<compile_context>
chip_gen: v7x
topology: tpu7x:2x2x1
jax: 0.10.0
libtpu: 0.0.40
codegen_flags: <defaults>
</compile_context>

<pallas_src>
import functools
import numpy as np
import jax
import jax.numpy as jnp
from jax.experimental import pallas as pl
from jax.experimental.pallas import tpu as pltpu

LN_EPS = 1e-5  # PyTorch layer_norm_eps default


def _layernorm(x, w, b):
    mu = jnp.mean(x, axis=-1, keepdims=True)
    var = jnp.mean((x - mu) ** 2, axis=-1, keepdims=True)
    return (x - mu) * jax.lax.rsqrt(var + LN_EPS) * w + b


# ----------------------------------------------------------------------------
# Fused Pallas kernel: every encoder layer + mean-pool + classifier for one
# batch block.  Weight refs hold ALL layers stacked on a leading axis.
# ----------------------------------------------------------------------------
def fused_transformer_kernel(x_ref,
                             wqkv_ref, bqkv_ref, wo_ref, bo_ref,
                             ln1w_ref, ln1b_ref,
                             w1_ref, b1_ref, w2_ref, b2_ref,
                             ln2w_ref, ln2b_ref,
                             wfc_ref, bfc_ref,
                             o_ref, *, nhead, num_layers):
    Bb, S, E = x_ref.shape
    H = nhead
    D = E // H
    scale = 1.0 / float(np.sqrt(D))
    R = Bb * S                           # flattened rows -> big MXU M dim

    x = x_ref[...].reshape(R, E)         # f32 activations, resident in vregs

    for l in range(num_layers):          # static unroll; weights stay in VMEM
        # ---- fused Q/K/V projection: one (R,E)x(E,3E) bf16 matmul ----------
        qkv = jnp.dot(x.astype(jnp.bfloat16), wqkv_ref[l],
                      preferred_element_type=jnp.float32) + bqkv_ref[l]
        q = qkv[:, 0:E].reshape(Bb, S, E)
        k = qkv[:, E:2 * E].reshape(Bb, S, E)
        v = qkv[:, 2 * E:3 * E].reshape(Bb, S, E)

        # ---- multi-head attention; accumulate output projection per head
        #      (acc += (p_h @ v_h) @ Wo[h]) -> no concat across the lane axis.
        wo_l = wo_ref[l]                 # (H, D, E) bf16
        attn = jnp.zeros((R, E), jnp.float32)
        for h in range(H):
            qh = q[:, :, h * D:(h + 1) * D]
            kh = k[:, :, h * D:(h + 1) * D]
            vh = v[:, :, h * D:(h + 1) * D]
            s = jnp.einsum("bqd,bkd->bqk", qh, kh,
                           preferred_element_type=jnp.float32) * scale
            s = s - jnp.max(s, axis=-1, keepdims=True)
            p = jnp.exp(s)
            p = p * pl.reciprocal(jnp.sum(p, axis=-1, keepdims=True),
                                  approx=True)
            oh = jnp.einsum("bqk,bkd->bqd", p, vh,
                            preferred_element_type=jnp.float32)     # (Bb,S,D)
            attn = attn + jnp.dot(oh.reshape(R, D).astype(jnp.bfloat16),
                                  wo_l[h],
                                  preferred_element_type=jnp.float32)
        attn = attn + bo_ref[l]

        # ---- residual + post-norm 1 (dropout = identity in eval) -----------
        h1 = _layernorm(x + attn, ln1w_ref[l], ln1b_ref[l])

        # ---- FFN: linear1 -> relu -> linear2 (bf16 MXU, f32 accumulation) --
        ff = jnp.dot(h1.astype(jnp.bfloat16), w1_ref[l],
                     preferred_element_type=jnp.float32) + b1_ref[l]
        ff = jnp.maximum(ff, 0.0)
        ff = jnp.dot(ff.astype(jnp.bfloat16), w2_ref[l],
                     preferred_element_type=jnp.float32) + b2_ref[l]

        # ---- residual + post-norm 2 ----------------------------------------
        x = _layernorm(h1 + ff, ln2w_ref[l], ln2b_ref[l])

    # ---- mean over sequence + final classifier (only HBM write: tiny logits)
    pooled = jnp.mean(x.reshape(Bb, S, E), axis=1)               # (Bb, E)
    o_ref[...] = (jnp.dot(pooled.astype(jnp.bfloat16), wfc_ref[...],
                          preferred_element_type=jnp.float32)
                  + bfc_ref[...])


def _cost_estimate(B, S, E, F, H, L, C):
    flops_layer = (2 * B * S * E * 3 * E      # fused QKV projection
                   + 2 * B * S * S * E        # attention scores (all heads)
                   + 2 * B * S * S * E        # probs @ V       (all heads)
                   + 2 * B * S * E * E        # output projection
                   + 2 * B * S * E * F        # FFN linear1
                   + 2 * B * S * F * E)       # FFN linear2
    flops = L * flops_layer + 2 * B * E * C
    transcendentals = L * (B * H * S * S      # exp
                           + B * H * S        # softmax reciprocal
                           + 2 * B * S)       # two layernorm rsqrt
    bytes_w = 2 * L * (E * 3 * E + E * E + 2 * E * F) + 2 * E * C   # bf16
    bytes_b = 4 * L * (3 * E + 6 * E + F) + 4 * C                   # f32
    bytes_act = 4 * B * S * E + 4 * B * C
    return pl.CostEstimate(flops=int(flops),
                           transcendentals=int(transcendentals),
                           bytes_accessed=int(bytes_w + bytes_b + bytes_act))


def transformer_classifier_forward(token_ids, params, nhead, block_b=8):
    # embedding lookup (plain JAX gather glue; padding row 0 is zeroed at init)
    x = params["embedding"][token_ids]               # (B, S, E) f32
    B, S, E = x.shape
    L = params["wqkv_t"].shape[0]
    F = params["w1_t"].shape[-1]
    C = params["fc_w_t"].shape[-1]

    bb = B if B <= block_b else block_b              # batch block per grid step
    assert B % bb == 0

    bf16 = lambda a: a.astype(jnp.bfloat16)
    # matmul weights in bf16 (2x MXU throughput, half the weight DMA bytes);
    # biases / layernorm params stay f32.
    weight_args = [bf16(params["wqkv_t"]), params["bqkv"],
                   bf16(params["wo_ht"]), params["bo"],
                   params["ln1_w"], params["ln1_b"],
                   bf16(params["w1_t"]), params["b1"],
                   bf16(params["w2_t"]), params["b2"],
                   params["ln2_w"], params["ln2_b"],
                   bf16(params["fc_w_t"]), params["fc_b"]]

    def full_spec(a):
        # whole parameter array resident in VMEM, same block every grid step.
        # NOTE(perf): at real model sizes add pipeline_mode=pl.Buffered(1) for
        # these constant blocks to avoid double-buffering them.
        return pl.BlockSpec(a.shape, lambda b, _nd=a.ndim: (0,) * _nd)

    in_specs = ([pl.BlockSpec((bb, S, E), lambda b: (b, 0, 0))]
                + [full_spec(a) for a in weight_args])

    return pl.pallas_call(
        functools.partial(fused_transformer_kernel, nhead=nhead, num_layers=L),
        out_shape=jax.ShapeDtypeStruct((B, C), jnp.float32),
        grid=(B // bb,),
        in_specs=in_specs,
        out_specs=pl.BlockSpec((bb, C), lambda b: (b, 0)),
        compiler_params=pltpu.CompilerParams(
            dimension_semantics=("parallel",),      # batch blocks independent
            vmem_limit_bytes=32 * 1024 * 1024),     # safe on v5e/v6e/v7x
        cost_estimate=_cost_estimate(B, S, E, F, nhead, L, C),
    )(x, *weight_args)


# ----------------------------------------------------------------------------
# Parameters (deterministic init).  Per-layer weights are stacked on a leading
# layer axis so one fused kernel sees all of them.
# ----------------------------------------------------------------------------
def init_params(key, vocab_size, embed_dim, nhead, num_layers, num_classes,
                dim_ff=2048):
    E, F, H = embed_dim, dim_ff, nhead
    D = E // H
    keys = jax.random.split(key, 4 + num_layers)

    emb = 0.05 * jax.random.normal(keys[0], (vocab_size + 1, E), jnp.float32)
    emb = emb.at[0].set(0.0)                         # padding_idx=0

    wqkv_t, bqkv, wo_ht, bo = [], [], [], []
    ln1w, ln1b, w1t, b1, w2t, b2, ln2w, ln2b = ([] for _ in range(8))
    for li in range(num_layers):
        lk = jax.random.split(keys[4 + li], 6)
        in_proj_w = 0.05 * jax.random.normal(lk[0], (3 * E, E), jnp.float32)
        in_proj_b = 0.05 * jax.random.normal(lk[1], (3 * E,), jnp.float32)
        out_proj_w = 0.05 * jax.random.normal(lk[2], (E, E), jnp.float32)
        out_proj_b = 0.05 * jax.random.normal(lk[3], (E,), jnp.float32)
        lin1_w = 0.05 * jax.random.normal(lk[4], (F, E), jnp.float32)
        lin2_w = 0.05 * jax.random.normal(lk[5], (E, F), jnp.float32)

        wqkv_t.append(in_proj_w.T)                   # (E, 3E): cols = [q|k|v]
        bqkv.append(in_proj_b.reshape(1, 3 * E))
        wo_ht.append(out_proj_w.T.reshape(H, D, E))  # per-head output proj
        bo.append(out_proj_b.reshape(1, E))
        ln1w.append(jnp.ones((1, E), jnp.float32))
        ln1b.append(jnp.zeros((1, E), jnp.float32))
        w1t.append(lin1_w.T)
        b1.append(jnp.zeros((1, F), jnp.float32))
        w2t.append(lin2_w.T)
        b2.append(jnp.zeros((1, E), jnp.float32))
        ln2w.append(jnp.ones((1, E), jnp.float32))
        ln2b.append(jnp.zeros((1, E), jnp.float32))

    fc_w = 0.05 * jax.random.normal(keys[1], (num_classes, E), jnp.float32)
    fc_b = 0.05 * jax.random.normal(keys[2], (num_classes,), jnp.float32)

    stk = lambda xs: jnp.stack(xs, axis=0)
    return dict(embedding=emb,
                wqkv_t=stk(wqkv_t), bqkv=stk(bqkv),
                wo_ht=stk(wo_ht), bo=stk(bo),
                ln1_w=stk(ln1w), ln1_b=stk(ln1b),
                w1_t=stk(w1t), b1=stk(b1),
                w2_t=stk(w2t), b2=stk(b2),
                ln2_w=stk(ln2w), ln2_b=stk(ln2b),
                fc_w_t=fc_w.T, fc_b=fc_b.reshape(1, num_classes))


# ----------------------------------------------------------------------------
# Pure-JAX f32 reference (PyTorch semantics) for correctness check.
# ----------------------------------------------------------------------------
def reference_forward(token_ids, params, nhead):
    x = params["embedding"][token_ids]
    B, S, E = x.shape
    H = nhead
    D = E // H
    scale = 1.0 / float(np.sqrt(D))
    L = params["wqkv_t"].shape[0]
    for l in range(L):
        qkv = x @ params["wqkv_t"][l] + params["bqkv"][l, 0]
        q, k, v = qkv[..., :E], qkv[..., E:2 * E], qkv[..., 2 * E:]
        qh = q.reshape(B, S, H, D).transpose(0, 2, 1, 3)
        kh = k.reshape(B, S, H, D).transpose(0, 2, 1, 3)
        vh = v.reshape(B, S, H, D).transpose(0, 2, 1, 3)
        s = jnp.einsum("bhqd,bhkd->bhqk", qh, kh) * scale
        p = jax.nn.softmax(s, axis=-1)
        a = jnp.einsum("bhqk,bhkd->bhqd", p, vh).transpose(0, 2, 1, 3)
        a = a.reshape(B, S, E) @ params["wo_ht"][l].reshape(E, E) + params["bo"][l, 0]
        h1 = _layernorm(x + a, params["ln1_w"][l, 0], params["ln1_b"][l, 0])
        ff = jnp.maximum(h1 @ params["w1_t"][l] + params["b1"][l, 0], 0.0)
        ff = ff @ params["w2_t"][l] + params["b2"][l, 0]
        x = _layernorm(h1 + ff, params["ln2_w"][l, 0], params["ln2_b"][l, 0])
    pooled = x.mean(axis=1)
    return pooled @ params["fc_w_t"] + params["fc_b"][0]


if __name__ == "__main__":
    vocab_size, embed_dim, nhead, num_layers, num_classes = 50, 32, 4, 2, 5
    batch, seq = 2, 8

    key = jax.random.PRNGKey(0)
    pkey, dkey = jax.random.split(key)
    params = init_params(pkey, vocab_size, embed_dim, nhead, num_layers,
                         num_classes)

    # token ids in [0, vocab_size]; 0 is the padding index
    token_ids = jax.random.randint(dkey, (batch, seq), 0, vocab_size + 1,
                                   dtype=jnp.int32)

    logits = transformer_classifier_forward(token_ids, params, nhead)
    logits = jax.block_until_ready(logits)

    ref = reference_forward(token_ids, params, nhead)
    # bf16 MXU inputs + approx softmax reciprocal vs f32 reference -> loose tol
    np.testing.assert_allclose(np.asarray(logits), np.asarray(ref),
                               rtol=2e-2, atol=2e-2)
    assert logits.shape == (batch, num_classes)
    print("KERNEL_OK")
</pallas_src>

<mosaic_0001>
module attributes {stable_mosaic.version = 11 : i64} {
  func.func @fused_transformer_kernel(%arg0: i32, %arg1: memref<2x8x32xf32, #tpu.memory_space<vmem>>, %arg2: memref<2x32x96xbf16, #tpu.memory_space<vmem>>, %arg3: memref<2x1x96xf32, #tpu.memory_space<vmem>>, %arg4: memref<2x4x8x32xbf16, #tpu.memory_space<vmem>>, %arg5: memref<2x1x32xf32, #tpu.memory_space<vmem>>, %arg6: memref<2x1x32xf32, #tpu.memory_space<vmem>>, %arg7: memref<2x1x32xf32, #tpu.memory_space<vmem>>, %arg8: memref<2x32x2048xbf16, #tpu.memory_space<vmem>>, %arg9: memref<2x1x2048xf32, #tpu.memory_space<vmem>>, %arg10: memref<2x2048x32xbf16, #tpu.memory_space<vmem>>, %arg11: memref<2x1x32xf32, #tpu.memory_space<vmem>>, %arg12: memref<2x1x32xf32, #tpu.memory_space<vmem>>, %arg13: memref<2x1x32xf32, #tpu.memory_space<vmem>>, %arg14: memref<32x5xbf16, #tpu.memory_space<vmem>>, %arg15: memref<1x5xf32, #tpu.memory_space<vmem>>, %arg16: memref<2x5xf32, #tpu.memory_space<vmem>>) attributes {dimension_semantics = [#tpu.dimension_semantics<parallel>], iteration_bounds = array<i64: 1>, scalar_prefetch = 0 : i64, scratch_operands = 0 : i64, tpu.core_type = #tpu.core_type<tc>, window_params = [{transform_indices = @transform_0, window_bounds = array<i64: 2, 8, 32>}, {pipeline_mode = #tpu.pipeline_mode<synchronous>, transform_indices = @transform_1, window_bounds = array<i64: 2, 32, 96>}, {pipeline_mode = #tpu.pipeline_mode<synchronous>, transform_indices = @transform_2, window_bounds = array<i64: 2, 1, 96>}, {pipeline_mode = #tpu.pipeline_mode<synchronous>, transform_indices = @transform_3, window_bounds = array<i64: 2, 4, 8, 32>}, {pipeline_mode = #tpu.pipeline_mode<synchronous>, transform_indices = @transform_4, window_bounds = array<i64: 2, 1, 32>}, {pipeline_mode = #tpu.pipeline_mode<synchronous>, transform_indices = @transform_5, window_bounds = array<i64: 2, 1, 32>}, {pipeline_mode = #tpu.pipeline_mode<synchronous>, transform_indices = @transform_6, window_bounds = array<i64: 2, 1, 32>}, {pipeline_mode = #tpu.pipeline_mode<synchronous>, transform_indices = @transform_7, window_bounds = array<i64: 2, 32, 2048>}, {pipeline_mode = #tpu.pipeline_mode<synchronous>, transform_indices = @transform_8, window_bounds = array<i64: 2, 1, 2048>}, {pipeline_mode = #tpu.pipeline_mode<synchronous>, transform_indices = @transform_9, window_bounds = array<i64: 2, 2048, 32>}, {pipeline_mode = #tpu.pipeline_mode<synchronous>, transform_indices = @transform_10, window_bounds = array<i64: 2, 1, 32>}, {pipeline_mode = #tpu.pipeline_mode<synchronous>, transform_indices = @transform_11, window_bounds = array<i64: 2, 1, 32>}, {pipeline_mode = #tpu.pipeline_mode<synchronous>, transform_indices = @transform_12, window_bounds = array<i64: 2, 1, 32>}, {pipeline_mode = #tpu.pipeline_mode<synchronous>, transform_indices = @transform_13, window_bounds = array<i64: 32, 5>}, {pipeline_mode = #tpu.pipeline_mode<synchronous>, transform_indices = @transform_14, window_bounds = array<i64: 1, 5>}, {transform_indices = @transform_15, window_bounds = array<i64: 2, 5>}]} {
    %c0 = arith.constant 0 : index
    %c0_0 = arith.constant 0 : index
    %c0_1 = arith.constant 0 : index
    %0 = vector.load %arg1[%c0, %c0_0, %c0_1] : memref<2x8x32xf32, #tpu.memory_space<vmem>>, vector<2x8x32xf32>
    %1 = vector.shape_cast %0 : vector<2x8x32xf32> to vector<16x32xf32>
    %2 = arith.truncf %1 : vector<16x32xf32> to vector<16x32xbf16>
    %c0_2 = arith.constant 0 : index
    %c0_3 = arith.constant 0 : index
    %c0_4 = arith.constant 0 : index
    %3 = vector.load %arg2[%c0_2, %c0_3, %c0_4] : memref<2x32x96xbf16, #tpu.memory_space<vmem>>, vector<1x32x96xbf16>
    %4 = vector.shape_cast %3 : vector<1x32x96xbf16> to vector<32x96xbf16>
    %cst = arith.constant dense<0.000000e+00> : vector<16x96xf32>
    %5 = tpu.matmul %2, %4, %cst {dimension_numbers = #tpu.dot_dimension_numbers<[1], [0], [0], [1], [0, 0, 1, 1], [], []>} : vector<16x32xbf16>, vector<32x96xbf16>, vector<16x96xf32> -> vector<16x96xf32>
    %c0_5 = arith.constant 0 : index
    %c0_6 = arith.constant 0 : index
    %c0_7 = arith.constant 0 : index
    %6 = vector.load %arg3[%c0_5, %c0_6, %c0_7] : memref<2x1x96xf32, #tpu.memory_space<vmem>>, vector<1x1x96xf32>
    %7 = vector.shape_cast %6 : vector<1x1x96xf32> to vector<1x96xf32>
    %8 = vector.broadcast %7 : vector<1x96xf32> to vector<16x96xf32>
    %9 = arith.addf %5, %8 : vector<16x96xf32>
    %10 = vector.extract_strided_slice %9 {offsets = [0, 0], sizes = [16, 32], strides = [1, 1]} : vector<16x96xf32> to vector<16x32xf32>
    %11 = vector.shape_cast %10 : vector<16x32xf32> to vector<2x8x32xf32>
    %12 = vector.extract_strided_slice %9 {offsets = [0, 32], sizes = [16, 32], strides = [1, 1]} : vector<16x96xf32> to vector<16x32xf32>
    %13 = vector.shape_cast %12 : vector<16x32xf32> to vector<2x8x32xf32>
    %14 = vector.extract_strided_slice %9 {offsets = [0, 64], sizes = [16, 32], strides = [1, 1]} : vector<16x96xf32> to vector<16x32xf32>
    %15 = vector.shape_cast %14 : vector<16x32xf32> to vector<2x8x32xf32>
    %c0_8 = arith.constant 0 : index
    %c0_9 = arith.constant 0 : index
    %c0_10 = arith.constant 0 : index
    %c0_11 = arith.constant 0 : index
    %16 = vector.load %arg4[%c0_8, %c0_9, %c0_10, %c0_11] : memref<2x4x8x32xbf16, #tpu.memory_space<vmem>>, vector<1x4x8x32xbf16>
    %17 = vector.shape_cast %16 : vector<1x4x8x32xbf16> to vector<4x8x32xbf16>
    %cst_12 = arith.constant 0.000000e+00 : f32
    %18 = vector.broadcast %cst_12 : f32 to vector<16x32xf32>
    %19 = vector.extract_strided_slice %11 {offsets = [0, 0, 0], sizes = [2, 8, 8], strides = [1, 1, 1]} : vector<2x8x32xf32> to vector<2x8x8xf32>
    %20 = vector.extract_strided_slice %13 {offsets = [0, 0, 0], sizes = [2, 8, 8], strides = [1, 1, 1]} : vector<2x8x32xf32> to vector<2x8x8xf32>
    %21 = vector.extract_strided_slice %15 {offsets = [0, 0, 0], sizes = [2, 8, 8], strides = [1, 1, 1]} : vector<2x8x32xf32> to vector<2x8x8xf32>
    "tpu.trace_start"() <{level = 10 : i32, message = "bqd,bkd->bqk"}> : () -> ()
    %cst_13 = arith.constant dense<0.000000e+00> : vector<2x8x8xf32>
    %22 = tpu.matmul %19, %20, %cst_13 {dimension_numbers = #tpu.dot_dimension_numbers<[2], [2], [1], [1], [0, 0, 0, 1, 1, 1], [0], [0]>} : vector<2x8x8xf32>, vector<2x8x8xf32>, vector<2x8x8xf32> -> vector<2x8x8xf32>
    "tpu.trace_stop"() : () -> ()
    %cst_14 = arith.constant 0.353553385 : f32
    %23 = vector.broadcast %cst_14 : f32 to vector<2x8x8xf32>
    %24 = arith.mulf %22, %23 : vector<2x8x8xf32>
    %cst_15 = arith.constant dense<0xFF800000> : vector<2x8xf32>
    %25 = vector.multi_reduction <maximumf>, %24, %cst_15 [2] : vector<2x8x8xf32> to vector<2x8xf32>
    %26 = vector.shape_cast %25 : vector<2x8xf32> to vector<2x8x1xf32>
    %27 = vector.broadcast %26 : vector<2x8x1xf32> to vector<2x8x8xf32>
    %28 = arith.subf %24, %27 : vector<2x8x8xf32>
    %29 = math.exp %28 : vector<2x8x8xf32>
    %cst_16 = arith.constant dense<0.000000e+00> : vector<2x8xf32>
    %30 = vector.multi_reduction <add>, %29, %cst_16 [2] : vector<2x8x8xf32> to vector<2x8xf32>
    %31 = vector.shape_cast %30 : vector<2x8xf32> to vector<2x8x1xf32>
    %32 = tpu.reciprocal %31 {approx = true} : vector<2x8x1xf32> -> vector<2x8x1xf32>
    %33 = vector.broadcast %32 : vector<2x8x1xf32> to vector<2x8x8xf32>
    %34 = arith.mulf %29, %33 : vector<2x8x8xf32>
    "tpu.trace_start"() <{level = 10 : i32, message = "bqk,bkd->bqd"}> : () -> ()
    %cst_17 = arith.constant dense<0.000000e+00> : vector<2x8x8xf32>
    %35 = tpu.matmul %34, %21, %cst_17 {dimension_numbers = #tpu.dot_dimension_numbers<[2], [1], [1], [2], [0, 0, 0, 1, 1, 2], [0], [0]>} : vector<2x8x8xf32>, vector<2x8x8xf32>, vector<2x8x8xf32> -> vector<2x8x8xf32>
    "tpu.trace_stop"() : () -> ()
    %36 = vector.shape_cast %35 : vector<2x8x8xf32> to vector<16x8xf32>
    %37 = arith.truncf %36 : vector<16x8xf32> to vector<16x8xbf16>
    %38 = vector.extract_strided_slice %17 {offsets = [0, 0, 0], sizes = [1, 8, 32], strides = [1, 1, 1]} : vector<4x8x32xbf16> to vector<1x8x32xbf16>
    %39 = vector.shape_cast %38 : vector<1x8x32xbf16> to vector<8x32xbf16>
    %cst_18 = arith.constant dense<0.000000e+00> : vector<16x32xf32>
    %40 = tpu.matmul %37, %39, %cst_18 {dimension_numbers = #tpu.dot_dimension_numbers<[1], [0], [0], [1], [0, 0, 1, 1], [], []>} : vector<16x8xbf16>, vector<8x32xbf16>, vector<16x32xf32> -> vector<16x32xf32>
    %41 = arith.addf %18, %40 : vector<16x32xf32>
    %42 = vector.extract_strided_slice %11 {offsets = [0, 0, 8], sizes = [2, 8, 8], strides = [1, 1, 1]} : vector<2x8x32xf32> to vector<2x8x8xf32>
    %43 = vector.extract_strided_slice %13 {offsets = [0, 0, 8], sizes = [2, 8, 8], strides = [1, 1, 1]} : vector<2x8x32xf32> to vector<2x8x8xf32>
    %44 = vector.extract_strided_slice %15 {offsets = [0, 0, 8], sizes = [2, 8, 8], strides = [1, 1, 1]} : vector<2x8x32xf32> to vector<2x8x8xf32>
    "tpu.trace_start"() <{level = 10 : i32, message = "bqd,bkd->bqk"}> : () -> ()
    %cst_19 = arith.constant dense<0.000000e+00> : vector<2x8x8xf32>
    %45 = tpu.matmul %42, %43, %cst_19 {dimension_numbers = #tpu.dot_dimension_numbers<[2], [2], [1], [1], [0, 0, 0, 1, 1, 1], [0], [0]>} : vector<2x8x8xf32>, vector<2x8x8xf32>, vector<2x8x8xf32> -> vector<2x8x8xf32>
    "tpu.trace_stop"() : () -> ()
    %cst_20 = arith.constant 0.353553385 : f32
    %46 = vector.broadcast %cst_20 : f32 to vector<2x8x8xf32>
    %47 = arith.mulf %45, %46 : vector<2x8x8xf32>
    %cst_21 = arith.constant dense<0xFF800000> : vector<2x8xf32>
    %48 = vector.multi_reduction <maximumf>, %47, %cst_21 [2] : vector<2x8x8xf32> to vector<2x8xf32>
    %49 = vector.shape_cast %48 : vector<2x8xf32> to vector<2x8x1xf32>
    %50 = vector.broadcast %49 : vector<2x8x1xf32> to vector<2x8x8xf32>
    %51 = arith.subf %47, %50 : vector<2x8x8xf32>
    %52 = math.exp %51 : vector<2x8x8xf32>
    %cst_22 = arith.constant dense<0.000000e+00> : vector<2x8xf32>
    %53 = vector.multi_reduction <add>, %52, %cst_22 [2] : vector<2x8x8xf32> to vector<2x8xf32>
    %54 = vector.shape_cast %53 : vector<2x8xf32> to vector<2x8x1xf32>
    %55 = tpu.reciprocal %54 {approx = true} : vector<2x8x1xf32> -> vector<2x8x1xf32>
    %56 = vector.broadcast %55 : vector<2x8x1xf32> to vector<2x8x8xf32>
    %57 = arith.mulf %52, %56 : vector<2x8x8xf32>
    "tpu.trace_start"() <{level = 10 : i32, message = "bqk,bkd->bqd"}> : () -> ()
    %cst_23 = arith.constant dense<0.000000e+00> : vector<2x8x8xf32>
    %58 = tpu.matmul %57, %44, %cst_23 {dimension_numbers = #tpu.dot_dimension_numbers<[2], [1], [1], [2], [0, 0, 0, 1, 1, 2], [0], [0]>} : vector<2x8x8xf32>, vector<2x8x8xf32>, vector<2x8x8xf32> -> vector<2x8x8xf32>
    "tpu.trace_stop"() : () -> ()
    %59 = vector.shape_cast %58 : vector<2x8x8xf32> to vector<16x8xf32>
    %60 = arith.truncf %59 : vector<16x8xf32> to vector<16x8xbf16>
    %61 = vector.extract_strided_slice %17 {offsets = [1, 0, 0], sizes = [1, 8, 32], strides = [1, 1, 1]} : vector<4x8x32xbf16> to vector<1x8x32xbf16>
    %62 = vector.shape_cast %61 : vector<1x8x32xbf16> to vector<8x32xbf16>
    %cst_24 = arith.constant dense<0.000000e+00> : vector<16x32xf32>
    %63 = tpu.matmul %60, %62, %cst_24 {dimension_numbers = #tpu.dot_dimension_numbers<[1], [0], [0], [1], [0, 0, 1, 1], [], []>} : vector<16x8xbf16>, vector<8x32xbf16>, vector<16x32xf32> -> vector<16x32xf32>
    %64 = arith.addf %41, %63 : vector<16x32xf32>
    %65 = vector.extract_strided_slice %11 {offsets = [0, 0, 16], sizes = [2, 8, 8], strides = [1, 1, 1]} : vector<2x8x32xf32> to vector<2x8x8xf32>
    %66 = vector.extract_strided_slice %13 {offsets = [0, 0, 16], sizes = [2, 8, 8], strides = [1, 1, 1]} : vector<2x8x32xf32> to vector<2x8x8xf32>
    %67 = vector.extract_strided_slice %15 {offsets = [0, 0, 16], sizes = [2, 8, 8], strides = [1, 1, 1]} : vector<2x8x32xf32> to vector<2x8x8xf32>
    "tpu.trace_start"() <{level = 10 : i32, message = "bqd,bkd->bqk"}> : () -> ()
    %cst_25 = arith.constant dense<0.000000e+00> : vector<2x8x8xf32>
    %68 = tpu.matmul %65, %66, %cst_25 {dimension_numbers = #tpu.dot_dimension_numbers<[2], [2], [1], [1], [0, 0, 0, 1, 1, 1], [0], [0]>} : vector<2x8x8xf32>, vector<2x8x8xf32>, vector<2x8x8xf32> -> vector<2x8x8xf32>
    "tpu.trace_stop"() : () -> ()
    %cst_26 = arith.constant 0.353553385 : f32
    %69 = vector.broadcast %cst_26 : f32 to vector<2x8x8xf32>
    %70 = arith.mulf %68, %69 : vector<2x8x8xf32>
    %cst_27 = arith.constant dense<0xFF800000> : vector<2x8xf32>
    %71 = vector.multi_reduction <maximumf>, %70, %cst_27 [2] : vector<2x8x8xf32> to vector<2x8xf32>
    %72 = vector.shape_cast %71 : vector<2x8xf32> to vector<2x8x1xf32>
    %73 = vector.broadcast %72 : vector<2x8x1xf32> to vector<2x8x8xf32>
    %74 = arith.subf %70, %73 : vector<2x8x8xf32>
    %75 = math.exp %74 : vector<2x8x8xf32>
    %cst_28 = arith.constant dense<0.000000e+00> : vector<2x8xf32>
    %76 = vector.multi_reduction <add>, %75, %cst_28 [2] : vector<2x8x8xf32> to vector<2x8xf32>
    %77 = vector.shape_cast %76 : vector<2x8xf32> to vector<2x8x1xf32>
    %78 = tpu.reciprocal %77 {approx = true} : vector<2x8x1xf32> -> vector<2x8x1xf32>
    %79 = vector.broadcast %78 : vector<2x8x1xf32> to vector<2x8x8xf32>
    %80 = arith.mulf %75, %79 : vector<2x8x8xf32>
    "tpu.trace_start"() <{level = 10 : i32, message = "bqk,bkd->bqd"}> : () -> ()
    %cst_29 = arith.constant dense<0.000000e+00> : vector<2x8x8xf32>
    %81 = tpu.matmul %80, %67, %cst_29 {dimension_numbers = #tpu.dot_dimension_numbers<[2], [1], [1], [2], [0, 0, 0, 1, 1, 2], [0], [0]>} : vector<2x8x8xf32>, vector<2x8x8xf32>, vector<2x8x8xf32> -> vector<2x8x8xf32>
    "tpu.trace_stop"() : () -> ()
    %82 = vector.shape_cast %81 : vector<2x8x8xf32> to vector<16x8xf32>
    %83 = arith.truncf %82 : vector<16x8xf32> to vector<16x8xbf16>
    %84 = vector.extract_strided_slice %17 {offsets = [2, 0, 0], sizes = [1, 8, 32], strides = [1, 1, 1]} : vector<4x8x32xbf16> to vector<1x8x32xbf16>
    %85 = vector.shape_cast %84 : vector<1x8x32xbf16> to vector<8x32xbf16>
    %cst_30 = arith.constant dense<0.000000e+00> : vector<16x32xf32>
    %86 = tpu.matmul %83, %85, %cst_30 {dimension_numbers = #tpu.dot_dimension_numbers<[1], [0], [0], [1], [0, 0, 1, 1], [], []>} : vector<16x8xbf16>, vector<8x32xbf16>, vector<16x32xf32> -> vector<16x32xf32>
    %87 = arith.addf %64, %86 : vector<16x32xf32>
    %88 = vector.extract_strided_slice %11 {offsets = [0, 0, 24], sizes = [2, 8, 8], strides = [1, 1, 1]} : vector<2x8x32xf32> to vector<2x8x8xf32>
    %89 = vector.extract_strided_slice %13 {offsets = [0, 0, 24], sizes = [2, 8, 8], strides = [1, 1, 1]} : vector<2x8x32xf32> to vector<2x8x8xf32>
    %90 = vector.extract_strided_slice %15 {offsets = [0, 0, 24], sizes = [2, 8, 8], strides = [1, 1, 1]} : vector<2x8x32xf32> to vector<2x8x8xf32>
    "tpu.trace_start"() <{level = 10 : i32, message = "bqd,bkd->bqk"}> : () -> ()
    %cst_31 = arith.constant dense<0.000000e+00> : vector<2x8x8xf32>
    %91 = tpu.matmul %88, %89, %cst_31 {dimension_numbers = #tpu.dot_dimension_numbers<[2], [2], [1], [1], [0, 0, 0, 1, 1, 1], [0], [0]>} : vector<2x8x8xf32>, vector<2x8x8xf32>, vector<2x8x8xf32> -> vector<2x8x8xf32>
    "tpu.trace_stop"() : () -> ()
    %cst_32 = arith.constant 0.353553385 : f32
    %92 = vector.broadcast %cst_32 : f32 to vector<2x8x8xf32>
    %93 = arith.mulf %91, %92 : vector<2x8x8xf32>
    %cst_33 = arith.constant dense<0xFF800000> : vector<2x8xf32>
    %94 = vector.multi_reduction <maximumf>, %93, %cst_33 [2] : vector<2x8x8xf32> to vector<2x8xf32>
    %95 = vector.shape_cast %94 : vector<2x8xf32> to vector<2x8x1xf32>
    %96 = vector.broadcast %95 : vector<2x8x1xf32> to vector<2x8x8xf32>
    %97 = arith.subf %93, %96 : vector<2x8x8xf32>
    %98 = math.exp %97 : vector<2x8x8xf32>
    %cst_34 = arith.constant dense<0.000000e+00> : vector<2x8xf32>
    %99 = vector.multi_reduction <add>, %98, %cst_34 [2] : vector<2x8x8xf32> to vector<2x8xf32>
    %100 = vector.shape_cast %99 : vector<2x8xf32> to vector<2x8x1xf32>
    %101 = tpu.reciprocal %100 {approx = true} : vector<2x8x1xf32> -> vector<2x8x1xf32>
    %102 = vector.broadcast %101 : vector<2x8x1xf32> to vector<2x8x8xf32>
    %103 = arith.mulf %98, %102 : vector<2x8x8xf32>
    "tpu.trace_start"() <{level = 10 : i32, message = "bqk,bkd->bqd"}> : () -> ()
    %cst_35 = arith.constant dense<0.000000e+00> : vector<2x8x8xf32>
    %104 = tpu.matmul %103, %90, %cst_35 {dimension_numbers = #tpu.dot_dimension_numbers<[2], [1], [1], [2], [0, 0, 0, 1, 1, 2], [0], [0]>} : vector<2x8x8xf32>, vector<2x8x8xf32>, vector<2x8x8xf32> -> vector<2x8x8xf32>
    "tpu.trace_stop"() : () -> ()
    %105 = vector.shape_cast %104 : vector<2x8x8xf32> to vector<16x8xf32>
    %106 = arith.truncf %105 : vector<16x8xf32> to vector<16x8xbf16>
    %107 = vector.extract_strided_slice %17 {offsets = [3, 0, 0], sizes = [1, 8, 32], strides = [1, 1, 1]} : vector<4x8x32xbf16> to vector<1x8x32xbf16>
    %108 = vector.shape_cast %107 : vector<1x8x32xbf16> to vector<8x32xbf16>
    %cst_36 = arith.constant dense<0.000000e+00> : vector<16x32xf32>
    %109 = tpu.matmul %106, %108, %cst_36 {dimension_numbers = #tpu.dot_dimension_numbers<[1], [0], [0], [1], [0, 0, 1, 1], [], []>} : vector<16x8xbf16>, vector<8x32xbf16>, vector<16x32xf32> -> vector<16x32xf32>
    %110 = arith.addf %87, %109 : vector<16x32xf32>
    %c0_37 = arith.constant 0 : index
    %c0_38 = arith.constant 0 : index
    %c0_39 = arith.constant 0 : index
    %111 = vector.load %arg5[%c0_37, %c0_38, %c0_39] : memref<2x1x32xf32, #tpu.memory_space<vmem>>, vector<1x1x32xf32>
    %112 = vector.shape_cast %111 : vector<1x1x32xf32> to vector<1x32xf32>
    %113 = vector.broadcast %112 : vector<1x32xf32> to vector<16x32xf32>
    %114 = arith.addf %110, %113 : vector<16x32xf32>
    %115 = arith.addf %1, %114 : vector<16x32xf32>
    %c0_40 = arith.constant 0 : index
    %c0_41 = arith.constant 0 : index
    %c0_42 = arith.constant 0 : index
    %116 = vector.load %arg6[%c0_40, %c0_41, %c0_42] : memref<2x1x32xf32, #tpu.memory_space<vmem>>, vector<1x1x32xf32>
    %117 = vector.shape_cast %116 : vector<1x1x32xf32> to vector<1x32xf32>
    %c0_43 = arith.constant 0 : index
    %c0_44 = arith.constant 0 : index
    %c0_45 = arith.constant 0 : index
    %118 = vector.load %arg7[%c0_43, %c0_44, %c0_45] : memref<2x1x32xf32, #tpu.memory_space<vmem>>, vector<1x1x32xf32>
    %119 = vector.shape_cast %118 : vector<1x1x32xf32> to vector<1x32xf32>
    %cst_46 = arith.constant dense<0.000000e+00> : vector<16xf32>
    %120 = vector.multi_reduction <add>, %115, %cst_46 [1] : vector<16x32xf32> to vector<16xf32>
    %121 = vector.shape_cast %120 : vector<16xf32> to vector<16x1xf32>
    %cst_47 = arith.constant 3.200000e+01 : f32
    %122 = vector.broadcast %cst_47 : f32 to vector<16x1xf32>
    %123 = arith.divf %121, %122 : vector<16x1xf32>
    %124 = vector.broadcast %123 : vector<16x1xf32> to vector<16x32xf32>
    %125 = arith.subf %115, %124 : vector<16x32xf32>
    %126 = arith.mulf %125, %125 : vector<16x32xf32>
    %cst_48 = arith.constant dense<0.000000e+00> : vector<16xf32>
    %127 = vector.multi_reduction <add>, %126, %cst_48 [1] : vector<16x32xf32> to vector<16xf32>
    %128 = vector.shape_cast %127 : vector<16xf32> to vector<16x1xf32>
    %cst_49 = arith.constant 3.200000e+01 : f32
    %129 = vector.broadcast %cst_49 : f32 to vector<16x1xf32>
    %130 = arith.divf %128, %129 : vector<16x1xf32>
    %131 = vector.broadcast %123 : vector<16x1xf32> to vector<16x32xf32>
    %132 = arith.subf %115, %131 : vector<16x32xf32>
    %cst_50 = arith.constant 9.99999974E-6 : f32
    %133 = vector.broadcast %cst_50 : f32 to vector<16x1xf32>
    %134 = arith.addf %130, %133 : vector<16x1xf32>
    %135 = math.rsqrt %134 : vector<16x1xf32>
    %136 = vector.broadcast %135 : vector<16x1xf32> to vector<16x32xf32>
    %137 = arith.mulf %132, %136 : vector<16x32xf32>
    %138 = vector.broadcast %117 : vector<1x32xf32> to vector<16x32xf32>
    %139 = arith.mulf %137, %138 : vector<16x32xf32>
    %140 = vector.broadcast %119 : vector<1x32xf32> to vector<16x32xf32>
    %141 = arith.addf %139, %140 : vector<16x32xf32>
    %142 = arith.truncf %141 : vector<16x32xf32> to vector<16x32xbf16>
    %c0_51 = arith.constant 0 : index
    %c0_52 = arith.constant 0 : index
    %c0_53 = arith.constant 0 : index
    %143 = vector.load %arg8[%c0_51, %c0_52, %c0_53] : memref<2x32x2048xbf16, #tpu.memory_space<vmem>>, vector<1x32x2048xbf16>
    %144 = vector.shape_cast %143 : vector<1x32x2048xbf16> to vector<32x2048xbf16>
    %cst_54 = arith.constant dense<0.000000e+00> : vector<16x2048xf32>
    %145 = tpu.matmul %142, %144, %cst_54 {dimension_numbers = #tpu.dot_dimension_numbers<[1], [0], [0], [1], [0, 0, 1, 1], [], []>} : vector<16x32xbf16>, vector<32x2048xbf16>, vector<16x2048xf32> -> vector<16x2048xf32>
    %c0_55 = arith.constant 0 : index
    %c0_56 = arith.constant 0 : index
    %c0_57 = arith.constant 0 : index
    %146 = vector.load %arg9[%c0_55, %c0_56, %c0_57] : memref<2x1x2048xf32, #tpu.memory_space<vmem>>, vector<1x1x2048xf32>
    %147 = vector.shape_cast %146 : vector<1x1x2048xf32> to vector<1x2048xf32>
    %148 = vector.broadcast %147 : vector<1x2048xf32> to vector<16x2048xf32>
    %149 = arith.addf %145, %148 : vector<16x2048xf32>
    %cst_58 = arith.constant 0.000000e+00 : f32
    %150 = vector.broadcast %cst_58 : f32 to vector<16x2048xf32>
    %151 = arith.maximumf %149, %150 : vector<16x2048xf32>
    %152 = arith.truncf %151 : vector<16x2048xf32> to vector<16x2048xbf16>
    %c0_59 = arith.constant 0 : index
    %c0_60 = arith.constant 0 : index
    %c0_61 = arith.constant 0 : index
    %153 = vector.load %arg10[%c0_59, %c0_60, %c0_61] : memref<2x2048x32xbf16, #tpu.memory_space<vmem>>, vector<1x2048x32xbf16>
    %154 = vector.shape_cast %153 : vector<1x2048x32xbf16> to vector<2048x32xbf16>
    %cst_62 = arith.constant dense<0.000000e+00> : vector<16x32xf32>
    %155 = tpu.matmul %152, %154, %cst_62 {dimension_numbers = #tpu.dot_dimension_numbers<[1], [0], [0], [1], [0, 0, 1, 1], [], []>} : vector<16x2048xbf16>, vector<2048x32xbf16>, vector<16x32xf32> -> vector<16x32xf32>
    %c0_63 = arith.constant 0 : index
    %c0_64 = arith.constant 0 : index
    %c0_65 = arith.constant 0 : index
    %156 = vector.load %arg11[%c0_63, %c0_64, %c0_65] : memref<2x1x32xf32, #tpu.memory_space<vmem>>, vector<1x1x32xf32>
    %157 = vector.shape_cast %156 : vector<1x1x32xf32> to vector<1x32xf32>
    %158 = vector.broadcast %157 : vector<1x32xf32> to vector<16x32xf32>
    %159 = arith.addf %155, %158 : vector<16x32xf32>
    %160 = arith.addf %141, %159 : vector<16x32xf32>
    %c0_66 = arith.constant 0 : index
    %c0_67 = arith.constant 0 : index
    %c0_68 = arith.constant 0 : index
    %161 = vector.load %arg12[%c0_66, %c0_67, %c0_68] : memref<2x1x32xf32, #tpu.memory_space<vmem>>, vector<1x1x32xf32>
    %162 = vector.shape_cast %161 : vector<1x1x32xf32> to vector<1x32xf32>
    %c0_69 = arith.constant 0 : index
    %c0_70 = arith.constant 0 : index
    %c0_71 = arith.constant 0 : index
    %163 = vector.load %arg13[%c0_69, %c0_70, %c0_71] : memref<2x1x32xf32, #tpu.memory_space<vmem>>, vector<1x1x32xf32>
    %164 = vector.shape_cast %163 : vector<1x1x32xf32> to vector<1x32xf32>
    %cst_72 = arith.constant dense<0.000000e+00> : vector<16xf32>
    %165 = vector.multi_reduction <add>, %160, %cst_72 [1] : vector<16x32xf32> to vector<16xf32>
    %166 = vector.shape_cast %165 : vector<16xf32> to vector<16x1xf32>
    %cst_73 = arith.constant 3.200000e+01 : f32
    %167 = vector.broadcast %cst_73 : f32 to vector<16x1xf32>
    %168 = arith.divf %166, %167 : vector<16x1xf32>
    %169 = vector.broadcast %168 : vector<16x1xf32> to vector<16x32xf32>
    %170 = arith.subf %160, %169 : vector<16x32xf32>
    %171 = arith.mulf %170, %170 : vector<16x32xf32>
    %cst_74 = arith.constant dense<0.000000e+00> : vector<16xf32>
    %172 = vector.multi_reduction <add>, %171, %cst_74 [1] : vector<16x32xf32> to vector<16xf32>
    %173 = vector.shape_cast %172 : vector<16xf32> to vector<16x1xf32>
    %cst_75 = arith.constant 3.200000e+01 : f32
    %174 = vector.broadcast %cst_75 : f32 to vector<16x1xf32>
    %175 = arith.divf %173, %174 : vector<16x1xf32>
    %176 = vector.broadcast %168 : vector<16x1xf32> to vector<16x32xf32>
    %177 = arith.subf %160, %176 : vector<16x32xf32>
    %cst_76 = arith.constant 9.99999974E-6 : f32
    %178 = vector.broadcast %cst_76 : f32 to vector<16x1xf32>
    %179 = arith.addf %175, %178 : vector<16x1xf32>
    %180 = math.rsqrt %179 : vector<16x1xf32>
    %181 = vector.broadcast %180 : vector<16x1xf32> to vector<16x32xf32>
    %182 = arith.mulf %177, %181 : vector<16x32xf32>
    %183 = vector.broadcast %162 : vector<1x32xf32> to vector<16x32xf32>
    %184 = arith.mulf %182, %183 : vector<16x32xf32>
    %185 = vector.broadcast %164 : vector<1x32xf32> to vector<16x32xf32>
    %186 = arith.addf %184, %185 : vector<16x32xf32>
    %187 = arith.truncf %186 : vector<16x32xf32> to vector<16x32xbf16>
    %c1 = arith.constant 1 : index
    %c0_77 = arith.constant 0 : index
    %c0_78 = arith.constant 0 : index
    %188 = vector.load %arg2[%c1, %c0_77, %c0_78] : memref<2x32x96xbf16, #tpu.memory_space<vmem>>, vector<1x32x96xbf16>
    %189 = vector.shape_cast %188 : vector<1x32x96xbf16> to vector<32x96xbf16>
    %cst_79 = arith.constant dense<0.000000e+00> : vector<16x96xf32>
    %190 = tpu.matmul %187, %189, %cst_79 {dimension_numbers = #tpu.dot_dimension_numbers<[1], [0], [0], [1], [0, 0, 1, 1], [], []>} : vector<16x32xbf16>, vector<32x96xbf16>, vector<16x96xf32> -> vector<16x96xf32>
    %c1_80 = arith.constant 1 : index
    %c0_81 = arith.constant 0 : index
    %c0_82 = arith.constant 0 : index
    %191 = vector.load %arg3[%c1_80, %c0_81, %c0_82] : memref<2x1x96xf32, #tpu.memory_space<vmem>>, vector<1x1x96xf32>
    %192 = vector.shape_cast %191 : vector<1x1x96xf32> to vector<1x96xf32>
    %193 = vector.broadcast %192 : vector<1x96xf32> to vector<16x96xf32>
    %194 = arith.addf %190, %193 : vector<16x96xf32>
    %195 = vector.extract_strided_slice %194 {offsets = [0, 0], sizes = [16, 32], strides = [1, 1]} : vector<16x96xf32> to vector<16x32xf32>
    %196 = vector.shape_cast %195 : vector<16x32xf32> to vector<2x8x32xf32>
    %197 = vector.extract_strided_slice %194 {offsets = [0, 32], sizes = [16, 32], strides = [1, 1]} : vector<16x96xf32> to vector<16x32xf32>
    %198 = vector.shape_cast %197 : vector<16x32xf32> to vector<2x8x32xf32>
    %199 = vector.extract_strided_slice %194 {offsets = [0, 64], sizes = [16, 32], strides = [1, 1]} : vector<16x96xf32> to vector<16x32xf32>
    %200 = vector.shape_cast %199 : vector<16x32xf32> to vector<2x8x32xf32>
    %c1_83 = arith.constant 1 : index
    %c0_84 = arith.constant 0 : index
    %c0_85 = arith.constant 0 : index
    %c0_86 = arith.constant 0 : index
    %201 = vector.load %arg4[%c1_83, %c0_84, %c0_85, %c0_86] : memref<2x4x8x32xbf16, #tpu.memory_space<vmem>>, vector<1x4x8x32xbf16>
    %202 = vector.shape_cast %201 : vector<1x4x8x32xbf16> to vector<4x8x32xbf16>
    %cst_87 = arith.constant 0.000000e+00 : f32
    %203 = vector.broadcast %cst_87 : f32 to vector<16x32xf32>
    %204 = vector.extract_strided_slice %196 {offsets = [0, 0, 0], sizes = [2, 8, 8], strides = [1, 1, 1]} : vector<2x8x32xf32> to vector<2x8x8xf32>
    %205 = vector.extract_strided_slice %198 {offsets = [0, 0, 0], sizes = [2, 8, 8], strides = [1, 1, 1]} : vector<2x8x32xf32> to vector<2x8x8xf32>
    %206 = vector.extract_strided_slice %200 {offsets = [0, 0, 0], sizes = [2, 8, 8], strides = [1, 1, 1]} : vector<2x8x32xf32> to vector<2x8x8xf32>
    "tpu.trace_start"() <{level = 10 : i32, message = "bqd,bkd->bqk"}> : () -> ()
    %cst_88 = arith.constant dense<0.000000e+00> : vector<2x8x8xf32>
    %207 = tpu.matmul %204, %205, %cst_88 {dimension_numbers = #tpu.dot_dimension_numbers<[2], [2], [1], [1], [0, 0, 0, 1, 1, 1], [0], [0]>} : vector<2x8x8xf32>, vector<2x8x8xf32>, vector<2x8x8xf32> -> vector<2x8x8xf32>
    "tpu.trace_stop"() : () -> ()
    %cst_89 = arith.constant 0.353553385 : f32
    %208 = vector.broadcast %cst_89 : f32 to vector<2x8x8xf32>
    %209 = arith.mulf %207, %208 : vector<2x8x8xf32>
    %cst_90 = arith.constant dense<0xFF800000> : vector<2x8xf32>
    %210 = vector.multi_reduction <maximumf>, %209, %cst_90 [2] : vector<2x8x8xf32> to vector<2x8xf32>
    %211 = vector.shape_cast %210 : vector<2x8xf32> to vector<2x8x1xf32>
    %212 = vector.broadcast %211 : vector<2x8x1xf32> to vector<2x8x8xf32>
    %213 = arith.subf %209, %212 : vector<2x8x8xf32>
    %214 = math.exp %213 : vector<2x8x8xf32>
    %cst_91 = arith.constant dense<0.000000e+00> : vector<2x8xf32>
    %215 = vector.multi_reduction <add>, %214, %cst_91 [2] : vector<2x8x8xf32> to vector<2x8xf32>
    %216 = vector.shape_cast %215 : vector<2x8xf32> to vector<2x8x1xf32>
    %217 = tpu.reciprocal %216 {approx = true} : vector<2x8x1xf32> -> vector<2x8x1xf32>
    %218 = vector.broadcast %217 : vector<2x8x1xf32> to vector<2x8x8xf32>
    %219 = arith.mulf %214, %218 : vector<2x8x8xf32>
    "tpu.trace_start"() <{level = 10 : i32, message = "bqk,bkd->bqd"}> : () -> ()
    %cst_92 = arith.constant dense<0.000000e+00> : vector<2x8x8xf32>
    %220 = tpu.matmul %219, %206, %cst_92 {dimension_numbers = #tpu.dot_dimension_numbers<[2], [1], [1], [2], [0, 0, 0, 1, 1, 2], [0], [0]>} : vector<2x8x8xf32>, vector<2x8x8xf32>, vector<2x8x8xf32> -> vector<2x8x8xf32>
    "tpu.trace_stop"() : () -> ()
    %221 = vector.shape_cast %220 : vector<2x8x8xf32> to vector<16x8xf32>
    %222 = arith.truncf %221 : vector<16x8xf32> to vector<16x8xbf16>
    %223 = vector.extract_strided_slice %202 {offsets = [0, 0, 0], sizes = [1, 8, 32], strides = [1, 1, 1]} : vector<4x8x32xbf16> to vector<1x8x32xbf16>
    %224 = vector.shape_cast %223 : vector<1x8x32xbf16> to vector<8x32xbf16>
    %cst_93 = arith.constant dense<0.000000e+00> : vector<16x32xf32>
    %225 = tpu.matmul %222, %224, %cst_93 {dimension_numbers = #tpu.dot_dimension_numbers<[1], [0], [0], [1], [0, 0, 1, 1], [], []>} : vector<16x8xbf16>, vector<8x32xbf16>, vector<16x32xf32> -> vector<16x32xf32>
    %226 = arith.addf %203, %225 : vector<16x32xf32>
    %227 = vector.extract_strided_slice %196 {offsets = [0, 0, 8], sizes = [2, 8, 8], strides = [1, 1, 1]} : vector<2x8x32xf32> to vector<2x8x8xf32>
    %228 = vector.extract_strided_slice %198 {offsets = [0, 0, 8], sizes = [2, 8, 8], strides = [1, 1, 1]} : vector<2x8x32xf32> to vector<2x8x8xf32>
    %229 = vector.extract_strided_slice %200 {offsets = [0, 0, 8], sizes = [2, 8, 8], strides = [1, 1, 1]} : vector<2x8x32xf32> to vector<2x8x8xf32>
    "tpu.trace_start"() <{level = 10 : i32, message = "bqd,bkd->bqk"}> : () -> ()
    %cst_94 = arith.constant dense<0.000000e+00> : vector<2x8x8xf32>
    %230 = tpu.matmul %227, %228, %cst_94 {dimension_numbers = #tpu.dot_dimension_numbers<[2], [2], [1], [1], [0, 0, 0, 1, 1, 1], [0], [0]>} : vector<2x8x8xf32>, vector<2x8x8xf32>, vector<2x8x8xf32> -> vector<2x8x8xf32>
    "tpu.trace_stop"() : () -> ()
    %cst_95 = arith.constant 0.353553385 : f32
    %231 = vector.broadcast %cst_95 : f32 to vector<2x8x8xf32>
    %232 = arith.mulf %230, %231 : vector<2x8x8xf32>
    %cst_96 = arith.constant dense<0xFF800000> : vector<2x8xf32>
    %233 = vector.multi_reduction <maximumf>, %232, %cst_96 [2] : vector<2x8x8xf32> to vector<2x8xf32>
    %234 = vector.shape_cast %233 : vector<2x8xf32> to vector<2x8x1xf32>
    %235 = vector.broadcast %234 : vector<2x8x1xf32> to vector<2x8x8xf32>
    %236 = arith.subf %232, %235 : vector<2x8x8xf32>
    %237 = math.exp %236 : vector<2x8x8xf32>
    %cst_97 = arith.constant dense<0.000000e+00> : vector<2x8xf32>
    %238 = vector.multi_reduction <add>, %237, %cst_97 [2] : vector<2x8x8xf32> to vector<2x8xf32>
    %239 = vector.shape_cast %238 : vector<2x8xf32> to vector<2x8x1xf32>
    %240 = tpu.reciprocal %239 {approx = true} : vector<2x8x1xf32> -> vector<2x8x1xf32>
    %241 = vector.broadcast %240 : vector<2x8x1xf32> to vector<2x8x8xf32>
    %242 = arith.mulf %237, %241 : vector<2x8x8xf32>
    "tpu.trace_start"() <{level = 10 : i32, message = "bqk,bkd->bqd"}> : () -> ()
    %cst_98 = arith.constant dense<0.000000e+00> : vector<2x8x8xf32>
    %243 = tpu.matmul %242, %229, %cst_98 {dimension_numbers = #tpu.dot_dimension_numbers<[2], [1], [1], [2], [0, 0, 0, 1, 1, 2], [0], [0]>} : vector<2x8x8xf32>, vector<2x8x8xf32>, vector<2x8x8xf32> -> vector<2x8x8xf32>
    "tpu.trace_stop"() : () -> ()
    %244 = vector.shape_cast %243 : vector<2x8x8xf32> to vector<16x8xf32>
    %245 = arith.truncf %244 : vector<16x8xf32> to vector<16x8xbf16>
    %246 = vector.extract_strided_slice %202 {offsets = [1, 0, 0], sizes = [1, 8, 32], strides = [1, 1, 1]} : vector<4x8x32xbf16> to vector<1x8x32xbf16>
    %247 = vector.shape_cast %246 : vector<1x8x32xbf16> to vector<8x32xbf16>
    %cst_99 = arith.constant dense<0.000000e+00> : vector<16x32xf32>
    %248 = tpu.matmul %245, %247, %cst_99 {dimension_numbers = #tpu.dot_dimension_numbers<[1], [0], [0], [1], [0, 0, 1, 1], [], []>} : vector<16x8xbf16>, vector<8x32xbf16>, vector<16x32xf32> -> vector<16x32xf32>
    %249 = arith.addf %226, %248 : vector<16x32xf32>
    %250 = vector.extract_strided_slice %196 {offsets = [0, 0, 16], sizes = [2, 8, 8], strides = [1, 1, 1]} : vector<2x8x32xf32> to vector<2x8x8xf32>
    %251 = vector.extract_strided_slice %198 {offsets = [0, 0, 16], sizes = [2, 8, 8], strides = [1, 1, 1]} : vector<2x8x32xf32> to vector<2x8x8xf32>
    %252 = vector.extract_strided_slice %200 {offsets = [0, 0, 16], sizes = [2, 8, 8], strides = [1, 1, 1]} : vector<2x8x32xf32> to vector<2x8x8xf32>
    "tpu.trace_start"() <{level = 10 : i32, message = "bqd,bkd->bqk"}> : () -> ()
    %cst_100 = arith.constant dense<0.000000e+00> : vector<2x8x8xf32>
    %253 = tpu.matmul %250, %251, %cst_100 {dimension_numbers = #tpu.dot_dimension_numbers<[2], [2], [1], [1], [0, 0, 0, 1, 1, 1], [0], [0]>} : vector<2x8x8xf32>, vector<2x8x8xf32>, vector<2x8x8xf32> -> vector<2x8x8xf32>
    "tpu.trace_stop"() : () -> ()
    %cst_101 = arith.constant 0.353553385 : f32
    %254 = vector.broadcast %cst_101 : f32 to vector<2x8x8xf32>
    %255 = arith.mulf %253, %254 : vector<2x8x8xf32>
    %cst_102 = arith.constant dense<0xFF800000> : vector<2x8xf32>
    %256 = vector.multi_reduction <maximumf>, %255, %cst_102 [2] : vector<2x8x8xf32> to vector<2x8xf32>
    %257 = vector.shape_cast %256 : vector<2x8xf32> to vector<2x8x1xf32>
    %258 = vector.broadcast %257 : vector<2x8x1xf32> to vector<2x8x8xf32>
    %259 = arith.subf %255, %258 : vector<2x8x8xf32>
    %260 = math.exp %259 : vector<2x8x8xf32>
    %cst_103 = arith.constant dense<0.000000e+00> : vector<2x8xf32>
    %261 = vector.multi_reduction <add>, %260, %cst_103 [2] : vector<2x8x8xf32> to vector<2x8xf32>
    %262 = vector.shape_cast %261 : vector<2x8xf32> to vector<2x8x1xf32>
    %263 = tpu.reciprocal %262 {approx = true} : vector<2x8x1xf32> -> vector<2x8x1xf32>
    %264 = vector.broadcast %263 : vector<2x8x1xf32> to vector<2x8x8xf32>
    %265 = arith.mulf %260, %264 : vector<2x8x8xf32>
    "tpu.trace_start"() <{level = 10 : i32, message = "bqk,bkd->bqd"}> : () -> ()
    %cst_104 = arith.constant dense<0.000000e+00> : vector<2x8x8xf32>
    %266 = tpu.matmul %265, %252, %cst_104 {dimension_numbers = #tpu.dot_dimension_numbers<[2], [1], [1], [2], [0, 0, 0, 1, 1, 2], [0], [0]>} : vector<2x8x8xf32>, vector<2x8x8xf32>, vector<2x8x8xf32> -> vector<2x8x8xf32>
    "tpu.trace_stop"() : () -> ()
    %267 = vector.shape_cast %266 : vector<2x8x8xf32> to vector<16x8xf32>
    %268 = arith.truncf %267 : vector<16x8xf32> to vector<16x8xbf16>
    %269 = vector.extract_strided_slice %202 {offsets = [2, 0, 0], sizes = [1, 8, 32], strides = [1, 1, 1]} : vector<4x8x32xbf16> to vector<1x8x32xbf16>
    %270 = vector.shape_cast %269 : vector<1x8x32xbf16> to vector<8x32xbf16>
    %cst_105 = arith.constant dense<0.000000e+00> : vector<16x32xf32>
    %271 = tpu.matmul %268, %270, %cst_105 {dimension_numbers = #tpu.dot_dimension_numbers<[1], [0], [0], [1], [0, 0, 1, 1], [], []>} : vector<16x8xbf16>, vector<8x32xbf16>, vector<16x32xf32> -> vector<16x32xf32>
    %272 = arith.addf %249, %271 : vector<16x32xf32>
    %273 = vector.extract_strided_slice %196 {offsets = [0, 0, 24], sizes = [2, 8, 8], strides = [1, 1, 1]} : vector<2x8x32xf32> to vector<2x8x8xf32>
    %274 = vector.extract_strided_slice %198 {offsets = [0, 0, 24], sizes = [2, 8, 8], strides = [1, 1, 1]} : vector<2x8x32xf32> to vector<2x8x8xf32>
    %275 = vector.extract_strided_slice %200 {offsets = [0, 0, 24], sizes = [2, 8, 8], strides = [1, 1, 1]} : vector<2x8x32xf32> to vector<2x8x8xf32>
    "tpu.trace_start"() <{level = 10 : i32, message = "bqd,bkd->bqk"}> : () -> ()
    %cst_106 = arith.constant dense<0.000000e+00> : vector<2x8x8xf32>
    %276 = tpu.matmul %273, %274, %cst_106 {dimension_numbers = #tpu.dot_dimension_numbers<[2], [2], [1], [1], [0, 0, 0, 1, 1, 1], [0], [0]>} : vector<2x8x8xf32>, vector<2x8x8xf32>, vector<2x8x8xf32> -> vector<2x8x8xf32>
    "tpu.trace_stop"() : () -> ()
    %cst_107 = arith.constant 0.353553385 : f32
    %277 = vector.broadcast %cst_107 : f32 to vector<2x8x8xf32>
    %278 = arith.mulf %276, %277 : vector<2x8x8xf32>
    %cst_108 = arith.constant dense<0xFF800000> : vector<2x8xf32>
    %279 = vector.multi_reduction <maximumf>, %278, %cst_108 [2] : vector<2x8x8xf32> to vector<2x8xf32>
    %280 = vector.shape_cast %279 : vector<2x8xf32> to vector<2x8x1xf32>
    %281 = vector.broadcast %280 : vector<2x8x1xf32> to vector<2x8x8xf32>
    %282 = arith.subf %278, %281 : vector<2x8x8xf32>
    %283 = math.exp %282 : vector<2x8x8xf32>
    %cst_109 = arith.constant dense<0.000000e+00> : vector<2x8xf32>
    %284 = vector.multi_reduction <add>, %283, %cst_109 [2] : vector<2x8x8xf32> to vector<2x8xf32>
    %285 = vector.shape_cast %284 : vector<2x8xf32> to vector<2x8x1xf32>
    %286 = tpu.reciprocal %285 {approx = true} : vector<2x8x1xf32> -> vector<2x8x1xf32>
    %287 = vector.broadcast %286 : vector<2x8x1xf32> to vector<2x8x8xf32>
    %288 = arith.mulf %283, %287 : vector<2x8x8xf32>
    "tpu.trace_start"() <{level = 10 : i32, message = "bqk,bkd->bqd"}> : () -> ()
    %cst_110 = arith.constant dense<0.000000e+00> : vector<2x8x8xf32>
    %289 = tpu.matmul %288, %275, %cst_110 {dimension_numbers = #tpu.dot_dimension_numbers<[2], [1], [1], [2], [0, 0, 0, 1, 1, 2], [0], [0]>} : vector<2x8x8xf32>, vector<2x8x8xf32>, vector<2x8x8xf32> -> vector<2x8x8xf32>
    "tpu.trace_stop"() : () -> ()
    %290 = vector.shape_cast %289 : vector<2x8x8xf32> to vector<16x8xf32>
    %291 = arith.truncf %290 : vector<16x8xf32> to vector<16x8xbf16>
    %292 = vector.extract_strided_slice %202 {offsets = [3, 0, 0], sizes = [1, 8, 32], strides = [1, 1, 1]} : vector<4x8x32xbf16> to vector<1x8x32xbf16>
    %293 = vector.shape_cast %292 : vector<1x8x32xbf16> to vector<8x32xbf16>
    %cst_111 = arith.constant dense<0.000000e+00> : vector<16x32xf32>
    %294 = tpu.matmul %291, %293, %cst_111 {dimension_numbers = #tpu.dot_dimension_numbers<[1], [0], [0], [1], [0, 0, 1, 1], [], []>} : vector<16x8xbf16>, vector<8x32xbf16>, vector<16x32xf32> -> vector<16x32xf32>
    %295 = arith.addf %272, %294 : vector<16x32xf32>
    %c1_112 = arith.constant 1 : index
    %c0_113 = arith.constant 0 : index
    %c0_114 = arith.constant 0 : index
    %296 = vector.load %arg5[%c1_112, %c0_113, %c0_114] : memref<2x1x32xf32, #tpu.memory_space<vmem>>, vector<1x1x32xf32>
    %297 = vector.shape_cast %296 : vector<1x1x32xf32> to vector<1x32xf32>
    %298 = vector.broadcast %297 : vector<1x32xf32> to vector<16x32xf32>
    %299 = arith.addf %295, %298 : vector<16x32xf32>
    %300 = arith.addf %186, %299 : vector<16x32xf32>
    %c1_115 = arith.constant 1 : index
    %c0_116 = arith.constant 0 : index
    %c0_117 = arith.constant 0 : index
    %301 = vector.load %arg6[%c1_115, %c0_116, %c0_117] : memref<2x1x32xf32, #tpu.memory_space<vmem>>, vector<1x1x32xf32>
    %302 = vector.shape_cast %301 : vector<1x1x32xf32> to vector<1x32xf32>
    %c1_118 = arith.constant 1 : index
    %c0_119 = arith.constant 0 : index
    %c0_120 = arith.constant 0 : index
    %303 = vector.load %arg7[%c1_118, %c0_119, %c0_120] : memref<2x1x32xf32, #tpu.memory_space<vmem>>, vector<1x1x32xf32>
    %304 = vector.shape_cast %303 : vector<1x1x32xf32> to vector<1x32xf32>
    %cst_121 = arith.constant dense<0.000000e+00> : vector<16xf32>
    %305 = vector.multi_reduction <add>, %300, %cst_121 [1] : vector<16x32xf32> to vector<16xf32>
    %306 = vector.shape_cast %305 : vector<16xf32> to vector<16x1xf32>
    %cst_122 = arith.constant 3.200000e+01 : f32
    %307 = vector.broadcast %cst_122 : f32 to vector<16x1xf32>
    %308 = arith.divf %306, %307 : vector<16x1xf32>
    %309 = vector.broadcast %308 : vector<16x1xf32> to vector<16x32xf32>
    %310 = arith.subf %300, %309 : vector<16x32xf32>
    %311 = arith.mulf %310, %310 : vector<16x32xf32>
    %cst_123 = arith.constant dense<0.000000e+00> : vector<16xf32>
    %312 = vector.multi_reduction <add>, %311, %cst_123 [1] : vector<16x32xf32> to vector<16xf32>
    %313 = vector.shape_cast %312 : vector<16xf32> to vector<16x1xf32>
    %cst_124 = arith.constant 3.200000e+01 : f32
    %314 = vector.broadcast %cst_124 : f32 to vector<16x1xf32>
    %315 = arith.divf %313, %314 : vector<16x1xf32>
    %316 = vector.broadcast %308 : vector<16x1xf32> to vector<16x32xf32>
    %317 = arith.subf %300, %316 : vector<16x32xf32>
    %cst_125 = arith.constant 9.99999974E-6 : f32
    %318 = vector.broadcast %cst_125 : f32 to vector<16x1xf32>
    %319 = arith.addf %315, %318 : vector<16x1xf32>
    %320 = math.rsqrt %319 : vector<16x1xf32>
    %321 = vector.broadcast %320 : vector<16x1xf32> to vector<16x32xf32>
    %322 = arith.mulf %317, %321 : vector<16x32xf32>
    %323 = vector.broadcast %302 : vector<1x32xf32> to vector<16x32xf32>
    %324 = arith.mulf %322, %323 : vector<16x32xf32>
    %325 = vector.broadcast %304 : vector<1x32xf32> to vector<16x32xf32>
    %326 = arith.addf %324, %325 : vector<16x32xf32>
    %327 = arith.truncf %326 : vector<16x32xf32> to vector<16x32xbf16>
    %c1_126 = arith.constant 1 : index
    %c0_127 = arith.constant 0 : index
    %c0_128 = arith.constant 0 : index
    %328 = vector.load %arg8[%c1_126, %c0_127, %c0_128] : memref<2x32x2048xbf16, #tpu.memory_space<vmem>>, vector<1x32x2048xbf16>
    %329 = vector.shape_cast %328 : vector<1x32x2048xbf16> to vector<32x2048xbf16>
    %cst_129 = arith.constant dense<0.000000e+00> : vector<16x2048xf32>
    %330 = tpu.matmul %327, %329, %cst_129 {dimension_numbers = #tpu.dot_dimension_numbers<[1], [0], [0], [1], [0, 0, 1, 1], [], []>} : vector<16x32xbf16>, vector<32x2048xbf16>, vector<16x2048xf32> -> vector<16x2048xf32>
    %c1_130 = arith.constant 1 : index
    %c0_131 = arith.constant 0 : index
    %c0_132 = arith.constant 0 : index
    %331 = vector.load %arg9[%c1_130, %c0_131, %c0_132] : memref<2x1x2048xf32, #tpu.memory_space<vmem>>, vector<1x1x2048xf32>
    %332 = vector.shape_cast %331 : vector<1x1x2048xf32> to vector<1x2048xf32>
    %333 = vector.broadcast %332 : vector<1x2048xf32> to vector<16x2048xf32>
    %334 = arith.addf %330, %333 : vector<16x2048xf32>
    %cst_133 = arith.constant 0.000000e+00 : f32
    %335 = vector.broadcast %cst_133 : f32 to vector<16x2048xf32>
    %336 = arith.maximumf %334, %335 : vector<16x2048xf32>
    %337 = arith.truncf %336 : vector<16x2048xf32> to vector<16x2048xbf16>
    %c1_134 = arith.constant 1 : index
    %c0_135 = arith.constant 0 : index
    %c0_136 = arith.constant 0 : index
    %338 = vector.load %arg10[%c1_134, %c0_135, %c0_136] : memref<2x2048x32xbf16, #tpu.memory_space<vmem>>, vector<1x2048x32xbf16>
    %339 = vector.shape_cast %338 : vector<1x2048x32xbf16> to vector<2048x32xbf16>
    %cst_137 = arith.constant dense<0.000000e+00> : vector<16x32xf32>
    %340 = tpu.matmul %337, %339, %cst_137 {dimension_numbers = #tpu.dot_dimension_numbers<[1], [0], [0], [1], [0, 0, 1, 1], [], []>} : vector<16x2048xbf16>, vector<2048x32xbf16>, vector<16x32xf32> -> vector<16x32xf32>
    %c1_138 = arith.constant 1 : index
    %c0_139 = arith.constant 0 : index
    %c0_140 = arith.constant 0 : index
    %341 = vector.load %arg11[%c1_138, %c0_139, %c0_140] : memref<2x1x32xf32, #tpu.memory_space<vmem>>, vector<1x1x32xf32>
    %342 = vector.shape_cast %341 : vector<1x1x32xf32> to vector<1x32xf32>
    %343 = vector.broadcast %342 : vector<1x32xf32> to vector<16x32xf32>
    %344 = arith.addf %340, %343 : vector<16x32xf32>
    %345 = arith.addf %326, %344 : vector<16x32xf32>
    %c1_141 = arith.constant 1 : index
    %c0_142 = arith.constant 0 : index
    %c0_143 = arith.constant 0 : index
    %346 = vector.load %arg12[%c1_141, %c0_142, %c0_143] : memref<2x1x32xf32, #tpu.memory_space<vmem>>, vector<1x1x32xf32>
    %347 = vector.shape_cast %346 : vector<1x1x32xf32> to vector<1x32xf32>
    %c1_144 = arith.constant 1 : index
    %c0_145 = arith.constant 0 : index
    %c0_146 = arith.constant 0 : index
    %348 = vector.load %arg13[%c1_144, %c0_145, %c0_146] : memref<2x1x32xf32, #tpu.memory_space<vmem>>, vector<1x1x32xf32>
    %349 = vector.shape_cast %348 : vector<1x1x32xf32> to vector<1x32xf32>
    %cst_147 = arith.constant dense<0.000000e+00> : vector<16xf32>
    %350 = vector.multi_reduction <add>, %345, %cst_147 [1] : vector<16x32xf32> to vector<16xf32>
    %351 = vector.shape_cast %350 : vector<16xf32> to vector<16x1xf32>
    %cst_148 = arith.constant 3.200000e+01 : f32
    %352 = vector.broadcast %cst_148 : f32 to vector<16x1xf32>
    %353 = arith.divf %351, %352 : vector<16x1xf32>
    %354 = vector.broadcast %353 : vector<16x1xf32> to vector<16x32xf32>
    %355 = arith.subf %345, %354 : vector<16x32xf32>
    %356 = arith.mulf %355, %355 : vector<16x32xf32>
    %cst_149 = arith.constant dense<0.000000e+00> : vector<16xf32>
    %357 = vector.multi_reduction <add>, %356, %cst_149 [1] : vector<16x32xf32> to vector<16xf32>
    %358 = vector.shape_cast %357 : vector<16xf32> to vector<16x1xf32>
    %cst_150 = arith.constant 3.200000e+01 : f32
    %359 = vector.broadcast %cst_150 : f32 to vector<16x1xf32>
    %360 = arith.divf %358, %359 : vector<16x1xf32>
    %361 = vector.broadcast %353 : vector<16x1xf32> to vector<16x32xf32>
    %362 = arith.subf %345, %361 : vector<16x32xf32>
    %cst_151 = arith.constant 9.99999974E-6 : f32
    %363 = vector.broadcast %cst_151 : f32 to vector<16x1xf32>
    %364 = arith.addf %360, %363 : vector<16x1xf32>
    %365 = math.rsqrt %364 : vector<16x1xf32>
    %366 = vector.broadcast %365 : vector<16x1xf32> to vector<16x32xf32>
    %367 = arith.mulf %362, %366 : vector<16x32xf32>
    %368 = vector.broadcast %347 : vector<1x32xf32> to vector<16x32xf32>
    %369 = arith.mulf %367, %368 : vector<16x32xf32>
    %370 = vector.broadcast %349 : vector<1x32xf32> to vector<16x32xf32>
    %371 = arith.addf %369, %370 : vector<16x32xf32>
    %372 = vector.shape_cast %371 : vector<16x32xf32> to vector<2x8x32xf32>
    %cst_152 = arith.constant dense<0.000000e+00> : vector<2x32xf32>
    %373 = vector.multi_reduction <add>, %372, %cst_152 [1] : vector<2x8x32xf32> to vector<2x32xf32>
    %cst_153 = arith.constant 8.000000e+00 : f32
    %374 = vector.broadcast %cst_153 : f32 to vector<2x32xf32>
    %375 = arith.divf %373, %374 : vector<2x32xf32>
    %376 = arith.truncf %375 : vector<2x32xf32> to vector<2x32xbf16>
    %c0_154 = arith.constant 0 : index
    %c0_155 = arith.constant 0 : index
    %377 = vector.load %arg14[%c0_154, %c0_155] : memref<32x5xbf16, #tpu.memory_space<vmem>>, vector<32x5xbf16>
    %cst_156 = arith.constant dense<0.000000e+00> : vector<2x5xf32>
    %378 = tpu.matmul %376, %377, %cst_156 {dimension_numbers = #tpu.dot_dimension_numbers<[1], [0], [0], [1], [0, 0, 1, 1], [], []>} : vector<2x32xbf16>, vector<32x5xbf16>, vector<2x5xf32> -> vector<2x5xf32>
    %c0_157 = arith.constant 0 : index
    %c0_158 = arith.constant 0 : index
    %379 = vector.load %arg15[%c0_157, %c0_158] : memref<1x5xf32, #tpu.memory_space<vmem>>, vector<1x5xf32>
    %380 = vector.broadcast %379 : vector<1x5xf32> to vector<2x5xf32>
    %381 = arith.addf %378, %380 : vector<2x5xf32>
    %c0_159 = arith.constant 0 : index
    %c0_160 = arith.constant 0 : index
    %382 = vector.load %arg16[%c0_159, %c0_160] : memref<2x5xf32, #tpu.memory_space<vmem>>, vector<2x5xf32>
    tpu.vector_store %arg16[%c0_159, %c0_160], %381 {strides = array<i32>} : memref<2x5xf32, #tpu.memory_space<vmem>>, vector<2x5xf32>,
    return
  }
  func.func @transform_0(%arg0: i32) -> (i32, i32, i32) {
    %c0_i32 = arith.constant 0 : i32
    %c0_i32_0 = arith.constant 0 : i32
    %c0_i32_1 = arith.constant 0 : i32
    return %arg0, %c0_i32, %c0_i32_0 : i32, i32, i32
  }
  func.func @transform_1(%arg0: i32) -> (i32, i32, i32) {
    %c0_i32 = arith.constant 0 : i32
    %c0_i32_0 = arith.constant 0 : i32
    %c0_i32_1 = arith.constant 0 : i32
    %c0_i32_2 = arith.constant 0 : i32
    return %c0_i32, %c0_i32_0, %c0_i32_1 : i32, i32, i32
  }
  func.func @transform_2(%arg0: i32) -> (i32, i32, i32) {
    %c0_i32 = arith.constant 0 : i32
    %c0_i32_0 = arith.constant 0 : i32
    %c0_i32_1 = arith.constant 0 : i32
    %c0_i32_2 = arith.constant 0 : i32
    return %c0_i32, %c0_i32_0, %c0_i32_1 : i32, i32, i32
  }
  func.func @transform_3(%arg0: i32) -> (i32, i32, i32, i32) {
    %c0_i32 = arith.constant 0 : i32
    %c0_i32_0 = arith.constant 0 : i32
    %c0_i32_1 = arith.constant 0 : i32
    %c0_i32_2 = arith.constant 0 : i32
    %c0_i32_3 = arith.constant 0 : i32
    return %c0_i32, %c0_i32_0, %c0_i32_1, %c0_i32_2 : i32, i32, i32, i32
  }
  func.func @transform_4(%arg0: i32) -> (i32, i32, i32) {
    %c0_i32 = arith.constant 0 : i32
    %c0_i32_0 = arith.constant 0 : i32
    %c0_i32_1 = arith.constant 0 : i32
    %c0_i32_2 = arith.constant 0 : i32
    return %c0_i32, %c0_i32_0, %c0_i32_1 : i32, i32, i32
  }
  func.func @transform_5(%arg0: i32) -> (i32, i32, i32) {
    %c0_i32 = arith.constant 0 : i32
    %c0_i32_0 = arith.constant 0 : i32
    %c0_i32_1 = arith.constant 0 : i32
    %c0_i32_2 = arith.constant 0 : i32
    return %c0_i32, %c0_i32_0, %c0_i32_1 : i32, i32, i32
  }
  func.func @transform_6(%arg0: i32) -> (i32, i32, i32) {
    %c0_i32 = arith.constant 0 : i32
    %c0_i32_0 = arith.constant 0 : i32
    %c0_i32_1 = arith.constant 0 : i32
    %c0_i32_2 = arith.constant 0 : i32
    return %c0_i32, %c0_i32_0, %c0_i32_1 : i32, i32, i32
  }
  func.func @transform_7(%arg0: i32) -> (i32, i32, i32) {
    %c0_i32 = arith.constant 0 : i32
    %c0_i32_0 = arith.constant 0 : i32
    %c0_i32_1 = arith.constant 0 : i32
    %c0_i32_2 = arith.constant 0 : i32
    return %c0_i32, %c0_i32_0, %c0_i32_1 : i32, i32, i32
  }
  func.func @transform_8(%arg0: i32) -> (i32, i32, i32) {
    %c0_i32 = arith.constant 0 : i32
    %c0_i32_0 = arith.constant 0 : i32
    %c0_i32_1 = arith.constant 0 : i32
    %c0_i32_2 = arith.constant 0 : i32
    return %c0_i32, %c0_i32_0, %c0_i32_1 : i32, i32, i32
  }
  func.func @transform_9(%arg0: i32) -> (i32, i32, i32) {
    %c0_i32 = arith.constant 0 : i32
    %c0_i32_0 = arith.constant 0 : i32
    %c0_i32_1 = arith.constant 0 : i32
    %c0_i32_2 = arith.constant 0 : i32
    return %c0_i32, %c0_i32_0, %c0_i32_1 : i32, i32, i32
  }
  func.func @transform_10(%arg0: i32) -> (i32, i32, i32) {
    %c0_i32 = arith.constant 0 : i32
    %c0_i32_0 = arith.constant 0 : i32
    %c0_i32_1 = arith.constant 0 : i32
    %c0_i32_2 = arith.constant 0 : i32
    return %c0_i32, %c0_i32_0, %c0_i32_1 : i32, i32, i32
  }
  func.func @transform_11(%arg0: i32) -> (i32, i32, i32) {
    %c0_i32 = arith.constant 0 : i32
    %c0_i32_0 = arith.constant 0 : i32
    %c0_i32_1 = arith.constant 0 : i32
    %c0_i32_2 = arith.constant 0 : i32
    return %c0_i32, %c0_i32_0, %c0_i32_1 : i32, i32, i32
  }
  func.func @transform_12(%arg0: i32) -> (i32, i32, i32) {
    %c0_i32 = arith.constant 0 : i32
    %c0_i32_0 = arith.constant 0 : i32
    %c0_i32_1 = arith.constant 0 : i32
    %c0_i32_2 = arith.constant 0 : i32
    return %c0_i32, %c0_i32_0, %c0_i32_1 : i32, i32, i32
  }
  func.func @transform_13(%arg0: i32) -> (i32, i32) {
    %c0_i32 = arith.constant 0 : i32
    %c0_i32_0 = arith.constant 0 : i32
    %c0_i32_1 = arith.constant 0 : i32
    return %c0_i32, %c0_i32_0 : i32, i32
  }
  func.func @transform_14(%arg0: i32) -> (i32, i32) {
    %c0_i32 = arith.constant 0 : i32
    %c0_i32_0 = arith.constant 0 : i32
    %c0_i32_1 = arith.constant 0 : i32
    return %c0_i32, %c0_i32_0 : i32, i32
  }
  func.func @transform_15(%arg0: i32) -> (i32, i32) {
    %c0_i32 = arith.constant 0 : i32
    %c0_i32_0 = arith.constant 0 : i32
    return %arg0, %c0_i32 : i32, i32
  }
}

</mosaic_0001>

<llo_original>
// kernel: tpu_custom_call.1
$region0: #{tpu_custom_call.1}
  #allocation0 [shape = 'u32[]', space=smem, size = 0x4, offset = 0x4, fixed_abs, tag = 'smem constant byte address 0x4 - core index']
  #allocation1 [shape = 'u32[144,128]{1,0:T(1,128)}', space=vmem, size = 0x12000, scoped, tag = 'internal scratch']
  %s0 = inlined_call_operand.vmem [shape: f32[2,8,32], index: 0, kind: input, shape index: {}]
  %s1 = inlined_call_operand.vmem [shape: bf16[2,32,96], index: 1, kind: input, shape index: {}]
  %s2 = inlined_call_operand.vmem [shape: f32[2,1,96], index: 2, kind: input, shape index: {}]
  %s3 = inlined_call_operand.vmem [shape: bf16[2,4,8,32], index: 3, kind: input, shape index: {}]
  %s4 = inlined_call_operand.vmem [shape: f32[2,1,32], index: 4, kind: input, shape index: {}]
  %s5 = inlined_call_operand.vmem [shape: f32[2,1,32], index: 5, kind: input, shape index: {}]
  %s6 = inlined_call_operand.vmem [shape: f32[2,1,32], index: 6, kind: input, shape index: {}]
  %s7 = inlined_call_operand.vmem [shape: bf16[2,32,2048], index: 7, kind: input, shape index: {}]
  %s8 = inlined_call_operand.vmem [shape: f32[2,1,2048], index: 8, kind: input, shape index: {}]
  %s9 = inlined_call_operand.vmem [shape: bf16[2,2048,32], index: 9, kind: input, shape index: {}]
  %s10 = inlined_call_operand.vmem [shape: f32[2,1,32], index: 10, kind: input, shape index: {}]
  %s11 = inlined_call_operand.vmem [shape: f32[2,1,32], index: 11, kind: input, shape index: {}]
  %s12 = inlined_call_operand.vmem [shape: f32[2,1,32], index: 12, kind: input, shape index: {}]
  %s13 = inlined_call_operand.vmem [shape: bf16[32,5], index: 13, kind: input, shape index: {}]
  %s14 = inlined_call_operand.vmem [shape: f32[1,5], index: 14, kind: input, shape index: {}]
  %s15 = inlined_call_operand.hbm [shape: f32[2,5], index: 15, kind: output, shape index: {}]
  %s16 = sld [smem:[#allocation0]]
  $region70: #{tpu_custom_call.1} parent=0
    _
  %s18 = ssub.s32 1, %s16
  %s19 = scalar_select 0, %s18, %s16
  $region1: #{tpu_custom_call.1} parent=0
    #allocation2 [shape = 'u8[1024]{0}', space=vmem, size = 0x400, scoped, tag = 'output window, operand 0, single buffered']
    #allocation3 [shape = 's32[1]{0}', space=sflag, size = 0x4, scoped, tag = 'scoped memory for tpu_custom_call.1']
    %20 = vsyncpa [#allocation3], 0
    // Predicated region
    $region2: #{tpu_custom_call.1} parent=1 // pred_check
      _
    $region3: #{tpu_custom_call.1} parent=1 // pred_check_branch
      %22 = sbr.rel (0) target = $region5
    $region4: #{tpu_custom_call.1} parent=1 // pred_region
      _
    $region5: #{tpu_custom_call.1} parent=1 // pred_fallthru
      _
    // Predicated region
    $region6: #{tpu_custom_call.1} parent=1 // pred_check
      _
    $region7: #{tpu_custom_call.1} parent=1 // pred_check_branch
      %24 = sbr.rel (0) target = $region9
    $region8: #{tpu_custom_call.1} parent=1 // pred_region
      _
    $region9: #{tpu_custom_call.1} parent=1 // pred_fallthru
      _
    // Predicated region
    $region10: #{tpu_custom_call.1} parent=1 // pred_check
      _
    $region11: #{tpu_custom_call.1} parent=1 // pred_check_branch
      %26 = sbr.rel (0) target = $region13
    $region12: #{tpu_custom_call.1} parent=1 // pred_region
      _
    $region13: #{tpu_custom_call.1} parent=1 // pred_fallthru
      _
    // Predicated region
    $region14: #{tpu_custom_call.1} parent=1 // pred_check
      _
    $region15: #{tpu_custom_call.1} parent=1 // pred_check_branch
      %28 = sbr.rel (0) target = $region17
    $region16: #{tpu_custom_call.1} parent=1 // pred_region
      _
    $region17: #{tpu_custom_call.1} parent=1 // pred_fallthru
      _
    // Predicated region
    $region18: #{tpu_custom_call.1} parent=1 // pred_check
      _
    $region19: #{tpu_custom_call.1} parent=1 // pred_check_branch
      %30 = sbr.rel (0) target = $region21
    $region20: #{tpu_custom_call.1} parent=1 // pred_region
      _
    $region21: #{tpu_custom_call.1} parent=1 // pred_fallthru
      _
    // Predicated region
    $region22: #{tpu_custom_call.1} parent=1 // pred_check
      _
    $region23: #{tpu_custom_call.1} parent=1 // pred_check_branch
      %32 = sbr.rel (0) target = $region25
    $region24: #{tpu_custom_call.1} parent=1 // pred_region
      _
    $region25: #{tpu_custom_call.1} parent=1 // pred_fallthru
      _
    // Predicated region
    $region26: #{tpu_custom_call.1} parent=1 // pred_check
      _
    $region27: #{tpu_custom_call.1} parent=1 // pred_check_branch
      %34 = sbr.rel (0) target = $region29
    $region28: #{tpu_custom_call.1} parent=1 // pred_region
      _
    $region29: #{tpu_custom_call.1} parent=1 // pred_fallthru
      _
    // Predicated region
    $region30: #{tpu_custom_call.1} parent=1 // pred_check
      _
    $region31: #{tpu_custom_call.1} parent=1 // pred_check_branch
      %36 = sbr.rel (0) target = $region33
    $region32: #{tpu_custom_call.1} parent=1 // pred_region
      _
    $region33: #{tpu_custom_call.1} parent=1 // pred_fallthru
      _
    // Predicated region
    $region34: #{tpu_custom_call.1} parent=1 // pred_check
      _
    $region35: #{tpu_custom_call.1} parent=1 // pred_check_branch
      %38 = sbr.rel (0) target = $region37
    $region36: #{tpu_custom_call.1} parent=1 // pred_region
      _
    $region37: #{tpu_custom_call.1} parent=1 // pred_fallthru
      _
    // Predicated region
    $region38: #{tpu_custom_call.1} parent=1 // pred_check
      _
    $region39: #{tpu_custom_call.1} parent=1 // pred_check_branch
      %40 = sbr.rel (0) target = $region41
    $region40: #{tpu_custom_call.1} parent=1 // pred_region
      _
    $region41: #{tpu_custom_call.1} parent=1 // pred_fallthru
      _
    // Predicated region
    $region42: #{tpu_custom_call.1} parent=1 // pred_check
      _
    $region43: #{tpu_custom_call.1} parent=1 // pred_check_branch
      %42 = sbr.rel (0) target = $region45
    $region44: #{tpu_custom_call.1} parent=1 // pred_region
      _
    $region45: #{tpu_custom_call.1} parent=1 // pred_fallthru
      _
    // Predicated region
    $region46: #{tpu_custom_call.1} parent=1 // pred_check
      _
    $region47: #{tpu_custom_call.1} parent=1 // pred_check_branch
      %44 = sbr.rel (0) target = $region49
    $region48: #{tpu_custom_call.1} parent=1 // pred_region
      _
    $region49: #{tpu_custom_call.1} parent=1 // pred_fallthru
      _
    // Predicated region
    $region50: #{tpu_custom_call.1} parent=1 // pred_check
      _
    $region51: #{tpu_custom_call.1} parent=1 // pred_check_branch
      %46 = sbr.rel (0) target = $region53
    $region52: #{tpu_custom_call.1} parent=1 // pred_region
      _
    $region53: #{tpu_custom_call.1} parent=1 // pred_fallthru
      _
    // Predicated region
    $region54: #{tpu_custom_call.1} parent=1 // pred_check
      _
    $region55: #{tpu_custom_call.1} parent=1 // pred_check_branch
      %48 = sbr.rel (0) target = $region57
    $region56: #{tpu_custom_call.1} parent=1 // pred_region
      _
    $region57: #{tpu_custom_call.1} parent=1 // pred_fallthru
      _
    // Predicated region
    $region58: #{tpu_custom_call.1} parent=1 // pred_check
      _
    $region59: #{tpu_custom_call.1} parent=1 // pred_check_branch
      %50 = sbr.rel (0) target = $region61
    $region60: #{tpu_custom_call.1} parent=1 // pred_region
      _
    $region61: #{tpu_custom_call.1} parent=1 // pred_fallthru
      _
    %v52 = vld [vmem:[%s0] sm:$0xff]
    %v53 = vld [vmem:[%s0 + $0x8] sm:$0xff]
    %v54 = vpack.c.bf16 %v53, %v52
    %v55 = vld [vmem:[%s1] sm:$0xf]
    %v56 = vld [vmem:[%s1 + $0x4] sm:$0xf]
    %v57 = vld [vmem:[%s1 + $0x8] sm:$0xf]
    %v58 = vld [vmem:[%s1 + $0xc] sm:$0xf]
    %v59 = vld [vmem:[%s2] sm:$0x1]
    %v61 = vlaneseq
    %v62 = vshrl.u32 %v61, 7
    %v63 = vsub.s32 0, %v62
    %v64 = vrot.slane %v59, %v63
    %v70 = vunpack.c.l.b16 %v55
    %v71 = vunpack.c.l.b16 %v56
    %v72 = vunpack.c.l.b16 %v57
    %v73 = vunpack.c.l.b16 %v58
    %v74 = vpack.c.b16 %v71, %v70
    %v75 = vpack.c.b16 %v73, %v72
    %vm78 = vcmask 261120
    %v80 = vsel %vm78, %v54, 0
    %82 = vmatprep.subr.bf16.mxu0 0
    %83 = vmatpush1.bf16.msra.mxu0 %v74
    %84 = vmatprep.subr.bf16.mxu0 0
    %85 = vmatpush1.bf16.msra.mxu0 %v75
    %86 = vmatprep.subr.bf16.mxu0 0
    %87 = vmatpush1.bf16.msra.mxu0 0
    %88 = vmatprep.subr.bf16.mxu0 0
    %89 = vmatpush1.bf16.msra.mxu0 0
    %90 = vmatprep.subr.bf16.mxu0 0
    %91 = vmatpush1.bf16.msra.mxu0 0
    %92 = vmatprep.subr.bf16.mxu0 0
    %93 = vmatpush1.bf16.msra.mxu0 0
    %94 = vmatprep.subr.bf16.mxu0 0
    %95 = vmatpush1.bf16.msra.mxu0 0
    %96 = vmatprep.subr.bf16.mxu0 0
    %97 = vmatpush1.bf16.msra.mxu0 0
    %98 = vmatprep.subr.bf16.mxu0 0
    %99 = vmatpush1.bf16.msra.mxu0 0
    %100 = vmatprep.subr.bf16.mxu0 0
    %101 = vmatpush1.bf16.msra.mxu0 0
    %102 = vmatprep.subr.bf16.mxu0 0
    %103 = vmatpush1.bf16.msra.mxu0 0
    %104 = vmatprep.subr.bf16.mxu0 0
    %105 = vmatpush1.bf16.msra.mxu0 0
    %106 = vmatprep.subr.bf16.mxu0 0
    %107 = vmatpush1.bf16.msra.mxu0 0
    %108 = vmatprep.subr.bf16.mxu0 0
    %109 = vmatpush1.bf16.msra.mxu0 0
    %110 = vmatprep.subr.bf16.mxu0 0
    %111 = vmatpush1.bf16.msra.mxu0 0
    %112 = vmatprep.subr.bf16.mxu0 0
    %113 = vmatpush1.bf16.msra.mxu0 0
    %114 = vmatprep.mubr.bf16.mxu0 0
    %115 = vmatmul.mubr.bf16.gmra.mrb[0].mxu0 %v80
    %v116 = vpop.f32.mrb[0].mxu0
    %v117 = vadd.f32 %v64, %v116
    %v118 = vpop.f32.mrb[0].mxu0
    %v119 = vpop.f32.mrb[0].mxu0
    %v120 = vadd.f32 %v64, %v119
    %v121 = vpop.f32.mrb[0].mxu0
    %122 = vdwg.mxu0
    %v123 = vld [vmem:[%s3] sm:$0xf]
    %v124 = vld [vmem:[%s3 + $0x4] sm:$0xf]
    %v125 = vld [vmem:[%s3 + $0x8] sm:$0xf]
    %v126 = vld [vmem:[%s3 + $0xc] sm:$0xf]
    %128 = vrot.lane.b32.xlu0 %v117, 96
    %v129 = vpop.permute.xlu0 %128
    %vm130 = vcmask 64512
    %v131 = vsel %vm130, %v117, 0
    %v133 = vsel %vm130, %v129, 0
    %135 = vmatprep.subr.mxu0 0.0
    %136 = vmatpush1.xpose.msra.mxu0 %v133
    %137 = vmatprep.subr.mxu0 0.0
    %138 = vmatpush1.xpose.msra.mxu0 0.0
    %139 = vmatprep.subr.mxu0 0.0
    %140 = vmatpush1.xpose.msra.mxu0 0.0
    %141 = vmatprep.subr.mxu0 0.0
    %142 = vmatpush1.xpose.msra.mxu0 0.0
    %143 = vmatprep.subr.mxu0 0.0
    %144 = vmatpush1.xpose.msra.mxu0 0.0
    %145 = vmatprep.subr.mxu0 0.0
    %146 = vmatpush1.xpose.msra.mxu0 0.0
    %147 = vmatprep.subr.mxu0 0.0
    %148 = vmatpush1.xpose.msra.mxu0 0.0
    %149 = vmatprep.subr.mxu0 0.0
    %150 = vmatpush1.xpose.msra.mxu0 0.0
    %151 = vmatprep.subr.mxu0 0.0
    %152 = vmatpush1.xpose.msra.mxu0 0.0
    %153 = vmatprep.subr.mxu0 0.0
    %154 = vmatpush1.xpose.msra.mxu0 0.0
    %155 = vmatprep.subr.mxu0 0.0
    %156 = vmatpush1.xpose.msra.mxu0 0.0
    %157 = vmatprep.subr.mxu0 0.0
    %158 = vmatpush1.xpose.msra.mxu0 0.0
    %159 = vmatprep.subr.mxu0 0.0
    %160 = vmatpush1.xpose.msra.mxu0 0.0
    %161 = vmatprep.subr.mxu0 0.0
    %162 = vmatpush1.xpose.msra.mxu0 0.0
    %163 = vmatprep.subr.mxu0 0.0
    %164 = vmatpush1.xpose.msra.mxu0 0.0
    %165 = vmatprep.subr.mxu0 0.0
    %166 = vmatpush1.xpose.msra.mxu0 0.0
    %167 = vmatprep.subr.mxu0 0.0
    %168 = vmatpush1.xpose.msra.mxu0 0.0
    %169 = vmatprep.subr.mxu0 0.0
    %170 = vmatpush1.xpose.msra.mxu0 0.0
    %171 = vmatprep.subr.mxu0 0.0
    %172 = vmatpush1.xpose.msra.mxu0 0.0
    %173 = vmatprep.subr.mxu0 0.0
    %174 = vmatpush1.xpose.msra.mxu0 0.0
    %175 = vmatprep.subr.mxu0 0.0
    %176 = vmatpush1.xpose.msra.mxu0 0.0
    %177 = vmatprep.subr.mxu0 0.0
    %178 = vmatpush1.xpose.msra.mxu0 0.0
    %179 = vmatprep.subr.mxu0 0.0
    %180 = vmatpush1.xpose.msra.mxu0 0.0
    %181 = vmatprep.subr.mxu0 0.0
    %182 = vmatpush1.xpose.msra.mxu0 0.0
    %183 = vmatprep.subr.mxu0 0.0
    %184 = vmatpush1.xpose.msra.mxu0 0.0
    %185 = vmatprep.subr.mxu0 0.0
    %186 = vmatpush1.xpose.msra.mxu0 0.0
    %187 = vmatprep.subr.mxu0 0.0
    %188 = vmatpush1.xpose.msra.mxu0 0.0
    %189 = vmatprep.subr.mxu0 0.0
    %190 = vmatpush1.xpose.msra.mxu0 0.0
    %191 = vmatprep.subr.mxu0 0.0
    %192 = vmatpush1.xpose.msra.mxu0 0.0
    %193 = vmatprep.subr.mxu0 0.0
    %194 = vmatpush1.xpose.msra.mxu0 0.0
    %195 = vmatprep.subr.mxu0 0.0
    %196 = vmatpush1.xpose.msra.mxu0 0.0
    %197 = vmatprep.subr.mxu0 0.0
    %198 = vmatpush1.xpose.msra.mxu0 0.0
    %199 = vmatprep.mubr.f32.mxu0 0.0
    %200 = vmatmul.mubr.f32.gmra.mrb[0].mxu0 %v131
    %v201 = vpop.f32.mrb[0].mxu0
    %v202 = vadd.f32 0.0, %v201
    %v203 = vpop.f32.mrb[0].mxu0
    %204 = vdwg.mxu0
    %206 = vrot.lane.b32.xlu0 %v120, 96
    %v207 = vpop.permute.xlu0 %206
    %v208 = vsel %vm130, %v120, 0
    %v210 = vsel %vm130, %v207, 0
    %212 = vmatprep.subr.mxu0 0.0
    %213 = vmatpush1.xpose.msra.mxu0 %v210
    %214 = vmatprep.subr.mxu0 0.0
    %215 = vmatpush1.xpose.msra.mxu0 0.0
    %216 = vmatprep.subr.mxu0 0.0
    %217 = vmatpush1.xpose.msra.mxu0 0.0
    %218 = vmatprep.subr.mxu0 0.0
    %219 = vmatpush1.xpose.msra.mxu0 0.0
    %220 = vmatprep.subr.mxu0 0.0
    %221 = vmatpush1.xpose.msra.mxu0 0.0
    %222 = vmatprep.subr.mxu0 0.0
    %223 = vmatpush1.xpose.msra.mxu0 0.0
    %224 = vmatprep.subr.mxu0 0.0
    %225 = vmatpush1.xpose.msra.mxu0 0.0
    %226 = vmatprep.subr.mxu0 0.0
    %227 = vmatpush1.xpose.msra.mxu0 0.0
    %228 = vmatprep.subr.mxu0 0.0
    %229 = vmatpush1.xpose.msra.mxu0 0.0
    %230 = vmatprep.subr.mxu0 0.0
    %231 = vmatpush1.xpose.msra.mxu0 0.0
    %232 = vmatprep.subr.mxu0 0.0
    %233 = vmatpush1.xpose.msra.mxu0 0.0
    %234 = vmatprep.subr.mxu0 0.0
    %235 = vmatpush1.xpose.msra.mxu0 0.0
    %236 = vmatprep.subr.mxu0 0.0
    %237 = vmatpush1.xpose.msra.mxu0 0.0
    %238 = vmatprep.subr.mxu0 0.0
    %239 = vmatpush1.xpose.msra.mxu0 0.0
    %240 = vmatprep.subr.mxu0 0.0
    %241 = vmatpush1.xpose.msra.mxu0 0.0
    %242 = vmatprep.subr.mxu0 0.0
    %243 = vmatpush1.xpose.msra.mxu0 0.0
    %244 = vmatprep.subr.mxu0 0.0
    %245 = vmatpush1.xpose.msra.mxu0 0.0
    %246 = vmatprep.subr.mxu0 0.0
    %247 = vmatpush1.xpose.msra.mxu0 0.0
    %248 = vmatprep.subr.mxu0 0.0
    %249 = vmatpush1.xpose.msra.mxu0 0.0
    %250 = vmatprep.subr.mxu0 0.0
    %251 = vmatpush1.xpose.msra.mxu0 0.0
    %252 = vmatprep.subr.mxu0 0.0
    %253 = vmatpush1.xpose.msra.mxu0 0.0
    %254 = vmatprep.subr.mxu0 0.0
    %255 = vmatpush1.xpose.msra.mxu0 0.0
    %256 = vmatprep.subr.mxu0 0.0
    %257 = vmatpush1.xpose.msra.mxu0 0.0
    %258 = vmatprep.subr.mxu0 0.0
    %259 = vmatpush1.xpose.msra.mxu0 0.0
    %260 = vmatprep.subr.mxu0 0.0
    %261 = vmatpush1.xpose.msra.mxu0 0.0
    %262 = vmatprep.subr.mxu0 0.0
    %263 = vmatpush1.xpose.msra.mxu0 0.0
    %264 = vmatprep.subr.mxu0 0.0
    %265 = vmatpush1.xpose.msra.mxu0 0.0
    %266 = vmatprep.subr.mxu0 0.0
    %267 = vmatpush1.xpose.msra.mxu0 0.0
    %268 = vmatprep.subr.mxu0 0.0
    %269 = vmatpush1.xpose.msra.mxu0 0.0
    %270 = vmatprep.subr.mxu0 0.0
    %271 = vmatpush1.xpose.msra.mxu0 0.0
    %272 = vmatprep.subr.mxu0 0.0
    %273 = vmatpush1.xpose.msra.mxu0 0.0
    %274 = vmatprep.subr.mxu0 0.0
    %275 = vmatpush1.xpose.msra.mxu0 0.0
    %276 = vmatprep.mubr.f32.mxu0 0.0
    %277 = vmatmul.mubr.f32.gmra.mrb[0].mxu0 %v208
    %v278 = vpop.f32.mrb[0].mxu0
    %v279 = vadd.f32 0.0, %v278
    %v280 = vpop.f32.mrb[0].mxu0
    %281 = vdwg.mxu0
    %v282 = vmul.f32 %v202, 0.35355338
    %v283 = vmul.f32 %v279, 0.35355338
    %v284 = vsel %vm130, %v282, -inf
    %285 = vmax.xlane.f32.xlu0 %v284
    %v286 = vpop.xlane.xlu0 %285
    %v287 = vsel %vm130, %v283, -inf
    %288 = vmax.xlane.f32.xlu0 %v287
    %v289 = vpop.xlane.xlu0 %288
    %v290 = vsub.f32 %v282, %v286
    %v291 = vsub.f32 %v283, %v289
    %v292 = vmul.f32 %v290, 1.442695
    %v293 = vpow.pop %v292
    %v294 = vmul.f32 %v291, 1.442695
    %v295 = vpow.pop %v294
    %v296 = vsel %vm130, %v293, 0.0
    %297 = vadd.xlane.f32.xlu0 %v296
    %v298 = vpop.xlane.xlu0 %297
    %v299 = vsel %vm130, %v295, 0.0
    %300 = vadd.xlane.f32.xlu0 %v299
    %v301 = vpop.xlane.xlu0 %300
    %v302 = vrcp.pop %v298
    %v303 = vrcp.pop %v301
    %v304 = vmul.f32 %v293, %v302
    %v305 = vmul.f32 %v295, %v303
    %306 = vrot.lane.b32.xlu0 %v117, 64
    %v307 = vpop.permute.xlu0 %306
    %v310 = vsel %vm130, %v304, 0
    %312 = vmatprep.subr.mxu0 0.0
    %313 = vmatpush1.msra.mxu0 %v307
    %314 = vmatprep.subr.mxu0 0.0
    %315 = vmatpush1.msra.mxu0 0.0
    %316 = vmatprep.subr.mxu0 0.0
    %317 = vmatpush1.msra.mxu0 0.0
    %318 = vmatprep.subr.mxu0 0.0
    %319 = vmatpush1.msra.mxu0 0.0
    %320 = vmatprep.subr.mxu0 0.0
    %321 = vmatpush1.msra.mxu0 0.0
    %322 = vmatprep.subr.mxu0 0.0
    %323 = vmatpush1.msra.mxu0 0.0
    %324 = vmatprep.subr.mxu0 0.0
    %325 = vmatpush1.msra.mxu0 0.0
    %326 = vmatprep.subr.mxu0 0.0
    %327 = vmatpush1.msra.mxu0 0.0
    %328 = vmatprep.subr.mxu0 0.0
    %329 = vmatpush1.msra.mxu0 0.0
    %330 = vmatprep.subr.mxu0 0.0
    %331 = vmatpush1.msra.mxu0 0.0
    %332 = vmatprep.subr.mxu0 0.0
    %333 = vmatpush1.msra.mxu0 0.0
    %334 = vmatprep.subr.mxu0 0.0
    %335 = vmatpush1.msra.mxu0 0.0
    %336 = vmatprep.subr.mxu0 0.0
    %337 = vmatpush1.msra.mxu0 0.0
    %338 = vmatprep.subr.mxu0 0.0
    %339 = vmatpush1.msra.mxu0 0.0
    %340 = vmatprep.subr.mxu0 0.0
    %341 = vmatpush1.msra.mxu0 0.0
    %342 = vmatprep.subr.mxu0 0.0
    %343 = vmatpush1.msra.mxu0 0.0
    %344 = vmatprep.subr.mxu0 0.0
    %345 = vmatpush1.msra.mxu0 0.0
    %346 = vmatprep.subr.mxu0 0.0
    %347 = vmatpush1.msra.mxu0 0.0
    %348 = vmatprep.subr.mxu0 0.0
    %349 = vmatpush1.msra.mxu0 0.0
    %350 = vmatprep.subr.mxu0 0.0
    %351 = vmatpush1.msra.mxu0 0.0
    %352 = vmatprep.subr.mxu0 0.0
    %353 = vmatpush1.msra.mxu0 0.0
    %354 = vmatprep.subr.mxu0 0.0
    %355 = vmatpush1.msra.mxu0 0.0
    %356 = vmatprep.subr.mxu0 0.0
    %357 = vmatpush1.msra.mxu0 0.0
    %358 = vmatprep.subr.mxu0 0.0
    %359 = vmatpush1.msra.mxu0 0.0
    %360 = vmatprep.subr.mxu0 0.0
    %361 = vmatpush1.msra.mxu0 0.0
    %362 = vmatprep.subr.mxu0 0.0
    %363 = vmatpush1.msra.mxu0 0.0
    %364 = vmatprep.subr.mxu0 0.0
    %365 = vmatpush1.msra.mxu0 0.0
    %366 = vmatprep.subr.mxu0 0.0
    %367 = vmatpush1.msra.mxu0 0.0
    %368 = vmatprep.subr.mxu0 0.0
    %369 = vmatpush1.msra.mxu0 0.0
    %370 = vmatprep.subr.mxu0 0.0
    %371 = vmatpush1.msra.mxu0 0.0
    %372 = vmatprep.subr.mxu0 0.0
    %373 = vmatpush1.msra.mxu0 0.0
    %374 = vmatprep.subr.mxu0 0.0
    %375 = vmatpush1.msra.mxu0 0.0
    %376 = vmatprep.mubr.f32.mxu0 0.0
    %377 = vmatmul.mubr.f32.gmra.mrb[0].mxu0 %v310
    %v378 = vpop.f32.mrb[0].mxu0
    %v379 = vadd.f32 0.0, %v378
    %v380 = vpop.f32.mrb[0].mxu0
    %381 = vdwg.mxu0
    %382 = vrot.lane.b32.xlu0 %v120, 64
    %v383 = vpop.permute.xlu0 %382
    %v386 = vsel %vm130, %v305, 0
    %388 = vmatprep.subr.mxu0 0.0
    %389 = vmatpush1.msra.mxu0 %v383
    %390 = vmatprep.subr.mxu0 0.0
    %391 = vmatpush1.msra.mxu0 0.0
    %392 = vmatprep.subr.mxu0 0.0
    %393 = vmatpush1.msra.mxu0 0.0
    %394 = vmatprep.subr.mxu0 0.0
    %395 = vmatpush1.msra.mxu0 0.0
    %396 = vmatprep.subr.mxu0 0.0
    %397 = vmatpush1.msra.mxu0 0.0
    %398 = vmatprep.subr.mxu0 0.0
    %399 = vmatpush1.msra.mxu0 0.0
    %400 = vmatprep.subr.mxu0 0.0
    %401 = vmatpush1.msra.mxu0 0.0
    %402 = vmatprep.subr.mxu0 0.0
    %403 = vmatpush1.msra.mxu0 0.0
    %404 = vmatprep.subr.mxu0 0.0
    %405 = vmatpush1.msra.mxu0 0.0
    %406 = vmatprep.subr.mxu0 0.0
    %407 = vmatpush1.msra.mxu0 0.0
    %408 = vmatprep.subr.mxu0 0.0
    %409 = vmatpush1.msra.mxu0 0.0
    %410 = vmatprep.subr.mxu0 0.0
    %411 = vmatpush1.msra.mxu0 0.0
    %412 = vmatprep.subr.mxu0 0.0
    %413 = vmatpush1.msra.mxu0 0.0
    %414 = vmatprep.subr.mxu0 0.0
    %415 = vmatpush1.msra.mxu0 0.0
    %416 = vmatprep.subr.mxu0 0.0
    %417 = vmatpush1.msra.mxu0 0.0
    %418 = vmatprep.subr.mxu0 0.0
    %419 = vmatpush1.msra.mxu0 0.0
    %420 = vmatprep.subr.mxu0 0.0
    %421 = vmatpush1.msra.mxu0 0.0
    %422 = vmatprep.subr.mxu0 0.0
    %423 = vmatpush1.msra.mxu0 0.0
    %424 = vmatprep.subr.mxu0 0.0
    %425 = vmatpush1.msra.mxu0 0.0
    %426 = vmatprep.subr.mxu0 0.0
    %427 = vmatpush1.msra.mxu0 0.0
    %428 = vmatprep.subr.mxu0 0.0
    %429 = vmatpush1.msra.mxu0 0.0
    %430 = vmatprep.subr.mxu0 0.0
    %431 = vmatpush1.msra.mxu0 0.0
    %432 = vmatprep.subr.mxu0 0.0
    %433 = vmatpush1.msra.mxu0 0.0
    %434 = vmatprep.subr.mxu0 0.0
    %435 = vmatpush1.msra.mxu0 0.0
    %436 = vmatprep.subr.mxu0 0.0
    %437 = vmatpush1.msra.mxu0 0.0
    %438 = vmatprep.subr.mxu0 0.0
    %439 = vmatpush1.msra.mxu0 0.0
    %440 = vmatprep.subr.mxu0 0.0
    %441 = vmatpush1.msra.mxu0 0.0
    %442 = vmatprep.subr.mxu0 0.0
    %443 = vmatpush1.msra.mxu0 0.0
    %444 = vmatprep.subr.mxu0 0.0
    %445 = vmatpush1.msra.mxu0 0.0
    %446 = vmatprep.subr.mxu0 0.0
    %447 = vmatpush1.msra.mxu0 0.0
    %448 = vmatprep.subr.mxu0 0.0
    %449 = vmatpush1.msra.mxu0 0.0
    %450 = vmatprep.subr.mxu0 0.0
    %451 = vmatpush1.msra.mxu0 0.0
    %452 = vmatprep.mubr.f32.mxu0 0.0
    %453 = vmatmul.mubr.f32.gmra.mrb[0].mxu0 %v386
    %v454 = vpop.f32.mrb[0].mxu0
    %v455 = vadd.f32 0.0, %v454
    %v456 = vpop.f32.mrb[0].mxu0
    %457 = vdwg.mxu0
    %v458 = vpack.c.bf16 %v455, %v379
    %459 = vrot.lane.b32.xlu0 %v117, 120
    %v460 = vpop.permute.xlu0 %459
    %461 = vrot.lane.b32.xlu0 %v117, 88
    %v462 = vpop.permute.xlu0 %461
    %v463 = vsel %vm130, %v460, 0
    %v465 = vsel %vm130, %v462, 0
    %467 = vmatprep.subr.mxu0 0.0
    %468 = vmatpush1.xpose.msra.mxu0 %v465
    %469 = vmatprep.subr.mxu0 0.0
    %470 = vmatpush1.xpose.msra.mxu0 0.0
    %471 = vmatprep.subr.mxu0 0.0
    %472 = vmatpush1.xpose.msra.mxu0 0.0
    %473 = vmatprep.subr.mxu0 0.0
    %474 = vmatpush1.xpose.msra.mxu0 0.0
    %475 = vmatprep.subr.mxu0 0.0
    %476 = vmatpush1.xpose.msra.mxu0 0.0
    %477 = vmatprep.subr.mxu0 0.0
    %478 = vmatpush1.xpose.msra.mxu0 0.0
    %479 = vmatprep.subr.mxu0 0.0
    %480 = vmatpush1.xpose.msra.mxu0 0.0
    %481 = vmatprep.subr.mxu0 0.0
    %482 = vmatpush1.xpose.msra.mxu0 0.0
    %483 = vmatprep.subr.mxu0 0.0
    %484 = vmatpush1.xpose.msra.mxu0 0.0
    %485 = vmatprep.subr.mxu0 0.0
    %486 = vmatpush1.xpose.msra.mxu0 0.0
    %487 = vmatprep.subr.mxu0 0.0
    %488 = vmatpush1.xpose.msra.mxu0 0.0
    %489 = vmatprep.subr.mxu0 0.0
    %490 = vmatpush1.xpose.msra.mxu0 0.0
    %491 = vmatprep.subr.mxu0 0.0
    %492 = vmatpush1.xpose.msra.mxu0 0.0
    %493 = vmatprep.subr.mxu0 0.0
    %494 = vmatpush1.xpose.msra.mxu0 0.0
    %495 = vmatprep.subr.mxu0 0.0
    %496 = vmatpush1.xpose.msra.mxu0 0.0
    %497 = vmatprep.subr.mxu0 0.0
    %498 = vmatpush1.xpose.msra.mxu0 0.0
    %499 = vmatprep.subr.mxu0 0.0
    %500 = vmatpush1.xpose.msra.mxu0 0.0
    %501 = vmatprep.subr.mxu0 0.0
    %502 = vmatpush1.xpose.msra.mxu0 0.0
    %503 = vmatprep.subr.mxu0 0.0
    %504 = vmatpush1.xpose.msra.mxu0 0.0
    %505 = vmatprep.subr.mxu0 0.0
    %506 = vmatpush1.xpose.msra.mxu0 0.0
    %507 = vmatprep.subr.mxu0 0.0
    %508 = vmatpush1.xpose.msra.mxu0 0.0
    %509 = vmatprep.subr.mxu0 0.0
    %510 = vmatpush1.xpose.msra.mxu0 0.0
    %511 = vmatprep.subr.mxu0 0.0
    %512 = vmatpush1.xpose.msra.mxu0 0.0
    %513 = vmatprep.subr.mxu0 0.0
    %514 = vmatpush1.xpose.msra.mxu0 0.0
    %515 = vmatprep.subr.mxu0 0.0
    %516 = vmatpush1.xpose.msra.mxu0 0.0
    %517 = vmatprep.subr.mxu0 0.0
    %518 = vmatpush1.xpose.msra.mxu0 0.0
    %519 = vmatprep.subr.mxu0 0.0
    %520 = vmatpush1.xpose.msra.mxu0 0.0
    %521 = vmatprep.subr.mxu0 0.0
    %522 = vmatpush1.xpose.msra.mxu0 0.0
    %523 = vmatprep.subr.mxu0 0.0
    %524 = vmatpush1.xpose.msra.mxu0 0.0
    %525 = vmatprep.subr.mxu0 0.0
    %526 = vmatpush1.xpose.msra.mxu0 0.0
    %527 = vmatprep.subr.mxu0 0.0
    %528 = vmatpush1.xpose.msra.mxu0 0.0
    %529 = vmatprep.subr.mxu0 0.0
    %530 = vmatpush1.xpose.msra.mxu0 0.0
    %531 = vmatprep.mubr.f32.mxu0 0.0
    %532 = vmatmul.mubr.f32.gmra.mrb[0].mxu0 %v463
    %v533 = vpop.f32.mrb[0].mxu0
    %v534 = vadd.f32 0.0, %v533
    %v535 = vpop.f32.mrb[0].mxu0
    %536 = vdwg.mxu0
    %537 = vrot.lane.b32.xlu0 %v120, 120
    %v538 = vpop.permute.xlu0 %537
    %539 = vrot.lane.b32.xlu0 %v120, 88
    %v540 = vpop.permute.xlu0 %539
    %v541 = vsel %vm130, %v538, 0
    %v543 = vsel %vm130, %v540, 0
    %545 = vmatprep.subr.mxu0 0.0
    %546 = vmatpush1.xpose.msra.mxu0 %v543
    %547 = vmatprep.subr.mxu0 0.0
    %548 = vmatpush1.xpose.msra.mxu0 0.0
    %549 = vmatprep.subr.mxu0 0.0
    %550 = vmatpush1.xpose.msra.mxu0 0.0
    %551 = vmatprep.subr.mxu0 0.0
    %552 = vmatpush1.xpose.msra.mxu0 0.0
    %553 = vmatprep.subr.mxu0 0.0
    %554 = vmatpush1.xpose.msra.mxu0 0.0
    %555 = vmatprep.subr.mxu0 0.0
    %556 = vmatpush1.xpose.msra.mxu0 0.0
    %557 = vmatprep.subr.mxu0 0.0
    %558 = vmatpush1.xpose.msra.mxu0 0.0
    %559 = vmatprep.subr.mxu0 0.0
    %560 = vmatpush1.xpose.msra.mxu0 0.0
    %561 = vmatprep.subr.mxu0 0.0
    %562 = vmatpush1.xpose.msra.mxu0 0.0
    %563 = vmatprep.subr.mxu0 0.0
    %564 = vmatpush1.xpose.msra.mxu0 0.0
    %565 = vmatprep.subr.mxu0 0.0
    %566 = vmatpush1.xpose.msra.mxu0 0.0
    %567 = vmatprep.subr.mxu0 0.0
    %568 = vmatpush1.xpose.msra.mxu0 0.0
    %569 = vmatprep.subr.mxu0 0.0
    %570 = vmatpush1.xpose.msra.mxu0 0.0
    %571 = vmatprep.subr.mxu0 0.0
    %572 = vmatpush1.xpose.msra.mxu0 0.0
    %573 = vmatprep.subr.mxu0 0.0
    %574 = vmatpush1.xpose.msra.mxu0 0.0
    %575 = vmatprep.subr.mxu0 0.0
    %576 = vmatpush1.xpose.msra.mxu0 0.0
    %577 = vmatprep.subr.mxu0 0.0
    %578 = vmatpush1.xpose.msra.mxu0 0.0
    %579 = vmatprep.subr.mxu0 0.0
    %580 = vmatpush1.xpose.msra.mxu0 0.0
    %581 = vmatprep.subr.mxu0 0.0
    %582 = vmatpush1.xpose.msra.mxu0 0.0
    %583 = vmatprep.subr.mxu0 0.0
    %584 = vmatpush1.xpose.msra.mxu0 0.0
    %585 = vmatprep.subr.mxu0 0.0
    %586 = vmatpush1.xpose.msra.mxu0 0.0
    %587 = vmatprep.subr.mxu0 0.0
    %588 = vmatpush1.xpose.msra.mxu0 0.0
    %589 = vmatprep.subr.mxu0 0.0
    %590 = vmatpush1.xpose.msra.mxu0 0.0
    %591 = vmatprep.subr.mxu0 0.0
    %592 = vmatpush1.xpose.msra.mxu0 0.0
    %593 = vmatprep.subr.mxu0 0.0
    %594 = vmatpush1.xpose.msra.mxu0 0.0
    %595 = vmatprep.subr.mxu0 0.0
    %596 = vmatpush1.xpose.msra.mxu0 0.0
    %597 = vmatprep.subr.mxu0 0.0
    %598 = vmatpush1.xpose.msra.mxu0 0.0
    %599 = vmatprep.subr.mxu0 0.0
    %600 = vmatpush1.xpose.msra.mxu0 0.0
    %601 = vmatprep.subr.mxu0 0.0
    %602 = vmatpush1.xpose.msra.mxu0 0.0
    %603 = vmatprep.subr.mxu0 0.0
    %604 = vmatpush1.xpose.msra.mxu0 0.0
    %605 = vmatprep.subr.mxu0 0.0
    %606 = vmatpush1.xpose.msra.mxu0 0.0
    %607 = vmatprep.subr.mxu0 0.0
    %608 = vmatpush1.xpose.msra.mxu0 0.0
    %609 = vmatprep.mubr.f32.mxu0 0.0
    %610 = vmatmul.mubr.f32.gmra.mrb[0].mxu0 %v541
    %v611 = vpop.f32.mrb[0].mxu0
    %v612 = vadd.f32 0.0, %v611
    %v613 = vpop.f32.mrb[0].mxu0
    %614 = vdwg.mxu0
    %v615 = vmul.f32 %v534, 0.35355338
    %v616 = vmul.f32 %v612, 0.35355338
    %v617 = vsel %vm130, %v615, -inf
    %618 = vmax.xlane.f32.xlu0 %v617
    %v619 = vpop.xlane.xlu0 %618
    %v620 = vsel %vm130, %v616, -inf
    %621 = vmax.xlane.f32.xlu0 %v620
    %v622 = vpop.xlane.xlu0 %621
    %v623 = vsub.f32 %v615, %v619
    %v624 = vsub.f32 %v616, %v622
    %v625 = vmul.f32 %v623, 1.442695
    %v626 = vpow.pop %v625
    %v627 = vmul.f32 %v624, 1.442695
    %v628 = vpow.pop %v627
    %v629 = vsel %vm130, %v626, 0.0
    %630 = vadd.xlane.f32.xlu0 %v629
    %v631 = vpop.xlane.xlu0 %630
    %v632 = vsel %vm130, %v628, 0.0
    %633 = vadd.xlane.f32.xlu0 %v632
    %v634 = vpop.xlane.xlu0 %633
    %v635 = vrcp.pop %v631
    %v636 = vrcp.pop %v634
    %v637 = vmul.f32 %v626, %v635
    %v638 = vmul.f32 %v628, %v636
    %639 = vrot.lane.b32.xlu0 %v117, 56
    %v640 = vpop.permute.xlu0 %639
    %v643 = vsel %vm130, %v637, 0
    %645 = vmatprep.subr.mxu0 0.0
    %646 = vmatpush1.msra.mxu0 %v640
    %647 = vmatprep.subr.mxu0 0.0
    %648 = vmatpush1.msra.mxu0 0.0
    %649 = vmatprep.subr.mxu0 0.0
    %650 = vmatpush1.msra.mxu0 0.0
    %651 = vmatprep.subr.mxu0 0.0
    %652 = vmatpush1.msra.mxu0 0.0
    %653 = vmatprep.subr.mxu0 0.0
    %654 = vmatpush1.msra.mxu0 0.0
    %655 = vmatprep.subr.mxu0 0.0
    %656 = vmatpush1.msra.mxu0 0.0
    %657 = vmatprep.subr.mxu0 0.0
    %658 = vmatpush1.msra.mxu0 0.0
    %659 = vmatprep.subr.mxu0 0.0
    %660 = vmatpush1.msra.mxu0 0.0
    %661 = vmatprep.subr.mxu0 0.0
    %662 = vmatpush1.msra.mxu0 0.0
    %663 = vmatprep.subr.mxu0 0.0
    %664 = vmatpush1.msra.mxu0 0.0
    %665 = vmatprep.subr.mxu0 0.0
    %666 = vmatpush1.msra.mxu0 0.0
    %667 = vmatprep.subr.mxu0 0.0
    %668 = vmatpush1.msra.mxu0 0.0
    %669 = vmatprep.subr.mxu0 0.0
    %670 = vmatpush1.msra.mxu0 0.0
    %671 = vmatprep.subr.mxu0 0.0
    %672 = vmatpush1.msra.mxu0 0.0
    %673 = vmatprep.subr.mxu0 0.0
    %674 = vmatpush1.msra.mxu0 0.0
    %675 = vmatprep.subr.mxu0 0.0
    %676 = vmatpush1.msra.mxu0 0.0
    %677 = vmatprep.subr.mxu0 0.0
    %678 = vmatpush1.msra.mxu0 0.0
    %679 = vmatprep.subr.mxu0 0.0
    %680 = vmatpush1.msra.mxu0 0.0
    %681 = vmatprep.subr.mxu0 0.0
    %682 = vmatpush1.msra.mxu0 0.0
    %683 = vmatprep.subr.mxu0 0.0
    %684 = vmatpush1.msra.mxu0 0.0
    %685 = vmatprep.subr.mxu0 0.0
    %686 = vmatpush1.msra.mxu0 0.0
    %687 = vmatprep.subr.mxu0 0.0
    %688 = vmatpush1.msra.mxu0 0.0
    %689 = vmatprep.subr.mxu0 0.0
    %690 = vmatpush1.msra.mxu0 0.0
    %691 = vmatprep.subr.mxu0 0.0
    %692 = vmatpush1.msra.mxu0 0.0
    %693 = vmatprep.subr.mxu0 0.0
    %694 = vmatpush1.msra.mxu0 0.0
    %695 = vmatprep.subr.mxu0 0.0
    %696 = vmatpush1.msra.mxu0 0.0
    %697 = vmatprep.subr.mxu0 0.0
    %698 = vmatpush1.msra.mxu0 0.0
    %699 = vmatprep.subr.mxu0 0.0
    %700 = vmatpush1.msra.mxu0 0.0
    %701 = vmatprep.subr.mxu0 0.0
    %702 = vmatpush1.msra.mxu0 0.0
    %703 = vmatprep.subr.mxu0 0.0
    %704 = vmatpush1.msra.mxu0 0.0
    %705 = vmatprep.subr.mxu0 0.0
    %706 = vmatpush1.msra.mxu0 0.0
    %707 = vmatprep.subr.mxu0 0.0
    %708 = vmatpush1.msra.mxu0 0.0
    %709 = vmatprep.mubr.f32.mxu0 0.0
    %710 = vmatmul.mubr.f32.gmra.mrb[0].mxu0 %v643
    %v711 = vpop.f32.mrb[0].mxu0
    %v712 = vadd.f32 0.0, %v711
    %v713 = vpop.f32.mrb[0].mxu0
    %714 = vdwg.mxu0
    %715 = vrot.lane.b32.xlu0 %v120, 56
    %v716 = vpop.permute.xlu0 %715
    %v719 = vsel %vm130, %v638, 0
    %721 = vmatprep.subr.mxu0 0.0
    %722 = vmatpush1.msra.mxu0 %v716
    %723 = vmatprep.subr.mxu0 0.0
    %724 = vmatpush1.msra.mxu0 0.0
    %725 = vmatprep.subr.mxu0 0.0
    %726 = vmatpush1.msra.mxu0 0.0
    %727 = vmatprep.subr.mxu0 0.0
    %728 = vmatpush1.msra.mxu0 0.0
    %729 = vmatprep.subr.mxu0 0.0
    %730 = vmatpush1.msra.mxu0 0.0
    %731 = vmatprep.subr.mxu0 0.0
    %732 = vmatpush1.msra.mxu0 0.0
    %733 = vmatprep.subr.mxu0 0.0
    %734 = vmatpush1.msra.mxu0 0.0
    %735 = vmatprep.subr.mxu0 0.0
    %736 = vmatpush1.msra.mxu0 0.0
    %737 = vmatprep.subr.mxu0 0.0
    %738 = vmatpush1.msra.mxu0 0.0
    %739 = vmatprep.subr.mxu0 0.0
    %740 = vmatpush1.msra.mxu0 0.0
    %741 = vmatprep.subr.mxu0 0.0
    %742 = vmatpush1.msra.mxu0 0.0
    %743 = vmatprep.subr.mxu0 0.0
    %744 = vmatpush1.msra.mxu0 0.0
    %745 = vmatprep.subr.mxu0 0.0
    %746 = vmatpush1.msra.mxu0 0.0
    %747 = vmatprep.subr.mxu0 0.0
    %748 = vmatpush1.msra.mxu0 0.0
    %749 = vmatprep.subr.mxu0 0.0
    %750 = vmatpush1.msra.mxu0 0.0
    %751 = vmatprep.subr.mxu0 0.0
    %752 = vmatpush1.msra.mxu0 0.0
    %753 = vmatprep.subr.mxu0 0.0
    %754 = vmatpush1.msra.mxu0 0.0
    %755 = vmatprep.subr.mxu0 0.0
    %756 = vmatpush1.msra.mxu0 0.0
    %757 = vmatprep.subr.mxu0 0.0
    %758 = vmatpush1.msra.mxu0 0.0
    %759 = vmatprep.subr.mxu0 0.0
    %760 = vmatpush1.msra.mxu0 0.0
    %761 = vmatprep.subr.mxu0 0.0
    %762 = vmatpush1.msra.mxu0 0.0
    %763 = vmatprep.subr.mxu0 0.0
    %764 = vmatpush1.msra.mxu0 0.0
    %765 = vmatprep.subr.mxu0 0.0
    %766 = vmatpush1.msra.mxu0 0.0
    %767 = vmatprep.subr.mxu0 0.0
    %768 = vmatpush1.msra.mxu0 0.0
    %769 = vmatprep.subr.mxu0 0.0
    %770 = vmatpush1.msra.mxu0 0.0
    %771 = vmatprep.subr.mxu0 0.0
    %772 = vmatpush1.msra.mxu0 0.0
    %773 = vmatprep.subr.mxu0 0.0
    %774 = vmatpush1.msra.mxu0 0.0
    %775 = vmatprep.subr.mxu0 0.0
    %776 = vmatpush1.msra.mxu0 0.0
    %777 = vmatprep.subr.mxu0 0.0
    %778 = vmatpush1.msra.mxu0 0.0
    %779 = vmatprep.subr.mxu0 0.0
    %780 = vmatpush1.msra.mxu0 0.0
    %781 = vmatprep.subr.mxu0 0.0
    %782 = vmatpush1.msra.mxu0 0.0
    %783 = vmatprep.subr.mxu0 0.0
    %784 = vmatpush1.msra.mxu0 0.0
    %785 = vmatprep.mubr.f32.mxu0 0.0
    %786 = vmatmul.mubr.f32.gmra.mrb[0].mxu0 %v719
    %v787 = vpop.f32.mrb[0].mxu0
    %v788 = vadd.f32 0.0, %v787
    %v789 = vpop.f32.mrb[0].mxu0
    %790 = vdwg.mxu0
    %v791 = vpack.c.bf16 %v788, %v712
    %v793 = vsel %vm130, %v791, 0
    %vm795 = vcmask 1043456
    %v797 = vsel %vm795, %v124, 0
    %799 = vmatprep.subr.bf16.mxu0 0
    %800 = vmatpush1.bf16.msra.mxu0 %v797
    %801 = vmatprep.subr.bf16.mxu0 0
    %802 = vmatpush1.bf16.msra.mxu0 0
    %803 = vmatprep.subr.bf16.mxu0 0
    %804 = vmatpush1.bf16.msra.mxu0 0
    %805 = vmatprep.subr.bf16.mxu0 0
    %806 = vmatpush1.bf16.msra.mxu0 0
    %807 = vmatprep.subr.bf16.mxu0 0
    %808 = vmatpush1.bf16.msra.mxu0 0
    %809 = vmatprep.subr.bf16.mxu0 0
    %810 = vmatpush1.bf16.msra.mxu0 0
    %811 = vmatprep.subr.bf16.mxu0 0
    %812 = vmatpush1.bf16.msra.mxu0 0
    %813 = vmatprep.subr.bf16.mxu0 0
    %814 = vmatpush1.bf16.msra.mxu0 0
    %815 = vmatprep.subr.bf16.mxu0 0
    %816 = vmatpush1.bf16.msra.mxu0 0
    %817 = vmatprep.subr.bf16.mxu0 0
    %818 = vmatpush1.bf16.msra.mxu0 0
    %819 = vmatprep.subr.bf16.mxu0 0
    %820 = vmatpush1.bf16.msra.mxu0 0
    %821 = vmatprep.subr.bf16.mxu0 0
    %822 = vmatpush1.bf16.msra.mxu0 0
    %823 = vmatprep.subr.bf16.mxu0 0
    %824 = vmatpush1.bf16.msra.mxu0 0
    %825 = vmatprep.subr.bf16.mxu0 0
    %826 = vmatpush1.bf16.msra.mxu0 0
    %827 = vmatprep.subr.bf16.mxu0 0
    %828 = vmatpush1.bf16.msra.mxu0 0
    %829 = vmatprep.subr.bf16.mxu0 0
    %830 = vmatpush1.bf16.msra.mxu0 0
    %831 = vmatprep.mubr.bf16.mxu0 0
    %832 = vmatmul.mubr.bf16.gmra.mrb[0].mxu0 %v793
    %v833 = vpop.f32.mrb[0].mxu0
    %v834 = vadd.f32 0.0, %v833
    %v835 = vpop.f32.mrb[0].mxu0
    %v836 = vpop.f32.mrb[0].mxu0
    %v837 = vadd.f32 0.0, %v836
    %v838 = vpop.f32.mrb[0].mxu0
    %839 = vdwg.mxu0
    %v841 = vsel %vm130, %v458, 0
    %v844 = vsel %vm795, %v123, 0
    %846 = vmatprep.subr.bf16.mxu0 0
    %847 = vmatpush1.bf16.msra.mxu0 %v844
    %848 = vmatprep.subr.bf16.mxu0 0
    %849 = vmatpush1.bf16.msra.mxu0 0
    %850 = vmatprep.subr.bf16.mxu0 0
    %851 = vmatpush1.bf16.msra.mxu0 0
    %852 = vmatprep.subr.bf16.mxu0 0
    %853 = vmatpush1.bf16.msra.mxu0 0
    %854 = vmatprep.subr.bf16.mxu0 0
    %855 = vmatpush1.bf16.msra.mxu0 0
    %856 = vmatprep.subr.bf16.mxu0 0
    %857 = vmatpush1.bf16.msra.mxu0 0
    %858 = vmatprep.subr.bf16.mxu0 0
    %859 = vmatpush1.bf16.msra.mxu0 0
    %860 = vmatprep.subr.bf16.mxu0 0
    %861 = vmatpush1.bf16.msra.mxu0 0
    %862 = vmatprep.subr.bf16.mxu0 0
    %863 = vmatpush1.bf16.msra.mxu0 0
    %864 = vmatprep.subr.bf16.mxu0 0
    %865 = vmatpush1.bf16.msra.mxu0 0
    %866 = vmatprep.subr.bf16.mxu0 0
    %867 = vmatpush1.bf16.msra.mxu0 0
    %868 = vmatprep.subr.bf16.mxu0 0
    %869 = vmatpush1.bf16.msra.mxu0 0
    %870 = vmatprep.subr.bf16.mxu0 0
    %871 = vmatpush1.bf16.msra.mxu0 0
    %872 = vmatprep.subr.bf16.mxu0 0
    %873 = vmatpush1.bf16.msra.mxu0 0
    %874 = vmatprep.subr.bf16.mxu0 0
    %875 = vmatpush1.bf16.msra.mxu0 0
    %876 = vmatprep.subr.bf16.mxu0 0
    %877 = vmatpush1.bf16.msra.mxu0 0
    %878 = vmatprep.mubr.bf16.mxu0 0
    %879 = vmatmul.mubr.bf16.gmra.mrb[0].mxu0 %v841
    %v880 = vpop.f32.mrb[0].mxu0
    %v881 = vadd.f32 %v834, %v880
    %v882 = vpop.f32.mrb[0].mxu0
    %v883 = vpop.f32.mrb[0].mxu0
    %v884 = vadd.f32 %v837, %v883
    %v885 = vpop.f32.mrb[0].mxu0
    %886 = vdwg.mxu0
    %887 = vrot.lane.b32.xlu0 %v117, 112
    %v888 = vpop.permute.xlu0 %887
    %889 = vrot.lane.b32.xlu0 %v117, 80
    %v890 = vpop.permute.xlu0 %889
    %v891 = vsel %vm130, %v888, 0
    %v893 = vsel %vm130, %v890, 0
    %895 = vmatprep.subr.mxu0 0.0
    %896 = vmatpush1.xpose.msra.mxu0 %v893
    %897 = vmatprep.subr.mxu0 0.0
    %898 = vmatpush1.xpose.msra.mxu0 0.0
    %899 = vmatprep.subr.mxu0 0.0
    %900 = vmatpush1.xpose.msra.mxu0 0.0
    %901 = vmatprep.subr.mxu0 0.0
    %902 = vmatpush1.xpose.msra.mxu0 0.0
    %903 = vmatprep.subr.mxu0 0.0
    %904 = vmatpush1.xpose.msra.mxu0 0.0
    %905 = vmatprep.subr.mxu0 0.0
    %906 = vmatpush1.xpose.msra.mxu0 0.0
    %907 = vmatprep.subr.mxu0 0.0
    %908 = vmatpush1.xpose.msra.mxu0 0.0
    %909 = vmatprep.subr.mxu0 0.0
    %910 = vmatpush1.xpose.msra.mxu0 0.0
    %911 = vmatprep.subr.mxu0 0.0
    %912 = vmatpush1.xpose.msra.mxu0 0.0
    %913 = vmatprep.subr.mxu0 0.0
    %914 = vmatpush1.xpose.msra.mxu0 0.0
    %915 = vmatprep.subr.mxu0 0.0
    %916 = vmatpush1.xpose.msra.mxu0 0.0
    %917 = vmatprep.subr.mxu0 0.0
    %918 = vmatpush1.xpose.msra.mxu0 0.0
    %919 = vmatprep.subr.mxu0 0.0
    %920 = vmatpush1.xpose.msra.mxu0 0.0
    %921 = vmatprep.subr.mxu0 0.0
    %922 = vmatpush1.xpose.msra.mxu0 0.0
    %923 = vmatprep.subr.mxu0 0.0
    %924 = vmatpush1.xpose.msra.mxu0 0.0
    %925 = vmatprep.subr.mxu0 0.0
    %926 = vmatpush1.xpose.msra.mxu0 0.0
    %927 = vmatprep.subr.mxu0 0.0
    %928 = vmatpush1.xpose.msra.mxu0 0.0
    %929 = vmatprep.subr.mxu0 0.0
    %930 = vmatpush1.xpose.msra.mxu0 0.0
    %931 = vmatprep.subr.mxu0 0.0
    %932 = vmatpush1.xpose.msra.mxu0 0.0
    %933 = vmatprep.subr.mxu0 0.0
    %934 = vmatpush1.xpose.msra.mxu0 0.0
    %935 = vmatprep.subr.mxu0 0.0
    %936 = vmatpush1.xpose.msra.mxu0 0.0
    %937 = vmatprep.subr.mxu0 0.0
    %938 = vmatpush1.xpose.msra.mxu0 0.0
    %939 = vmatprep.subr.mxu0 0.0
    %940 = vmatpush1.xpose.msra.mxu0 0.0
    %941 = vmatprep.subr.mxu0 0.0
    %942 = vmatpush1.xpose.msra.mxu0 0.0
    %943 = vmatprep.subr.mxu0 0.0
    %944 = vmatpush1.xpose.msra.mxu0 0.0
    %945 = vmatprep.subr.mxu0 0.0
    %946 = vmatpush1.xpose.msra.mxu0 0.0
    %947 = vmatprep.subr.mxu0 0.0
    %948 = vmatpush1.xpose.msra.mxu0 0.0
    %949 = vmatprep.subr.mxu0 0.0
    %950 = vmatpush1.xpose.msra.mxu0 0.0
    %951 = vmatprep.subr.mxu0 0.0
    %952 = vmatpush1.xpose.msra.mxu0 0.0
    %953 = vmatprep.subr.mxu0 0.0
    %954 = vmatpush1.xpose.msra.mxu0 0.0
    %955 = vmatprep.subr.mxu0 0.0
    %956 = vmatpush1.xpose.msra.mxu0 0.0
    %957 = vmatprep.subr.mxu0 0.0
    %958 = vmatpush1.xpose.msra.mxu0 0.0
    %959 = vmatprep.mubr.f32.mxu0 0.0
    %960 = vmatmul.mubr.f32.gmra.mrb[0].mxu0 %v891
    %v961 = vpop.f32.mrb[0].mxu0
    %v962 = vadd.f32 0.0, %v961
    %v963 = vpop.f32.mrb[0].mxu0
    %964 = vdwg.mxu0
    %965 = vrot.lane.b32.xlu0 %v120, 112
    %v966 = vpop.permute.xlu0 %965
    %967 = vrot.lane.b32.xlu0 %v120, 80
    %v968 = vpop.permute.xlu0 %967
    %v969 = vsel %vm130, %v966, 0
    %v971 = vsel %vm130, %v968, 0
    %973 = vmatprep.subr.mxu0 0.0
    %974 = vmatpush1.xpose.msra.mxu0 %v971
    %975 = vmatprep.subr.mxu0 0.0
    %976 = vmatpush1.xpose.msra.mxu0 0.0
    %977 = vmatprep.subr.mxu0 0.0
    %978 = vmatpush1.xpose.msra.mxu0 0.0
    %979 = vmatprep.subr.mxu0 0.0
    %980 = vmatpush1.xpose.msra.mxu0 0.0
    %981 = vmatprep.subr.mxu0 0.0
    %982 = vmatpush1.xpose.msra.mxu0 0.0
    %983 = vmatprep.subr.mxu0 0.0
    %984 = vmatpush1.xpose.msra.mxu0 0.0
    %985 = vmatprep.subr.mxu0 0.0
    %986 = vmatpush1.xpose.msra.mxu0 0.0
    %987 = vmatprep.subr.mxu0 0.0
    %988 = vmatpush1.xpose.msra.mxu0 0.0
    %989 = vmatprep.subr.mxu0 0.0
    %990 = vmatpush1.xpose.msra.mxu0 0.0
    %991 = vmatprep.subr.mxu0 0.0
    %992 = vmatpush1.xpose.msra.mxu0 0.0
    %993 = vmatprep.subr.mxu0 0.0
    %994 = vmatpush1.xpose.msra.mxu0 0.0
    %995 = vmatprep.subr.mxu0 0.0
    %996 = vmatpush1.xpose.msra.mxu0 0.0
    %997 = vmatprep.subr.mxu0 0.0
    %998 = vmatpush1.xpose.msra.mxu0 0.0
    %999 = vmatprep.subr.mxu0 0.0
    %1000 = vmatpush1.xpose.msra.mxu0 0.0
    %1001 = vmatprep.subr.mxu0 0.0
    %1002 = vmatpush1.xpose.msra.mxu0 0.0
    %1003 = vmatprep.subr.mxu0 0.0
    %1004 = vmatpush1.xpose.msra.mxu0 0.0
    %1005 = vmatprep.subr.mxu0 0.0
    %1006 = vmatpush1.xpose.msra.mxu0 0.0
    %1007 = vmatprep.subr.mxu0 0.0
    %1008 = vmatpush1.xpose.msra.mxu0 0.0
    %1009 = vmatprep.subr.mxu0 0.0
    %1010 = vmatpush1.xpose.msra.mxu0 0.0
    %1011 = vmatprep.subr.mxu0 0.0
    %1012 = vmatpush1.xpose.msra.mxu0 0.0
    %1013 = vmatprep.subr.mxu0 0.0
    %1014 = vmatpush1.xpose.msra.mxu0 0.0
    %1015 = vmatprep.subr.mxu0 0.0
    %1016 = vmatpush1.xpose.msra.mxu0 0.0
    %1017 = vmatprep.subr.mxu0 0.0
    %1018 = vmatpush1.xpose.msra.mxu0 0.0
    %1019 = vmatprep.subr.mxu0 0.0
    %1020 = vmatpush1.xpose.msra.mxu0 0.0
    %1021 = vmatprep.subr.mxu0 0.0
    %1022 = vmatpush1.xpose.msra.mxu0 0.0
    %1023 = vmatprep.subr.mxu0 0.0
    %1024 = vmatpush1.xpose.msra.mxu0 0.0
    %1025 = vmatprep.subr.mxu0 0.0
    %1026 = vmatpush1.xpose.msra.mxu0 0.0
    %1027 = vmatprep.subr.mxu0 0.0
    %1028 = vmatpush1.xpose.msra.mxu0 0.0
    %1029 = vmatprep.subr.mxu0 0.0
    %1030 = vmatpush1.xpose.msra.mxu0 0.0
    %1031 = vmatprep.subr.mxu0 0.0
    %1032 = vmatpush1.xpose.msra.mxu0 0.0
    %1033 = vmatprep.subr.mxu0 0.0
    %1034 = vmatpush1.xpose.msra.mxu0 0.0
    %1035 = vmatprep.subr.mxu0 0.0
    %1036 = vmatpush1.xpose.msra.mxu0 0.0
    %1037 = vmatprep.mubr.f32.mxu0 0.0
    %1038 = vmatmul.mubr.f32.gmra.mrb[0].mxu0 %v969
    %v1039 = vpop.f32.mrb[0].mxu0
    %v1040 = vadd.f32 0.0, %v1039
    %v1041 = vpop.f32.mrb[0].mxu0
    %1042 = vdwg.mxu0
    %v1043 = vmul.f32 %v962, 0.35355338
    %v1044 = vmul.f32 %v1040, 0.35355338
    %v1045 = vsel %vm130, %v1043, -inf
    %1046 = vmax.xlane.f32.xlu0 %v1045
    %v1047 = vpop.xlane.xlu0 %1046
    %v1048 = vsel %vm130, %v1044, -inf
    %1049 = vmax.xlane.f32.xlu0 %v1048
    %v1050 = vpop.xlane.xlu0 %1049
    %v1051 = vsub.f32 %v1043, %v1047
    %v1052 = vsub.f32 %v1044, %v1050
    %v1053 = vmul.f32 %v1051, 1.442695
    %v1054 = vpow.pop %v1053
    %v1055 = vmul.f32 %v1052, 1.442695
    %v1056 = vpow.pop %v1055
    %v1057 = vsel %vm130, %v1054, 0.0
    %1058 = vadd.xlane.f32.xlu0 %v1057
    %v1059 = vpop.xlane.xlu0 %1058
    %v1060 = vsel %vm130, %v1056, 0.0
    %1061 = vadd.xlane.f32.xlu0 %v1060
    %v1062 = vpop.xlane.xlu0 %1061
    %v1063 = vrcp.pop %v1059
    %v1064 = vrcp.pop %v1062
    %v1065 = vmul.f32 %v1054, %v1063
    %v1066 = vmul.f32 %v1056, %v1064
    %1067 = vrot.lane.b32.xlu0 %v117, 48
    %v1068 = vpop.permute.xlu0 %1067
    %v1071 = vsel %vm130, %v1065, 0
    %1073 = vmatprep.subr.mxu0 0.0
    %1074 = vmatpush1.msra.mxu0 %v1068
    %1075 = vmatprep.subr.mxu0 0.0
    %1076 = vmatpush1.msra.mxu0 0.0
    %1077 = vmatprep.subr.mxu0 0.0
    %1078 = vmatpush1.msra.mxu0 0.0
    %1079 = vmatprep.subr.mxu0 0.0
    %1080 = vmatpush1.msra.mxu0 0.0
    %1081 = vmatprep.subr.mxu0 0.0
    %1082 = vmatpush1.msra.mxu0 0.0
    %1083 = vmatprep.subr.mxu0 0.0
    %1084 = vmatpush1.msra.mxu0 0.0
    %1085 = vmatprep.subr.mxu0 0.0
    %1086 = vmatpush1.msra.mxu0 0.0
    %1087 = vmatprep.subr.mxu0 0.0
    %1088 = vmatpush1.msra.mxu0 0.0
    %1089 = vmatprep.subr.mxu0 0.0
    %1090 = vmatpush1.msra.mxu0 0.0
    %1091 = vmatprep.subr.mxu0 0.0
    %1092 = vmatpush1.msra.mxu0 0.0
    %1093 = vmatprep.subr.mxu0 0.0
    %1094 = vmatpush1.msra.mxu0 0.0
    %1095 = vmatprep.subr.mxu0 0.0
    %1096 = vmatpush1.msra.mxu0 0.0
    %1097 = vmatprep.subr.mxu0 0.0
    %1098 = vmatpush1.msra.mxu0 0.0
    %1099 = vmatprep.subr.mxu0 0.0
    %1100 = vmatpush1.msra.mxu0 0.0
    %1101 = vmatprep.subr.mxu0 0.0
    %1102 = vmatpush1.msra.mxu0 0.0
    %1103 = vmatprep.subr.mxu0 0.0
    %1104 = vmatpush1.msra.mxu0 0.0
    %1105 = vmatprep.subr.mxu0 0.0
    %1106 = vmatpush1.msra.mxu0 0.0
    %1107 = vmatprep.subr.mxu0 0.0
    %1108 = vmatpush1.msra.mxu0 0.0
    %1109 = vmatprep.subr.mxu0 0.0
    %1110 = vmatpush1.msra.mxu0 0.0
    %1111 = vmatprep.subr.mxu0 0.0
    %1112 = vmatpush1.msra.mxu0 0.0
    %1113 = vmatprep.subr.mxu0 0.0
    %1114 = vmatpush1.msra.mxu0 0.0
    %1115 = vmatprep.subr.mxu0 0.0
    %1116 = vmatpush1.msra.mxu0 0.0
    %1117 = vmatprep.subr.mxu0 0.0
    %1118 = vmatpush1.msra.mxu0 0.0
    %1119 = vmatprep.subr.mxu0 0.0
    %1120 = vmatpush1.msra.mxu0 0.0
    %1121 = vmatprep.subr.mxu0 0.0
    %1122 = vmatpush1.msra.mxu0 0.0
    %1123 = vmatprep.subr.mxu0 0.0
    %1124 = vmatpush1.msra.mxu0 0.0
    %1125 = vmatprep.subr.mxu0 0.0
    %1126 = vmatpush1.msra.mxu0 0.0
    %1127 = vmatprep.subr.mxu0 0.0
    %1128 = vmatpush1.msra.mxu0 0.0
    %1129 = vmatprep.subr.mxu0 0.0
    %1130 = vmatpush1.msra.mxu0 0.0
    %1131 = vmatprep.subr.mxu0 0.0
    %1132 = vmatpush1.msra.mxu0 0.0
    %1133 = vmatprep.subr.mxu0 0.0
    %1134 = vmatpush1.msra.mxu0 0.0
    %1135 = vmatprep.subr.mxu0 0.0
    %1136 = vmatpush1.msra.mxu0 0.0
    %1137 = vmatprep.mubr.f32.mxu0 0.0
    %1138 = vmatmul.mubr.f32.gmra.mrb[0].mxu0 %v1071
    %v1139 = vpop.f32.mrb[0].mxu0
    %v1140 = vadd.f32 0.0, %v1139
    %v1141 = vpop.f32.mrb[0].mxu0
    %1142 = vdwg.mxu0
    %1143 = vrot.lane.b32.xlu0 %v120, 48
    %v1144 = vpop.permute.xlu0 %1143
    %v1147 = vsel %vm130, %v1066, 0
    %1149 = vmatprep.subr.mxu0 0.0
    %1150 = vmatpush1.msra.mxu0 %v1144
    %1151 = vmatprep.subr.mxu0 0.0
    %1152 = vmatpush1.msra.mxu0 0.0
    %1153 = vmatprep.subr.mxu0 0.0
    %1154 = vmatpush1.msra.mxu0 0.0
    %1155 = vmatprep.subr.mxu0 0.0
    %1156 = vmatpush1.msra.mxu0 0.0
    %1157 = vmatprep.subr.mxu0 0.0
    %1158 = vmatpush1.msra.mxu0 0.0
    %1159 = vmatprep.subr.mxu0 0.0
    %1160 = vmatpush1.msra.mxu0 0.0
    %1161 = vmatprep.subr.mxu0 0.0
    %1162 = vmatpush1.msra.mxu0 0.0
    %1163 = vmatprep.subr.mxu0 0.0
    %1164 = vmatpush1.msra.mxu0 0.0
    %1165 = vmatprep.subr.mxu0 0.0
    %1166 = vmatpush1.msra.mxu0 0.0
    %1167 = vmatprep.subr.mxu0 0.0
    %1168 = vmatpush1.msra.mxu0 0.0
    %1169 = vmatprep.subr.mxu0 0.0
    %1170 = vmatpush1.msra.mxu0 0.0
    %1171 = vmatprep.subr.mxu0 0.0
    %1172 = vmatpush1.msra.mxu0 0.0
    %1173 = vmatprep.subr.mxu0 0.0
    %1174 = vmatpush1.msra.mxu0 0.0
    %1175 = vmatprep.subr.mxu0 0.0
    %1176 = vmatpush1.msra.mxu0 0.0
    %1177 = vmatprep.subr.mxu0 0.0
    %1178 = vmatpush1.msra.mxu0 0.0
    %1179 = vmatprep.subr.mxu0 0.0
    %1180 = vmatpush1.msra.mxu0 0.0
    %1181 = vmatprep.subr.mxu0 0.0
    %1182 = vmatpush1.msra.mxu0 0.0
    %1183 = vmatprep.subr.mxu0 0.0
    %1184 = vmatpush1.msra.mxu0 0.0
    %1185 = vmatprep.subr.mxu0 0.0
    %1186 = vmatpush1.msra.mxu0 0.0
    %1187 = vmatprep.subr.mxu0 0.0
    %1188 = vmatpush1.msra.mxu0 0.0
    %1189 = vmatprep.subr.mxu0 0.0
    %1190 = vmatpush1.msra.mxu0 0.0
    %1191 = vmatprep.subr.mxu0 0.0
    %1192 = vmatpush1.msra.mxu0 0.0
    %1193 = vmatprep.subr.mxu0 0.0
    %1194 = vmatpush1.msra.mxu0 0.0
    %1195 = vmatprep.subr.mxu0 0.0
    %1196 = vmatpush1.msra.mxu0 0.0
    %1197 = vmatprep.subr.mxu0 0.0
    %1198 = vmatpush1.msra.mxu0 0.0
    %1199 = vmatprep.subr.mxu0 0.0
    %1200 = vmatpush1.msra.mxu0 0.0
    %1201 = vmatprep.subr.mxu0 0.0
    %1202 = vmatpush1.msra.mxu0 0.0
    %1203 = vmatprep.subr.mxu0 0.0
    %1204 = vmatpush1.msra.mxu0 0.0
    %1205 = vmatprep.subr.mxu0 0.0
    %1206 = vmatpush1.msra.mxu0 0.0
    %1207 = vmatprep.subr.mxu0 0.0
    %1208 = vmatpush1.msra.mxu0 0.0
    %1209 = vmatprep.subr.mxu0 0.0
    %1210 = vmatpush1.msra.mxu0 0.0
    %1211 = vmatprep.subr.mxu0 0.0
    %1212 = vmatpush1.msra.mxu0 0.0
    %1213 = vmatprep.mubr.f32.mxu0 0.0
    %1214 = vmatmul.mubr.f32.gmra.mrb[0].mxu0 %v1147
    %v1215 = vpop.f32.mrb[0].mxu0
    %v1216 = vadd.f32 0.0, %v1215
    %v1217 = vpop.f32.mrb[0].mxu0
    %1218 = vdwg.mxu0
    %v1219 = vpack.c.bf16 %v1216, %v1140
    %v1221 = vsel %vm130, %v1219, 0
    %v1224 = vsel %vm795, %v125, 0
    %1226 = vmatprep.subr.bf16.mxu0 0
    %1227 = vmatpush1.bf16.msra.mxu0 %v1224
    %1228 = vmatprep.subr.bf16.mxu0 0
    %1229 = vmatpush1.bf16.msra.mxu0 0
    %1230 = vmatprep.subr.bf16.mxu0 0
    %1231 = vmatpush1.bf16.msra.mxu0 0
    %1232 = vmatprep.subr.bf16.mxu0 0
    %1233 = vmatpush1.bf16.msra.mxu0 0
    %1234 = vmatprep.subr.bf16.mxu0 0
    %1235 = vmatpush1.bf16.msra.mxu0 0
    %1236 = vmatprep.subr.bf16.mxu0 0
    %1237 = vmatpush1.bf16.msra.mxu0 0
    %1238 = vmatprep.subr.bf16.mxu0 0
    %1239 = vmatpush1.bf16.msra.mxu0 0
    %1240 = vmatprep.subr.bf16.mxu0 0
    %1241 = vmatpush1.bf16.msra.mxu0 0
    %1242 = vmatprep.subr.bf16.mxu0 0
    %1243 = vmatpush1.bf16.msra.mxu0 0
    %1244 = vmatprep.subr.bf16.mxu0 0
    %1245 = vmatpush1.bf16.msra.mxu0 0
    %1246 = vmatprep.subr.bf16.mxu0 0
    %1247 = vmatpush1.bf16.msra.mxu0 0
    %1248 = vmatprep.subr.bf16.mxu0 0
    %1249 = vmatpush1.bf16.msra.mxu0 0
    %1250 = vmatprep.subr.bf16.mxu0 0
    %1251 = vmatpush1.bf16.msra.mxu0 0
    %1252 = vmatprep.subr.bf16.mxu0 0
    %1253 = vmatpush1.bf16.msra.mxu0 0
    %1254 = vmatprep.subr.bf16.mxu0 0
    %1255 = vmatpush1.bf16.msra.mxu0 0
    %1256 = vmatprep.subr.bf16.mxu0 0
    %1257 = vmatpush1.bf16.msra.mxu0 0
    %1258 = vmatprep.mubr.bf16.mxu0 0
    %1259 = vmatmul.mubr.bf16.gmra.mrb[0].mxu0 %v1221
    %v1260 = vpop.f32.mrb[0].mxu0
    %v1261 = vadd.f32 0.0, %v1260
    %v1262 = vpop.f32.mrb[0].mxu0
    %v1263 = vpop.f32.mrb[0].mxu0
    %v1264 = vadd.f32 0.0, %v1263
    %v1265 = vpop.f32.mrb[0].mxu0
    %1266 = vdwg.mxu0
    %v1267 = vadd.f32 %v881, %v1261
    %v1268 = vadd.f32 %v884, %v1264
    %1269 = vrot.lane.b32.xlu0 %v117, 104
    %v1270 = vpop.permute.xlu0 %1269
    %1271 = vrot.lane.b32.xlu0 %v117, 72
    %v1272 = vpop.permute.xlu0 %1271
    %v1273 = vsel %vm130, %v1270, 0
    %v1275 = vsel %vm130, %v1272, 0
    %1277 = vmatprep.subr.mxu0 0.0
    %1278 = vmatpush1.xpose.msra.mxu0 %v1275
    %1279 = vmatprep.subr.mxu0 0.0
    %1280 = vmatpush1.xpose.msra.mxu0 0.0
    %1281 = vmatprep.subr.mxu0 0.0
    %1282 = vmatpush1.xpose.msra.mxu0 0.0
    %1283 = vmatprep.subr.mxu0 0.0
    %1284 = vmatpush1.xpose.msra.mxu0 0.0
    %1285 = vmatprep.subr.mxu0 0.0
    %1286 = vmatpush1.xpose.msra.mxu0 0.0
    %1287 = vmatprep.subr.mxu0 0.0
    %1288 = vmatpush1.xpose.msra.mxu0 0.0
    %1289 = vmatprep.subr.mxu0 0.0
    %1290 = vmatpush1.xpose.msra.mxu0 0.0
    %1291 = vmatprep.subr.mxu0 0.0
    %1292 = vmatpush1.xpose.msra.mxu0 0.0
    %1293 = vmatprep.subr.mxu0 0.0
    %1294 = vmatpush1.xpose.msra.mxu0 0.0
    %1295 = vmatprep.subr.mxu0 0.0
    %1296 = vmatpush1.xpose.msra.mxu0 0.0
    %1297 = vmatprep.subr.mxu0 0.0
    %1298 = vmatpush1.xpose.msra.mxu0 0.0
    %1299 = vmatprep.subr.mxu0 0.0
    %1300 = vmatpush1.xpose.msra.mxu0 0.0
    %1301 = vmatprep.subr.mxu0 0.0
    %1302 = vmatpush1.xpose.msra.mxu0 0.0
    %1303 = vmatprep.subr.mxu0 0.0
    %1304 = vmatpush1.xpose.msra.mxu0 0.0
    %1305 = vmatprep.subr.mxu0 0.0
    %1306 = vmatpush1.xpose.msra.mxu0 0.0
    %1307 = vmatprep.subr.mxu0 0.0
    %1308 = vmatpush1.xpose.msra.mxu0 0.0
    %1309 = vmatprep.subr.mxu0 0.0
    %1310 = vmatpush1.xpose.msra.mxu0 0.0
    %1311 = vmatprep.subr.mxu0 0.0
    %1312 = vmatpush1.xpose.msra.mxu0 0.0
    %1313 = vmatprep.subr.mxu0 0.0
    %1314 = vmatpush1.xpose.msra.mxu0 0.0
    %1315 = vmatprep.subr.mxu0 0.0
    %1316 = vmatpush1.xpose.msra.mxu0 0.0
    %1317 = vmatprep.subr.mxu0 0.0
    %1318 = vmatpush1.xpose.msra.mxu0 0.0
    %1319 = vmatprep.subr.mxu0 0.0
    %1320 = vmatpush1.xpose.msra.mxu0 0.0
    %1321 = vmatprep.subr.mxu0 0.0
    %1322 = vmatpush1.xpose.msra.mxu0 0.0
    %1323 = vmatprep.subr.mxu0 0.0
    %1324 = vmatpush1.xpose.msra.mxu0 0.0
    %1325 = vmatprep.subr.mxu0 0.0
    %1326 = vmatpush1.xpose.msra.mxu0 0.0
    %1327 = vmatprep.subr.mxu0 0.0
    %1328 = vmatpush1.xpose.msra.mxu0 0.0
    %1329 = vmatprep.subr.mxu0 0.0
    %1330 = vmatpush1.xpose.msra.mxu0 0.0
    %1331 = vmatprep.subr.mxu0 0.0
    %1332 = vmatpush1.xpose.msra.mxu0 0.0
    %1333 = vmatprep.subr.mxu0 0.0
    %1334 = vmatpush1.xpose.msra.mxu0 0.0
    %1335 = vmatprep.subr.mxu0 0.0
    %1336 = vmatpush1.xpose.msra.mxu0 0.0
    %1337 = vmatprep.subr.mxu0 0.0
    %1338 = vmatpush1.xpose.msra.mxu0 0.0
    %1339 = vmatprep.subr.mxu0 0.0
    %1340 = vmatpush1.xpose.msra.mxu0 0.0
    %1341 = vmatprep.mubr.f32.mxu0 0.0
    %1342 = vmatmul.mubr.f32.gmra.mrb[0].mxu0 %v1273
    %v1343 = vpop.f32.mrb[0].mxu0
    %v1344 = vadd.f32 0.0, %v1343
    %v1345 = vpop.f32.mrb[0].mxu0
    %1346 = vdwg.mxu0
    %1347 = vrot.lane.b32.xlu0 %v120, 104
    %v1348 = vpop.permute.xlu0 %1347
    %1349 = vrot.lane.b32.xlu0 %v120, 72
    %v1350 = vpop.permute.xlu0 %1349
    %v1351 = vsel %vm130, %v1348, 0
    %v1353 = vsel %vm130, %v1350, 0
    %1355 = vmatprep.subr.mxu0 0.0
    %1356 = vmatpush1.xpose.msra.mxu0 %v1353
    %1357 = vmatprep.subr.mxu0 0.0
    %1358 = vmatpush1.xpose.msra.mxu0 0.0
    %1359 = vmatprep.subr.mxu0 0.0
    %1360 = vmatpush1.xpose.msra.mxu0 0.0
    %1361 = vmatprep.subr.mxu0 0.0
    %1362 = vmatpush1.xpose.msra.mxu0 0.0
    %1363 = vmatprep.subr.mxu0 0.0
    %1364 = vmatpush1.xpose.msra.mxu0 0.0
    %1365 = vmatprep.subr.mxu0 0.0
    %1366 = vmatpush1.xpose.msra.mxu0 0.0
    %1367 = vmatprep.subr.mxu0 0.0
    %1368 = vmatpush1.xpose.msra.mxu0 0.0
    %1369 = vmatprep.subr.mxu0 0.0
    %1370 = vmatpush1.xpose.msra.mxu0 0.0
    %1371 = vmatprep.subr.mxu0 0.0
    %1372 = vmatpush1.xpose.msra.mxu0 0.0
    %1373 = vmatprep.subr.mxu0 0.0
    %1374 = vmatpush1.xpose.msra.mxu0 0.0
    %1375 = vmatprep.subr.mxu0 0.0
    %1376 = vmatpush1.xpose.msra.mxu0 0.0
    %1377 = vmatprep.subr.mxu0 0.0
    %1378 = vmatpush1.xpose.msra.mxu0 0.0
    %1379 = vmatprep.subr.mxu0 0.0
    %1380 = vmatpush1.xpose.msra.mxu0 0.0
    %1381 = vmatprep.subr.mxu0 0.0
    %1382 = vmatpush1.xpose.msra.mxu0 0.0
    %1383 = vmatprep.subr.mxu0 0.0
    %1384 = vmatpush1.xpose.msra.mxu0 0.0
    %1385 = vmatprep.subr.mxu0 0.0
    %1386 = vmatpush1.xpose.msra.mxu0 0.0
    %1387 = vmatprep.subr.mxu0 0.0
    %1388 = vmatpush1.xpose.msra.mxu0 0.0
    %1389 = vmatprep.subr.mxu0 0.0
    %1390 = vmatpush1.xpose.msra.mxu0 0.0
    %1391 = vmatprep.subr.mxu0 0.0
    %1392 = vmatpush1.xpose.msra.mxu0 0.0
    %1393 = vmatprep.subr.mxu0 0.0
    %1394 = vmatpush1.xpose.msra.mxu0 0.0
    %1395 = vmatprep.subr.mxu0 0.0
    %1396 = vmatpush1.xpose.msra.mxu0 0.0
    %1397 = vmatprep.subr.mxu0 0.0
    %1398 = vmatpush1.xpose.msra.mxu0 0.0
    %1399 = vmatprep.subr.mxu0 0.0
    %1400 = vmatpush1.xpose.msra.mxu0 0.0
    %1401 = vmatprep.subr.mxu0 0.0
    %1402 = vmatpush1.xpose.msra.mxu0 0.0
    %1403 = vmatprep.subr.mxu0 0.0
    %1404 = vmatpush1.xpose.msra.mxu0 0.0
    %1405 = vmatprep.subr.mxu0 0.0
    %1406 = vmatpush1.xpose.msra.mxu0 0.0
    %1407 = vmatprep.subr.mxu0 0.0
    %1408 = vmatpush1.xpose.msra.mxu0 0.0
    %1409 = vmatprep.subr.mxu0 0.0
    %1410 = vmatpush1.xpose.msra.mxu0 0.0
    %1411 = vmatprep.subr.mxu0 0.0
    %1412 = vmatpush1.xpose.msra.mxu0 0.0
    %1413 = vmatprep.subr.mxu0 0.0
    %1414 = vmatpush1.xpose.msra.mxu0 0.0
    %1415 = vmatprep.subr.mxu0 0.0
    %1416 = vmatpush1.xpose.msra.mxu0 0.0
    %1417 = vmatprep.subr.mxu0 0.0
    %1418 = vmatpush1.xpose.msra.mxu0 0.0
    %1419 = vmatprep.mubr.f32.mxu0 0.0
    %1420 = vmatmul.mubr.f32.gmra.mrb[0].mxu0 %v1351
    %v1421 = vpop.f32.mrb[0].mxu0
    %v1422 = vadd.f32 0.0, %v1421
    %v1423 = vpop.f32.mrb[0].mxu0
    %1424 = vdwg.mxu0
    %v1425 = vmul.f32 %v1344, 0.35355338
    %v1426 = vmul.f32 %v1422, 0.35355338
    %v1427 = vsel %vm130, %v1425, -inf
    %1428 = vmax.xlane.f32.xlu0 %v1427
    %v1429 = vpop.xlane.xlu0 %1428
    %v1430 = vsel %vm130, %v1426, -inf
    %1431 = vmax.xlane.f32.xlu0 %v1430
    %v1432 = vpop.xlane.xlu0 %1431
    %v1433 = vsub.f32 %v1425, %v1429
    %v1434 = vsub.f32 %v1426, %v1432
    %v1435 = vmul.f32 %v1433, 1.442695
    %v1436 = vpow.pop %v1435
    %v1437 = vmul.f32 %v1434, 1.442695
    %v1438 = vpow.pop %v1437
    %v1439 = vsel %vm130, %v1436, 0.0
    %1440 = vadd.xlane.f32.xlu0 %v1439
    %v1441 = vpop.xlane.xlu0 %1440
    %v1442 = vsel %vm130, %v1438, 0.0
    %1443 = vadd.xlane.f32.xlu0 %v1442
    %v1444 = vpop.xlane.xlu0 %1443
    %v1445 = vrcp.pop %v1441
    %v1446 = vrcp.pop %v1444
    %v1447 = vmul.f32 %v1436, %v1445
    %v1448 = vmul.f32 %v1438, %v1446
    %1449 = vrot.lane.b32.xlu0 %v117, 40
    %v1450 = vpop.permute.xlu0 %1449
    %v1453 = vsel %vm130, %v1447, 0
    %1455 = vmatprep.subr.mxu0 0.0
    %1456 = vmatpush1.msra.mxu0 %v1450
    %1457 = vmatprep.subr.mxu0 0.0
    %1458 = vmatpush1.msra.mxu0 0.0
    %1459 = vmatprep.subr.mxu0 0.0
    %1460 = vmatpush1.msra.mxu0 0.0
    %1461 = vmatprep.subr.mxu0 0.0
    %1462 = vmatpush1.msra.mxu0 0.0
    %1463 = vmatprep.subr.mxu0 0.0
    %1464 = vmatpush1.msra.mxu0 0.0
    %1465 = vmatprep.subr.mxu0 0.0
    %1466 = vmatpush1.msra.mxu0 0.0
    %1467 = vmatprep.subr.mxu0 0.0
    %1468 = vmatpush1.msra.mxu0 0.0
    %1469 = vmatprep.subr.mxu0 0.0
    %1470 = vmatpush1.msra.mxu0 0.0
    %1471 = vmatprep.subr.mxu0 0.0
    %1472 = vmatpush1.msra.mxu0 0.0
    %1473 = vmatprep.subr.mxu0 0.0
    %1474 = vmatpush1.msra.mxu0 0.0
    %1475 = vmatprep.subr.mxu0 0.0
    %1476 = vmatpush1.msra.mxu0 0.0
    %1477 = vmatprep.subr.mxu0 0.0
    %1478 = vmatpush1.msra.mxu0 0.0
    %1479 = vmatprep.subr.mxu0 0.0
    %1480 = vmatpush1.msra.mxu0 0.0
    %1481 = vmatprep.subr.mxu0 0.0
    %1482 = vmatpush1.msra.mxu0 0.0
    %1483 = vmatprep.subr.mxu0 0.0
    %1484 = vmatpush1.msra.mxu0 0.0
    %1485 = vmatprep.subr.mxu0 0.0
    %1486 = vmatpush1.msra.mxu0 0.0
    %1487 = vmatprep.subr.mxu0 0.0
    %1488 = vmatpush1.msra.mxu0 0.0
    %1489 = vmatprep.subr.mxu0 0.0
    %1490 = vmatpush1.msra.mxu0 0.0
    %1491 = vmatprep.subr.mxu0 0.0
    %1492 = vmatpush1.msra.mxu0 0.0
    %1493 = vmatprep.subr.mxu0 0.0
    %1494 = vmatpush1.msra.mxu0 0.0
    %1495 = vmatprep.subr.mxu0 0.0
    %1496 = vmatpush1.msra.mxu0 0.0
    %1497 = vmatprep.subr.mxu0 0.0
    %1498 = vmatpush1.msra.mxu0 0.0
    %1499 = vmatprep.subr.mxu0 0.0
    %1500 = vmatpush1.msra.mxu0 0.0
    %1501 = vmatprep.subr.mxu0 0.0
    %1502 = vmatpush1.msra.mxu0 0.0
    %1503 = vmatprep.subr.mxu0 0.0
    %1504 = vmatpush1.msra.mxu0 0.0
    %1505 = vmatprep.subr.mxu0 0.0
    %1506 = vmatpush1.msra.mxu0 0.0
    %1507 = vmatprep.subr.mxu0 0.0
    %1508 = vmatpush1.msra.mxu0 0.0
    %1509 = vmatprep.subr.mxu0 0.0
    %1510 = vmatpush1.msra.mxu0 0.0
    %1511 = vmatprep.subr.mxu0 0.0
    %1512 = vmatpush1.msra.mxu0 0.0
    %1513 = vmatprep.subr.mxu0 0.0
    %1514 = vmatpush1.msra.mxu0 0.0
    %1515 = vmatprep.subr.mxu0 0.0
    %1516 = vmatpush1.msra.mxu0 0.0
    %1517 = vmatprep.subr.mxu0 0.0
    %1518 = vmatpush1.msra.mxu0 0.0
    %1519 = vmatprep.mubr.f32.mxu0 0.0
    %1520 = vmatmul.mubr.f32.gmra.mrb[0].mxu0 %v1453
    %v1521 = vpop.f32.mrb[0].mxu0
    %v1522 = vadd.f32 0.0, %v1521
    %v1523 = vpop.f32.mrb[0].mxu0
    %1524 = vdwg.mxu0
    %1525 = vrot.lane.b32.xlu0 %v120, 40
    %v1526 = vpop.permute.xlu0 %1525
    %v1529 = vsel %vm130, %v1448, 0
    %1531 = vmatprep.subr.mxu0 0.0
    %1532 = vmatpush1.msra.mxu0 %v1526
    %1533 = vmatprep.subr.mxu0 0.0
    %1534 = vmatpush1.msra.mxu0 0.0
    %1535 = vmatprep.subr.mxu0 0.0
    %1536 = vmatpush1.msra.mxu0 0.0
    %1537 = vmatprep.subr.mxu0 0.0
    %1538 = vmatpush1.msra.mxu0 0.0
    %1539 = vmatprep.subr.mxu0 0.0
    %1540 = vmatpush1.msra.mxu0 0.0
    %1541 = vmatprep.subr.mxu0 0.0
    %1542 = vmatpush1.msra.mxu0 0.0
    %1543 = vmatprep.subr.mxu0 0.0
    %1544 = vmatpush1.msra.mxu0 0.0
    %1545 = vmatprep.subr.mxu0 0.0
    %1546 = vmatpush1.msra.mxu0 0.0
    %1547 = vmatprep.subr.mxu0 0.0
    %1548 = vmatpush1.msra.mxu0 0.0
    %1549 = vmatprep.subr.mxu0 0.0
    %1550 = vmatpush1.msra.mxu0 0.0
    %1551 = vmatprep.subr.mxu0 0.0
    %1552 = vmatpush1.msra.mxu0 0.0
    %1553 = vmatprep.subr.mxu0 0.0
    %1554 = vmatpush1.msra.mxu0 0.0
    %1555 = vmatprep.subr.mxu0 0.0
    %1556 = vmatpush1.msra.mxu0 0.0
    %1557 = vmatprep.subr.mxu0 0.0
    %1558 = vmatpush1.msra.mxu0 0.0
    %1559 = vmatprep.subr.mxu0 0.0
    %1560 = vmatpush1.msra.mxu0 0.0
    %1561 = vmatprep.subr.mxu0 0.0
    %1562 = vmatpush1.msra.mxu0 0.0
    %1563 = vmatprep.subr.mxu0 0.0
    %1564 = vmatpush1.msra.mxu0 0.0
    %1565 = vmatprep.subr.mxu0 0.0
    %1566 = vmatpush1.msra.mxu0 0.0
    %1567 = vmatprep.subr.mxu0 0.0
    %1568 = vmatpush1.msra.mxu0 0.0
    %1569 = vmatprep.subr.mxu0 0.0
    %1570 = vmatpush1.msra.mxu0 0.0
    %1571 = vmatprep.subr.mxu0 0.0
    %1572 = vmatpush1.msra.mxu0 0.0
    %1573 = vmatprep.subr.mxu0 0.0
    %1574 = vmatpush1.msra.mxu0 0.0
    %1575 = vmatprep.subr.mxu0 0.0
    %1576 = vmatpush1.msra.mxu0 0.0
    %1577 = vmatprep.subr.mxu0 0.0
    %1578 = vmatpush1.msra.mxu0 0.0
    %1579 = vmatprep.subr.mxu0 0.0
    %1580 = vmatpush1.msra.mxu0 0.0
    %1581 = vmatprep.subr.mxu0 0.0
    %1582 = vmatpush1.msra.mxu0 0.0
    %1583 = vmatprep.subr.mxu0 0.0
    %1584 = vmatpush1.msra.mxu0 0.0
    %1585 = vmatprep.subr.mxu0 0.0
    %1586 = vmatpush1.msra.mxu0 0.0
    %1587 = vmatprep.subr.mxu0 0.0
    %1588 = vmatpush1.msra.mxu0 0.0
    %1589 = vmatprep.subr.mxu0 0.0
    %1590 = vmatpush1.msra.mxu0 0.0
    %1591 = vmatprep.subr.mxu0 0.0
    %1592 = vmatpush1.msra.mxu0 0.0
    %1593 = vmatprep.subr.mxu0 0.0
    %1594 = vmatpush1.msra.mxu0 0.0
    %1595 = vmatprep.mubr.f32.mxu0 0.0
    %1596 = vmatmul.mubr.f32.gmra.mrb[0].mxu0 %v1529
    %v1597 = vpop.f32.mrb[0].mxu0
    %v1598 = vadd.f32 0.0, %v1597
    %v1599 = vpop.f32.mrb[0].mxu0
    %1600 = vdwg.mxu0
    %v1601 = vpack.c.bf16 %v1598, %v1522
    %v1603 = vsel %vm130, %v1601, 0
    %v1606 = vsel %vm795, %v126, 0
    %1608 = vmatprep.subr.bf16.mxu0 0
    %1609 = vmatpush1.bf16.msra.mxu0 %v1606
    %1610 = vmatprep.subr.bf16.mxu0 0
    %1611 = vmatpush1.bf16.msra.mxu0 0
    %1612 = vmatprep.subr.bf16.mxu0 0
    %1613 = vmatpush1.bf16.msra.mxu0 0
    %1614 = vmatprep.subr.bf16.mxu0 0
    %1615 = vmatpush1.bf16.msra.mxu0 0
    %1616 = vmatprep.subr.bf16.mxu0 0
    %1617 = vmatpush1.bf16.msra.mxu0 0
    %1618 = vmatprep.subr.bf16.mxu0 0
    %1619 = vmatpush1.bf16.msra.mxu0 0
    %1620 = vmatprep.subr.bf16.mxu0 0
    %1621 = vmatpush1.bf16.msra.mxu0 0
    %1622 = vmatprep.subr.bf16.mxu0 0
    %1623 = vmatpush1.bf16.msra.mxu0 0
    %1624 = vmatprep.subr.bf16.mxu0 0
    %1625 = vmatpush1.bf16.msra.mxu0 0
    %1626 = vmatprep.subr.bf16.mxu0 0
    %1627 = vmatpush1.bf16.msra.mxu0 0
    %1628 = vmatprep.subr.bf16.mxu0 0
    %1629 = vmatpush1.bf16.msra.mxu0 0
    %1630 = vmatprep.subr.bf16.mxu0 0
    %1631 = vmatpush1.bf16.msra.mxu0 0
    %1632 = vmatprep.subr.bf16.mxu0 0
    %1633 = vmatpush1.bf16.msra.mxu0 0
    %1634 = vmatprep.subr.bf16.mxu0 0
    %1635 = vmatpush1.bf16.msra.mxu0 0
    %1636 = vmatprep.subr.bf16.mxu0 0
    %1637 = vmatpush1.bf16.msra.mxu0 0
    %1638 = vmatprep.subr.bf16.mxu0 0
    %1639 = vmatpush1.bf16.msra.mxu0 0
    %1640 = vmatprep.mubr.bf16.mxu0 0
    %1641 = vmatmul.mubr.bf16.gmra.mrb[0].mxu0 %v1603
    %v1642 = vpop.f32.mrb[0].mxu0
    %v1643 = vadd.f32 0.0, %v1642
    %v1644 = vpop.f32.mrb[0].mxu0
    %v1645 = vpop.f32.mrb[0].mxu0
    %v1646 = vadd.f32 0.0, %v1645
    %v1647 = vpop.f32.mrb[0].mxu0
    %1648 = vdwg.mxu0
    %v1649 = vadd.f32 %v1267, %v1643
    %v1650 = vadd.f32 %v1268, %v1646
    %v1651 = vld [vmem:[%s4] sm:$0x1]
    %v1653 = vlaneseq
    %v1654 = vshrl.u32 %v1653, 7
    %v1655 = vsub.s32 0, %v1654
    %v1656 = vrot.slane %v1651, %v1655
    %v1658 = vadd.f32 %v1649, %v1656
    %v1659 = vadd.f32 %v1650, %v1656
    %v1660 = vadd.f32 %v52, %v1658
    %v1661 = vadd.f32 %v53, %v1659
    %v1662 = vld [vmem:[%s5] sm:$0x1]
    %v1663 = vld [vmem:[%s6] sm:$0x1]
    %v1664 = vsel %vm78, %v1660, 0.0
    %1665 = vadd.xlane.f32.xlu0 %v1664
    %v1666 = vpop.xlane.xlu0 %1665
    %v1667 = vsel %vm78, %v1661, 0.0
    %1668 = vadd.xlane.f32.xlu0 %v1667
    %v1669 = vpop.xlane.xlu0 %1668
    %v1670 = vrcp.pop 32.0
    %v1671 = vmul.f32 %v1666, %v1670
    %v1672 = vmul.f32 %v1669, %v1670
    %v1673 = vsub.f32 %v1660, %v1671
    %v1674 = vsub.f32 %v1661, %v1672
    %v1675 = vmul.f32 %v1673, %v1673
    %v1676 = vmul.f32 %v1674, %v1674
    %v1677 = vsel %vm78, %v1675, 0.0
    %1678 = vadd.xlane.f32.xlu0 %v1677
    %v1679 = vpop.xlane.xlu0 %1678
    %v1680 = vsel %vm78, %v1676, 0.0
    %1681 = vadd.xlane.f32.xlu0 %v1680
    %v1682 = vpop.xlane.xlu0 %1681
    %v1683 = vmul.f32 %v1679, %v1670
    %v1684 = vmul.f32 %v1682, %v1670
    %v1685 = vadd.f32 %v1683, 1e-05
    %v1686 = vadd.f32 %v1684, 1e-05
    %v1687 = vrsqrt.pop %v1685
    %v1688 = vrsqrt.pop %v1686
    %v1689 = vmul.f32 %v1673, %v1687
    %v1690 = vmul.f32 %v1674, %v1688
    %v1692 = vlaneseq
    %v1693 = vshrl.u32 %v1692, 7
    %v1694 = vsub.s32 0, %v1693
    %v1695 = vrot.slane %v1662, %v1694
    %v1697 = vmul.f32 %v1689, %v1695
    %v1698 = vmul.f32 %v1690, %v1695
    %v1700 = vlaneseq
    %v1701 = vshrl.u32 %v1700, 7
    %v1702 = vsub.s32 0, %v1701
    %v1703 = vrot.slane %v1663, %v1702
    %v1705 = vadd.f32 %v1697, %v1703
    %v1706 = vadd.f32 %v1698, %v1703
    %v1707 = vpack.c.bf16 %v1706, %v1705
    %v1708 = vld [vmem:[%s7] sm:$0xff]
    %v1709 = vld [vmem:[%s7 + $0x8] sm:$0xff]
    %v1710 = vld [vmem:[%s7 + $0x10] sm:$0xff]
    %v1711 = vld [vmem:[%s7 + $0x18] sm:$0xff]
    %v1712 = vld [vmem:[%s7 + $0x20] sm:$0xff]
    %v1713 = vld [vmem:[%s7 + $0x28] sm:$0xff]
    %v1714 = vld [vmem:[%s7 + $0x30] sm:$0xff]
    %v1715 = vld [vmem:[%s7 + $0x38] sm:$0xff]
    %v1716 = vld [vmem:[%s7 + $0x40] sm:$0xff]
    %v1717 = vld [vmem:[%s7 + $0x48] sm:$0xff]
    %v1718 = vld [vmem:[%s7 + $0x50] sm:$0xff]
    %v1719 = vld [vmem:[%s7 + $0x58] sm:$0xff]
    %v1720 = vld [vmem:[%s7 + $0x60] sm:$0xff]
    %v1721 = vld [vmem:[%s7 + $0x68] sm:$0xff]
    %v1722 = vld [vmem:[%s7 + $0x70] sm:$0xff]
    %v1723 = vld [vmem:[%s7 + $0x78] sm:$0xff]
    %v1724 = vld [vmem:[%s7 + $0x80] sm:$0xff]
    %v1725 = vld [vmem:[%s7 + $0x88] sm:$0xff]
    %v1726 = vld [vmem:[%s7 + $0x90] sm:$0xff]
    %v1727 = vld [vmem:[%s7 + $0x98] sm:$0xff]
    %v1728 = vld [vmem:[%s7 + $0xa0] sm:$0xff]
    %v1729 = vld [vmem:[%s7 + $0xa8] sm:$0xff]
    %v1730 = vld [vmem:[%s7 + $0xb0] sm:$0xff]
    %v1731 = vld [vmem:[%s7 + $0xb8] sm:$0xff]
    %v1732 = vld [vmem:[%s7 + $0xc0] sm:$0xff]
    %v1733 = vld [vmem:[%s7 + $0xc8] sm:$0xff]
    %v1734 = vld [vmem:[%s7 + $0xd0] sm:$0xff]
    %v1735 = vld [vmem:[%s7 + $0xd8] sm:$0xff]
    %v1736 = vld [vmem:[%s7 + $0xe0] sm:$0xff]
    %v1737 = vld [vmem:[%s7 + $0xe8] sm:$0xff]
    %v1738 = vld [vmem:[%s7 + $0xf0] sm:$0xff]
    %v1739 = vld [vmem:[%s7 + $0xf8] sm:$0xff]
    %v1740 = vld [vmem:[%s8] sm:$0xff]
    %v1741 = vld [vmem:[%s8 + $0x8] sm:$0xff]
    %v1744 = vlaneseq
    %v1745 = vshrl.u32 %v1744, 7
    %v1746 = vsub.s32 0, %v1745
    %v1747 = vrot.slane %v1740, %v1746
    %v1748 = vlaneseq
    %v1749 = vshrl.u32 %v1748, 7
    %v1750 = vsub.s32 1, %v1749
    %v1751 = vrot.slane %v1740, %v1750
    %v1752 = vlaneseq
    %v1753 = vshrl.u32 %v1752, 7
    %v1754 = vsub.s32 2, %v1753
    %v1755 = vrot.slane %v1740, %v1754
    %v1756 = vlaneseq
    %v1757 = vshrl.u32 %v1756, 7
    %v1758 = vsub.s32 3, %v1757
    %v1759 = vrot.slane %v1740, %v1758
    %v1760 = vlaneseq
    %v1761 = vshrl.u32 %v1760, 7
    %v1762 = vsub.s32 4, %v1761
    %v1763 = vrot.slane %v1740, %v1762
    %v1764 = vlaneseq
    %v1765 = vshrl.u32 %v1764, 7
    %v1766 = vsub.s32 5, %v1765
    %v1767 = vrot.slane %v1740, %v1766
    %v1768 = vlaneseq
    %v1769 = vshrl.u32 %v1768, 7
    %v1770 = vsub.s32 6, %v1769
    %v1771 = vrot.slane %v1740, %v1770
    %v1772 = vlaneseq
    %v1773 = vshrl.u32 %v1772, 7
    %v1774 = vsub.s32 7, %v1773
    %v1775 = vrot.slane %v1740, %v1774
    %v1776 = vlaneseq
    %v1777 = vshrl.u32 %v1776, 7
    %v1778 = vsub.s32 0, %v1777
    %v1779 = vrot.slane %v1741, %v1778
    %v1780 = vlaneseq
    %v1781 = vshrl.u32 %v1780, 7
    %v1782 = vsub.s32 1, %v1781
    %v1783 = vrot.slane %v1741, %v1782
    %v1784 = vlaneseq
    %v1785 = vshrl.u32 %v1784, 7
    %v1786 = vsub.s32 2, %v1785
    %v1787 = vrot.slane %v1741, %v1786
    %v1788 = vlaneseq
    %v1789 = vshrl.u32 %v1788, 7
    %v1790 = vsub.s32 3, %v1789
    %v1791 = vrot.slane %v1741, %v1790
    %v1792 = vlaneseq
    %v1793 = vshrl.u32 %v1792, 7
    %v1794 = vsub.s32 4, %v1793
    %v1795 = vrot.slane %v1741, %v1794
    %v1796 = vlaneseq
    %v1797 = vshrl.u32 %v1796, 7
    %v1798 = vsub.s32 5, %v1797
    %v1799 = vrot.slane %v1741, %v1798
    %v1800 = vlaneseq
    %v1801 = vshrl.u32 %v1800, 7
    %v1802 = vsub.s32 6, %v1801
    %v1803 = vrot.slane %v1741, %v1802
    %v1804 = vlaneseq
    %v1805 = vshrl.u32 %v1804, 7
    %v1806 = vsub.s32 7, %v1805
    %v1807 = vrot.slane %v1741, %v1806
    %v1856 = vunpack.c.l.b16 %v1708
    %v1857 = vunpack.c.h.b16 %v1708
    %v1858 = vunpack.c.l.b16 %v1709
    %v1859 = vunpack.c.h.b16 %v1709
    %v1860 = vunpack.c.l.b16 %v1710
    %v1861 = vunpack.c.h.b16 %v1710
    %v1862 = vunpack.c.l.b16 %v1711
    %v1863 = vunpack.c.h.b16 %v1711
    %v1864 = vunpack.c.l.b16 %v1712
    %v1865 = vunpack.c.h.b16 %v1712
    %v1866 = vunpack.c.l.b16 %v1713
    %v1867 = vunpack.c.h.b16 %v1713
    %v1868 = vunpack.c.l.b16 %v1714
    %v1869 = vunpack.c.h.b16 %v1714
    %v1870 = vunpack.c.l.b16 %v1715
    %v1871 = vunpack.c.h.b16 %v1715
    %v1872 = vunpack.c.l.b16 %v1716
    %v1873 = vunpack.c.h.b16 %v1716
    %v1874 = vunpack.c.l.b16 %v1717
    %v1875 = vunpack.c.h.b16 %v1717
    %v1876 = vunpack.c.l.b16 %v1718
    %v1877 = vunpack.c.h.b16 %v1718
    %v1878 = vunpack.c.l.b16 %v1719
    %v1879 = vunpack.c.h.b16 %v1719
    %v1880 = vunpack.c.l.b16 %v1720
    %v1881 = vunpack.c.h.b16 %v1720
    %v1882 = vunpack.c.l.b16 %v1721
    %v1883 = vunpack.c.h.b16 %v1721
    %v1884 = vunpack.c.l.b16 %v1722
    %v1885 = vunpack.c.h.b16 %v1722
    %v1886 = vunpack.c.l.b16 %v1723
    %v1887 = vunpack.c.h.b16 %v1723
    %v1888 = vunpack.c.l.b16 %v1724
    %v1889 = vunpack.c.h.b16 %v1724
    %v1890 = vunpack.c.l.b16 %v1725
    %v1891 = vunpack.c.h.b16 %v1725
    %v1892 = vunpack.c.l.b16 %v1726
    %v1893 = vunpack.c.h.b16 %v1726
    %v1894 = vunpack.c.l.b16 %v1727
    %v1895 = vunpack.c.h.b16 %v1727
    %v1896 = vunpack.c.l.b16 %v1728
    %v1897 = vunpack.c.h.b16 %v1728
    %v1898 = vunpack.c.l.b16 %v1729
    %v1899 = vunpack.c.h.b16 %v1729
    %v1900 = vunpack.c.l.b16 %v1730
    %v1901 = vunpack.c.h.b16 %v1730
    %v1902 = vunpack.c.l.b16 %v1731
    %v1903 = vunpack.c.h.b16 %v1731
    %v1904 = vunpack.c.l.b16 %v1732
    %v1905 = vunpack.c.h.b16 %v1732
    %v1906 = vunpack.c.l.b16 %v1733
    %v1907 = vunpack.c.h.b16 %v1733
    %v1908 = vunpack.c.l.b16 %v1734
    %v1909 = vunpack.c.h.b16 %v1734
    %v1910 = vunpack.c.l.b16 %v1735
    %v1911 = vunpack.c.h.b16 %v1735
    %v1912 = vunpack.c.l.b16 %v1736
    %v1913 = vunpack.c.h.b16 %v1736
    %v1914 = vunpack.c.l.b16 %v1737
    %v1915 = vunpack.c.h.b16 %v1737
    %v1916 = vunpack.c.l.b16 %v1738
    %v1917 = vunpack.c.h.b16 %v1738
    %v1918 = vunpack.c.l.b16 %v1739
    %v1919 = vunpack.c.h.b16 %v1739
    %v1920 = vpack.c.b16 %v1872, %v1856
    %v1921 = vpack.c.b16 %v1873, %v1857
    %v1922 = vpack.c.b16 %v1874, %v1858
    %v1923 = vpack.c.b16 %v1875, %v1859
    %v1924 = vpack.c.b16 %v1876, %v1860
    %v1925 = vpack.c.b16 %v1877, %v1861
    %v1926 = vpack.c.b16 %v1878, %v1862
    %v1927 = vpack.c.b16 %v1879, %v1863
    %v1928 = vpack.c.b16 %v1880, %v1864
    %v1929 = vpack.c.b16 %v1881, %v1865
    %v1930 = vpack.c.b16 %v1882, %v1866
    %v1931 = vpack.c.b16 %v1883, %v1867
    %v1932 = vpack.c.b16 %v1884, %v1868
    %v1933 = vpack.c.b16 %v1885, %v1869
    %v1934 = vpack.c.b16 %v1886, %v1870
    %v1935 = vpack.c.b16 %v1887, %v1871
    %v1936 = vpack.c.b16 %v1904, %v1888
    %v1937 = vpack.c.b16 %v1905, %v1889
    %v1938 = vpack.c.b16 %v1906, %v1890
    %v1939 = vpack.c.b16 %v1907, %v1891
    %v1940 = vpack.c.b16 %v1908, %v1892
    %v1941 = vpack.c.b16 %v1909, %v1893
    %v1942 = vpack.c.b16 %v1910, %v1894
    %v1943 = vpack.c.b16 %v1911, %v1895
    %v1944 = vpack.c.b16 %v1912, %v1896
    %v1945 = vpack.c.b16 %v1913, %v1897
    %v1946 = vpack.c.b16 %v1914, %v1898
    %v1947 = vpack.c.b16 %v1915, %v1899
    %v1948 = vpack.c.b16 %v1916, %v1900
    %v1949 = vpack.c.b16 %v1917, %v1901
    %v1950 = vpack.c.b16 %v1918, %v1902
    %v1951 = vpack.c.b16 %v1919, %v1903
    %v1985 = vsel %vm78, %v1707, 0
    %1987 = vmatprep.subr.bf16.mxu0 %v1921
    %1988 = vmatpush1.bf16.msra.mxu0 %v1920
    %1989 = vmatprep.subr.bf16.mxu0 %v1937
    %1990 = vmatpush1.bf16.msra.mxu0 %v1936
    %1991 = vmatprep.subr.bf16.mxu0 0
    %1992 = vmatpush1.bf16.msra.mxu0 0
    %1993 = vmatprep.subr.bf16.mxu0 0
    %1994 = vmatpush1.bf16.msra.mxu0 0
    %1995 = vmatprep.subr.bf16.mxu0 0
    %1996 = vmatpush1.bf16.msra.mxu0 0
    %1997 = vmatprep.subr.bf16.mxu0 0
    %1998 = vmatpush1.bf16.msra.mxu0 0
    %1999 = vmatprep.subr.bf16.mxu0 0
    %2000 = vmatpush1.bf16.msra.mxu0 0
    %2001 = vmatprep.subr.bf16.mxu0 0
    %2002 = vmatpush1.bf16.msra.mxu0 0
    %2003 = vmatprep.subr.bf16.mxu0 0
    %2004 = vmatpush1.bf16.msra.mxu0 0
    %2005 = vmatprep.subr.bf16.mxu0 0
    %2006 = vmatpush1.bf16.msra.mxu0 0
    %2007 = vmatprep.subr.bf16.mxu0 0
    %2008 = vmatpush1.bf16.msra.mxu0 0
    %2009 = vmatprep.subr.bf16.mxu0 0
    %2010 = vmatpush1.bf16.msra.mxu0 0
    %2011 = vmatprep.subr.bf16.mxu0 0
    %2012 = vmatpush1.bf16.msra.mxu0 0
    %2013 = vmatprep.subr.bf16.mxu0 0
    %2014 = vmatpush1.bf16.msra.mxu0 0
    %2015 = vmatprep.subr.bf16.mxu0 0
    %2016 = vmatpush1.bf16.msra.mxu0 0
    %2017 = vmatprep.subr.bf16.mxu0 0
    %2018 = vmatpush1.bf16.msra.mxu0 0
    %2019 = vmatprep.mubr.bf16.mxu0 0
    %2020 = vmatmul.mubr.bf16.gmra.mrb[0].mxu0 %v1985
    %v2021 = vpop.f32.mrb[0].mxu0
    %v2022 = vadd.f32 %v1747, %v2021
    %v2023 = vpop.f32.mrb[0].mxu0
    %v2024 = vadd.f32 %v1751, %v2023
    %v2025 = vpop.f32.mrb[0].mxu0
    %v2026 = vadd.f32 %v1747, %v2025
    %v2027 = vpop.f32.mrb[0].mxu0
    %v2028 = vadd.f32 %v1751, %v2027
    %2029 = vdwg.mxu0
    %2030 = vmatprep.subr.bf16.mxu0 %v1923
    %2031 = vmatpush1.bf16.msra.mxu0 %v1922
    %2032 = vmatprep.subr.bf16.mxu0 %v1939
    %2033 = vmatpush1.bf16.msra.mxu0 %v1938
    %2034 = vmatprep.subr.bf16.mxu0 0
    %2035 = vmatpush1.bf16.msra.mxu0 0
    %2036 = vmatprep.subr.bf16.mxu0 0
    %2037 = vmatpush1.bf16.msra.mxu0 0
    %2038 = vmatprep.subr.bf16.mxu0 0
    %2039 = vmatpush1.bf16.msra.mxu0 0
    %2040 = vmatprep.subr.bf16.mxu0 0
    %2041 = vmatpush1.bf16.msra.mxu0 0
    %2042 = vmatprep.subr.bf16.mxu0 0
    %2043 = vmatpush1.bf16.msra.mxu0 0
    %2044 = vmatprep.subr.bf16.mxu0 0
    %2045 = vmatpush1.bf16.msra.mxu0 0
    %2046 = vmatprep.subr.bf16.mxu0 0
    %2047 = vmatpush1.bf16.msra.mxu0 0
    %2048 = vmatprep.subr.bf16.mxu0 0
    %2049 = vmatpush1.bf16.msra.mxu0 0
    %2050 = vmatprep.subr.bf16.mxu0 0
    %2051 = vmatpush1.bf16.msra.mxu0 0
    %2052 = vmatprep.subr.bf16.mxu0 0
    %2053 = vmatpush1.bf16.msra.mxu0 0
    %2054 = vmatprep.subr.bf16.mxu0 0
    %2055 = vmatpush1.bf16.msra.mxu0 0
    %2056 = vmatprep.subr.bf16.mxu0 0
    %2057 = vmatpush1.bf16.msra.mxu0 0
    %2058 = vmatprep.subr.bf16.mxu0 0
    %2059 = vmatpush1.bf16.msra.mxu0 0
    %2060 = vmatprep.subr.bf16.mxu0 0
    %2061 = vmatpush1.bf16.msra.mxu0 0
    %2062 = vmatprep.mubr.bf16.mxu0 0
    %2063 = vmatmul.mubr.bf16.gmra.mrb[0].mxu0 %v1985
    %v2064 = vpop.f32.mrb[0].mxu0
    %v2065 = vadd.f32 %v1755, %v2064
    %v2066 = vpop.f32.mrb[0].mxu0
    %v2067 = vadd.f32 %v1759, %v2066
    %v2068 = vpop.f32.mrb[0].mxu0
    %v2069 = vadd.f32 %v1755, %v2068
    %v2070 = vpop.f32.mrb[0].mxu0
    %v2071 = vadd.f32 %v1759, %v2070
    %2072 = vdwg.mxu0
    %2073 = vmatprep.subr.bf16.mxu0 %v1925
    %2074 = vmatpush1.bf16.msra.mxu0 %v1924
    %2075 = vmatprep.subr.bf16.mxu0 %v1941
    %2076 = vmatpush1.bf16.msra.mxu0 %v1940
    %2077 = vmatprep.subr.bf16.mxu0 0
    %2078 = vmatpush1.bf16.msra.mxu0 0
    %2079 = vmatprep.subr.bf16.mxu0 0
    %2080 = vmatpush1.bf16.msra.mxu0 0
    %2081 = vmatprep.subr.bf16.mxu0 0
    %2082 = vmatpush1.bf16.msra.mxu0 0
    %2083 = vmatprep.subr.bf16.mxu0 0
    %2084 = vmatpush1.bf16.msra.mxu0 0
    %2085 = vmatprep.subr.bf16.mxu0 0
    %2086 = vmatpush1.bf16.msra.mxu0 0
    %2087 = vmatprep.subr.bf16.mxu0 0
    %2088 = vmatpush1.bf16.msra.mxu0 0
    %2089 = vmatprep.subr.bf16.mxu0 0
    %2090 = vmatpush1.bf16.msra.mxu0 0
    %2091 = vmatprep.subr.bf16.mxu0 0
    %2092 = vmatpush1.bf16.msra.mxu0 0
    %2093 = vmatprep.subr.bf16.mxu0 0
    %2094 = vmatpush1.bf16.msra.mxu0 0
    %2095 = vmatprep.subr.bf16.mxu0 0
    %2096 = vmatpush1.bf16.msra.mxu0 0
    %2097 = vmatprep.subr.bf16.mxu0 0
    %2098 = vmatpush1.bf16.msra.mxu0 0
    %2099 = vmatprep.subr.bf16.mxu0 0
    %2100 = vmatpush1.bf16.msra.mxu0 0
    %2101 = vmatprep.subr.bf16.mxu0 0
    %2102 = vmatpush1.bf16.msra.mxu0 0
    %2103 = vmatprep.subr.bf16.mxu0 0
    %2104 = vmatpush1.bf16.msra.mxu0 0
    %2105 = vmatprep.mubr.bf16.mxu0 0
    %2106 = vmatmul.mubr.bf16.gmra.mrb[0].mxu0 %v1985
    %v2107 = vpop.f32.mrb[0].mxu0
    %v2108 = vadd.f32 %v1763, %v2107
    %v2109 = vpop.f32.mrb[0].mxu0
    %v2110 = vadd.f32 %v1767, %v2109
    %v2111 = vpop.f32.mrb[0].mxu0
    %v2112 = vadd.f32 %v1763, %v2111
    %v2113 = vpop.f32.mrb[0].mxu0
    %v2114 = vadd.f32 %v1767, %v2113
    %2115 = vdwg.mxu0
    %2116 = vmatprep.subr.bf16.mxu0 %v1927
    %2117 = vmatpush1.bf16.msra.mxu0 %v1926
    %2118 = vmatprep.subr.bf16.mxu0 %v1943
    %2119 = vmatpush1.bf16.msra.mxu0 %v1942
    %2120 = vmatprep.subr.bf16.mxu0 0
    %2121 = vmatpush1.bf16.msra.mxu0 0
    %2122 = vmatprep.subr.bf16.mxu0 0
    %2123 = vmatpush1.bf16.msra.mxu0 0
    %2124 = vmatprep.subr.bf16.mxu0 0
    %2125 = vmatpush1.bf16.msra.mxu0 0
    %2126 = vmatprep.subr.bf16.mxu0 0
    %2127 = vmatpush1.bf16.msra.mxu0 0
    %2128 = vmatprep.subr.bf16.mxu0 0
    %2129 = vmatpush1.bf16.msra.mxu0 0
    %2130 = vmatprep.subr.bf16.mxu0 0
    %2131 = vmatpush1.bf16.msra.mxu0 0
    %2132 = vmatprep.subr.bf16.mxu0 0
    %2133 = vmatpush1.bf16.msra.mxu0 0
    %2134 = vmatprep.subr.bf16.mxu0 0
    %2135 = vmatpush1.bf16.msra.mxu0 0
    %2136 = vmatprep.subr.bf16.mxu0 0
    %2137 = vmatpush1.bf16.msra.mxu0 0
    %2138 = vmatprep.subr.bf16.mxu0 0
    %2139 = vmatpush1.bf16.msra.mxu0 0
    %2140 = vmatprep.subr.bf16.mxu0 0
    %2141 = vmatpush1.bf16.msra.mxu0 0
    %2142 = vmatprep.subr.bf16.mxu0 0
    %2143 = vmatpush1.bf16.msra.mxu0 0
    %2144 = vmatprep.subr.bf16.mxu0 0
    %2145 = vmatpush1.bf16.msra.mxu0 0
    %2146 = vmatprep.subr.bf16.mxu0 0
    %2147 = vmatpush1.bf16.msra.mxu0 0
    %2148 = vmatprep.mubr.bf16.mxu0 0
    %2149 = vmatmul.mubr.bf16.gmra.mrb[0].mxu0 %v1985
    %v2150 = vpop.f32.mrb[0].mxu0
    %v2151 = vadd.f32 %v1771, %v2150
    %v2152 = vpop.f32.mrb[0].mxu0
    %v2153 = vadd.f32 %v1775, %v2152
    %v2154 = vpop.f32.mrb[0].mxu0
    %v2155 = vadd.f32 %v1771, %v2154
    %v2156 = vpop.f32.mrb[0].mxu0
    %v2157 = vadd.f32 %v1775, %v2156
    %2158 = vdwg.mxu0
    %2159 = vmatprep.subr.bf16.mxu0 %v1929
    %2160 = vmatpush1.bf16.msra.mxu0 %v1928
    %2161 = vmatprep.subr.bf16.mxu0 %v1945
    %2162 = vmatpush1.bf16.msra.mxu0 %v1944
    %2163 = vmatprep.subr.bf16.mxu0 0
    %2164 = vmatpush1.bf16.msra.mxu0 0
    %2165 = vmatprep.subr.bf16.mxu0 0
    %2166 = vmatpush1.bf16.msra.mxu0 0
    %2167 = vmatprep.subr.bf16.mxu0 0
    %2168 = vmatpush1.bf16.msra.mxu0 0
    %2169 = vmatprep.subr.bf16.mxu0 0
    %2170 = vmatpush1.bf16.msra.mxu0 0
    %2171 = vmatprep.subr.bf16.mxu0 0
    %2172 = vmatpush1.bf16.msra.mxu0 0
    %2173 = vmatprep.subr.bf16.mxu0 0
    %2174 = vmatpush1.bf16.msra.mxu0 0
    %2175 = vmatprep.subr.bf16.mxu0 0
    %2176 = vmatpush1.bf16.msra.mxu0 0
    %2177 = vmatprep.subr.bf16.mxu0 0
    %2178 = vmatpush1.bf16.msra.mxu0 0
    %2179 = vmatprep.subr.bf16.mxu0 0
    %2180 = vmatpush1.bf16.msra.mxu0 0
    %2181 = vmatprep.subr.bf16.mxu0 0
    %2182 = vmatpush1.bf16.msra.mxu0 0
    %2183 = vmatprep.subr.bf16.mxu0 0
    %2184 = vmatpush1.bf16.msra.mxu0 0
    %2185 = vmatprep.subr.bf16.mxu0 0
    %2186 = vmatpush1.bf16.msra.mxu0 0
    %2187 = vmatprep.subr.bf16.mxu0 0
    %2188 = vmatpush1.bf16.msra.mxu0 0
    %2189 = vmatprep.subr.bf16.mxu0 0
    %2190 = vmatpush1.bf16.msra.mxu0 0
    %2191 = vmatprep.mubr.bf16.mxu0 0
    %2192 = vmatmul.mubr.bf16.gmra.mrb[0].mxu0 %v1985
    %v2193 = vpop.f32.mrb[0].mxu0
    %v2194 = vadd.f32 %v1779, %v2193
    %v2195 = vpop.f32.mrb[0].mxu0
    %v2196 = vadd.f32 %v1783, %v2195
    %v2197 = vpop.f32.mrb[0].mxu0
    %v2198 = vadd.f32 %v1779, %v2197
    %v2199 = vpop.f32.mrb[0].mxu0
    %v2200 = vadd.f32 %v1783, %v2199
    %2201 = vdwg.mxu0
    %2202 = vmatprep.subr.bf16.mxu0 %v1931
    %2203 = vmatpush1.bf16.msra.mxu0 %v1930
    %2204 = vmatprep.subr.bf16.mxu0 %v1947
    %2205 = vmatpush1.bf16.msra.mxu0 %v1946
    %2206 = vmatprep.subr.bf16.mxu0 0
    %2207 = vmatpush1.bf16.msra.mxu0 0
    %2208 = vmatprep.subr.bf16.mxu0 0
    %2209 = vmatpush1.bf16.msra.mxu0 0
    %2210 = vmatprep.subr.bf16.mxu0 0
    %2211 = vmatpush1.bf16.msra.mxu0 0
    %2212 = vmatprep.subr.bf16.mxu0 0
    %2213 = vmatpush1.bf16.msra.mxu0 0
    %2214 = vmatprep.subr.bf16.mxu0 0
    %2215 = vmatpush1.bf16.msra.mxu0 0
    %2216 = vmatprep.subr.bf16.mxu0 0
    %2217 = vmatpush1.bf16.msra.mxu0 0
    %2218 = vmatprep.subr.bf16.mxu0 0
    %2219 = vmatpush1.bf16.msra.mxu0 0
    %2220 = vmatprep.subr.bf16.mxu0 0
    %2221 = vmatpush1.bf16.msra.mxu0 0
    %2222 = vmatprep.subr.bf16.mxu0 0
    %2223 = vmatpush1.bf16.msra.mxu0 0
    %2224 = vmatprep.subr.bf16.mxu0 0
    %2225 = vmatpush1.bf16.msra.mxu0 0
    %2226 = vmatprep.subr.bf16.mxu0 0
    %2227 = vmatpush1.bf16.msra.mxu0 0
    %2228 = vmatprep.subr.bf16.mxu0 0
    %2229 = vmatpush1.bf16.msra.mxu0 0
    %2230 = vmatprep.subr.bf16.mxu0 0
    %2231 = vmatpush1.bf16.msra.mxu0 0
    %2232 = vmatprep.subr.bf16.mxu0 0
    %2233 = vmatpush1.bf16.msra.mxu0 0
    %2234 = vmatprep.mubr.bf16.mxu0 0
    %2235 = vmatmul.mubr.bf16.gmra.mrb[0].mxu0 %v1985
    %v2236 = vpop.f32.mrb[0].mxu0
    %v2237 = vadd.f32 %v1787, %v2236
    %v2238 = vpop.f32.mrb[0].mxu0
    %v2239 = vadd.f32 %v1791, %v2238
    %v2240 = vpop.f32.mrb[0].mxu0
    %v2241 = vadd.f32 %v1787, %v2240
    %v2242 = vpop.f32.mrb[0].mxu0
    %v2243 = vadd.f32 %v1791, %v2242
    %2244 = vdwg.mxu0
    %2245 = vmatprep.subr.bf16.mxu0 %v1933
    %2246 = vmatpush1.bf16.msra.mxu0 %v1932
    %2247 = vmatprep.subr.bf16.mxu0 %v1949
    %2248 = vmatpush1.bf16.msra.mxu0 %v1948
    %2249 = vmatprep.subr.bf16.mxu0 0
    %2250 = vmatpush1.bf16.msra.mxu0 0
    %2251 = vmatprep.subr.bf16.mxu0 0
    %2252 = vmatpush1.bf16.msra.mxu0 0
    %2253 = vmatprep.subr.bf16.mxu0 0
    %2254 = vmatpush1.bf16.msra.mxu0 0
    %2255 = vmatprep.subr.bf16.mxu0 0
    %2256 = vmatpush1.bf16.msra.mxu0 0
    %2257 = vmatprep.subr.bf16.mxu0 0
    %2258 = vmatpush1.bf16.msra.mxu0 0
    %2259 = vmatprep.subr.bf16.mxu0 0
    %2260 = vmatpush1.bf16.msra.mxu0 0
    %2261 = vmatprep.subr.bf16.mxu0 0
    %2262 = vmatpush1.bf16.msra.mxu0 0
    %2263 = vmatprep.subr.bf16.mxu0 0
    %2264 = vmatpush1.bf16.msra.mxu0 0
    %2265 = vmatprep.subr.bf16.mxu0 0
    %2266 = vmatpush1.bf16.msra.mxu0 0
    %2267 = vmatprep.subr.bf16.mxu0 0
    %2268 = vmatpush1.bf16.msra.mxu0 0
    %2269 = vmatprep.subr.bf16.mxu0 0
    %2270 = vmatpush1.bf16.msra.mxu0 0
    %2271 = vmatprep.subr.bf16.mxu0 0
    %2272 = vmatpush1.bf16.msra.mxu0 0
    %2273 = vmatprep.subr.bf16.mxu0 0
    %2274 = vmatpush1.bf16.msra.mxu0 0
    %2275 = vmatprep.subr.bf16.mxu0 0
    %2276 = vmatpush1.bf16.msra.mxu0 0
    %2277 = vmatprep.mubr.bf16.mxu0 0
    %2278 = vmatmul.mubr.bf16.gmra.mrb[0].mxu0 %v1985
    %v2279 = vpop.f32.mrb[0].mxu0
    %v2280 = vadd.f32 %v1795, %v2279
    %v2281 = vpop.f32.mrb[0].mxu0
    %v2282 = vadd.f32 %v1799, %v2281
    %v2283 = vpop.f32.mrb[0].mxu0
    %v2284 = vadd.f32 %v1795, %v2283
    %v2285 = vpop.f32.mrb[0].mxu0
    %v2286 = vadd.f32 %v1799, %v2285
    %2287 = vdwg.mxu0
    %2288 = vmatprep.subr.bf16.mxu0 %v1935
    %2289 = vmatpush1.bf16.msra.mxu0 %v1934
    %2290 = vmatprep.subr.bf16.mxu0 %v1951
    %2291 = vmatpush1.bf16.msra.mxu0 %v1950
    %2292 = vmatprep.subr.bf16.mxu0 0
    %2293 = vmatpush1.bf16.msra.mxu0 0
    %2294 = vmatprep.subr.bf16.mxu0 0
    %2295 = vmatpush1.bf16.msra.mxu0 0
    %2296 = vmatprep.subr.bf16.mxu0 0
    %2297 = vmatpush1.bf16.msra.mxu0 0
    %2298 = vmatprep.subr.bf16.mxu0 0
    %2299 = vmatpush1.bf16.msra.mxu0 0
    %2300 = vmatprep.subr.bf16.mxu0 0
    %2301 = vmatpush1.bf16.msra.mxu0 0
    %2302 = vmatprep.subr.bf16.mxu0 0
    %2303 = vmatpush1.bf16.msra.mxu0 0
    %2304 = vmatprep.subr.bf16.mxu0 0
    %2305 = vmatpush1.bf16.msra.mxu0 0
    %2306 = vmatprep.subr.bf16.mxu0 0
    %2307 = vmatpush1.bf16.msra.mxu0 0
    %2308 = vmatprep.subr.bf16.mxu0 0
    %2309 = vmatpush1.bf16.msra.mxu0 0
    %2310 = vmatprep.subr.bf16.mxu0 0
    %2311 = vmatpush1.bf16.msra.mxu0 0
    %2312 = vmatprep.subr.bf16.mxu0 0
    %2313 = vmatpush1.bf16.msra.mxu0 0
    %2314 = vmatprep.subr.bf16.mxu0 0
    %2315 = vmatpush1.bf16.msra.mxu0 0
    %2316 = vmatprep.subr.bf16.mxu0 0
    %2317 = vmatpush1.bf16.msra.mxu0 0
    %2318 = vmatprep.subr.bf16.mxu0 0
    %2319 = vmatpush1.bf16.msra.mxu0 0
    %2320 = vmatprep.mubr.bf16.mxu0 0
    %2321 = vmatmul.mubr.bf16.gmra.mrb[0].mxu0 %v1985
    %v2322 = vpop.f32.mrb[0].mxu0
    %v2323 = vadd.f32 %v1803, %v2322
    %v2324 = vpop.f32.mrb[0].mxu0
    %v2325 = vadd.f32 %v1807, %v2324
    %v2326 = vpop.f32.mrb[0].mxu0
    %v2327 = vadd.f32 %v1803, %v2326
    %v2328 = vpop.f32.mrb[0].mxu0
    %v2329 = vadd.f32 %v1807, %v2328
    %2330 = vdwg.mxu0
    %v2331 = vmax.f32 %v2022, 0.0
    %v2332 = vmax.f32 %v2024, 0.0
    %v2333 = vmax.f32 %v2065, 0.0
    %v2334 = vmax.f32 %v2067, 0.0
    %v2335 = vmax.f32 %v2108, 0.0
    %v2336 = vmax.f32 %v2110, 0.0
    %v2337 = vmax.f32 %v2151, 0.0
    %v2338 = vmax.f32 %v2153, 0.0
    %v2339 = vmax.f32 %v2194, 0.0
    %v2340 = vmax.f32 %v2196, 0.0
    %v2341 = vmax.f32 %v2237, 0.0
    %v2342 = vmax.f32 %v2239, 0.0
    %v2343 = vmax.f32 %v2280, 0.0
    %v2344 = vmax.f32 %v2282, 0.0
    %v2345 = vmax.f32 %v2323, 0.0
    %v2346 = vmax.f32 %v2325, 0.0
    %v2347 = vmax.f32 %v2026, 0.0
    %v2348 = vmax.f32 %v2028, 0.0
    %v2349 = vmax.f32 %v2069, 0.0
    %v2350 = vmax.f32 %v2071, 0.0
    %v2351 = vmax.f32 %v2112, 0.0
    %v2352 = vmax.f32 %v2114, 0.0
    %v2353 = vmax.f32 %v2155, 0.0
    %v2354 = vmax.f32 %v2157, 0.0
    %v2355 = vmax.f32 %v2198, 0.0
    %v2356 = vmax.f32 %v2200, 0.0
    %v2357 = vmax.f32 %v2241, 0.0
    %v2358 = vmax.f32 %v2243, 0.0
    %v2359 = vmax.f32 %v2284, 0.0
    %v2360 = vmax.f32 %v2286, 0.0
    %v2361 = vmax.f32 %v2327, 0.0
    %v2362 = vmax.f32 %v2329, 0.0
    %v2363 = vpack.c.bf16 %v2347, %v2331
    %v2364 = vpack.c.bf16 %v2348, %v2332
    %v2365 = vpack.c.bf16 %v2349, %v2333
    %v2366 = vpack.c.bf16 %v2350, %v2334
    %v2367 = vpack.c.bf16 %v2351, %v2335
    %v2368 = vpack.c.bf16 %v2352, %v2336
    %v2369 = vpack.c.bf16 %v2353, %v2337
    %v2370 = vpack.c.bf16 %v2354, %v2338
    %v2371 = vpack.c.bf16 %v2355, %v2339
    %v2372 = vpack.c.bf16 %v2356, %v2340
    %v2373 = vpack.c.bf16 %v2357, %v2341
    %v2374 = vpack.c.bf16 %v2358, %v2342
    %v2375 = vpack.c.bf16 %v2359, %v2343
    %v2376 = vpack.c.bf16 %v2360, %v2344
    %v2377 = vpack.c.bf16 %v2361, %v2345
    %v2378 = vpack.c.bf16 %v2362, %v2346
    %v2379 = vld [vmem:[%s9] sm:$0xf]
    %v2380 = vld [vmem:[%s9 + $0x4] sm:$0xf]
    %v2381 = vld [vmem:[%s9 + $0x8] sm:$0xf]
    %v2382 = vld [vmem:[%s9 + $0xc] sm:$0xf]
    %v2383 = vld [vmem:[%s9 + $0x10] sm:$0xf]
    %v2384 = vld [vmem:[%s9 + $0x14] sm:$0xf]
    %v2385 = vld [vmem:[%s9 + $0x18] sm:$0xf]
    %v2386 = vld [vmem:[%s9 + $0x1c] sm:$0xf]
    %v2387 = vld [vmem:[%s9 + $0x20] sm:$0xf]
    %v2388 = vld [vmem:[%s9 + $0x24] sm:$0xf]
    %v2389 = vld [vmem:[%s9 + $0x28] sm:$0xf]
    %v2390 = vld [vmem:[%s9 + $0x2c] sm:$0xf]
    %v2391 = vld [vmem:[%s9 + $0x30] sm:$0xf]
    %v2392 = vld [vmem:[%s9 + $0x34] sm:$0xf]
    %v2393 = vld [vmem:[%s9 + $0x38] sm:$0xf]
    %v2394 = vld [vmem:[%s9 + $0x3c] sm:$0xf]
    %v2395 = vld [vmem:[%s9 + $0x40] sm:$0xf]
    %v2396 = vld [vmem:[%s9 + $0x44] sm:$0xf]
    %v2397 = vld [vmem:[%s9 + $0x48] sm:$0xf]
    %v2398 = vld [vmem:[%s9 + $0x4c] sm:$0xf]
    %v2399 = vld [vmem:[%s9 + $0x50] sm:$0xf]
    %v2400 = vld [vmem:[%s9 + $0x54] sm:$0xf]
    %v2401 = vld [vmem:[%s9 + $0x58] sm:$0xf]
    %v2402 = vld [vmem:[%s9 + $0x5c] sm:$0xf]
    %v2403 = vld [vmem:[%s9 + $0x60] sm:$0xf]
    %v2404 = vld [vmem:[%s9 + $0x64] sm:$0xf]
    %v2405 = vld [vmem:[%s9 + $0x68] sm:$0xf]
    %v2406 = vld [vmem:[%s9 + $0x6c] sm:$0xf]
    %v2407 = vld [vmem:[%s9 + $0x70] sm:$0xf]
    %v2408 = vld [vmem:[%s9 + $0x74] sm:$0xf]
    %v2409 = vld [vmem:[%s9 + $0x78] sm:$0xf]
    %v2410 = vld [vmem:[%s9 + $0x7c] sm:$0xf]
    %v2411 = vld [vmem:[%s9 + $0x80] sm:$0xf]
    %v2412 = vld [vmem:[%s9 + $0x84] sm:$0xf]
    %v2413 = vld [vmem:[%s9 + $0x88] sm:$0xf]
    %v2414 = vld [vmem:[%s9 + $0x8c] sm:$0xf]
    %v2415 = vld [vmem:[%s9 + $0x90] sm:$0xf]
    %v2416 = vld [vmem:[%s9 + $0x94] sm:$0xf]
    %v2417 = vld [vmem:[%s9 + $0x98] sm:$0xf]
    %v2418 = vld [vmem:[%s9 + $0x9c] sm:$0xf]
    %v2419 = vld [vmem:[%s9 + $0xa0] sm:$0xf]
    %v2420 = vld [vmem:[%s9 + $0xa4] sm:$0xf]
    %v2421 = vld [vmem:[%s9 + $0xa8] sm:$0xf]
    %v2422 = vld [vmem:[%s9 + $0xac] sm:$0xf]
    %v2423 = vld [vmem:[%s9 + $0xb0] sm:$0xf]
    %v2424 = vld [vmem:[%s9 + $0xb4] sm:$0xf]
    %v2425 = vld [vmem:[%s9 + $0xb8] sm:$0xf]
    %v2426 = vld [vmem:[%s9 + $0xbc] sm:$0xf]
    %v2427 = vld [vmem:[%s9 + $0xc0] sm:$0xf]
    %v2428 = vld [vmem:[%s9 + $0xc4] sm:$0xf]
    %v2429 = vld [vmem:[%s9 + $0xc8] sm:$0xf]
    %v2430 = vld [vmem:[%s9 + $0xcc] sm:$0xf]
    %v2431 = vld [vmem:[%s9 + $0xd0] sm:$0xf]
    %v2432 = vld [vmem:[%s9 + $0xd4] sm:$0xf]
    %v2433 = vld [vmem:[%s9 + $0xd8] sm:$0xf]
    %v2434 = vld [vmem:[%s9 + $0xdc] sm:$0xf]
    %v2435 = vld [vmem:[%s9 + $0xe0] sm:$0xf]
    %v2436 = vld [vmem:[%s9 + $0xe4] sm:$0xf]
    %v2437 = vld [vmem:[%s9 + $0xe8] sm:$0xf]
    %v2438 = vld [vmem:[%s9 + $0xec] sm:$0xf]
    %v2439 = vld [vmem:[%s9 + $0xf0] sm:$0xf]
    %v2440 = vld [vmem:[%s9 + $0xf4] sm:$0xf]
    %v2441 = vld [vmem:[%s9 + $0xf8] sm:$0xf]
    %v2442 = vld [vmem:[%s9 + $0xfc] sm:$0xf]
    %v2443 = vld [vmem:[%s9 + $0x100] sm:$0xf]
    %v2444 = vld [vmem:[%s9 + $0x104] sm:$0xf]
    %v2445 = vld [vmem:[%s9 + $0x108] sm:$0xf]
    %v2446 = vld [vmem:[%s9 + $0x10c] sm:$0xf]
    %v2447 = vld [vmem:[%s9 + $0x110] sm:$0xf]
    %v2448 = vld [vmem:[%s9 + $0x114] sm:$0xf]
    %v2449 = vld [vmem:[%s9 + $0x118] sm:$0xf]
    %v2450 = vld [vmem:[%s9 + $0x11c] sm:$0xf]
    %v2451 = vld [vmem:[%s9 + $0x120] sm:$0xf]
    %v2452 = vld [vmem:[%s9 + $0x124] sm:$0xf]
    %v2453 = vld [vmem:[%s9 + $0x128] sm:$0xf]
    %v2454 = vld [vmem:[%s9 + $0x12c] sm:$0xf]
    %v2455 = vld [vmem:[%s9 + $0x130] sm:$0xf]
    %v2456 = vld [vmem:[%s9 + $0x134] sm:$0xf]
    %v2457 = vld [vmem:[%s9 + $0x138] sm:$0xf]
    %v2458 = vld [vmem:[%s9 + $0x13c] sm:$0xf]
    %v2459 = vld [vmem:[%s9 + $0x140] sm:$0xf]
    %v2460 = vld [vmem:[%s9 + $0x144] sm:$0xf]
    %v2461 = vld [vmem:[%s9 + $0x148] sm:$0xf]
    %v2462 = vld [vmem:[%s9 + $0x14c] sm:$0xf]
    %v2463 = vld [vmem:[%s9 + $0x150] sm:$0xf]
    %v2464 = vld [vmem:[%s9 + $0x154] sm:$0xf]
    %v2465 = vld [vmem:[%s9 + $0x158] sm:$0xf]
    %v2466 = vld [vmem:[%s9 + $0x15c] sm:$0xf]
    %v2467 = vld [vmem:[%s9 + $0x160] sm:$0xf]
    %v2468 = vld [vmem:[%s9 + $0x164] sm:$0xf]
    %v2469 = vld [vmem:[%s9 + $0x168] sm:$0xf]
    %v2470 = vld [vmem:[%s9 + $0x16c] sm:$0xf]
    %v2471 = vld [vmem:[%s9 + $0x170] sm:$0xf]
    %v2472 = vld [vmem:[%s9 + $0x174] sm:$0xf]
    %v2473 = vld [vmem:[%s9 + $0x178] sm:$0xf]
    %v2474 = vld [vmem:[%s9 + $0x17c] sm:$0xf]
    %v2475 = vld [vmem:[%s9 + $0x180] sm:$0xf]
    %v2476 = vld [vmem:[%s9 + $0x184] sm:$0xf]
    %v2477 = vld [vmem:[%s9 + $0x188] sm:$0xf]
    %v2478 = vld [vmem:[%s9 + $0x18c] sm:$0xf]
    %v2479 = vld [vmem:[%s9 + $0x190] sm:$0xf]
    %v2480 = vld [vmem:[%s9 + $0x194] sm:$0xf]
    %v2481 = vld [vmem:[%s9 + $0x198] sm:$0xf]
    %v2482 = vld [vmem:[%s9 + $0x19c] sm:$0xf]
    %v2483 = vld [vmem:[%s9 + $0x1a0] sm:$0xf]
    %v2484 = vld [vmem:[%s9 + $0x1a4] sm:$0xf]
    %v2485 = vld [vmem:[%s9 + $0x1a8] sm:$0xf]
    %v2486 = vld [vmem:[%s9 + $0x1ac] sm:$0xf]
    %v2487 = vld [vmem:[%s9 + $0x1b0] sm:$0xf]
    %v2488 = vld [vmem:[%s9 + $0x1b4] sm:$0xf]
    %v2489 = vld [vmem:[%s9 + $0x1b8] sm:$0xf]
    %v2490 = vld [vmem:[%s9 + $0x1bc] sm:$0xf]
    %v2491 = vld [vmem:[%s9 + $0x1c0] sm:$0xf]
    %v2492 = vld [vmem:[%s9 + $0x1c4] sm:$0xf]
    %v2493 = vld [vmem:[%s9 + $0x1c8] sm:$0xf]
    %v2494 = vld [vmem:[%s9 + $0x1cc] sm:$0xf]
    %v2495 = vld [vmem:[%s9 + $0x1d0] sm:$0xf]
    %v2496 = vld [vmem:[%s9 + $0x1d4] sm:$0xf]
    %v2497 = vld [vmem:[%s9 + $0x1d8] sm:$0xf]
    %v2498 = vld [vmem:[%s9 + $0x1dc] sm:$0xf]
    %v2499 = vld [vmem:[%s9 + $0x1e0] sm:$0xf]
    %v2500 = vld [vmem:[%s9 + $0x1e4] sm:$0xf]
    %v2501 = vld [vmem:[%s9 + $0x1e8] sm:$0xf]
    %v2502 = vld [vmem:[%s9 + $0x1ec] sm:$0xf]
    %v2503 = vld [vmem:[%s9 + $0x1f0] sm:$0xf]
    %v2504 = vld [vmem:[%s9 + $0x1f4] sm:$0xf]
    %v2505 = vld [vmem:[%s9 + $0x1f8] sm:$0xf]
    %v2506 = vld [vmem:[%s9 + $0x1fc] sm:$0xf]
    %v2507 = vld [vmem:[%s9 + $0x200] sm:$0xf]
    %v2508 = vld [vmem:[%s9 + $0x204] sm:$0xf]
    %v2509 = vld [vmem:[%s9 + $0x208] sm:$0xf]
    %v2510 = vld [vmem:[%s9 + $0x20c] sm:$0xf]
    %v2511 = vld [vmem:[%s9 + $0x210] sm:$0xf]
    %v2512 = vld [vmem:[%s9 + $0x214] sm:$0xf]
    %v2513 = vld [vmem:[%s9 + $0x218] sm:$0xf]
    %v2514 = vld [vmem:[%s9 + $0x21c] sm:$0xf]
    %v2515 = vld [vmem:[%s9 + $0x220] sm:$0xf]
    %v2516 = vld [vmem:[%s9 + $0x224] sm:$0xf]
    %v2517 = vld [vmem:[%s9 + $0x228] sm:$0xf]
    %v2518 = vld [vmem:[%s9 + $0x22c] sm:$0xf]
    %v2519 = vld [vmem:[%s9 + $0x230] sm:$0xf]
    %v2520 = vld [vmem:[%s9 + $0x234] sm:$0xf]
    %v2521 = vld [vmem:[%s9 + $0x238] sm:$0xf]
    %v2522 = vld [vmem:[%s9 + $0x23c] sm:$0xf]
    %v2523 = vld [vmem:[%s9 + $0x240] sm:$0xf]
    %v2524 = vld [vmem:[%s9 + $0x244] sm:$0xf]
    %v2525 = vld [vmem:[%s9 + $0x248] sm:$0xf]
    %v2526 = vld [vmem:[%s9 + $0x24c] sm:$0xf]
    %v2527 = vld [vmem:[%s9 + $0x250] sm:$0xf]
    %v2528 = vld [vmem:[%s9 + $0x254] sm:$0xf]
    %v2529 = vld [vmem:[%s9 + $0x258] sm:$0xf]
    %v2530 = vld [vmem:[%s9 + $0x25c] sm:$0xf]
    %v2531 = vld [vmem:[%s9 + $0x260] sm:$0xf]
    %v2532 = vld [vmem:[%s9 + $0x264] sm:$0xf]
    %v2533 = vld [vmem:[%s9 + $0x268] sm:$0xf]
    %v2534 = vld [vmem:[%s9 + $0x26c] sm:$0xf]
    %v2535 = vld [vmem:[%s9 + $0x270] sm:$0xf]
    %v2536 = vld [vmem:[%s9 + $0x274] sm:$0xf]
    %v2537 = vld [vmem:[%s9 + $0x278] sm:$0xf]
    %v2538 = vld [vmem:[%s9 + $0x27c] sm:$0xf]
    %v2539 = vld [vmem:[%s9 + $0x280] sm:$0xf]
    %v2540 = vld [vmem:[%s9 + $0x284] sm:$0xf]
    %v2541 = vld [vmem:[%s9 + $0x288] sm:$0xf]
    %v2542 = vld [vmem:[%s9 + $0x28c] sm:$0xf]
    %v2543 = vld [vmem:[%s9 + $0x290] sm:$0xf]
    %v2544 = vld [vmem:[%s9 + $0x294] sm:$0xf]
    %v2545 = vld [vmem:[%s9 + $0x298] sm:$0xf]
    %v2546 = vld [vmem:[%s9 + $0x29c] sm:$0xf]
    %v2547 = vld [vmem:[%s9 + $0x2a0] sm:$0xf]
    %v2548 = vld [vmem:[%s9 + $0x2a4] sm:$0xf]
    %v2549 = vld [vmem:[%s9 + $0x2a8] sm:$0xf]
    %v2550 = vld [vmem:[%s9 + $0x2ac] sm:$0xf]
    %v2551 = vld [vmem:[%s9 + $0x2b0] sm:$0xf]
    %v2552 = vld [vmem:[%s9 + $0x2b4] sm:$0xf]
    %v2553 = vld [vmem:[%s9 + $0x2b8] sm:$0xf]
    %v2554 = vld [vmem:[%s9 + $0x2bc] sm:$0xf]
    %v2555 = vld [vmem:[%s9 + $0x2c0] sm:$0xf]
    %v2556 = vld [vmem:[%s9 + $0x2c4] sm:$0xf]
    %v2557 = vld [vmem:[%s9 + $0x2c8] sm:$0xf]
    %v2558 = vld [vmem:[%s9 + $0x2cc] sm:$0xf]
    %v2559 = vld [vmem:[%s9 + $0x2d0] sm:$0xf]
    %v2560 = vld [vmem:[%s9 + $0x2d4] sm:$0xf]
    %v2561 = vld [vmem:[%s9 + $0x2d8] sm:$0xf]
    %v2562 = vld [vmem:[%s9 + $0x2dc] sm:$0xf]
    %v2563 = vld [vmem:[%s9 + $0x2e0] sm:$0xf]
    %v2564 = vld [vmem:[%s9 + $0x2e4] sm:$0xf]
    %v2565 = vld [vmem:[%s9 + $0x2e8] sm:$0xf]
    %v2566 = vld [vmem:[%s9 + $0x2ec] sm:$0xf]
    %v2567 = vld [vmem:[%s9 + $0x2f0] sm:$0xf]
    %v2568 = vld [vmem:[%s9 + $0x2f4] sm:$0xf]
    %v2569 = vld [vmem:[%s9 + $0x2f8] sm:$0xf]
    %v2570 = vld [vmem:[%s9 + $0x2fc] sm:$0xf]
    %v2571 = vld [vmem:[%s9 + $0x300] sm:$0xf]
    %v2572 = vld [vmem:[%s9 + $0x304] sm:$0xf]
    %v2573 = vld [vmem:[%s9 + $0x308] sm:$0xf]
    %v2574 = vld [vmem:[%s9 + $0x30c] sm:$0xf]
    %v2575 = vld [vmem:[%s9 + $0x310] sm:$0xf]
    %v2576 = vld [vmem:[%s9 + $0x314] sm:$0xf]
    %v2577 = vld [vmem:[%s9 + $0x318] sm:$0xf]
    %v2578 = vld [vmem:[%s9 + $0x31c] sm:$0xf]
    %v2579 = vld [vmem:[%s9 + $0x320] sm:$0xf]
    %v2580 = vld [vmem:[%s9 + $0x324] sm:$0xf]
    %v2581 = vld [vmem:[%s9 + $0x328] sm:$0xf]
    %v2582 = vld [vmem:[%s9 + $0x32c] sm:$0xf]
    %v2583 = vld [vmem:[%s9 + $0x330] sm:$0xf]
    %v2584 = vld [vmem:[%s9 + $0x334] sm:$0xf]
    %v2585 = vld [vmem:[%s9 + $0x338] sm:$0xf]
    %v2586 = vld [vmem:[%s9 + $0x33c] sm:$0xf]
    %v2587 = vld [vmem:[%s9 + $0x340] sm:$0xf]
    %v2588 = vld [vmem:[%s9 + $0x344] sm:$0xf]
    %v2589 = vld [vmem:[%s9 + $0x348] sm:$0xf]
    %v2590 = vld [vmem:[%s9 + $0x34c] sm:$0xf]
    %v2591 = vld [vmem:[%s9 + $0x350] sm:$0xf]
    %v2592 = vld [vmem:[%s9 + $0x354] sm:$0xf]
    %v2593 = vld [vmem:[%s9 + $0x358] sm:$0xf]
    %v2594 = vld [vmem:[%s9 + $0x35c] sm:$0xf]
    %v2595 = vld [vmem:[%s9 + $0x360] sm:$0xf]
    %v2596 = vld [vmem:[%s9 + $0x364] sm:$0xf]
    %v2597 = vld [vmem:[%s9 + $0x368] sm:$0xf]
    %v2598 = vld [vmem:[%s9 + $0x36c] sm:$0xf]
    %v2599 = vld [vmem:[%s9 + $0x370] sm:$0xf]
    %v2600 = vld [vmem:[%s9 + $0x374] sm:$0xf]
    %v2601 = vld [vmem:[%s9 + $0x378] sm:$0xf]
    %v2602 = vld [vmem:[%s9 + $0x37c] sm:$0xf]
    %v2603 = vld [vmem:[%s9 + $0x380] sm:$0xf]
    %v2604 = vld [vmem:[%s9 + $0x384] sm:$0xf]
    %v2605 = vld [vmem:[%s9 + $0x388] sm:$0xf]
    %v2606 = vld [vmem:[%s9 + $0x38c] sm:$0xf]
    %v2607 = vld [vmem:[%s9 + $0x390] sm:$0xf]
    %v2608 = vld [vmem:[%s9 + $0x394] sm:$0xf]
    %v2609 = vld [vmem:[%s9 + $0x398] sm:$0xf]
    %v2610 = vld [vmem:[%s9 + $0x39c] sm:$0xf]
    %v2611 = vld [vmem:[%s9 + $0x3a0] sm:$0xf]
    %v2612 = vld [vmem:[%s9 + $0x3a4] sm:$0xf]
    %v2613 = vld [vmem:[%s9 + $0x3a8] sm:$0xf]
    %v2614 = vld [vmem:[%s9 + $0x3ac] sm:$0xf]
    %v2615 = vld [vmem:[%s9 + $0x3b0] sm:$0xf]
    %v2616 = vld [vmem:[%s9 + $0x3b4] sm:$0xf]
    %v2617 = vld [vmem:[%s9 + $0x3b8] sm:$0xf]
    %v2618 = vld [vmem:[%s9 + $0x3bc] sm:$0xf]
    %v2619 = vld [vmem:[%s9 + $0x3c0] sm:$0xf]
    %v2620 = vld [vmem:[%s9 + $0x3c4] sm:$0xf]
    %v2621 = vld [vmem:[%s9 + $0x3c8] sm:$0xf]
    %v2622 = vld [vmem:[%s9 + $0x3cc] sm:$0xf]
    %v2623 = vld [vmem:[%s9 + $0x3d0] sm:$0xf]
    %v2624 = vld [vmem:[%s9 + $0x3d4] sm:$0xf]
    %v2625 = vld [vmem:[%s9 + $0x3d8] sm:$0xf]
    %v2626 = vld [vmem:[%s9 + $0x3dc] sm:$0xf]
    %v2627 = vld [vmem:[%s9 + $0x3e0] sm:$0xf]
    %v2628 = vld [vmem:[%s9 + $0x3e4] sm:$0xf]
    %v2629 = vld [vmem:[%s9 + $0x3e8] sm:$0xf]
    %v2630 = vld [vmem:[%s9 + $0x3ec] sm:$0xf]
    %v2631 = vld [vmem:[%s9 + $0x3f0] sm:$0xf]
    %v2632 = vld [vmem:[%s9 + $0x3f4] sm:$0xf]
    %v2633 = vld [vmem:[%s9 + $0x3f8] sm:$0xf]
    %v2634 = vld [vmem:[%s9 + $0x3fc] sm:$0xf]
    %v2635 = vld [vmem:[%s10] sm:$0x1]
    %v2637 = vlaneseq
    %v2638 = vshrl.u32 %v2637, 7
    %v2639 = vsub.s32 0, %v2638
    %v2640 = vrot.slane %v2635, %v2639
    %v2898 = vunpack.c.l.b16 %v2379
    %v2899 = vunpack.c.l.b16 %v2380
    %v2900 = vunpack.c.l.b16 %v2381
    %v2901 = vunpack.c.l.b16 %v2382
    %v2902 = vunpack.c.l.b16 %v2383
    %v2903 = vunpack.c.l.b16 %v2384
    %v2904 = vunpack.c.l.b16 %v2385
    %v2905 = vunpack.c.l.b16 %v2386
    %v2906 = vunpack.c.l.b16 %v2387
    %v2907 = vunpack.c.l.b16 %v2388
    %v2908 = vunpack.c.l.b16 %v2389
    %v2909 = vunpack.c.l.b16 %v2390
    %v2910 = vunpack.c.l.b16 %v2391
    %v2911 = vunpack.c.l.b16 %v2392
    %v2912 = vunpack.c.l.b16 %v2393
    %v2913 = vunpack.c.l.b16 %v2394
    %v2914 = vunpack.c.l.b16 %v2395
    %v2915 = vunpack.c.l.b16 %v2396
    %v2916 = vunpack.c.l.b16 %v2397
    %v2917 = vunpack.c.l.b16 %v2398
    %v2918 = vunpack.c.l.b16 %v2399
    %v2919 = vunpack.c.l.b16 %v2400
    %v2920 = vunpack.c.l.b16 %v2401
    %v2921 = vunpack.c.l.b16 %v2402
    %v2922 = vunpack.c.l.b16 %v2403
    %v2923 = vunpack.c.l.b16 %v2404
    %v2924 = vunpack.c.l.b16 %v2405
    %v2925 = vunpack.c.l.b16 %v2406
    %v2926 = vunpack.c.l.b16 %v2407
    %v2927 = vunpack.c.l.b16 %v2408
    %v2928 = vunpack.c.l.b16 %v2409
    %v2929 = vunpack.c.l.b16 %v2410
    %v2930 = vunpack.c.l.b16 %v2411
    %v2931 = vunpack.c.l.b16 %v2412
    %v2932 = vunpack.c.l.b16 %v2413
    %v2933 = vunpack.c.l.b16 %v2414
    %v2934 = vunpack.c.l.b16 %v2415
    %v2935 = vunpack.c.l.b16 %v2416
    %v2936 = vunpack.c.l.b16 %v2417
    %v2937 = vunpack.c.l.b16 %v2418
    %v2938 = vunpack.c.l.b16 %v2419
    %v2939 = vunpack.c.l.b16 %v2420
    %v2940 = vunpack.c.l.b16 %v2421
    %v2941 = vunpack.c.l.b16 %v2422
    %v2942 = vunpack.c.l.b16 %v2423
    %v2943 = vunpack.c.l.b16 %v2424
    %v2944 = vunpack.c.l.b16 %v2425
    %v2945 = vunpack.c.l.b16 %v2426
    %v2946 = vunpack.c.l.b16 %v2427
    %v2947 = vunpack.c.l.b16 %v2428
    %v2948 = vunpack.c.l.b16 %v2429
    %v2949 = vunpack.c.l.b16 %v2430
    %v2950 = vunpack.c.l.b16 %v2431
    %v2951 = vunpack.c.l.b16 %v2432
    %v2952 = vunpack.c.l.b16 %v2433
    %v2953 = vunpack.c.l.b16 %v2434
    %v2954 = vunpack.c.l.b16 %v2435
    %v2955 = vunpack.c.l.b16 %v2436
    %v2956 = vunpack.c.l.b16 %v2437
    %v2957 = vunpack.c.l.b16 %v2438
    %v2958 = vunpack.c.l.b16 %v2439
    %v2959 = vunpack.c.l.b16 %v2440
    %v2960 = vunpack.c.l.b16 %v2441
    %v2961 = vunpack.c.l.b16 %v2442
    %v2962 = vunpack.c.l.b16 %v2443
    %v2963 = vunpack.c.l.b16 %v2444
    %v2964 = vunpack.c.l.b16 %v2445
    %v2965 = vunpack.c.l.b16 %v2446
    %v2966 = vunpack.c.l.b16 %v2447
    %v2967 = vunpack.c.l.b16 %v2448
    %v2968 = vunpack.c.l.b16 %v2449
    %v2969 = vunpack.c.l.b16 %v2450
    %v2970 = vunpack.c.l.b16 %v2451
    %v2971 = vunpack.c.l.b16 %v2452
    %v2972 = vunpack.c.l.b16 %v2453
    %v2973 = vunpack.c.l.b16 %v2454
    %v2974 = vunpack.c.l.b16 %v2455
    %v2975 = vunpack.c.l.b16 %v2456
    %v2976 = vunpack.c.l.b16 %v2457
    %v2977 = vunpack.c.l.b16 %v2458
    %v2978 = vunpack.c.l.b16 %v2459
    %v2979 = vunpack.c.l.b16 %v2460
    %v2980 = vunpack.c.l.b16 %v2461
    %v2981 = vunpack.c.l.b16 %v2462
    %v2982 = vunpack.c.l.b16 %v2463
    %v2983 = vunpack.c.l.b16 %v2464
    %v2984 = vunpack.c.l.b16 %v2465
    %v2985 = vunpack.c.l.b16 %v2466
    %v2986 = vunpack.c.l.b16 %v2467
    %v2987 = vunpack.c.l.b16 %v2468
    %v2988 = vunpack.c.l.b16 %v2469
    %v2989 = vunpack.c.l.b16 %v2470
    %v2990 = vunpack.c.l.b16 %v2471
    %v2991 = vunpack.c.l.b16 %v2472
    %v2992 = vunpack.c.l.b16 %v2473
    %v2993 = vunpack.c.l.b16 %v2474
    %v2994 = vunpack.c.l.b16 %v2475
    %v2995 = vunpack.c.l.b16 %v2476
    %v2996 = vunpack.c.l.b16 %v2477
    %v2997 = vunpack.c.l.b16 %v2478
    %v2998 = vunpack.c.l.b16 %v2479
    %v2999 = vunpack.c.l.b16 %v2480
    %v3000 = vunpack.c.l.b16 %v2481
    %v3001 = vunpack.c.l.b16 %v2482
    %v3002 = vunpack.c.l.b16 %v2483
    %v3003 = vunpack.c.l.b16 %v2484
    %v3004 = vunpack.c.l.b16 %v2485
    %v3005 = vunpack.c.l.b16 %v2486
    %v3006 = vunpack.c.l.b16 %v2487
    %v3007 = vunpack.c.l.b16 %v2488
    %v3008 = vunpack.c.l.b16 %v2489
    %v3009 = vunpack.c.l.b16 %v2490
    %v3010 = vunpack.c.l.b16 %v2491
    %v3011 = vunpack.c.l.b16 %v2492
    %v3012 = vunpack.c.l.b16 %v2493
    %v3013 = vunpack.c.l.b16 %v2494
    %v3014 = vunpack.c.l.b16 %v2495
    %v3015 = vunpack.c.l.b16 %v2496
    %v3016 = vunpack.c.l.b16 %v2497
    %v3017 = vunpack.c.l.b16 %v2498
    %v3018 = vunpack.c.l.b16 %v2499
    %v3019 = vunpack.c.l.b16 %v2500
    %v3020 = vunpack.c.l.b16 %v2501
    %v3021 = vunpack.c.l.b16 %v2502
    %v3022 = vunpack.c.l.b16 %v2503
    %v3023 = vunpack.c.l.b16 %v2504
    %v3024 = vunpack.c.l.b16 %v2505
    %v3025 = vunpack.c.l.b16 %v2506
    %v3026 = vunpack.c.l.b16 %v2507
    %v3027 = vunpack.c.l.b16 %v2508
    %v3028 = vunpack.c.l.b16 %v2509
    %v3029 = vunpack.c.l.b16 %v2510
    %v3030 = vunpack.c.l.b16 %v2511
    %v3031 = vunpack.c.l.b16 %v2512
    %v3032 = vunpack.c.l.b16 %v2513
    %v3033 = vunpack.c.l.b16 %v2514
    %v3034 = vunpack.c.l.b16 %v2515
    %v3035 = vunpack.c.l.b16 %v2516
    %v3036 = vunpack.c.l.b16 %v2517
    %v3037 = vunpack.c.l.b16 %v2518
    %v3038 = vunpack.c.l.b16 %v2519
    %v3039 = vunpack.c.l.b16 %v2520
    %v3040 = vunpack.c.l.b16 %v2521
    %v3041 = vunpack.c.l.b16 %v2522
    %v3042 = vunpack.c.l.b16 %v2523
    %v3043 = vunpack.c.l.b16 %v2524
    %v3044 = vunpack.c.l.b16 %v2525
    %v3045 = vunpack.c.l.b16 %v2526
    %v3046 = vunpack.c.l.b16 %v2527
    %v3047 = vunpack.c.l.b16 %v2528
    %v3048 = vunpack.c.l.b16 %v2529
    %v3049 = vunpack.c.l.b16 %v2530
    %v3050 = vunpack.c.l.b16 %v2531
    %v3051 = vunpack.c.l.b16 %v2532
    %v3052 = vunpack.c.l.b16 %v2533
    %v3053 = vunpack.c.l.b16 %v2534
    %v3054 = vunpack.c.l.b16 %v2535
    %v3055 = vunpack.c.l.b16 %v2536
    %v3056 = vunpack.c.l.b16 %v2537
    %v3057 = vunpack.c.l.b16 %v2538
    %v3058 = vunpack.c.l.b16 %v2539
    %v3059 = vunpack.c.l.b16 %v2540
    %v3060 = vunpack.c.l.b16 %v2541
    %v3061 = vunpack.c.l.b16 %v2542
    %v3062 = vunpack.c.l.b16 %v2543
    %v3063 = vunpack.c.l.b16 %v2544
    %v3064 = vunpack.c.l.b16 %v2545
    %v3065 = vunpack.c.l.b16 %v2546
    %v3066 = vunpack.c.l.b16 %v2547
    %v3067 = vunpack.c.l.b16 %v2548
    %v3068 = vunpack.c.l.b16 %v2549
    %v3069 = vunpack.c.l.b16 %v2550
    %v3070 = vunpack.c.l.b16 %v2551
    %v3071 = vunpack.c.l.b16 %v2552
    %v3072 = vunpack.c.l.b16 %v2553
    %v3073 = vunpack.c.l.b16 %v2554
    %v3074 = vunpack.c.l.b16 %v2555
    %v3075 = vunpack.c.l.b16 %v2556
    %v3076 = vunpack.c.l.b16 %v2557
    %v3077 = vunpack.c.l.b16 %v2558
    %v3078 = vunpack.c.l.b16 %v2559
    %v3079 = vunpack.c.l.b16 %v2560
    %v3080 = vunpack.c.l.b16 %v2561
    %v3081 = vunpack.c.l.b16 %v2562
    %v3082 = vunpack.c.l.b16 %v2563
    %v3083 = vunpack.c.l.b16 %v2564
    %v3084 = vunpack.c.l.b16 %v2565
    %v3085 = vunpack.c.l.b16 %v2566
    %v3086 = vunpack.c.l.b16 %v2567
    %v3087 = vunpack.c.l.b16 %v2568
    %v3088 = vunpack.c.l.b16 %v2569
    %v3089 = vunpack.c.l.b16 %v2570
    %v3090 = vunpack.c.l.b16 %v2571
    %v3091 = vunpack.c.l.b16 %v2572
    %v3092 = vunpack.c.l.b16 %v2573
    %v3093 = vunpack.c.l.b16 %v2574
    %v3094 = vunpack.c.l.b16 %v2575
    %v3095 = vunpack.c.l.b16 %v2576
    %v3096 = vunpack.c.l.b16 %v2577
    %v3097 = vunpack.c.l.b16 %v2578
    %v3098 = vunpack.c.l.b16 %v2579
    %v3099 = vunpack.c.l.b16 %v2580
    %v3100 = vunpack.c.l.b16 %v2581
    %v3101 = vunpack.c.l.b16 %v2582
    %v3102 = vunpack.c.l.b16 %v2583
    %v3103 = vunpack.c.l.b16 %v2584
    %v3104 = vunpack.c.l.b16 %v2585
    %v3105 = vunpack.c.l.b16 %v2586
    %v3106 = vunpack.c.l.b16 %v2587
    %v3107 = vunpack.c.l.b16 %v2588
    %v3108 = vunpack.c.l.b16 %v2589
    %v3109 = vunpack.c.l.b16 %v2590
    %v3110 = vunpack.c.l.b16 %v2591
    %v3111 = vunpack.c.l.b16 %v2592
    %v3112 = vunpack.c.l.b16 %v2593
    %v3113 = vunpack.c.l.b16 %v2594
    %v3114 = vunpack.c.l.b16 %v2595
    %v3115 = vunpack.c.l.b16 %v2596
    %v3116 = vunpack.c.l.b16 %v2597
    %v3117 = vunpack.c.l.b16 %v2598
    %v3118 = vunpack.c.l.b16 %v2599
    %v3119 = vunpack.c.l.b16 %v2600
    %v3120 = vunpack.c.l.b16 %v2601
    %v3121 = vunpack.c.l.b16 %v2602
    %v3122 = vunpack.c.l.b16 %v2603
    %v3123 = vunpack.c.l.b16 %v2604
    %v3124 = vunpack.c.l.b16 %v2605
    %v3125 = vunpack.c.l.b16 %v2606
    %v3126 = vunpack.c.l.b16 %v2607
    %v3127 = vunpack.c.l.b16 %v2608
    %v3128 = vunpack.c.l.b16 %v2609
    %v3129 = vunpack.c.l.b16 %v2610
    %v3130 = vunpack.c.l.b16 %v2611
    %v3131 = vunpack.c.l.b16 %v2612
    %v3132 = vunpack.c.l.b16 %v2613
    %v3133 = vunpack.c.l.b16 %v2614
    %v3134 = vunpack.c.l.b16 %v2615
    %v3135 = vunpack.c.l.b16 %v2616
    %v3136 = vunpack.c.l.b16 %v2617
    %v3137 = vunpack.c.l.b16 %v2618
    %v3138 = vunpack.c.l.b16 %v2619
    %v3139 = vunpack.c.l.b16 %v2620
    %v3140 = vunpack.c.l.b16 %v2621
    %v3141 = vunpack.c.l.b16 %v2622
    %v3142 = vunpack.c.l.b16 %v2623
    %v3143 = vunpack.c.l.b16 %v2624
    %v3144 = vunpack.c.l.b16 %v2625
    %v3145 = vunpack.c.l.b16 %v2626
    %v3146 = vunpack.c.l.b16 %v2627
    %v3147 = vunpack.c.l.b16 %v2628
    %v3148 = vunpack.c.l.b16 %v2629
    %v3149 = vunpack.c.l.b16 %v2630
    %v3150 = vunpack.c.l.b16 %v2631
    %v3151 = vunpack.c.l.b16 %v2632
    %v3152 = vunpack.c.l.b16 %v2633
    %v3153 = vunpack.c.l.b16 %v2634
    %v3154 = vpack.c.b16 %v2899, %v2898
    %v3155 = vpack.c.b16 %v2901, %v2900
    %v3156 = vpack.c.b16 %v2903, %v2902
    %v3157 = vpack.c.b16 %v2905, %v2904
    %v3158 = vpack.c.b16 %v2907, %v2906
    %v3159 = vpack.c.b16 %v2909, %v2908
    %v3160 = vpack.c.b16 %v2911, %v2910
    %v3161 = vpack.c.b16 %v2913, %v2912
    %v3162 = vpack.c.b16 %v2915, %v2914
    %v3163 = vpack.c.b16 %v2917, %v2916
    %v3164 = vpack.c.b16 %v2919, %v2918
    %v3165 = vpack.c.b16 %v2921, %v2920
    %v3166 = vpack.c.b16 %v2923, %v2922
    %v3167 = vpack.c.b16 %v2925, %v2924
    %v3168 = vpack.c.b16 %v2927, %v2926
    %v3169 = vpack.c.b16 %v2929, %v2928
    %v3170 = vpack.c.b16 %v2931, %v2930
    %v3171 = vpack.c.b16 %v2933, %v2932
    %v3172 = vpack.c.b16 %v2935, %v2934
    %v3173 = vpack.c.b16 %v2937, %v2936
    %v3174 = vpack.c.b16 %v2939, %v2938
    %v3175 = vpack.c.b16 %v2941, %v2940
    %v3176 = vpack.c.b16 %v2943, %v2942
    %v3177 = vpack.c.b16 %v2945, %v2944
    %v3178 = vpack.c.b16 %v2947, %v2946
    %v3179 = vpack.c.b16 %v2949, %v2948
    %v3180 = vpack.c.b16 %v2951, %v2950
    %v3181 = vpack.c.b16 %v2953, %v2952
    %v3182 = vpack.c.b16 %v2955, %v2954
    %v3183 = vpack.c.b16 %v2957, %v2956
    %v3184 = vpack.c.b16 %v2959, %v2958
    %v3185 = vpack.c.b16 %v2961, %v2960
    %v3186 = vpack.c.b16 %v2963, %v2962
    %v3187 = vpack.c.b16 %v2965, %v2964
    %v3188 = vpack.c.b16 %v2967, %v2966
    %v3189 = vpack.c.b16 %v2969, %v2968
    %v3190 = vpack.c.b16 %v2971, %v2970
    %v3191 = vpack.c.b16 %v2973, %v2972
    %v3192 = vpack.c.b16 %v2975, %v2974
    %v3193 = vpack.c.b16 %v2977, %v2976
    %v3194 = vpack.c.b16 %v2979, %v2978
    %v3195 = vpack.c.b16 %v2981, %v2980
    %v3196 = vpack.c.b16 %v2983, %v2982
    %v3197 = vpack.c.b16 %v2985, %v2984
    %v3198 = vpack.c.b16 %v2987, %v2986
    %v3199 = vpack.c.b16 %v2989, %v2988
    %v3200 = vpack.c.b16 %v2991, %v2990
    %v3201 = vpack.c.b16 %v2993, %v2992
    %v3202 = vpack.c.b16 %v2995, %v2994
    %v3203 = vpack.c.b16 %v2997, %v2996
    %v3204 = vpack.c.b16 %v2999, %v2998
    %v3205 = vpack.c.b16 %v3001, %v3000
    %v3206 = vpack.c.b16 %v3003, %v3002
    %v3207 = vpack.c.b16 %v3005, %v3004
    %v3208 = vpack.c.b16 %v3007, %v3006
    %v3209 = vpack.c.b16 %v3009, %v3008
    %v3210 = vpack.c.b16 %v3011, %v3010
    %v3211 = vpack.c.b16 %v3013, %v3012
    %v3212 = vpack.c.b16 %v3015, %v3014
    %v3213 = vpack.c.b16 %v3017, %v3016
    %v3214 = vpack.c.b16 %v3019, %v3018
    %v3215 = vpack.c.b16 %v3021, %v3020
    %v3216 = vpack.c.b16 %v3023, %v3022
    %v3217 = vpack.c.b16 %v3025, %v3024
    %v3218 = vpack.c.b16 %v3027, %v3026
    %v3219 = vpack.c.b16 %v3029, %v3028
    %v3220 = vpack.c.b16 %v3031, %v3030
    %v3221 = vpack.c.b16 %v3033, %v3032
    %v3222 = vpack.c.b16 %v3035, %v3034
    %v3223 = vpack.c.b16 %v3037, %v3036
    %v3224 = vpack.c.b16 %v3039, %v3038
    %v3225 = vpack.c.b16 %v3041, %v3040
    %v3226 = vpack.c.b16 %v3043, %v3042
    %v3227 = vpack.c.b16 %v3045, %v3044
    %v3228 = vpack.c.b16 %v3047, %v3046
    %v3229 = vpack.c.b16 %v3049, %v3048
    %v3230 = vpack.c.b16 %v3051, %v3050
    %v3231 = vpack.c.b16 %v3053, %v3052
    %v3232 = vpack.c.b16 %v3055, %v3054
    %v3233 = vpack.c.b16 %v3057, %v3056
    %v3234 = vpack.c.b16 %v3059, %v3058
    %v3235 = vpack.c.b16 %v3061, %v3060
    %v3236 = vpack.c.b16 %v3063, %v3062
    %v3237 = vpack.c.b16 %v3065, %v3064
    %v3238 = vpack.c.b16 %v3067, %v3066
    %v3239 = vpack.c.b16 %v3069, %v3068
    %v3240 = vpack.c.b16 %v3071, %v3070
    %v3241 = vpack.c.b16 %v3073, %v3072
    %v3242 = vpack.c.b16 %v3075, %v3074
    %v3243 = vpack.c.b16 %v3077, %v3076
    %v3244 = vpack.c.b16 %v3079, %v3078
    %v3245 = vpack.c.b16 %v3081, %v3080
    %v3246 = vpack.c.b16 %v3083, %v3082
    %v3247 = vpack.c.b16 %v3085, %v3084
    %v3248 = vpack.c.b16 %v3087, %v3086
    %v3249 = vpack.c.b16 %v3089, %v3088
    %v3250 = vpack.c.b16 %v3091, %v3090
    %v3251 = vpack.c.b16 %v3093, %v3092
    %v3252 = vpack.c.b16 %v3095, %v3094
    %v3253 = vpack.c.b16 %v3097, %v3096
    %v3254 = vpack.c.b16 %v3099, %v3098
    %v3255 = vpack.c.b16 %v3101, %v3100
    %v3256 = vpack.c.b16 %v3103, %v3102
    %v3257 = vpack.c.b16 %v3105, %v3104
    %v3258 = vpack.c.b16 %v3107, %v3106
    %v3259 = vpack.c.b16 %v3109, %v3108
    %v3260 = vpack.c.b16 %v3111, %v3110
    %v3261 = vpack.c.b16 %v3113, %v3112
    %v3262 = vpack.c.b16 %v3115, %v3114
    %v3263 = vpack.c.b16 %v3117, %v3116
    %v3264 = vpack.c.b16 %v3119, %v3118
    %v3265 = vpack.c.b16 %v3121, %v3120
    %v3266 = vpack.c.b16 %v3123, %v3122
    %v3267 = vpack.c.b16 %v3125, %v3124
    %v3268 = vpack.c.b16 %v3127, %v3126
    %v3269 = vpack.c.b16 %v3129, %v3128
    %v3270 = vpack.c.b16 %v3131, %v3130
    %v3271 = vpack.c.b16 %v3133, %v3132
    %v3272 = vpack.c.b16 %v3135, %v3134
    %v3273 = vpack.c.b16 %v3137, %v3136
    %v3274 = vpack.c.b16 %v3139, %v3138
    %v3275 = vpack.c.b16 %v3141, %v3140
    %v3276 = vpack.c.b16 %v3143, %v3142
    %v3277 = vpack.c.b16 %v3145, %v3144
    %v3278 = vpack.c.b16 %v3147, %v3146
    %v3279 = vpack.c.b16 %v3149, %v3148
    %v3280 = vpack.c.b16 %v3151, %v3150
    %v3281 = vpack.c.b16 %v3153, %v3152
    %3410 = vmatprep.subr.bf16.mxu0 0
    %3411 = vmatpush1.bf16.msra.mxu0 %v3154
    %3412 = vmatprep.subr.bf16.mxu0 0
    %3413 = vmatpush1.bf16.msra.mxu0 %v3155
    %3414 = vmatprep.subr.bf16.mxu0 0
    %3415 = vmatpush1.bf16.msra.mxu0 %v3156
    %3416 = vmatprep.subr.bf16.mxu0 0
    %3417 = vmatpush1.bf16.msra.mxu0 %v3157
    %3418 = vmatprep.subr.bf16.mxu0 0
    %3419 = vmatpush1.bf16.msra.mxu0 %v3158
    %3420 = vmatprep.subr.bf16.mxu0 0
    %3421 = vmatpush1.bf16.msra.mxu0 %v3159
    %3422 = vmatprep.subr.bf16.mxu0 0
    %3423 = vmatpush1.bf16.msra.mxu0 %v3160
    %3424 = vmatprep.subr.bf16.mxu0 0
    %3425 = vmatpush1.bf16.msra.mxu0 %v3161
    %3426 = vmatprep.subr.bf16.mxu0 0
    %3427 = vmatpush1.bf16.msra.mxu0 %v3162
    %3428 = vmatprep.subr.bf16.mxu0 0
    %3429 = vmatpush1.bf16.msra.mxu0 %v3163
    %3430 = vmatprep.subr.bf16.mxu0 0
    %3431 = vmatpush1.bf16.msra.mxu0 %v3164
    %3432 = vmatprep.subr.bf16.mxu0 0
    %3433 = vmatpush1.bf16.msra.mxu0 %v3165
    %3434 = vmatprep.subr.bf16.mxu0 0
    %3435 = vmatpush1.bf16.msra.mxu0 %v3166
    %3436 = vmatprep.subr.bf16.mxu0 0
    %3437 = vmatpush1.bf16.msra.mxu0 %v3167
    %3438 = vmatprep.subr.bf16.mxu0 0
    %3439 = vmatpush1.bf16.msra.mxu0 %v3168
    %3440 = vmatprep.subr.bf16.mxu0 0
    %3441 = vmatpush1.bf16.msra.mxu0 %v3169
    %3442 = vmatprep.mubr.bf16.mxu0 %v2364
    %3443 = vmatmul.mubr.bf16.gmra.mrb[0].mxu0 %v2363
    %v3444 = vpop.f32.mrb[0].mxu0
    %v3445 = vadd.f32 %v2640, %v3444
    %v3446 = vpop.f32.mrb[0].mxu0
    %v3447 = vpop.f32.mrb[0].mxu0
    %v3448 = vadd.f32 %v2640, %v3447
    %v3449 = vpop.f32.mrb[0].mxu0
    %3450 = vdwg.mxu0
    %3451 = vmatprep.subr.bf16.mxu0 0
    %3452 = vmatpush1.bf16.msra.mxu0 %v3170
    %3453 = vmatprep.subr.bf16.mxu0 0
    %3454 = vmatpush1.bf16.msra.mxu0 %v3171
    %3455 = vmatprep.subr.bf16.mxu0 0
    %3456 = vmatpush1.bf16.msra.mxu0 %v3172
    %3457 = vmatprep.subr.bf16.mxu0 0
    %3458 = vmatpush1.bf16.msra.mxu0 %v3173
    %3459 = vmatprep.subr.bf16.mxu0 0
    %3460 = vmatpush1.bf16.msra.mxu0 %v3174
    %3461 = vmatprep.subr.bf16.mxu0 0
    %3462 = vmatpush1.bf16.msra.mxu0 %v3175
    %3463 = vmatprep.subr.bf16.mxu0 0
    %3464 = vmatpush1.bf16.msra.mxu0 %v3176
    %3465 = vmatprep.subr.bf16.mxu0 0
    %3466 = vmatpush1.bf16.msra.mxu0 %v3177
    %3467 = vmatprep.subr.bf16.mxu0 0
    %3468 = vmatpush1.bf16.msra.mxu0 %v3178
    %3469 = vmatprep.subr.bf16.mxu0 0
    %3470 = vmatpush1.bf16.msra.mxu0 %v3179
    %3471 = vmatprep.subr.bf16.mxu0 0
    %3472 = vmatpush1.bf16.msra.mxu0 %v3180
    %3473 = vmatprep.subr.bf16.mxu0 0
    %3474 = vmatpush1.bf16.msra.mxu0 %v3181
    %3475 = vmatprep.subr.bf16.mxu0 0
    %3476 = vmatpush1.bf16.msra.mxu0 %v3182
    %3477 = vmatprep.subr.bf16.mxu0 0
    %3478 = vmatpush1.bf16.msra.mxu0 %v3183
    %3479 = vmatprep.subr.bf16.mxu0 0
    %3480 = vmatpush1.bf16.msra.mxu0 %v3184
    %3481 = vmatprep.subr.bf16.mxu0 0
    %3482 = vmatpush1.bf16.msra.mxu0 %v3185
    %3483 = vmatprep.mubr.bf16.mxu0 %v2366
    %3484 = vmatmul.mubr.bf16.gmra.mrb[0].mxu0 %v2365
    %v3485 = vpop.f32.mrb[0].mxu0
    %v3486 = vadd.f32 %v3445, %v3485
    %v3487 = vpop.f32.mrb[0].mxu0
    %v3488 = vpop.f32.mrb[0].mxu0
    %v3489 = vadd.f32 %v3448, %v3488
    %v3490 = vpop.f32.mrb[0].mxu0
    %3491 = vdwg.mxu0
    %3492 = vmatprep.subr.bf16.mxu0 0
    %3493 = vmatpush1.bf16.msra.mxu0 %v3186
    %3494 = vmatprep.subr.bf16.mxu0 0
    %3495 = vmatpush1.bf16.msra.mxu0 %v3187
    %3496 = vmatprep.subr.bf16.mxu0 0
    %3497 = vmatpush1.bf16.msra.mxu0 %v3188
    %3498 = vmatprep.subr.bf16.mxu0 0
    %3499 = vmatpush1.bf16.msra.mxu0 %v3189
    %3500 = vmatprep.subr.bf16.mxu0 0
    %3501 = vmatpush1.bf16.msra.mxu0 %v3190
    %3502 = vmatprep.subr.bf16.mxu0 0
    %3503 = vmatpush1.bf16.msra.mxu0 %v3191
    %3504 = vmatprep.subr.bf16.mxu0 0
    %3505 = vmatpush1.bf16.msra.mxu0 %v3192
    %3506 = vmatprep.subr.bf16.mxu0 0
    %3507 = vmatpush1.bf16.msra.mxu0 %v3193
    %3508 = vmatprep.subr.bf16.mxu0 0
    %3509 = vmatpush1.bf16.msra.mxu0 %v3194
    %3510 = vmatprep.subr.bf16.mxu0 0
    %3511 = vmatpush1.bf16.msra.mxu0 %v3195
    %3512 = vmatprep.subr.bf16.mxu0 0
    %3513 = vmatpush1.bf16.msra.mxu0 %v3196
    %3514 = vmatprep.subr.bf16.mxu0 0
    %3515 = vmatpush1.bf16.msra.mxu0 %v3197
    %3516 = vmatprep.subr.bf16.mxu0 0
    %3517 = vmatpush1.bf16.msra.mxu0 %v3198
    %3518 = vmatprep.subr.bf16.mxu0 0
    %3519 = vmatpush1.bf16.msra.mxu0 %v3199
    %3520 = vmatprep.subr.bf16.mxu0 0
    %3521 = vmatpush1.bf16.msra.mxu0 %v3200
    %3522 = vmatprep.subr.bf16.mxu0 0
    %3523 = vmatpush1.bf16.msra.mxu0 %v3201
    %3524 = vmatprep.mubr.bf16.mxu0 %v2368
    %3525 = vmatmul.mubr.bf16.gmra.mrb[0].mxu0 %v2367
    %v3526 = vpop.f32.mrb[0].mxu0
    %v3527 = vadd.f32 %v3486, %v3526
    %v3528 = vpop.f32.mrb[0].mxu0
    %v3529 = vpop.f32.mrb[0].mxu0
    %v3530 = vadd.f32 %v3489, %v3529
    %v3531 = vpop.f32.mrb[0].mxu0
    %3532 = vdwg.mxu0
    %3533 = vmatprep.subr.bf16.mxu0 0
    %3534 = vmatpush1.bf16.msra.mxu0 %v3202
    %3535 = vmatprep.subr.bf16.mxu0 0
    %3536 = vmatpush1.bf16.msra.mxu0 %v3203
    %3537 = vmatprep.subr.bf16.mxu0 0
    %3538 = vmatpush1.bf16.msra.mxu0 %v3204
    %3539 = vmatprep.subr.bf16.mxu0 0
    %3540 = vmatpush1.bf16.msra.mxu0 %v3205
    %3541 = vmatprep.subr.bf16.mxu0 0
    %3542 = vmatpush1.bf16.msra.mxu0 %v3206
    %3543 = vmatprep.subr.bf16.mxu0 0
    %3544 = vmatpush1.bf16.msra.mxu0 %v3207
    %3545 = vmatprep.subr.bf16.mxu0 0
    %3546 = vmatpush1.bf16.msra.mxu0 %v3208
    %3547 = vmatprep.subr.bf16.mxu0 0
    %3548 = vmatpush1.bf16.msra.mxu0 %v3209
    %3549 = vmatprep.subr.bf16.mxu0 0
    %3550 = vmatpush1.bf16.msra.mxu0 %v3210
    %3551 = vmatprep.subr.bf16.mxu0 0
    %3552 = vmatpush1.bf16.msra.mxu0 %v3211
    %3553 = vmatprep.subr.bf16.mxu0 0
    %3554 = vmatpush1.bf16.msra.mxu0 %v3212
    %3555 = vmatprep.subr.bf16.mxu0 0
    %3556 = vmatpush1.bf16.msra.mxu0 %v3213
    %3557 = vmatprep.subr.bf16.mxu0 0
    %3558 = vmatpush1.bf16.msra.mxu0 %v3214
    %3559 = vmatprep.subr.bf16.mxu0 0
    %3560 = vmatpush1.bf16.msra.mxu0 %v3215
    %3561 = vmatprep.subr.bf16.mxu0 0
    %3562 = vmatpush1.bf16.msra.mxu0 %v3216
    %3563 = vmatprep.subr.bf16.mxu0 0
    %3564 = vmatpush1.bf16.msra.mxu0 %v3217
    %3565 = vmatprep.mubr.bf16.mxu0 %v2370
    %3566 = vmatmul.mubr.bf16.gmra.mrb[0].mxu0 %v2369
    %v3567 = vpop.f32.mrb[0].mxu0
    %v3568 = vadd.f32 %v3527, %v3567
    %v3569 = vpop.f32.mrb[0].mxu0
    %v3570 = vpop.f32.mrb[0].mxu0
    %v3571 = vadd.f32 %v3530, %v3570
    %v3572 = vpop.f32.mrb[0].mxu0
    %3573 = vdwg.mxu0
    %3574 = vmatprep.subr.bf16.mxu0 0
    %3575 = vmatpush1.bf16.msra.mxu0 %v3218
    %3576 = vmatprep.subr.bf16.mxu0 0
    %3577 = vmatpush1.bf16.msra.mxu0 %v3219
    %3578 = vmatprep.subr.bf16.mxu0 0
    %3579 = vmatpush1.bf16.msra.mxu0 %v3220
    %3580 = vmatprep.subr.bf16.mxu0 0
    %3581 = vmatpush1.bf16.msra.mxu0 %v3221
    %3582 = vmatprep.subr.bf16.mxu0 0
    %3583 = vmatpush1.bf16.msra.mxu0 %v3222
    %3584 = vmatprep.subr.bf16.mxu0 0
    %3585 = vmatpush1.bf16.msra.mxu0 %v3223
    %3586 = vmatprep.subr.bf16.mxu0 0
    %3587 = vmatpush1.bf16.msra.mxu0 %v3224
    %3588 = vmatprep.subr.bf16.mxu0 0
    %3589 = vmatpush1.bf16.msra.mxu0 %v3225
    %3590 = vmatprep.subr.bf16.mxu0 0
    %3591 = vmatpush1.bf16.msra.mxu0 %v3226
    %3592 = vmatprep.subr.bf16.mxu0 0
    %3593 = vmatpush1.bf16.msra.mxu0 %v3227
    %3594 = vmatprep.subr.bf16.mxu0 0
    %3595 = vmatpush1.bf16.msra.mxu0 %v3228
    %3596 = vmatprep.subr.bf16.mxu0 0
    %3597 = vmatpush1.bf16.msra.mxu0 %v3229
    %3598 = vmatprep.subr.bf16.mxu0 0
    %3599 = vmatpush1.bf16.msra.mxu0 %v3230
    %3600 = vmatprep.subr.bf16.mxu0 0
    %3601 = vmatpush1.bf16.msra.mxu0 %v3231
    %3602 = vmatprep.subr.bf16.mxu0 0
    %3603 = vmatpush1.bf16.msra.mxu0 %v3232
    %3604 = vmatprep.subr.bf16.mxu0 0
    %3605 = vmatpush1.bf16.msra.mxu0 %v3233
    %3606 = vmatprep.mubr.bf16.mxu0 %v2372
    %3607 = vmatmul.mubr.bf16.gmra.mrb[0].mxu0 %v2371
    %v3608 = vpop.f32.mrb[0].mxu0
    %v3609 = vadd.f32 %v3568, %v3608
    %v3610 = vpop.f32.mrb[0].mxu0
    %v3611 = vpop.f32.mrb[0].mxu0
    %v3612 = vadd.f32 %v3571, %v3611
    %v3613 = vpop.f32.mrb[0].mxu0
    %3614 = vdwg.mxu0
    %3615 = vmatprep.subr.bf16.mxu0 0
    %3616 = vmatpush1.bf16.msra.mxu0 %v3234
    %3617 = vmatprep.subr.bf16.mxu0 0
    %3618 = vmatpush1.bf16.msra.mxu0 %v3235
    %3619 = vmatprep.subr.bf16.mxu0 0
    %3620 = vmatpush1.bf16.msra.mxu0 %v3236
    %3621 = vmatprep.subr.bf16.mxu0 0
    %3622 = vmatpush1.bf16.msra.mxu0 %v3237
    %3623 = vmatprep.subr.bf16.mxu0 0
    %3624 = vmatpush1.bf16.msra.mxu0 %v3238
    %3625 = vmatprep.subr.bf16.mxu0 0
    %3626 = vmatpush1.bf16.msra.mxu0 %v3239
    %3627 = vmatprep.subr.bf16.mxu0 0
    %3628 = vmatpush1.bf16.msra.mxu0 %v3240
    %3629 = vmatprep.subr.bf16.mxu0 0
    %3630 = vmatpush1.bf16.msra.mxu0 %v3241
    %3631 = vmatprep.subr.bf16.mxu0 0
    %3632 = vmatpush1.bf16.msra.mxu0 %v3242
    %3633 = vmatprep.subr.bf16.mxu0 0
    %3634 = vmatpush1.bf16.msra.mxu0 %v3243
    %3635 = vmatprep.subr.bf16.mxu0 0
    %3636 = vmatpush1.bf16.msra.mxu0 %v3244
    %3637 = vmatprep.subr.bf16.mxu0 0
    %3638 = vmatpush1.bf16.msra.mxu0 %v3245
    %3639 = vmatprep.subr.bf16.mxu0 0
    %3640 = vmatpush1.bf16.msra.mxu0 %v3246
    %3641 = vmatprep.subr.bf16.mxu0 0
    %3642 = vmatpush1.bf16.msra.mxu0 %v3247
    %3643 = vmatprep.subr.bf16.mxu0 0
    %3644 = vmatpush1.bf16.msra.mxu0 %v3248
    %3645 = vmatprep.subr.bf16.mxu0 0
    %3646 = vmatpush1.bf16.msra.mxu0 %v3249
    %3647 = vmatprep.mubr.bf16.mxu0 %v2374
    %3648 = vmatmul.mubr.bf16.gmra.mrb[0].mxu0 %v2373
    %v3649 = vpop.f32.mrb[0].mxu0
    %v3650 = vadd.f32 %v3609, %v3649
    %v3651 = vpop.f32.mrb[0].mxu0
    %v3652 = vpop.f32.mrb[0].mxu0
    %v3653 = vadd.f32 %v3612, %v3652
    %v3654 = vpop.f32.mrb[0].mxu0
    %3655 = vdwg.mxu0
    %3656 = vmatprep.subr.bf16.mxu0 0
    %3657 = vmatpush1.bf16.msra.mxu0 %v3250
    %3658 = vmatprep.subr.bf16.mxu0 0
    %3659 = vmatpush1.bf16.msra.mxu0 %v3251
    %3660 = vmatprep.subr.bf16.mxu0 0
    %3661 = vmatpush1.bf16.msra.mxu0 %v3252
    %3662 = vmatprep.subr.bf16.mxu0 0
    %3663 = vmatpush1.bf16.msra.mxu0 %v3253
    %3664 = vmatprep.subr.bf16.mxu0 0
    %3665 = vmatpush1.bf16.msra.mxu0 %v3254
    %3666 = vmatprep.subr.bf16.mxu0 0
    %3667 = vmatpush1.bf16.msra.mxu0 %v3255
    %3668 = vmatprep.subr.bf16.mxu0 0
    %3669 = vmatpush1.bf16.msra.mxu0 %v3256
    %3670 = vmatprep.subr.bf16.mxu0 0
    %3671 = vmatpush1.bf16.msra.mxu0 %v3257
    %3672 = vmatprep.subr.bf16.mxu0 0
    %3673 = vmatpush1.bf16.msra.mxu0 %v3258
    %3674 = vmatprep.subr.bf16.mxu0 0
    %3675 = vmatpush1.bf16.msra.mxu0 %v3259
    %3676 = vmatprep.subr.bf16.mxu0 0
    %3677 = vmatpush1.bf16.msra.mxu0 %v3260
    %3678 = vmatprep.subr.bf16.mxu0 0
    %3679 = vmatpush1.bf16.msra.mxu0 %v3261
    %3680 = vmatprep.subr.bf16.mxu0 0
    %3681 = vmatpush1.bf16.msra.mxu0 %v3262
    %3682 = vmatprep.subr.bf16.mxu0 0
    %3683 = vmatpush1.bf16.msra.mxu0 %v3263
    %3684 = vmatprep.subr.bf16.mxu0 0
    %3685 = vmatpush1.bf16.msra.mxu0 %v3264
    %3686 = vmatprep.subr.bf16.mxu0 0
    %3687 = vmatpush1.bf16.msra.mxu0 %v3265
    %3688 = vmatprep.mubr.bf16.mxu0 %v2376
    %3689 = vmatmul.mubr.bf16.gmra.mrb[0].mxu0 %v2375
    %v3690 = vpop.f32.mrb[0].mxu0
    %v3691 = vadd.f32 %v3650, %v3690
    %v3692 = vpop.f32.mrb[0].mxu0
    %v3693 = vpop.f32.mrb[0].mxu0
    %v3694 = vadd.f32 %v3653, %v3693
    %v3695 = vpop.f32.mrb[0].mxu0
    %3696 = vdwg.mxu0
    %3697 = vmatprep.subr.bf16.mxu0 0
    %3698 = vmatpush1.bf16.msra.mxu0 %v3266
    %3699 = vmatprep.subr.bf16.mxu0 0
    %3700 = vmatpush1.bf16.msra.mxu0 %v3267
    %3701 = vmatprep.subr.bf16.mxu0 0
    %3702 = vmatpush1.bf16.msra.mxu0 %v3268
    %3703 = vmatprep.subr.bf16.mxu0 0
    %3704 = vmatpush1.bf16.msra.mxu0 %v3269
    %3705 = vmatprep.subr.bf16.mxu0 0
    %3706 = vmatpush1.bf16.msra.mxu0 %v3270
    %3707 = vmatprep.subr.bf16.mxu0 0
    %3708 = vmatpush1.bf16.msra.mxu0 %v3271
    %3709 = vmatprep.subr.bf16.mxu0 0
    %3710 = vmatpush1.bf16.msra.mxu0 %v3272
    %3711 = vmatprep.subr.bf16.mxu0 0
    %3712 = vmatpush1.bf16.msra.mxu0 %v3273
    %3713 = vmatprep.subr.bf16.mxu0 0
    %3714 = vmatpush1.bf16.msra.mxu0 %v3274
    %3715 = vmatprep.subr.bf16.mxu0 0
    %3716 = vmatpush1.bf16.msra.mxu0 %v3275
    %3717 = vmatprep.subr.bf16.mxu0 0
    %3718 = vmatpush1.bf16.msra.mxu0 %v3276
    %3719 = vmatprep.subr.bf16.mxu0 0
    %3720 = vmatpush1.bf16.msra.mxu0 %v3277
    %3721 = vmatprep.subr.bf16.mxu0 0
    %3722 = vmatpush1.bf16.msra.mxu0 %v3278
    %3723 = vmatprep.subr.bf16.mxu0 0
    %3724 = vmatpush1.bf16.msra.mxu0 %v3279
    %3725 = vmatprep.subr.bf16.mxu0 0
    %3726 = vmatpush1.bf16.msra.mxu0 %v3280
    %3727 = vmatprep.subr.bf16.mxu0 0
    %3728 = vmatpush1.bf16.msra.mxu0 %v3281
    %3729 = vmatprep.mubr.bf16.mxu0 %v2378
    %3730 = vmatmul.mubr.bf16.gmra.mrb[0].mxu0 %v2377
    %v3731 = vpop.f32.mrb[0].mxu0
    %v3732 = vadd.f32 %v3691, %v3731
    %v3733 = vpop.f32.mrb[0].mxu0
    %v3734 = vpop.f32.mrb[0].mxu0
    %v3735 = vadd.f32 %v3694, %v3734
    %v3736 = vpop.f32.mrb[0].mxu0
    %3737 = vdwg.mxu0
    %v3738 = vadd.f32 %v1705, %v3732
    %v3739 = vadd.f32 %v1706, %v3735
    %v3740 = vld [vmem:[%s11] sm:$0x1]
    %v3741 = vld [vmem:[%s12] sm:$0x1]
    %v3742 = vsel %vm78, %v3738, 0.0
    %3743 = vadd.xlane.f32.xlu0 %v3742
    %v3744 = vpop.xlane.xlu0 %3743
    %v3745 = vsel %vm78, %v3739, 0.0
    %3746 = vadd.xlane.f32.xlu0 %v3745
    %v3747 = vpop.xlane.xlu0 %3746
    %v3748 = vmul.f32 %v3744, %v1670
    %v3749 = vmul.f32 %v3747, %v1670
    %v3750 = vsub.f32 %v3738, %v3748
    %v3751 = vsub.f32 %v3739, %v3749
    %v3752 = vmul.f32 %v3750, %v3750
    %v3753 = vmul.f32 %v3751, %v3751
    %v3754 = vsel %vm78, %v3752, 0.0
    %3755 = vadd.xlane.f32.xlu0 %v3754
    %v3756 = vpop.xlane.xlu0 %3755
    %v3757 = vsel %vm78, %v3753, 0.0
    %3758 = vadd.xlane.f32.xlu0 %v3757
    %v3759 = vpop.xlane.xlu0 %3758
    %v3760 = vmul.f32 %v3756, %v1670
    %v3761 = vmul.f32 %v3759, %v1670
    %v3762 = vadd.f32 %v3760, 1e-05
    %v3763 = vadd.f32 %v3761, 1e-05
    %v3764 = vrsqrt.pop %v3762
    %v3765 = vrsqrt.pop %v3763
    %v3766 = vmul.f32 %v3750, %v3764
    %v3767 = vmul.f32 %v3751, %v3765
    %v3769 = vlaneseq
    %v3770 = vshrl.u32 %v3769, 7
    %v3771 = vsub.s32 0, %v3770
    %v3772 = vrot.slane %v3740, %v3771
    %v3774 = vmul.f32 %v3766, %v3772
    %v3775 = vmul.f32 %v3767, %v3772
    %v3777 = vlaneseq
    %v3778 = vshrl.u32 %v3777, 7
    %v3779 = vsub.s32 0, %v3778
    %v3780 = vrot.slane %v3741, %v3779
    %v3782 = vadd.f32 %v3774, %v3780
    %v3783 = vadd.f32 %v3775, %v3780
    %v3784 = vpack.c.bf16 %v3783, %v3782
    %s3785 = scalar_lea.vmem %s1, 16
    %v3786 = vld [vmem:[%s3785] sm:$0xf]
    %v3787 = vld [vmem:[%s3785 + $0x4] sm:$0xf]
    %v3788 = vld [vmem:[%s3785 + $0x8] sm:$0xf]
    %v3789 = vld [vmem:[%s3785 + $0xc] sm:$0xf]
    %s3790 = scalar_lea.vmem %s2, 1
    %v3791 = vld [vmem:[%s3790] sm:$0x1]
    %v3793 = vlaneseq
    %v3794 = vshrl.u32 %v3793, 7
    %v3795 = vsub.s32 0, %v3794
    %v3796 = vrot.slane %v3791, %v3795
    %v3802 = vunpack.c.l.b16 %v3786
    %v3803 = vunpack.c.l.b16 %v3787
    %v3804 = vunpack.c.l.b16 %v3788
    %v3805 = vunpack.c.l.b16 %v3789
    %v3806 = vpack.c.b16 %v3803, %v3802
    %v3807 = vpack.c.b16 %v3805, %v3804
    %v3811 = vsel %vm78, %v3784, 0
    %3813 = vmatprep.subr.bf16.mxu0 0
    %3814 = vmatpush1.bf16.msra.mxu0 %v3806
    %3815 = vmatprep.subr.bf16.mxu0 0
    %3816 = vmatpush1.bf16.msra.mxu0 %v3807
    %3817 = vmatprep.subr.bf16.mxu0 0
    %3818 = vmatpush1.bf16.msra.mxu0 0
    %3819 = vmatprep.subr.bf16.mxu0 0
    %3820 = vmatpush1.bf16.msra.mxu0 0
    %3821 = vmatprep.subr.bf16.mxu0 0
    %3822 = vmatpush1.bf16.msra.mxu0 0
    %3823 = vmatprep.subr.bf16.mxu0 0
    %3824 = vmatpush1.bf16.msra.mxu0 0
    %3825 = vmatprep.subr.bf16.mxu0 0
    %3826 = vmatpush1.bf16.msra.mxu0 0
    %3827 = vmatprep.subr.bf16.mxu0 0
    %3828 = vmatpush1.bf16.msra.mxu0 0
    %3829 = vmatprep.subr.bf16.mxu0 0
    %3830 = vmatpush1.bf16.msra.mxu0 0
    %3831 = vmatprep.subr.bf16.mxu0 0
    %3832 = vmatpush1.bf16.msra.mxu0 0
    %3833 = vmatprep.subr.bf16.mxu0 0
    %3834 = vmatpush1.bf16.msra.mxu0 0
    %3835 = vmatprep.subr.bf16.mxu0 0
    %3836 = vmatpush1.bf16.msra.mxu0 0
    %3837 = vmatprep.subr.bf16.mxu0 0
    %3838 = vmatpush1.bf16.msra.mxu0 0
    %3839 = vmatprep.subr.bf16.mxu0 0
    %3840 = vmatpush1.bf16.msra.mxu0 0
    %3841 = vmatprep.subr.bf16.mxu0 0
    %3842 = vmatpush1.bf16.msra.mxu0 0
    %3843 = vmatprep.subr.bf16.mxu0 0
    %3844 = vmatpush1.bf16.msra.mxu0 0
    %3845 = vmatprep.mubr.bf16.mxu0 0
    %3846 = vmatmul.mubr.bf16.gmra.mrb[0].mxu0 %v3811
    %v3847 = vpop.f32.mrb[0].mxu0
    %v3848 = vadd.f32 %v3796, %v3847
    %v3849 = vpop.f32.mrb[0].mxu0
    %v3850 = vpop.f32.mrb[0].mxu0
    %v3851 = vadd.f32 %v3796, %v3850
    %v3852 = vpop.f32.mrb[0].mxu0
    %3853 = vdwg.mxu0
    %s3854 = scalar_lea.vmem %s3, 16
    %v3855 = vld [vmem:[%s3854] sm:$0xf]
    %v3856 = vld [vmem:[%s3854 + $0x4] sm:$0xf]
    %v3857 = vld [vmem:[%s3854 + $0x8] sm:$0xf]
    %v3858 = vld [vmem:[%s3854 + $0xc] sm:$0xf]
    %3860 = vrot.lane.b32.xlu0 %v3848, 96
    %v3861 = vpop.permute.xlu0 %3860
    %v3862 = vsel %vm130, %v3848, 0
    %v3864 = vsel %vm130, %v3861, 0
    %3866 = vmatprep.subr.mxu0 0.0
    %3867 = vmatpush1.xpose.msra.mxu0 %v3864
    %3868 = vmatprep.subr.mxu0 0.0
    %3869 = vmatpush1.xpose.msra.mxu0 0.0
    %3870 = vmatprep.subr.mxu0 0.0
    %3871 = vmatpush1.xpose.msra.mxu0 0.0
    %3872 = vmatprep.subr.mxu0 0.0
    %3873 = vmatpush1.xpose.msra.mxu0 0.0
    %3874 = vmatprep.subr.mxu0 0.0
    %3875 = vmatpush1.xpose.msra.mxu0 0.0
    %3876 = vmatprep.subr.mxu0 0.0
    %3877 = vmatpush1.xpose.msra.mxu0 0.0
    %3878 = vmatprep.subr.mxu0 0.0
    %3879 = vmatpush1.xpose.msra.mxu0 0.0
    %3880 = vmatprep.subr.mxu0 0.0
    %3881 = vmatpush1.xpose.msra.mxu0 0.0
    %3882 = vmatprep.subr.mxu0 0.0
    %3883 = vmatpush1.xpose.msra.mxu0 0.0
    %3884 = vmatprep.subr.mxu0 0.0
    %3885 = vmatpush1.xpose.msra.mxu0 0.0
    %3886 = vmatprep.subr.mxu0 0.0
    %3887 = vmatpush1.xpose.msra.mxu0 0.0
    %3888 = vmatprep.subr.mxu0 0.0
    %3889 = vmatpush1.xpose.msra.mxu0 0.0
    %3890 = vmatprep.subr.mxu0 0.0
    %3891 = vmatpush1.xpose.msra.mxu0 0.0
    %3892 = vmatprep.subr.mxu0 0.0
    %3893 = vmatpush1.xpose.msra.mxu0 0.0
    %3894 = vmatprep.subr.mxu0 0.0
    %3895 = vmatpush1.xpose.msra.mxu0 0.0
    %3896 = vmatprep.subr.mxu0 0.0
    %3897 = vmatpush1.xpose.msra.mxu0 0.0
    %3898 = vmatprep.subr.mxu0 0.0
    %3899 = vmatpush1.xpose.msra.mxu0 0.0
    %3900 = vmatprep.subr.mxu0 0.0
    %3901 = vmatpush1.xpose.msra.mxu0 0.0
    %3902 = vmatprep.subr.mxu0 0.0
    %3903 = vmatpush1.xpose.msra.mxu0 0.0
    %3904 = vmatprep.subr.mxu0 0.0
    %3905 = vmatpush1.xpose.msra.mxu0 0.0
    %3906 = vmatprep.subr.mxu0 0.0
    %3907 = vmatpush1.xpose.msra.mxu0 0.0
    %3908 = vmatprep.subr.mxu0 0.0
    %3909 = vmatpush1.xpose.msra.mxu0 0.0
    %3910 = vmatprep.subr.mxu0 0.0
    %3911 = vmatpush1.xpose.msra.mxu0 0.0
    %3912 = vmatprep.subr.mxu0 0.0
    %3913 = vmatpush1.xpose.msra.mxu0 0.0
    %3914 = vmatprep.subr.mxu0 0.0
    %3915 = vmatpush1.xpose.msra.mxu0 0.0
    %3916 = vmatprep.subr.mxu0 0.0
    %3917 = vmatpush1.xpose.msra.mxu0 0.0
    %3918 = vmatprep.subr.mxu0 0.0
    %3919 = vmatpush1.xpose.msra.mxu0 0.0
    %3920 = vmatprep.subr.mxu0 0.0
    %3921 = vmatpush1.xpose.msra.mxu0 0.0
    %3922 = vmatprep.subr.mxu0 0.0
    %3923 = vmatpush1.xpose.msra.mxu0 0.0
    %3924 = vmatprep.subr.mxu0 0.0
    %3925 = vmatpush1.xpose.msra.mxu0 0.0
    %3926 = vmatprep.subr.mxu0 0.0
    %3927 = vmatpush1.xpose.msra.mxu0 0.0
    %3928 = vmatprep.subr.mxu0 0.0
    %3929 = vmatpush1.xpose.msra.mxu0 0.0
    %3930 = vmatprep.mubr.f32.mxu0 0.0
    %3931 = vmatmul.mubr.f32.gmra.mrb[0].mxu0 %v3862
    %v3932 = vpop.f32.mrb[0].mxu0
    %v3933 = vadd.f32 0.0, %v3932
    %v3934 = vpop.f32.mrb[0].mxu0
    %3935 = vdwg.mxu0
    %3937 = vrot.lane.b32.xlu0 %v3851, 96
    %v3938 = vpop.permute.xlu0 %3937
    %v3939 = vsel %vm130, %v3851, 0
    %v3941 = vsel %vm130, %v3938, 0
    %3943 = vmatprep.subr.mxu0 0.0
    %3944 = vmatpush1.xpose.msra.mxu0 %v3941
    %3945 = vmatprep.subr.mxu0 0.0
    %3946 = vmatpush1.xpose.msra.mxu0 0.0
    %3947 = vmatprep.subr.mxu0 0.0
    %3948 = vmatpush1.xpose.msra.mxu0 0.0
    %3949 = vmatprep.subr.mxu0 0.0
    %3950 = vmatpush1.xpose.msra.mxu0 0.0
    %3951 = vmatprep.subr.mxu0 0.0
    %3952 = vmatpush1.xpose.msra.mxu0 0.0
    %3953 = vmatprep.subr.mxu0 0.0
    %3954 = vmatpush1.xpose.msra.mxu0 0.0
    %3955 = vmatprep.subr.mxu0 0.0
    %3956 = vmatpush1.xpose.msra.mxu0 0.0
    %3957 = vmatprep.subr.mxu0 0.0
    %3958 = vmatpush1.xpose.msra.mxu0 0.0
    %3959 = vmatprep.subr.mxu0 0.0
    %3960 = vmatpush1.xpose.msra.mxu0 0.0
    %3961 = vmatprep.subr.mxu0 0.0
    %3962 = vmatpush1.xpose.msra.mxu0 0.0
    %3963 = vmatprep.subr.mxu0 0.0
    %3964 = vmatpush1.xpose.msra.mxu0 0.0
    %3965 = vmatprep.subr.mxu0 0.0
    %3966 = vmatpush1.xpose.msra.mxu0 0.0
    %3967 = vmatprep.subr.mxu0 0.0
    %3968 = vmatpush1.xpose.msra.mxu0 0.0
    %3969 = vmatprep.subr.mxu0 0.0
    %3970 = vmatpush1.xpose.msra.mxu0 0.0
    %3971 = vmatprep.subr.mxu0 0.0
    %3972 = vmatpush1.xpose.msra.mxu0 0.0
    %3973 = vmatprep.subr.mxu0 0.0
    %3974 = vmatpush1.xpose.msra.mxu0 0.0
    %3975 = vmatprep.subr.mxu0 0.0
    %3976 = vmatpush1.xpose.msra.mxu0 0.0
    %3977 = vmatprep.subr.mxu0 0.0
    %3978 = vmatpush1.xpose.msra.mxu0 0.0
    %3979 = vmatprep.subr.mxu0 0.0
    %3980 = vmatpush1.xpose.msra.mxu0 0.0
    %3981 = vmatprep.subr.mxu0 0.0
    %3982 = vmatpush1.xpose.msra.mxu0 0.0
    %3983 = vmatprep.subr.mxu0 0.0
    %3984 = vmatpush1.xpose.msra.mxu0 0.0
    %3985 = vmatprep.subr.mxu0 0.0
    %3986 = vmatpush1.xpose.msra.mxu0 0.0
    %3987 = vmatprep.subr.mxu0 0.0
    %3988 = vmatpush1.xpose.msra.mxu0 0.0
    %3989 = vmatprep.subr.mxu0 0.0
    %3990 = vmatpush1.xpose.msra.mxu0 0.0
    %3991 = vmatprep.subr.mxu0 0.0
    %3992 = vmatpush1.xpose.msra.mxu0 0.0
    %3993 = vmatprep.subr.mxu0 0.0
    %3994 = vmatpush1.xpose.msra.mxu0 0.0
    %3995 = vmatprep.subr.mxu0 0.0
    %3996 = vmatpush1.xpose.msra.mxu0 0.0
    %3997 = vmatprep.subr.mxu0 0.0
    %3998 = vmatpush1.xpose.msra.mxu0 0.0
    %3999 = vmatprep.subr.mxu0 0.0
    %4000 = vmatpush1.xpose.msra.mxu0 0.0
    %4001 = vmatprep.subr.mxu0 0.0
    %4002 = vmatpush1.xpose.msra.mxu0 0.0
    %4003 = vmatprep.subr.mxu0 0.0
    %4004 = vmatpush1.xpose.msra.mxu0 0.0
    %4005 = vmatprep.subr.mxu0 0.0
    %4006 = vmatpush1.xpose.msra.mxu0 0.0
    %4007 = vmatprep.mubr.f32.mxu0 0.0
    %4008 = vmatmul.mubr.f32.gmra.mrb[0].mxu0 %v3939
    %v4009 = vpop.f32.mrb[0].mxu0
    %v4010 = vadd.f32 0.0, %v4009
    %v4011 = vpop.f32.mrb[0].mxu0
    %4012 = vdwg.mxu0
    %v4013 = vmul.f32 %v3933, 0.35355338
    %v4014 = vmul.f32 %v4010, 0.35355338
    %v4015 = vsel %vm130, %v4013, -inf
    %4016 = vmax.xlane.f32.xlu0 %v4015
    %v4017 = vpop.xlane.xlu0 %4016
    %v4018 = vsel %vm130, %v4014, -inf
    %4019 = vmax.xlane.f32.xlu0 %v4018
    %v4020 = vpop.xlane.xlu0 %4019
    %v4021 = vsub.f32 %v4013, %v4017
    %v4022 = vsub.f32 %v4014, %v4020
    %v4023 = vmul.f32 %v4021, 1.442695
    %v4024 = vpow.pop %v4023
    %v4025 = vmul.f32 %v4022, 1.442695
    %v4026 = vpow.pop %v4025
    %v4027 = vsel %vm130, %v4024, 0.0
    %4028 = vadd.xlane.f32.xlu0 %v4027
    %v4029 = vpop.xlane.xlu0 %4028
    %v4030 = vsel %vm130, %v4026, 0.0
    %4031 = vadd.xlane.f32.xlu0 %v4030
    %v4032 = vpop.xlane.xlu0 %4031
    %v4033 = vrcp.pop %v4029
    %v4034 = vrcp.pop %v4032
    %v4035 = vmul.f32 %v4024, %v4033
    %v4036 = vmul.f32 %v4026, %v4034
    %4037 = vrot.lane.b32.xlu0 %v3848, 64
    %v4038 = vpop.permute.xlu0 %4037
    %v4041 = vsel %vm130, %v4035, 0
    %4043 = vmatprep.subr.mxu0 0.0
    %4044 = vmatpush1.msra.mxu0 %v4038
    %4045 = vmatprep.subr.mxu0 0.0
    %4046 = vmatpush1.msra.mxu0 0.0
    %4047 = vmatprep.subr.mxu0 0.0
    %4048 = vmatpush1.msra.mxu0 0.0
    %4049 = vmatprep.subr.mxu0 0.0
    %4050 = vmatpush1.msra.mxu0 0.0
    %4051 = vmatprep.subr.mxu0 0.0
    %4052 = vmatpush1.msra.mxu0 0.0
    %4053 = vmatprep.subr.mxu0 0.0
    %4054 = vmatpush1.msra.mxu0 0.0
    %4055 = vmatprep.subr.mxu0 0.0
    %4056 = vmatpush1.msra.mxu0 0.0
    %4057 = vmatprep.subr.mxu0 0.0
    %4058 = vmatpush1.msra.mxu0 0.0
    %4059 = vmatprep.subr.mxu0 0.0
    %4060 = vmatpush1.msra.mxu0 0.0
    %4061 = vmatprep.subr.mxu0 0.0
    %4062 = vmatpush1.msra.mxu0 0.0
    %4063 = vmatprep.subr.mxu0 0.0
    %4064 = vmatpush1.msra.mxu0 0.0
    %4065 = vmatprep.subr.mxu0 0.0
    %4066 = vmatpush1.msra.mxu0 0.0
    %4067 = vmatprep.subr.mxu0 0.0
    %4068 = vmatpush1.msra.mxu0 0.0
    %4069 = vmatprep.subr.mxu0 0.0
    %4070 = vmatpush1.msra.mxu0 0.0
    %4071 = vmatprep.subr.mxu0 0.0
    %4072 = vmatpush1.msra.mxu0 0.0
    %4073 = vmatprep.subr.mxu0 0.0
    %4074 = vmatpush1.msra.mxu0 0.0
    %4075 = vmatprep.subr.mxu0 0.0
    %4076 = vmatpush1.msra.mxu0 0.0
    %4077 = vmatprep.subr.mxu0 0.0
    %4078 = vmatpush1.msra.mxu0 0.0
    %4079 = vmatprep.subr.mxu0 0.0
    %4080 = vmatpush1.msra.mxu0 0.0
    %4081 = vmatprep.subr.mxu0 0.0
    %4082 = vmatpush1.msra.mxu0 0.0
    %4083 = vmatprep.subr.mxu0 0.0
    %4084 = vmatpush1.msra.mxu0 0.0
    %4085 = vmatprep.subr.mxu0 0.0
    %4086 = vmatpush1.msra.mxu0 0.0
    %4087 = vmatprep.subr.mxu0 0.0
    %4088 = vmatpush1.msra.mxu0 0.0
    %4089 = vmatprep.subr.mxu0 0.0
    %4090 = vmatpush1.msra.mxu0 0.0
    %4091 = vmatprep.subr.mxu0 0.0
    %4092 = vmatpush1.msra.mxu0 0.0
    %4093 = vmatprep.subr.mxu0 0.0
    %4094 = vmatpush1.msra.mxu0 0.0
    %4095 = vmatprep.subr.mxu0 0.0
    %4096 = vmatpush1.msra.mxu0 0.0
    %4097 = vmatprep.subr.mxu0 0.0
    %4098 = vmatpush1.msra.mxu0 0.0
    %4099 = vmatprep.subr.mxu0 0.0
    %4100 = vmatpush1.msra.mxu0 0.0
    %4101 = vmatprep.subr.mxu0 0.0
    %4102 = vmatpush1.msra.mxu0 0.0
    %4103 = vmatprep.subr.mxu0 0.0
    %4104 = vmatpush1.msra.mxu0 0.0
    %4105 = vmatprep.subr.mxu0 0.0
    %4106 = vmatpush1.msra.mxu0 0.0
    %4107 = vmatprep.mubr.f32.mxu0 0.0
    %4108 = vmatmul.mubr.f32.gmra.mrb[0].mxu0 %v4041
    %v4109 = vpop.f32.mrb[0].mxu0
    %v4110 = vadd.f32 0.0, %v4109
    %v4111 = vpop.f32.mrb[0].mxu0
    %4112 = vdwg.mxu0
    %4113 = vrot.lane.b32.xlu0 %v3851, 64
    %v4114 = vpop.permute.xlu0 %4113
    %v4117 = vsel %vm130, %v4036, 0
    %4119 = vmatprep.subr.mxu0 0.0
    %4120 = vmatpush1.msra.mxu0 %v4114
    %4121 = vmatprep.subr.mxu0 0.0
    %4122 = vmatpush1.msra.mxu0 0.0
    %4123 = vmatprep.subr.mxu0 0.0
    %4124 = vmatpush1.msra.mxu0 0.0
    %4125 = vmatprep.subr.mxu0 0.0
    %4126 = vmatpush1.msra.mxu0 0.0
    %4127 = vmatprep.subr.mxu0 0.0
    %4128 = vmatpush1.msra.mxu0 0.0
    %4129 = vmatprep.subr.mxu0 0.0
    %4130 = vmatpush1.msra.mxu0 0.0
    %4131 = vmatprep.subr.mxu0 0.0
    %4132 = vmatpush1.msra.mxu0 0.0
    %4133 = vmatprep.subr.mxu0 0.0
    %4134 = vmatpush1.msra.mxu0 0.0
    %4135 = vmatprep.subr.mxu0 0.0
    %4136 = vmatpush1.msra.mxu0 0.0
    %4137 = vmatprep.subr.mxu0 0.0
    %4138 = vmatpush1.msra.mxu0 0.0
    %4139 = vmatprep.subr.mxu0 0.0
    %4140 = vmatpush1.msra.mxu0 0.0
    %4141 = vmatprep.subr.mxu0 0.0
    %4142 = vmatpush1.msra.mxu0 0.0
    %4143 = vmatprep.subr.mxu0 0.0
    %4144 = vmatpush1.msra.mxu0 0.0
    %4145 = vmatprep.subr.mxu0 0.0
    %4146 = vmatpush1.msra.mxu0 0.0
    %4147 = vmatprep.subr.mxu0 0.0
    %4148 = vmatpush1.msra.mxu0 0.0
    %4149 = vmatprep.subr.mxu0 0.0
    %4150 = vmatpush1.msra.mxu0 0.0
    %4151 = vmatprep.subr.mxu0 0.0
    %4152 = vmatpush1.msra.mxu0 0.0
    %4153 = vmatprep.subr.mxu0 0.0
    %4154 = vmatpush1.msra.mxu0 0.0
    %4155 = vmatprep.subr.mxu0 0.0
    %4156 = vmatpush1.msra.mxu0 0.0
    %4157 = vmatprep.subr.mxu0 0.0
    %4158 = vmatpush1.msra.mxu0 0.0
    %4159 = vmatprep.subr.mxu0 0.0
    %4160 = vmatpush1.msra.mxu0 0.0
    %4161 = vmatprep.subr.mxu0 0.0
    %4162 = vmatpush1.msra.mxu0 0.0
    %4163 = vmatprep.subr.mxu0 0.0
    %4164 = vmatpush1.msra.mxu0 0.0
    %4165 = vmatprep.subr.mxu0 0.0
    %4166 = vmatpush1.msra.mxu0 0.0
    %4167 = vmatprep.subr.mxu0 0.0
    %4168 = vmatpush1.msra.mxu0 0.0
    %4169 = vmatprep.subr.mxu0 0.0
    %4170 = vmatpush1.msra.mxu0 0.0
    %4171 = vmatprep.subr.mxu0 0.0
    %4172 = vmatpush1.msra.mxu0 0.0
    %4173 = vmatprep.subr.mxu0 0.0
    %4174 = vmatpush1.msra.mxu0 0.0
    %4175 = vmatprep.subr.mxu0 0.0
    %4176 = vmatpush1.msra.mxu0 0.0
    %4177 = vmatprep.subr.mxu0 0.0
    %4178 = vmatpush1.msra.mxu0 0.0
    %4179 = vmatprep.subr.mxu0 0.0
    %4180 = vmatpush1.msra.mxu0 0.0
    %4181 = vmatprep.subr.mxu0 0.0
    %4182 = vmatpush1.msra.mxu0 0.0
    %4183 = vmatprep.mubr.f32.mxu0 0.0
    %4184 = vmatmul.mubr.f32.gmra.mrb[0].mxu0 %v4117
    %v4185 = vpop.f32.mrb[0].mxu0
    %v4186 = vadd.f32 0.0, %v4185
    %v4187 = vpop.f32.mrb[0].mxu0
    %4188 = vdwg.mxu0
    %v4189 = vpack.c.bf16 %v4186, %v4110
    %4190 = vrot.lane.b32.xlu0 %v3848, 120
    %v4191 = vpop.permute.xlu0 %4190
    %4192 = vrot.lane.b32.xlu0 %v3848, 88
    %v4193 = vpop.permute.xlu0 %4192
    %v4194 = vsel %vm130, %v4191, 0
    %v4196 = vsel %vm130, %v4193, 0
    %4198 = vmatprep.subr.mxu0 0.0
    %4199 = vmatpush1.xpose.msra.mxu0 %v4196
    %4200 = vmatprep.subr.mxu0 0.0
    %4201 = vmatpush1.xpose.msra.mxu0 0.0
    %4202 = vmatprep.subr.mxu0 0.0
    %4203 = vmatpush1.xpose.msra.mxu0 0.0
    %4204 = vmatprep.subr.mxu0 0.0
    %4205 = vmatpush1.xpose.msra.mxu0 0.0
    %4206 = vmatprep.subr.mxu0 0.0
    %4207 = vmatpush1.xpose.msra.mxu0 0.0
    %4208 = vmatprep.subr.mxu0 0.0
    %4209 = vmatpush1.xpose.msra.mxu0 0.0
    %4210 = vmatprep.subr.mxu0 0.0
    %4211 = vmatpush1.xpose.msra.mxu0 0.0
    %4212 = vmatprep.subr.mxu0 0.0
    %4213 = vmatpush1.xpose.msra.mxu0 0.0
    %4214 = vmatprep.subr.mxu0 0.0
    %4215 = vmatpush1.xpose.msra.mxu0 0.0
    %4216 = vmatprep.subr.mxu0 0.0
    %4217 = vmatpush1.xpose.msra.mxu0 0.0
    %4218 = vmatprep.subr.mxu0 0.0
    %4219 = vmatpush1.xpose.msra.mxu0 0.0
    %4220 = vmatprep.subr.mxu0 0.0
    %4221 = vmatpush1.xpose.msra.mxu0 0.0
    %4222 = vmatprep.subr.mxu0 0.0
    %4223 = vmatpush1.xpose.msra.mxu0 0.0
    %4224 = vmatprep.subr.mxu0 0.0
    %4225 = vmatpush1.xpose.msra.mxu0 0.0
    %4226 = vmatprep.subr.mxu0 0.0
    %4227 = vmatpush1.xpose.msra.mxu0 0.0
    %4228 = vmatprep.subr.mxu0 0.0
    %4229 = vmatpush1.xpose.msra.mxu0 0.0
    %4230 = vmatprep.subr.mxu0 0.0
    %4231 = vmatpush1.xpose.msra.mxu0 0.0
    %4232 = vmatprep.subr.mxu0 0.0
    %4233 = vmatpush1.xpose.msra.mxu0 0.0
    %4234 = vmatprep.subr.mxu0 0.0
    %4235 = vmatpush1.xpose.msra.mxu0 0.0
    %4236 = vmatprep.subr.mxu0 0.0
    %4237 = vmatpush1.xpose.msra.mxu0 0.0
    %4238 = vmatprep.subr.mxu0 0.0
    %4239 = vmatpush1.xpose.msra.mxu0 0.0
    %4240 = vmatprep.subr.mxu0 0.0
    %4241 = vmatpush1.xpose.msra.mxu0 0.0
    %4242 = vmatprep.subr.mxu0 0.0
    %4243 = vmatpush1.xpose.msra.mxu0 0.0
    %4244 = vmatprep.subr.mxu0 0.0
    %4245 = vmatpush1.xpose.msra.mxu0 0.0
    %4246 = vmatprep.subr.mxu0 0.0
    %4247 = vmatpush1.xpose.msra.mxu0 0.0
    %4248 = vmatprep.subr.mxu0 0.0
    %4249 = vmatpush1.xpose.msra.mxu0 0.0
    %4250 = vmatprep.subr.mxu0 0.0
    %4251 = vmatpush1.xpose.msra.mxu0 0.0
    %4252 = vmatprep.subr.mxu0 0.0
    %4253 = vmatpush1.xpose.msra.mxu0 0.0
    %4254 = vmatprep.subr.mxu0 0.0
    %4255 = vmatpush1.xpose.msra.mxu0 0.0
    %4256 = vmatprep.subr.mxu0 0.0
    %4257 = vmatpush1.xpose.msra.mxu0 0.0
    %4258 = vmatprep.subr.mxu0 0.0
    %4259 = vmatpush1.xpose.msra.mxu0 0.0
    %4260 = vmatprep.subr.mxu0 0.0
    %4261 = vmatpush1.xpose.msra.mxu0 0.0
    %4262 = vmatprep.mubr.f32.mxu0 0.0
    %4263 = vmatmul.mubr.f32.gmra.mrb[0].mxu0 %v4194
    %v4264 = vpop.f32.mrb[0].mxu0
    %v4265 = vadd.f32 0.0, %v4264
    %v4266 = vpop.f32.mrb[0].mxu0
    %4267 = vdwg.mxu0
    %4268 = vrot.lane.b32.xlu0 %v3851, 120
    %v4269 = vpop.permute.xlu0 %4268
    %4270 = vrot.lane.b32.xlu0 %v3851, 88
    %v4271 = vpop.permute.xlu0 %4270
    %v4272 = vsel %vm130, %v4269, 0
    %v4274 = vsel %vm130, %v4271, 0
    %4276 = vmatprep.subr.mxu0 0.0
    %4277 = vmatpush1.xpose.msra.mxu0 %v4274
    %4278 = vmatprep.subr.mxu0 0.0
    %4279 = vmatpush1.xpose.msra.mxu0 0.0
    %4280 = vmatprep.subr.mxu0 0.0
    %4281 = vmatpush1.xpose.msra.mxu0 0.0
    %4282 = vmatprep.subr.mxu0 0.0
    %4283 = vmatpush1.xpose.msra.mxu0 0.0
    %4284 = vmatprep.subr.mxu0 0.0
    %4285 = vmatpush1.xpose.msra.mxu0 0.0
    %4286 = vmatprep.subr.mxu0 0.0
    %4287 = vmatpush1.xpose.msra.mxu0 0.0
    %4288 = vmatprep.subr.mxu0 0.0
    %4289 = vmatpush1.xpose.msra.mxu0 0.0
    %4290 = vmatprep.subr.mxu0 0.0
    %4291 = vmatpush1.xpose.msra.mxu0 0.0
    %4292 = vmatprep.subr.mxu0 0.0
    %4293 = vmatpush1.xpose.msra.mxu0 0.0
    %4294 = vmatprep.subr.mxu0 0.0
    %4295 = vmatpush1.xpose.msra.mxu0 0.0
    %4296 = vmatprep.subr.mxu0 0.0
    %4297 = vmatpush1.xpose.msra.mxu0 0.0
    %4298 = vmatprep.subr.mxu0 0.0
    %4299 = vmatpush1.xpose.msra.mxu0 0.0
    %4300 = vmatprep.subr.mxu0 0.0
    %4301 = vmatpush1.xpose.msra.mxu0 0.0
    %4302 = vmatprep.subr.mxu0 0.0
    %4303 = vmatpush1.xpose.msra.mxu0 0.0
    %4304 = vmatprep.subr.mxu0 0.0
    %4305 = vmatpush1.xpose.msra.mxu0 0.0
    %4306 = vmatprep.subr.mxu0 0.0
    %4307 = vmatpush1.xpose.msra.mxu0 0.0
    %4308 = vmatprep.subr.mxu0 0.0
    %4309 = vmatpush1.xpose.msra.mxu0 0.0
    %4310 = vmatprep.subr.mxu0 0.0
    %4311 = vmatpush1.xpose.msra.mxu0 0.0
    %4312 = vmatprep.subr.mxu0 0.0
    %4313 = vmatpush1.xpose.msra.mxu0 0.0
    %4314 = vmatprep.subr.mxu0 0.0
    %4315 = vmatpush1.xpose.msra.mxu0 0.0
    %4316 = vmatprep.subr.mxu0 0.0
    %4317 = vmatpush1.xpose.msra.mxu0 0.0
    %4318 = vmatprep.subr.mxu0 0.0
    %4319 = vmatpush1.xpose.msra.mxu0 0.0
    %4320 = vmatprep.subr.mxu0 0.0
    %4321 = vmatpush1.xpose.msra.mxu0 0.0
    %4322 = vmatprep.subr.mxu0 0.0
    %4323 = vmatpush1.xpose.msra.mxu0 0.0
    %4324 = vmatprep.subr.mxu0 0.0
    %4325 = vmatpush1.xpose.msra.mxu0 0.0
    %4326 = vmatprep.subr.mxu0 0.0
    %4327 = vmatpush1.xpose.msra.mxu0 0.0
    %4328 = vmatprep.subr.mxu0 0.0
    %4329 = vmatpush1.xpose.msra.mxu0 0.0
    %4330 = vmatprep.subr.mxu0 0.0
    %4331 = vmatpush1.xpose.msra.mxu0 0.0
    %4332 = vmatprep.subr.mxu0 0.0
    %4333 = vmatpush1.xpose.msra.mxu0 0.0
    %4334 = vmatprep.subr.mxu0 0.0
    %4335 = vmatpush1.xpose.msra.mxu0 0.0
    %4336 = vmatprep.subr.mxu0 0.0
    %4337 = vmatpush1.xpose.msra.mxu0 0.0
    %4338 = vmatprep.subr.mxu0 0.0
    %4339 = vmatpush1.xpose.msra.mxu0 0.0
    %4340 = vmatprep.mubr.f32.mxu0 0.0
    %4341 = vmatmul.mubr.f32.gmra.mrb[0].mxu0 %v4272
    %v4342 = vpop.f32.mrb[0].mxu0
    %v4343 = vadd.f32 0.0, %v4342
    %v4344 = vpop.f32.mrb[0].mxu0
    %4345 = vdwg.mxu0
    %v4346 = vmul.f32 %v4265, 0.35355338
    %v4347 = vmul.f32 %v4343, 0.35355338
    %v4348 = vsel %vm130, %v4346, -inf
    %4349 = vmax.xlane.f32.xlu0 %v4348
    %v4350 = vpop.xlane.xlu0 %4349
    %v4351 = vsel %vm130, %v4347, -inf
    %4352 = vmax.xlane.f32.xlu0 %v4351
    %v4353 = vpop.xlane.xlu0 %4352
    %v4354 = vsub.f32 %v4346, %v4350
    %v4355 = vsub.f32 %v4347, %v4353
    %v4356 = vmul.f32 %v4354, 1.442695
    %v4357 = vpow.pop %v4356
    %v4358 = vmul.f32 %v4355, 1.442695
    %v4359 = vpow.pop %v4358
    %v4360 = vsel %vm130, %v4357, 0.0
    %4361 = vadd.xlane.f32.xlu0 %v4360
    %v4362 = vpop.xlane.xlu0 %4361
    %v4363 = vsel %vm130, %v4359, 0.0
    %4364 = vadd.xlane.f32.xlu0 %v4363
    %v4365 = vpop.xlane.xlu0 %4364
    %v4366 = vrcp.pop %v4362
    %v4367 = vrcp.pop %v4365
    %v4368 = vmul.f32 %v4357, %v4366
    %v4369 = vmul.f32 %v4359, %v4367
    %4370 = vrot.lane.b32.xlu0 %v3848, 56
    %v4371 = vpop.permute.xlu0 %4370
    %v4374 = vsel %vm130, %v4368, 0
    %4376 = vmatprep.subr.mxu0 0.0
    %4377 = vmatpush1.msra.mxu0 %v4371
    %4378 = vmatprep.subr.mxu0 0.0
    %4379 = vmatpush1.msra.mxu0 0.0
    %4380 = vmatprep.subr.mxu0 0.0
    %4381 = vmatpush1.msra.mxu0 0.0
    %4382 = vmatprep.subr.mxu0 0.0
    %4383 = vmatpush1.msra.mxu0 0.0
    %4384 = vmatprep.subr.mxu0 0.0
    %4385 = vmatpush1.msra.mxu0 0.0
    %4386 = vmatprep.subr.mxu0 0.0
    %4387 = vmatpush1.msra.mxu0 0.0
    %4388 = vmatprep.subr.mxu0 0.0
    %4389 = vmatpush1.msra.mxu0 0.0
    %4390 = vmatprep.subr.mxu0 0.0
    %4391 = vmatpush1.msra.mxu0 0.0
    %4392 = vmatprep.subr.mxu0 0.0
    %4393 = vmatpush1.msra.mxu0 0.0
    %4394 = vmatprep.subr.mxu0 0.0
    %4395 = vmatpush1.msra.mxu0 0.0
    %4396 = vmatprep.subr.mxu0 0.0
    %4397 = vmatpush1.msra.mxu0 0.0
    %4398 = vmatprep.subr.mxu0 0.0
    %4399 = vmatpush1.msra.mxu0 0.0
    %4400 = vmatprep.subr.mxu0 0.0
    %4401 = vmatpush1.msra.mxu0 0.0
    %4402 = vmatprep.subr.mxu0 0.0
    %4403 = vmatpush1.msra.mxu0 0.0
    %4404 = vmatprep.subr.mxu0 0.0
    %4405 = vmatpush1.msra.mxu0 0.0
    %4406 = vmatprep.subr.mxu0 0.0
    %4407 = vmatpush1.msra.mxu0 0.0
    %4408 = vmatprep.subr.mxu0 0.0
    %4409 = vmatpush1.msra.mxu0 0.0
    %4410 = vmatprep.subr.mxu0 0.0
    %4411 = vmatpush1.msra.mxu0 0.0
    %4412 = vmatprep.subr.mxu0 0.0
    %4413 = vmatpush1.msra.mxu0 0.0
    %4414 = vmatprep.subr.mxu0 0.0
    %4415 = vmatpush1.msra.mxu0 0.0
    %4416 = vmatprep.subr.mxu0 0.0
    %4417 = vmatpush1.msra.mxu0 0.0
    %4418 = vmatprep.subr.mxu0 0.0
    %4419 = vmatpush1.msra.mxu0 0.0
    %4420 = vmatprep.subr.mxu0 0.0
    %4421 = vmatpush1.msra.mxu0 0.0
    %4422 = vmatprep.subr.mxu0 0.0
    %4423 = vmatpush1.msra.mxu0 0.0
    %4424 = vmatprep.subr.mxu0 0.0
    %4425 = vmatpush1.msra.mxu0 0.0
    %4426 = vmatprep.subr.mxu0 0.0
    %4427 = vmatpush1.msra.mxu0 0.0
    %4428 = vmatprep.subr.mxu0 0.0
    %4429 = vmatpush1.msra.mxu0 0.0
    %4430 = vmatprep.subr.mxu0 0.0
    %4431 = vmatpush1.msra.mxu0 0.0
    %4432 = vmatprep.subr.mxu0 0.0
    %4433 = vmatpush1.msra.mxu0 0.0
    %4434 = vmatprep.subr.mxu0 0.0
    %4435 = vmatpush1.msra.mxu0 0.0
    %4436 = vmatprep.subr.mxu0 0.0
    %4437 = vmatpush1.msra.mxu0 0.0
    %4438 = vmatprep.subr.mxu0 0.0
    %4439 = vmatpush1.msra.mxu0 0.0
    %4440 = vmatprep.mubr.f32.mxu0 0.0
    %4441 = vmatmul.mubr.f32.gmra.mrb[0].mxu0 %v4374
    %v4442 = vpop.f32.mrb[0].mxu0
    %v4443 = vadd.f32 0.0, %v4442
    %v4444 = vpop.f32.mrb[0].mxu0
    %4445 = vdwg.mxu0
    %4446 = vrot.lane.b32.xlu0 %v3851, 56
    %v4447 = vpop.permute.xlu0 %4446
    %v4450 = vsel %vm130, %v4369, 0
    %4452 = vmatprep.subr.mxu0 0.0
    %4453 = vmatpush1.msra.mxu0 %v4447
    %4454 = vmatprep.subr.mxu0 0.0
    %4455 = vmatpush1.msra.mxu0 0.0
    %4456 = vmatprep.subr.mxu0 0.0
    %4457 = vmatpush1.msra.mxu0 0.0
    %4458 = vmatprep.subr.mxu0 0.0
    %4459 = vmatpush1.msra.mxu0 0.0
    %4460 = vmatprep.subr.mxu0 0.0
    %4461 = vmatpush1.msra.mxu0 0.0
    %4462 = vmatprep.subr.mxu0 0.0
    %4463 = vmatpush1.msra.mxu0 0.0
    %4464 = vmatprep.subr.mxu0 0.0
    %4465 = vmatpush1.msra.mxu0 0.0
    %4466 = vmatprep.subr.mxu0 0.0
    %4467 = vmatpush1.msra.mxu0 0.0
    %4468 = vmatprep.subr.mxu0 0.0
    %4469 = vmatpush1.msra.mxu0 0.0
    %4470 = vmatprep.subr.mxu0 0.0
    %4471 = vmatpush1.msra.mxu0 0.0
    %4472 = vmatprep.subr.mxu0 0.0
    %4473 = vmatpush1.msra.mxu0 0.0
    %4474 = vmatprep.subr.mxu0 0.0
    %4475 = vmatpush1.msra.mxu0 0.0
    %4476 = vmatprep.subr.mxu0 0.0
    %4477 = vmatpush1.msra.mxu0 0.0
    %4478 = vmatprep.subr.mxu0 0.0
    %4479 = vmatpush1.msra.mxu0 0.0
    %4480 = vmatprep.subr.mxu0 0.0
    %4481 = vmatpush1.msra.mxu0 0.0
    %4482 = vmatprep.subr.mxu0 0.0
    %4483 = vmatpush1.msra.mxu0 0.0
    %4484 = vmatprep.subr.mxu0 0.0
    %4485 = vmatpush1.msra.mxu0 0.0
    %4486 = vmatprep.subr.mxu0 0.0
    %4487 = vmatpush1.msra.mxu0 0.0
    %4488 = vmatprep.subr.mxu0 0.0
    %4489 = vmatpush1.msra.mxu0 0.0
    %4490 = vmatprep.subr.mxu0 0.0
    %4491 = vmatpush1.msra.mxu0 0.0
    %4492 = vmatprep.subr.mxu0 0.0
    %4493 = vmatpush1.msra.mxu0 0.0
    %4494 = vmatprep.subr.mxu0 0.0
    %4495 = vmatpush1.msra.mxu0 0.0
    %4496 = vmatprep.subr.mxu0 0.0
    %4497 = vmatpush1.msra.mxu0 0.0
    %4498 = vmatprep.subr.mxu0 0.0
    %4499 = vmatpush1.msra.mxu0 0.0
    %4500 = vmatprep.subr.mxu0 0.0
    %4501 = vmatpush1.msra.mxu0 0.0
    %4502 = vmatprep.subr.mxu0 0.0
    %4503 = vmatpush1.msra.mxu0 0.0
    %4504 = vmatprep.subr.mxu0 0.0
    %4505 = vmatpush1.msra.mxu0 0.0
    %4506 = vmatprep.subr.mxu0 0.0
    %4507 = vmatpush1.msra.mxu0 0.0
    %4508 = vmatprep.subr.mxu0 0.0
    %4509 = vmatpush1.msra.mxu0 0.0
    %4510 = vmatprep.subr.mxu0 0.0
    %4511 = vmatpush1.msra.mxu0 0.0
    %4512 = vmatprep.subr.mxu0 0.0
    %4513 = vmatpush1.msra.mxu0 0.0
    %4514 = vmatprep.subr.mxu0 0.0
    %4515 = vmatpush1.msra.mxu0 0.0
    %4516 = vmatprep.mubr.f32.mxu0 0.0
    %4517 = vmatmul.mubr.f32.gmra.mrb[0].mxu0 %v4450
    %v4518 = vpop.f32.mrb[0].mxu0
    %v4519 = vadd.f32 0.0, %v4518
    %v4520 = vpop.f32.mrb[0].mxu0
    %4521 = vdwg.mxu0
    %v4522 = vpack.c.bf16 %v4519, %v4443
    %v4524 = vsel %vm130, %v4522, 0
    %v4527 = vsel %vm795, %v3856, 0
    %4529 = vmatprep.subr.bf16.mxu0 0
    %4530 = vmatpush1.bf16.msra.mxu0 %v4527
    %4531 = vmatprep.subr.bf16.mxu0 0
    %4532 = vmatpush1.bf16.msra.mxu0 0
    %4533 = vmatprep.subr.bf16.mxu0 0
    %4534 = vmatpush1.bf16.msra.mxu0 0
    %4535 = vmatprep.subr.bf16.mxu0 0
    %4536 = vmatpush1.bf16.msra.mxu0 0
    %4537 = vmatprep.subr.bf16.mxu0 0
    %4538 = vmatpush1.bf16.msra.mxu0 0
    %4539 = vmatprep.subr.bf16.mxu0 0
    %4540 = vmatpush1.bf16.msra.mxu0 0
    %4541 = vmatprep.subr.bf16.mxu0 0
    %4542 = vmatpush1.bf16.msra.mxu0 0
    %4543 = vmatprep.subr.bf16.mxu0 0
    %4544 = vmatpush1.bf16.msra.mxu0 0
    %4545 = vmatprep.subr.bf16.mxu0 0
    %4546 = vmatpush1.bf16.msra.mxu0 0
    %4547 = vmatprep.subr.bf16.mxu0 0
    %4548 = vmatpush1.bf16.msra.mxu0 0
    %4549 = vmatprep.subr.bf16.mxu0 0
    %4550 = vmatpush1.bf16.msra.mxu0 0
    %4551 = vmatprep.subr.bf16.mxu0 0
    %4552 = vmatpush1.bf16.msra.mxu0 0
    %4553 = vmatprep.subr.bf16.mxu0 0
    %4554 = vmatpush1.bf16.msra.mxu0 0
    %4555 = vmatprep.subr.bf16.mxu0 0
    %4556 = vmatpush1.bf16.msra.mxu0 0
    %4557 = vmatprep.subr.bf16.mxu0 0
    %4558 = vmatpush1.bf16.msra.mxu0 0
    %4559 = vmatprep.subr.bf16.mxu0 0
    %4560 = vmatpush1.bf16.msra.mxu0 0
    %4561 = vmatprep.mubr.bf16.mxu0 0
    %4562 = vmatmul.mubr.bf16.gmra.mrb[0].mxu0 %v4524
    %v4563 = vpop.f32.mrb[0].mxu0
    %v4564 = vadd.f32 0.0, %v4563
    %v4565 = vpop.f32.mrb[0].mxu0
    %v4566 = vpop.f32.mrb[0].mxu0
    %v4567 = vadd.f32 0.0, %v4566
    %v4568 = vpop.f32.mrb[0].mxu0
    %4569 = vdwg.mxu0
    %v4571 = vsel %vm130, %v4189, 0
    %v4574 = vsel %vm795, %v3855, 0
    %4576 = vmatprep.subr.bf16.mxu0 0
    %4577 = vmatpush1.bf16.msra.mxu0 %v4574
    %4578 = vmatprep.subr.bf16.mxu0 0
    %4579 = vmatpush1.bf16.msra.mxu0 0
    %4580 = vmatprep.subr.bf16.mxu0 0
    %4581 = vmatpush1.bf16.msra.mxu0 0
    %4582 = vmatprep.subr.bf16.mxu0 0
    %4583 = vmatpush1.bf16.msra.mxu0 0
    %4584 = vmatprep.subr.bf16.mxu0 0
    %4585 = vmatpush1.bf16.msra.mxu0 0
    %4586 = vmatprep.subr.bf16.mxu0 0
    %4587 = vmatpush1.bf16.msra.mxu0 0
    %4588 = vmatprep.subr.bf16.mxu0 0
    %4589 = vmatpush1.bf16.msra.mxu0 0
    %4590 = vmatprep.subr.bf16.mxu0 0
    %4591 = vmatpush1.bf16.msra.mxu0 0
    %4592 = vmatprep.subr.bf16.mxu0 0
    %4593 = vmatpush1.bf16.msra.mxu0 0
    %4594 = vmatprep.subr.bf16.mxu0 0
    %4595 = vmatpush1.bf16.msra.mxu0 0
    %4596 = vmatprep.subr.bf16.mxu0 0
    %4597 = vmatpush1.bf16.msra.mxu0 0
    %4598 = vmatprep.subr.bf16.mxu0 0
    %4599 = vmatpush1.bf16.msra.mxu0 0
    %4600 = vmatprep.subr.bf16.mxu0 0
    %4601 = vmatpush1.bf16.msra.mxu0 0
    %4602 = vmatprep.subr.bf16.mxu0 0
    %4603 = vmatpush1.bf16.msra.mxu0 0
    %4604 = vmatprep.subr.bf16.mxu0 0
    %4605 = vmatpush1.bf16.msra.mxu0 0
    %4606 = vmatprep.subr.bf16.mxu0 0
    %4607 = vmatpush1.bf16.msra.mxu0 0
    %4608 = vmatprep.mubr.bf16.mxu0 0
    %4609 = vmatmul.mubr.bf16.gmra.mrb[0].mxu0 %v4571
    %v4610 = vpop.f32.mrb[0].mxu0
    %v4611 = vadd.f32 %v4564, %v4610
    %v4612 = vpop.f32.mrb[0].mxu0
    %v4613 = vpop.f32.mrb[0].mxu0
    %v4614 = vadd.f32 %v4567, %v4613
    %v4615 = vpop.f32.mrb[0].mxu0
    %4616 = vdwg.mxu0
    %4617 = vrot.lane.b32.xlu0 %v3848, 112
    %v4618 = vpop.permute.xlu0 %4617
    %4619 = vrot.lane.b32.xlu0 %v3848, 80
    %v4620 = vpop.permute.xlu0 %4619
    %v4621 = vsel %vm130, %v4618, 0
    %v4623 = vsel %vm130, %v4620, 0
    %4625 = vmatprep.subr.mxu0 0.0
    %4626 = vmatpush1.xpose.msra.mxu0 %v4623
    %4627 = vmatprep.subr.mxu0 0.0
    %4628 = vmatpush1.xpose.msra.mxu0 0.0
    %4629 = vmatprep.subr.mxu0 0.0
    %4630 = vmatpush1.xpose.msra.mxu0 0.0
    %4631 = vmatprep.subr.mxu0 0.0
    %4632 = vmatpush1.xpose.msra.mxu0 0.0
    %4633 = vmatprep.subr.mxu0 0.0
    %4634 = vmatpush1.xpose.msra.mxu0 0.0
    %4635 = vmatprep.subr.mxu0 0.0
    %4636 = vmatpush1.xpose.msra.mxu0 0.0
    %4637 = vmatprep.subr.mxu0 0.0
    %4638 = vmatpush1.xpose.msra.mxu0 0.0
    %4639 = vmatprep.subr.mxu0 0.0
    %4640 = vmatpush1.xpose.msra.mxu0 0.0
    %4641 = vmatprep.subr.mxu0 0.0
    %4642 = vmatpush1.xpose.msra.mxu0 0.0
    %4643 = vmatprep.subr.mxu0 0.0
    %4644 = vmatpush1.xpose.msra.mxu0 0.0
    %4645 = vmatprep.subr.mxu0 0.0
    %4646 = vmatpush1.xpose.msra.mxu0 0.0
    %4647 = vmatprep.subr.mxu0 0.0
    %4648 = vmatpush1.xpose.msra.mxu0 0.0
    %4649 = vmatprep.subr.mxu0 0.0
    %4650 = vmatpush1.xpose.msra.mxu0 0.0
    %4651 = vmatprep.subr.mxu0 0.0
    %4652 = vmatpush1.xpose.msra.mxu0 0.0
    %4653 = vmatprep.subr.mxu0 0.0
    %4654 = vmatpush1.xpose.msra.mxu0 0.0
    %4655 = vmatprep.subr.mxu0 0.0
    %4656 = vmatpush1.xpose.msra.mxu0 0.0
    %4657 = vmatprep.subr.mxu0 0.0
    %4658 = vmatpush1.xpose.msra.mxu0 0.0
    %4659 = vmatprep.subr.mxu0 0.0
    %4660 = vmatpush1.xpose.msra.mxu0 0.0
    %4661 = vmatprep.subr.mxu0 0.0
    %4662 = vmatpush1.xpose.msra.mxu0 0.0
    %4663 = vmatprep.subr.mxu0 0.0
    %4664 = vmatpush1.xpose.msra.mxu0 0.0
    %4665 = vmatprep.subr.mxu0 0.0
    %4666 = vmatpush1.xpose.msra.mxu0 0.0
    %4667 = vmatprep.subr.mxu0 0.0
    %4668 = vmatpush1.xpose.msra.mxu0 0.0
    %4669 = vmatprep.subr.mxu0 0.0
    %4670 = vmatpush1.xpose.msra.mxu0 0.0
    %4671 = vmatprep.subr.mxu0 0.0
    %4672 = vmatpush1.xpose.msra.mxu0 0.0
    %4673 = vmatprep.subr.mxu0 0.0
    %4674 = vmatpush1.xpose.msra.mxu0 0.0
    %4675 = vmatprep.subr.mxu0 0.0
    %4676 = vmatpush1.xpose.msra.mxu0 0.0
    %4677 = vmatprep.subr.mxu0 0.0
    %4678 = vmatpush1.xpose.msra.mxu0 0.0
    %4679 = vmatprep.subr.mxu0 0.0
    %4680 = vmatpush1.xpose.msra.mxu0 0.0
    %4681 = vmatprep.subr.mxu0 0.0
    %4682 = vmatpush1.xpose.msra.mxu0 0.0
    %4683 = vmatprep.subr.mxu0 0.0
    %4684 = vmatpush1.xpose.msra.mxu0 0.0
    %4685 = vmatprep.subr.mxu0 0.0
    %4686 = vmatpush1.xpose.msra.mxu0 0.0
    %4687 = vmatprep.subr.mxu0 0.0
    %4688 = vmatpush1.xpose.msra.mxu0 0.0
    %4689 = vmatprep.mubr.f32.mxu0 0.0
    %4690 = vmatmul.mubr.f32.gmra.mrb[0].mxu0 %v4621
    %v4691 = vpop.f32.mrb[0].mxu0
    %v4692 = vadd.f32 0.0, %v4691
    %v4693 = vpop.f32.mrb[0].mxu0
    %4694 = vdwg.mxu0
    %4695 = vrot.lane.b32.xlu0 %v3851, 112
    %v4696 = vpop.permute.xlu0 %4695
    %4697 = vrot.lane.b32.xlu0 %v3851, 80
    %v4698 = vpop.permute.xlu0 %4697
    %v4699 = vsel %vm130, %v4696, 0
    %v4701 = vsel %vm130, %v4698, 0
    %4703 = vmatprep.subr.mxu0 0.0
    %4704 = vmatpush1.xpose.msra.mxu0 %v4701
    %4705 = vmatprep.subr.mxu0 0.0
    %4706 = vmatpush1.xpose.msra.mxu0 0.0
    %4707 = vmatprep.subr.mxu0 0.0
    %4708 = vmatpush1.xpose.msra.mxu0 0.0
    %4709 = vmatprep.subr.mxu0 0.0
    %4710 = vmatpush1.xpose.msra.mxu0 0.0
    %4711 = vmatprep.subr.mxu0 0.0
    %4712 = vmatpush1.xpose.msra.mxu0 0.0
    %4713 = vmatprep.subr.mxu0 0.0
    %4714 = vmatpush1.xpose.msra.mxu0 0.0
    %4715 = vmatprep.subr.mxu0 0.0
    %4716 = vmatpush1.xpose.msra.mxu0 0.0
    %4717 = vmatprep.subr.mxu0 0.0
    %4718 = vmatpush1.xpose.msra.mxu0 0.0
    %4719 = vmatprep.subr.mxu0 0.0
    %4720 = vmatpush1.xpose.msra.mxu0 0.0
    %4721 = vmatprep.subr.mxu0 0.0
    %4722 = vmatpush1.xpose.msra.mxu0 0.0
    %4723 = vmatprep.subr.mxu0 0.0
    %4724 = vmatpush1.xpose.msra.mxu0 0.0
    %4725 = vmatprep.subr.mxu0 0.0
    %4726 = vmatpush1.xpose.msra.mxu0 0.0
    %4727 = vmatprep.subr.mxu0 0.0
    %4728 = vmatpush1.xpose.msra.mxu0 0.0
    %4729 = vmatprep.subr.mxu0 0.0
    %4730 = vmatpush1.xpose.msra.mxu0 0.0
    %4731 = vmatprep.subr.mxu0 0.0
    %4732 = vmatpush1.xpose.msra.mxu0 0.0
    %4733 = vmatprep.subr.mxu0 0.0
    %4734 = vmatpush1.xpose.msra.mxu0 0.0
    %4735 = vmatprep.subr.mxu0 0.0
    %4736 = vmatpush1.xpose.msra.mxu0 0.0
    %4737 = vmatprep.subr.mxu0 0.0
    %4738 = vmatpush1.xpose.msra.mxu0 0.0
    %4739 = vmatprep.subr.mxu0 0.0
    %4740 = vmatpush1.xpose.msra.mxu0 0.0
    %4741 = vmatprep.subr.mxu0 0.0
    %4742 = vmatpush1.xpose.msra.mxu0 0.0
    %4743 = vmatprep.subr.mxu0 0.0
    %4744 = vmatpush1.xpose.msra.mxu0 0.0
    %4745 = vmatprep.subr.mxu0 0.0
    %4746 = vmatpush1.xpose.msra.mxu0 0.0
    %4747 = vmatprep.subr.mxu0 0.0
    %4748 = vmatpush1.xpose.msra.mxu0 0.0
    %4749 = vmatprep.subr.mxu0 0.0
    %4750 = vmatpush1.xpose.msra.mxu0 0.0
    %4751 = vmatprep.subr.mxu0 0.0
    %4752 = vmatpush1.xpose.msra.mxu0 0.0
    %4753 = vmatprep.subr.mxu0 0.0
    %4754 = vmatpush1.xpose.msra.mxu0 0.0
    %4755 = vmatprep.subr.mxu0 0.0
    %4756 = vmatpush1.xpose.msra.mxu0 0.0
    %4757 = vmatprep.subr.mxu0 0.0
    %4758 = vmatpush1.xpose.msra.mxu0 0.0
    %4759 = vmatprep.subr.mxu0 0.0
    %4760 = vmatpush1.xpose.msra.mxu0 0.0
    %4761 = vmatprep.subr.mxu0 0.0
    %4762 = vmatpush1.xpose.msra.mxu0 0.0
    %4763 = vmatprep.subr.mxu0 0.0
    %4764 = vmatpush1.xpose.msra.mxu0 0.0
    %4765 = vmatprep.subr.mxu0 0.0
    %4766 = vmatpush1.xpose.msra.mxu0 0.0
    %4767 = vmatprep.mubr.f32.mxu0 0.0
    %4768 = vmatmul.mubr.f32.gmra.mrb[0].mxu0 %v4699
    %v4769 = vpop.f32.mrb[0].mxu0
    %v4770 = vadd.f32 0.0, %v4769
    %v4771 = vpop.f32.mrb[0].mxu0
    %4772 = vdwg.mxu0
    %v4773 = vmul.f32 %v4692, 0.35355338
    %v4774 = vmul.f32 %v4770, 0.35355338
    %v4775 = vsel %vm130, %v4773, -inf
    %4776 = vmax.xlane.f32.xlu0 %v4775
    %v4777 = vpop.xlane.xlu0 %4776
    %v4778 = vsel %vm130, %v4774, -inf
    %4779 = vmax.xlane.f32.xlu0 %v4778
    %v4780 = vpop.xlane.xlu0 %4779
    %v4781 = vsub.f32 %v4773, %v4777
    %v4782 = vsub.f32 %v4774, %v4780
    %v4783 = vmul.f32 %v4781, 1.442695
    %v4784 = vpow.pop %v4783
    %v4785 = vmul.f32 %v4782, 1.442695
    %v4786 = vpow.pop %v4785
    %v4787 = vsel %vm130, %v4784, 0.0
    %4788 = vadd.xlane.f32.xlu0 %v4787
    %v4789 = vpop.xlane.xlu0 %4788
    %v4790 = vsel %vm130, %v4786, 0.0
    %4791 = vadd.xlane.f32.xlu0 %v4790
    %v4792 = vpop.xlane.xlu0 %4791
    %v4793 = vrcp.pop %v4789
    %v4794 = vrcp.pop %v4792
    %v4795 = vmul.f32 %v4784, %v4793
    %v4796 = vmul.f32 %v4786, %v4794
    %4797 = vrot.lane.b32.xlu0 %v3848, 48
    %v4798 = vpop.permute.xlu0 %4797
    %v4801 = vsel %vm130, %v4795, 0
    %4803 = vmatprep.subr.mxu0 0.0
    %4804 = vmatpush1.msra.mxu0 %v4798
    %4805 = vmatprep.subr.mxu0 0.0
    %4806 = vmatpush1.msra.mxu0 0.0
    %4807 = vmatprep.subr.mxu0 0.0
    %4808 = vmatpush1.msra.mxu0 0.0
    %4809 = vmatprep.subr.mxu0 0.0
    %4810 = vmatpush1.msra.mxu0 0.0
    %4811 = vmatprep.subr.mxu0 0.0
    %4812 = vmatpush1.msra.mxu0 0.0
    %4813 = vmatprep.subr.mxu0 0.0
    %4814 = vmatpush1.msra.mxu0 0.0
    %4815 = vmatprep.subr.mxu0 0.0
    %4816 = vmatpush1.msra.mxu0 0.0
    %4817 = vmatprep.subr.mxu0 0.0
    %4818 = vmatpush1.msra.mxu0 0.0
    %4819 = vmatprep.subr.mxu0 0.0
    %4820 = vmatpush1.msra.mxu0 0.0
    %4821 = vmatprep.subr.mxu0 0.0
    %4822 = vmatpush1.msra.mxu0 0.0
    %4823 = vmatprep.subr.mxu0 0.0
    %4824 = vmatpush1.msra.mxu0 0.0
    %4825 = vmatprep.subr.mxu0 0.0
    %4826 = vmatpush1.msra.mxu0 0.0
    %4827 = vmatprep.subr.mxu0 0.0
    %4828 = vmatpush1.msra.mxu0 0.0
    %4829 = vmatprep.subr.mxu0 0.0
    %4830 = vmatpush1.msra.mxu0 0.0
    %4831 = vmatprep.subr.mxu0 0.0
    %4832 = vmatpush1.msra.mxu0 0.0
    %4833 = vmatprep.subr.mxu0 0.0
    %4834 = vmatpush1.msra.mxu0 0.0
    %4835 = vmatprep.subr.mxu0 0.0
    %4836 = vmatpush1.msra.mxu0 0.0
    %4837 = vmatprep.subr.mxu0 0.0
    %4838 = vmatpush1.msra.mxu0 0.0
    %4839 = vmatprep.subr.mxu0 0.0
    %4840 = vmatpush1.msra.mxu0 0.0
    %4841 = vmatprep.subr.mxu0 0.0
    %4842 = vmatpush1.msra.mxu0 0.0
    %4843 = vmatprep.subr.mxu0 0.0
    %4844 = vmatpush1.msra.mxu0 0.0
    %4845 = vmatprep.subr.mxu0 0.0
    %4846 = vmatpush1.msra.mxu0 0.0
    %4847 = vmatprep.subr.mxu0 0.0
    %4848 = vmatpush1.msra.mxu0 0.0
    %4849 = vmatprep.subr.mxu0 0.0
    %4850 = vmatpush1.msra.mxu0 0.0
    %4851 = vmatprep.subr.mxu0 0.0
    %4852 = vmatpush1.msra.mxu0 0.0
    %4853 = vmatprep.subr.mxu0 0.0
    %4854 = vmatpush1.msra.mxu0 0.0
    %4855 = vmatprep.subr.mxu0 0.0
    %4856 = vmatpush1.msra.mxu0 0.0
    %4857 = vmatprep.subr.mxu0 0.0
    %4858 = vmatpush1.msra.mxu0 0.0
    %4859 = vmatprep.subr.mxu0 0.0
    %4860 = vmatpush1.msra.mxu0 0.0
    %4861 = vmatprep.subr.mxu0 0.0
    %4862 = vmatpush1.msra.mxu0 0.0
    %4863 = vmatprep.subr.mxu0 0.0
    %4864 = vmatpush1.msra.mxu0 0.0
    %4865 = vmatprep.subr.mxu0 0.0
    %4866 = vmatpush1.msra.mxu0 0.0
    %4867 = vmatprep.mubr.f32.mxu0 0.0
    %4868 = vmatmul.mubr.f32.gmra.mrb[0].mxu0 %v4801
    %v4869 = vpop.f32.mrb[0].mxu0
    %v4870 = vadd.f32 0.0, %v4869
    %v4871 = vpop.f32.mrb[0].mxu0
    %4872 = vdwg.mxu0
    %4873 = vrot.lane.b32.xlu0 %v3851, 48
    %v4874 = vpop.permute.xlu0 %4873
    %v4877 = vsel %vm130, %v4796, 0
    %4879 = vmatprep.subr.mxu0 0.0
    %4880 = vmatpush1.msra.mxu0 %v4874
    %4881 = vmatprep.subr.mxu0 0.0
    %4882 = vmatpush1.msra.mxu0 0.0
    %4883 = vmatprep.subr.mxu0 0.0
    %4884 = vmatpush1.msra.mxu0 0.0
    %4885 = vmatprep.subr.mxu0 0.0
    %4886 = vmatpush1.msra.mxu0 0.0
    %4887 = vmatprep.subr.mxu0 0.0
    %4888 = vmatpush1.msra.mxu0 0.0
    %4889 = vmatprep.subr.mxu0 0.0
    %4890 = vmatpush1.msra.mxu0 0.0
    %4891 = vmatprep.subr.mxu0 0.0
    %4892 = vmatpush1.msra.mxu0 0.0
    %4893 = vmatprep.subr.mxu0 0.0
    %4894 = vmatpush1.msra.mxu0 0.0
    %4895 = vmatprep.subr.mxu0 0.0
    %4896 = vmatpush1.msra.mxu0 0.0
    %4897 = vmatprep.subr.mxu0 0.0
    %4898 = vmatpush1.msra.mxu0 0.0
    %4899 = vmatprep.subr.mxu0 0.0
    %4900 = vmatpush1.msra.mxu0 0.0
    %4901 = vmatprep.subr.mxu0 0.0
    %4902 = vmatpush1.msra.mxu0 0.0
    %4903 = vmatprep.subr.mxu0 0.0
    %4904 = vmatpush1.msra.mxu0 0.0
    %4905 = vmatprep.subr.mxu0 0.0
    %4906 = vmatpush1.msra.mxu0 0.0
    %4907 = vmatprep.subr.mxu0 0.0
    %4908 = vmatpush1.msra.mxu0 0.0
    %4909 = vmatprep.subr.mxu0 0.0
    %4910 = vmatpush1.msra.mxu0 0.0
    %4911 = vmatprep.subr.mxu0 0.0
    %4912 = vmatpush1.msra.mxu0 0.0
    %4913 = vmatprep.subr.mxu0 0.0
    %4914 = vmatpush1.msra.mxu0 0.0
    %4915 = vmatprep.subr.mxu0 0.0
    %4916 = vmatpush1.msra.mxu0 0.0
    %4917 = vmatprep.subr.mxu0 0.0
    %4918 = vmatpush1.msra.mxu0 0.0
    %4919 = vmatprep.subr.mxu0 0.0
    %4920 = vmatpush1.msra.mxu0 0.0
    %4921 = vmatprep.subr.mxu0 0.0
    %4922 = vmatpush1.msra.mxu0 0.0
    %4923 = vmatprep.subr.mxu0 0.0
    %4924 = vmatpush1.msra.mxu0 0.0
    %4925 = vmatprep.subr.mxu0 0.0
    %4926 = vmatpush1.msra.mxu0 0.0
    %4927 = vmatprep.subr.mxu0 0.0
    %4928 = vmatpush1.msra.mxu0 0.0
    %4929 = vmatprep.subr.mxu0 0.0
    %4930 = vmatpush1.msra.mxu0 0.0
    %4931 = vmatprep.subr.mxu0 0.0
    %4932 = vmatpush1.msra.mxu0 0.0
    %4933 = vmatprep.subr.mxu0 0.0
    %4934 = vmatpush1.msra.mxu0 0.0
    %4935 = vmatprep.subr.mxu0 0.0
    %4936 = vmatpush1.msra.mxu0 0.0
    %4937 = vmatprep.subr.mxu0 0.0
    %4938 = vmatpush1.msra.mxu0 0.0
    %4939 = vmatprep.subr.mxu0 0.0
    %4940 = vmatpush1.msra.mxu0 0.0
    %4941 = vmatprep.subr.mxu0 0.0
    %4942 = vmatpush1.msra.mxu0 0.0
    %4943 = vmatprep.mubr.f32.mxu0 0.0
    %4944 = vmatmul.mubr.f32.gmra.mrb[0].mxu0 %v4877
    %v4945 = vpop.f32.mrb[0].mxu0
    %v4946 = vadd.f32 0.0, %v4945
    %v4947 = vpop.f32.mrb[0].mxu0
    %4948 = vdwg.mxu0
    %v4949 = vpack.c.bf16 %v4946, %v4870
    %v4951 = vsel %vm130, %v4949, 0
    %v4954 = vsel %vm795, %v3857, 0
    %4956 = vmatprep.subr.bf16.mxu0 0
    %4957 = vmatpush1.bf16.msra.mxu0 %v4954
    %4958 = vmatprep.subr.bf16.mxu0 0
    %4959 = vmatpush1.bf16.msra.mxu0 0
    %4960 = vmatprep.subr.bf16.mxu0 0
    %4961 = vmatpush1.bf16.msra.mxu0 0
    %4962 = vmatprep.subr.bf16.mxu0 0
    %4963 = vmatpush1.bf16.msra.mxu0 0
    %4964 = vmatprep.subr.bf16.mxu0 0
    %4965 = vmatpush1.bf16.msra.mxu0 0
    %4966 = vmatprep.subr.bf16.mxu0 0
    %4967 = vmatpush1.bf16.msra.mxu0 0
    %4968 = vmatprep.subr.bf16.mxu0 0
    %4969 = vmatpush1.bf16.msra.mxu0 0
    %4970 = vmatprep.subr.bf16.mxu0 0
    %4971 = vmatpush1.bf16.msra.mxu0 0
    %4972 = vmatprep.subr.bf16.mxu0 0
    %4973 = vmatpush1.bf16.msra.mxu0 0
    %4974 = vmatprep.subr.bf16.mxu0 0
    %4975 = vmatpush1.bf16.msra.mxu0 0
    %4976 = vmatprep.subr.bf16.mxu0 0
    %4977 = vmatpush1.bf16.msra.mxu0 0
    %4978 = vmatprep.subr.bf16.mxu0 0
    %4979 = vmatpush1.bf16.msra.mxu0 0
    %4980 = vmatprep.subr.bf16.mxu0 0
    %4981 = vmatpush1.bf16.msra.mxu0 0
    %4982 = vmatprep.subr.bf16.mxu0 0
    %4983 = vmatpush1.bf16.msra.mxu0 0
    %4984 = vmatprep.subr.bf16.mxu0 0
    %4985 = vmatpush1.bf16.msra.mxu0 0
    %4986 = vmatprep.subr.bf16.mxu0 0
    %4987 = vmatpush1.bf16.msra.mxu0 0
    %4988 = vmatprep.mubr.bf16.mxu0 0
    %4989 = vmatmul.mubr.bf16.gmra.mrb[0].mxu0 %v4951
    %v4990 = vpop.f32.mrb[0].mxu0
    %v4991 = vadd.f32 0.0, %v4990
    %v4992 = vpop.f32.mrb[0].mxu0
    %v4993 = vpop.f32.mrb[0].mxu0
    %v4994 = vadd.f32 0.0, %v4993
    %v4995 = vpop.f32.mrb[0].mxu0
    %4996 = vdwg.mxu0
    %v4997 = vadd.f32 %v4611, %v4991
    %v4998 = vadd.f32 %v4614, %v4994
    %4999 = vrot.lane.b32.xlu0 %v3848, 104
    %v5000 = vpop.permute.xlu0 %4999
    %5001 = vrot.lane.b32.xlu0 %v3848, 72
    %v5002 = vpop.permute.xlu0 %5001
    %v5003 = vsel %vm130, %v5000, 0
    %v5005 = vsel %vm130, %v5002, 0
    %5007 = vmatprep.subr.mxu0 0.0
    %5008 = vmatpush1.xpose.msra.mxu0 %v5005
    %5009 = vmatprep.subr.mxu0 0.0
    %5010 = vmatpush1.xpose.msra.mxu0 0.0
    %5011 = vmatprep.subr.mxu0 0.0
    %5012 = vmatpush1.xpose.msra.mxu0 0.0
    %5013 = vmatprep.subr.mxu0 0.0
    %5014 = vmatpush1.xpose.msra.mxu0 0.0
    %5015 = vmatprep.subr.mxu0 0.0
    %5016 = vmatpush1.xpose.msra.mxu0 0.0
    %5017 = vmatprep.subr.mxu0 0.0
    %5018 = vmatpush1.xpose.msra.mxu0 0.0
    %5019 = vmatprep.subr.mxu0 0.0
    %5020 = vmatpush1.xpose.msra.mxu0 0.0
    %5021 = vmatprep.subr.mxu0 0.0
    %5022 = vmatpush1.xpose.msra.mxu0 0.0
    %5023 = vmatprep.subr.mxu0 0.0
    %5024 = vmatpush1.xpose.msra.mxu0 0.0
    %5025 = vmatprep.subr.mxu0 0.0
    %5026 = vmatpush1.xpose.msra.mxu0 0.0
    %5027 = vmatprep.subr.mxu0 0.0
    %5028 = vmatpush1.xpose.msra.mxu0 0.0
    %5029 = vmatprep.subr.mxu0 0.0
    %5030 = vmatpush1.xpose.msra.mxu0 0.0
    %5031 = vmatprep.subr.mxu0 0.0
    %5032 = vmatpush1.xpose.msra.mxu0 0.0
    %5033 = vmatprep.subr.mxu0 0.0
    %5034 = vmatpush1.xpose.msra.mxu0 0.0
    %5035 = vmatprep.subr.mxu0 0.0
    %5036 = vmatpush1.xpose.msra.mxu0 0.0
    %5037 = vmatprep.subr.mxu0 0.0
    %5038 = vmatpush1.xpose.msra.mxu0 0.0
    %5039 = vmatprep.subr.mxu0 0.0
    %5040 = vmatpush1.xpose.msra.mxu0 0.0
    %5041 = vmatprep.subr.mxu0 0.0
    %5042 = vmatpush1.xpose.msra.mxu0 0.0
    %5043 = vmatprep.subr.mxu0 0.0
    %5044 = vmatpush1.xpose.msra.mxu0 0.0
    %5045 = vmatprep.subr.mxu0 0.0
    %5046 = vmatpush1.xpose.msra.mxu0 0.0
    %5047 = vmatprep.subr.mxu0 0.0
    %5048 = vmatpush1.xpose.msra.mxu0 0.0
    %5049 = vmatprep.subr.mxu0 0.0
    %5050 = vmatpush1.xpose.msra.mxu0 0.0
    %5051 = vmatprep.subr.mxu0 0.0
    %5052 = vmatpush1.xpose.msra.mxu0 0.0
    %5053 = vmatprep.subr.mxu0 0.0
    %5054 = vmatpush1.xpose.msra.mxu0 0.0
    %5055 = vmatprep.subr.mxu0 0.0
    %5056 = vmatpush1.xpose.msra.mxu0 0.0
    %5057 = vmatprep.subr.mxu0 0.0
    %5058 = vmatpush1.xpose.msra.mxu0 0.0
    %5059 = vmatprep.subr.mxu0 0.0
    %5060 = vmatpush1.xpose.msra.mxu0 0.0
    %5061 = vmatprep.subr.mxu0 0.0
    %5062 = vmatpush1.xpose.msra.mxu0 0.0
    %5063 = vmatprep.subr.mxu0 0.0
    %5064 = vmatpush1.xpose.msra.mxu0 0.0
    %5065 = vmatprep.subr.mxu0 0.0
    %5066 = vmatpush1.xpose.msra.mxu0 0.0
    %5067 = vmatprep.subr.mxu0 0.0
    %5068 = vmatpush1.xpose.msra.mxu0 0.0
    %5069 = vmatprep.subr.mxu0 0.0
    %5070 = vmatpush1.xpose.msra.mxu0 0.0
    %5071 = vmatprep.mubr.f32.mxu0 0.0
    %5072 = vmatmul.mubr.f32.gmra.mrb[0].mxu0 %v5003
    %v5073 = vpop.f32.mrb[0].mxu0
    %v5074 = vadd.f32 0.0, %v5073
    %v5075 = vpop.f32.mrb[0].mxu0
    %5076 = vdwg.mxu0
    %5077 = vrot.lane.b32.xlu0 %v3851, 104
    %v5078 = vpop.permute.xlu0 %5077
    %5079 = vrot.lane.b32.xlu0 %v3851, 72
    %v5080 = vpop.permute.xlu0 %5079
    %v5081 = vsel %vm130, %v5078, 0
    %v5083 = vsel %vm130, %v5080, 0
    %5085 = vmatprep.subr.mxu0 0.0
    %5086 = vmatpush1.xpose.msra.mxu0 %v5083
    %5087 = vmatprep.subr.mxu0 0.0
    %5088 = vmatpush1.xpose.msra.mxu0 0.0
    %5089 = vmatprep.subr.mxu0 0.0
    %5090 = vmatpush1.xpose.msra.mxu0 0.0
    %5091 = vmatprep.subr.mxu0 0.0
    %5092 = vmatpush1.xpose.msra.mxu0 0.0
    %5093 = vmatprep.subr.mxu0 0.0
    %5094 = vmatpush1.xpose.msra.mxu0 0.0
    %5095 = vmatprep.subr.mxu0 0.0
    %5096 = vmatpush1.xpose.msra.mxu0 0.0
    %5097 = vmatprep.subr.mxu0 0.0
    %5098 = vmatpush1.xpose.msra.mxu0 0.0
    %5099 = vmatprep.subr.mxu0 0.0
    %5100 = vmatpush1.xpose.msra.mxu0 0.0
    %5101 = vmatprep.subr.mxu0 0.0
    %5102 = vmatpush1.xpose.msra.mxu0 0.0
    %5103 = vmatprep.subr.mxu0 0.0
    %5104 = vmatpush1.xpose.msra.mxu0 0.0
    %5105 = vmatprep.subr.mxu0 0.0
    %5106 = vmatpush1.xpose.msra.mxu0 0.0
    %5107 = vmatprep.subr.mxu0 0.0
    %5108 = vmatpush1.xpose.msra.mxu0 0.0
    %5109 = vmatprep.subr.mxu0 0.0
    %5110 = vmatpush1.xpose.msra.mxu0 0.0
    %5111 = vmatprep.subr.mxu0 0.0
    %5112 = vmatpush1.xpose.msra.mxu0 0.0
    %5113 = vmatprep.subr.mxu0 0.0
    %5114 = vmatpush1.xpose.msra.mxu0 0.0
    %5115 = vmatprep.subr.mxu0 0.0
    %5116 = vmatpush1.xpose.msra.mxu0 0.0
    %5117 = vmatprep.subr.mxu0 0.0
    %5118 = vmatpush1.xpose.msra.mxu0 0.0
    %5119 = vmatprep.subr.mxu0 0.0
    %5120 = vmatpush1.xpose.msra.mxu0 0.0
    %5121 = vmatprep.subr.mxu0 0.0
    %5122 = vmatpush1.xpose.msra.mxu0 0.0
    %5123 = vmatprep.subr.mxu0 0.0
    %5124 = vmatpush1.xpose.msra.mxu0 0.0
    %5125 = vmatprep.subr.mxu0 0.0
    %5126 = vmatpush1.xpose.msra.mxu0 0.0
    %5127 = vmatprep.subr.mxu0 0.0
    %5128 = vmatpush1.xpose.msra.mxu0 0.0
    %5129 = vmatprep.subr.mxu0 0.0
    %5130 = vmatpush1.xpose.msra.mxu0 0.0
    %5131 = vmatprep.subr.mxu0 0.0
    %5132 = vmatpush1.xpose.msra.mxu0 0.0
    %5133 = vmatprep.subr.mxu0 0.0
    %5134 = vmatpush1.xpose.msra.mxu0 0.0
    %5135 = vmatprep.subr.mxu0 0.0
    %5136 = vmatpush1.xpose.msra.mxu0 0.0
    %5137 = vmatprep.subr.mxu0 0.0
    %5138 = vmatpush1.xpose.msra.mxu0 0.0
    %5139 = vmatprep.subr.mxu0 0.0
    %5140 = vmatpush1.xpose.msra.mxu0 0.0
    %5141 = vmatprep.subr.mxu0 0.0
    %5142 = vmatpush1.xpose.msra.mxu0 0.0
    %5143 = vmatprep.subr.mxu0 0.0
    %5144 = vmatpush1.xpose.msra.mxu0 0.0
    %5145 = vmatprep.subr.mxu0 0.0
    %5146 = vmatpush1.xpose.msra.mxu0 0.0
    %5147 = vmatprep.subr.mxu0 0.0
    %5148 = vmatpush1.xpose.msra.mxu0 0.0
    %5149 = vmatprep.mubr.f32.mxu0 0.0
    %5150 = vmatmul.mubr.f32.gmra.mrb[0].mxu0 %v5081
    %v5151 = vpop.f32.mrb[0].mxu0
    %v5152 = vadd.f32 0.0, %v5151
    %v5153 = vpop.f32.mrb[0].mxu0
    %5154 = vdwg.mxu0
    %v5155 = vmul.f32 %v5074, 0.35355338
    %v5156 = vmul.f32 %v5152, 0.35355338
    %v5157 = vsel %vm130, %v5155, -inf
    %5158 = vmax.xlane.f32.xlu0 %v5157
    %v5159 = vpop.xlane.xlu0 %5158
    %v5160 = vsel %vm130, %v5156, -inf
    %5161 = vmax.xlane.f32.xlu0 %v5160
    %v5162 = vpop.xlane.xlu0 %5161
    %v5163 = vsub.f32 %v5155, %v5159
    %v5164 = vsub.f32 %v5156, %v5162
    %v5165 = vmul.f32 %v5163, 1.442695
    %v5166 = vpow.pop %v5165
    %v5167 = vmul.f32 %v5164, 1.442695
    %v5168 = vpow.pop %v5167
    %v5169 = vsel %vm130, %v5166, 0.0
    %5170 = vadd.xlane.f32.xlu0 %v5169
    %v5171 = vpop.xlane.xlu0 %5170
    %v5172 = vsel %vm130, %v5168, 0.0
    %5173 = vadd.xlane.f32.xlu0 %v5172
    %v5174 = vpop.xlane.xlu0 %5173
    %v5175 = vrcp.pop %v5171
    %v5176 = vrcp.pop %v5174
    %v5177 = vmul.f32 %v5166, %v5175
    %v5178 = vmul.f32 %v5168, %v5176
    %5179 = vrot.lane.b32.xlu0 %v3848, 40
    %v5180 = vpop.permute.xlu0 %5179
    %v5183 = vsel %vm130, %v5177, 0
    %5185 = vmatprep.subr.mxu0 0.0
    %5186 = vmatpush1.msra.mxu0 %v5180
    %5187 = vmatprep.subr.mxu0 0.0
    %5188 = vmatpush1.msra.mxu0 0.0
    %5189 = vmatprep.subr.mxu0 0.0
    %5190 = vmatpush1.msra.mxu0 0.0
    %5191 = vmatprep.subr.mxu0 0.0
    %5192 = vmatpush1.msra.mxu0 0.0
    %5193 = vmatprep.subr.mxu0 0.0
    %5194 = vmatpush1.msra.mxu0 0.0
    %5195 = vmatprep.subr.mxu0 0.0
    %5196 = vmatpush1.msra.mxu0 0.0
    %5197 = vmatprep.subr.mxu0 0.0
    %5198 = vmatpush1.msra.mxu0 0.0
    %5199 = vmatprep.subr.mxu0 0.0
    %5200 = vmatpush1.msra.mxu0 0.0
    %5201 = vmatprep.subr.mxu0 0.0
    %5202 = vmatpush1.msra.mxu0 0.0
    %5203 = vmatprep.subr.mxu0 0.0
    %5204 = vmatpush1.msra.mxu0 0.0
    %5205 = vmatprep.subr.mxu0 0.0
    %5206 = vmatpush1.msra.mxu0 0.0
    %5207 = vmatprep.subr.mxu0 0.0
    %5208 = vmatpush1.msra.mxu0 0.0
    %5209 = vmatprep.subr.mxu0 0.0
    %5210 = vmatpush1.msra.mxu0 0.0
    %5211 = vmatprep.subr.mxu0 0.0
    %5212 = vmatpush1.msra.mxu0 0.0
    %5213 = vmatprep.subr.mxu0 0.0
    %5214 = vmatpush1.msra.mxu0 0.0
    %5215 = vmatprep.subr.mxu0 0.0
    %5216 = vmatpush1.msra.mxu0 0.0
    %5217 = vmatprep.subr.mxu0 0.0
    %5218 = vmatpush1.msra.mxu0 0.0
    %5219 = vmatprep.subr.mxu0 0.0
    %5220 = vmatpush1.msra.mxu0 0.0
    %5221 = vmatprep.subr.mxu0 0.0
    %5222 = vmatpush1.msra.mxu0 0.0
    %5223 = vmatprep.subr.mxu0 0.0
    %5224 = vmatpush1.msra.mxu0 0.0
    %5225 = vmatprep.subr.mxu0 0.0
    %5226 = vmatpush1.msra.mxu0 0.0
    %5227 = vmatprep.subr.mxu0 0.0
    %5228 = vmatpush1.msra.mxu0 0.0
    %5229 = vmatprep.subr.mxu0 0.0
    %5230 = vmatpush1.msra.mxu0 0.0
    %5231 = vmatprep.subr.mxu0 0.0
    %5232 = vmatpush1.msra.mxu0 0.0
    %5233 = vmatprep.subr.mxu0 0.0
    %5234 = vmatpush1.msra.mxu0 0.0
    %5235 = vmatprep.subr.mxu0 0.0
    %5236 = vmatpush1.msra.mxu0 0.0
    %5237 = vmatprep.subr.mxu0 0.0
    %5238 = vmatpush1.msra.mxu0 0.0
    %5239 = vmatprep.subr.mxu0 0.0
    %5240 = vmatpush1.msra.mxu0 0.0
    %5241 = vmatprep.subr.mxu0 0.0
    %5242 = vmatpush1.msra.mxu0 0.0
    %5243 = vmatprep.subr.mxu0 0.0
    %5244 = vmatpush1.msra.mxu0 0.0
    %5245 = vmatprep.subr.mxu0 0.0
    %5246 = vmatpush1.msra.mxu0 0.0
    %5247 = vmatprep.subr.mxu0 0.0
    %5248 = vmatpush1.msra.mxu0 0.0
    %5249 = vmatprep.mubr.f32.mxu0 0.0
    %5250 = vmatmul.mubr.f32.gmra.mrb[0].mxu0 %v5183
    %v5251 = vpop.f32.mrb[0].mxu0
    %v5252 = vadd.f32 0.0, %v5251
    %v5253 = vpop.f32.mrb[0].mxu0
    %5254 = vdwg.mxu0
    %5255 = vrot.lane.b32.xlu0 %v3851, 40
    %v5256 = vpop.permute.xlu0 %5255
    %v5259 = vsel %vm130, %v5178, 0
    %5261 = vmatprep.subr.mxu0 0.0
    %5262 = vmatpush1.msra.mxu0 %v5256
    %5263 = vmatprep.subr.mxu0 0.0
    %5264 = vmatpush1.msra.mxu0 0.0
    %5265 = vmatprep.subr.mxu0 0.0
    %5266 = vmatpush1.msra.mxu0 0.0
    %5267 = vmatprep.subr.mxu0 0.0
    %5268 = vmatpush1.msra.mxu0 0.0
    %5269 = vmatprep.subr.mxu0 0.0
    %5270 = vmatpush1.msra.mxu0 0.0
    %5271 = vmatprep.subr.mxu0 0.0
    %5272 = vmatpush1.msra.mxu0 0.0
    %5273 = vmatprep.subr.mxu0 0.0
    %5274 = vmatpush1.msra.mxu0 0.0
    %5275 = vmatprep.subr.mxu0 0.0
    %5276 = vmatpush1.msra.mxu0 0.0
    %5277 = vmatprep.subr.mxu0 0.0
    %5278 = vmatpush1.msra.mxu0 0.0
    %5279 = vmatprep.subr.mxu0 0.0
    %5280 = vmatpush1.msra.mxu0 0.0
    %5281 = vmatprep.subr.mxu0 0.0
    %5282 = vmatpush1.msra.mxu0 0.0
    %5283 = vmatprep.subr.mxu0 0.0
    %5284 = vmatpush1.msra.mxu0 0.0
    %5285 = vmatprep.subr.mxu0 0.0
    %5286 = vmatpush1.msra.mxu0 0.0
    %5287 = vmatprep.subr.mxu0 0.0
    %5288 = vmatpush1.msra.mxu0 0.0
    %5289 = vmatprep.subr.mxu0 0.0
    %5290 = vmatpush1.msra.mxu0 0.0
    %5291 = vmatprep.subr.mxu0 0.0
    %5292 = vmatpush1.msra.mxu0 0.0
    %5293 = vmatprep.subr.mxu0 0.0
    %5294 = vmatpush1.msra.mxu0 0.0
    %5295 = vmatprep.subr.mxu0 0.0
    %5296 = vmatpush1.msra.mxu0 0.0
    %5297 = vmatprep.subr.mxu0 0.0
    %5298 = vmatpush1.msra.mxu0 0.0
    %5299 = vmatprep.subr.mxu0 0.0
    %5300 = vmatpush1.msra.mxu0 0.0
    %5301 = vmatprep.subr.mxu0 0.0
    %5302 = vmatpush1.msra.mxu0 0.0
    %5303 = vmatprep.subr.mxu0 0.0
    %5304 = vmatpush1.msra.mxu0 0.0
    %5305 = vmatprep.subr.mxu0 0.0
    %5306 = vmatpush1.msra.mxu0 0.0
    %5307 = vmatprep.subr.mxu0 0.0
    %5308 = vmatpush1.msra.mxu0 0.0
    %5309 = vmatprep.subr.mxu0 0.0
    %5310 = vmatpush1.msra.mxu0 0.0
    %5311 = vmatprep.subr.mxu0 0.0
    %5312 = vmatpush1.msra.mxu0 0.0
    %5313 = vmatprep.subr.mxu0 0.0
    %5314 = vmatpush1.msra.mxu0 0.0
    %5315 = vmatprep.subr.mxu0 0.0
    %5316 = vmatpush1.msra.mxu0 0.0
    %5317 = vmatprep.subr.mxu0 0.0
    %5318 = vmatpush1.msra.mxu0 0.0
    %5319 = vmatprep.subr.mxu0 0.0
    %5320 = vmatpush1.msra.mxu0 0.0
    %5321 = vmatprep.subr.mxu0 0.0
    %5322 = vmatpush1.msra.mxu0 0.0
    %5323 = vmatprep.subr.mxu0 0.0
    %5324 = vmatpush1.msra.mxu0 0.0
    %5325 = vmatprep.mubr.f32.mxu0 0.0
    %5326 = vmatmul.mubr.f32.gmra.mrb[0].mxu0 %v5259
    %v5327 = vpop.f32.mrb[0].mxu0
    %v5328 = vadd.f32 0.0, %v5327
    %v5329 = vpop.f32.mrb[0].mxu0
    %5330 = vdwg.mxu0
    %v5331 = vpack.c.bf16 %v5328, %v5252
    %v5333 = vsel %vm130, %v5331, 0
    %v5336 = vsel %vm795, %v3858, 0
    %5338 = vmatprep.subr.bf16.mxu0 0
    %5339 = vmatpush1.bf16.msra.mxu0 %v5336
    %5340 = vmatprep.subr.bf16.mxu0 0
    %5341 = vmatpush1.bf16.msra.mxu0 0
    %5342 = vmatprep.subr.bf16.mxu0 0
    %5343 = vmatpush1.bf16.msra.mxu0 0
    %5344 = vmatprep.subr.bf16.mxu0 0
    %5345 = vmatpush1.bf16.msra.mxu0 0
    %5346 = vmatprep.subr.bf16.mxu0 0
    %5347 = vmatpush1.bf16.msra.mxu0 0
    %5348 = vmatprep.subr.bf16.mxu0 0
    %5349 = vmatpush1.bf16.msra.mxu0 0
    %5350 = vmatprep.subr.bf16.mxu0 0
    %5351 = vmatpush1.bf16.msra.mxu0 0
    %5352 = vmatprep.subr.bf16.mxu0 0
    %5353 = vmatpush1.bf16.msra.mxu0 0
    %5354 = vmatprep.subr.bf16.mxu0 0
    %5355 = vmatpush1.bf16.msra.mxu0 0
    %5356 = vmatprep.subr.bf16.mxu0 0
    %5357 = vmatpush1.bf16.msra.mxu0 0
    %5358 = vmatprep.subr.bf16.mxu0 0
    %5359 = vmatpush1.bf16.msra.mxu0 0
    %5360 = vmatprep.subr.bf16.mxu0 0
    %5361 = vmatpush1.bf16.msra.mxu0 0
    %5362 = vmatprep.subr.bf16.mxu0 0
    %5363 = vmatpush1.bf16.msra.mxu0 0
    %5364 = vmatprep.subr.bf16.mxu0 0
    %5365 = vmatpush1.bf16.msra.mxu0 0
    %5366 = vmatprep.subr.bf16.mxu0 0
    %5367 = vmatpush1.bf16.msra.mxu0 0
    %5368 = vmatprep.subr.bf16.mxu0 0
    %5369 = vmatpush1.bf16.msra.mxu0 0
    %5370 = vmatprep.mubr.bf16.mxu0 0
    %5371 = vmatmul.mubr.bf16.gmra.mrb[0].mxu0 %v5333
    %v5372 = vpop.f32.mrb[0].mxu0
    %v5373 = vadd.f32 0.0, %v5372
    %v5374 = vpop.f32.mrb[0].mxu0
    %v5375 = vpop.f32.mrb[0].mxu0
    %v5376 = vadd.f32 0.0, %v5375
    %v5377 = vpop.f32.mrb[0].mxu0
    %5378 = vdwg.mxu0
    %v5379 = vadd.f32 %v4997, %v5373
    %v5380 = vadd.f32 %v4998, %v5376
    %s5381 = scalar_lea.vmem %s4, 1
    %v5382 = vld [vmem:[%s5381] sm:$0x1]
    %v5384 = vlaneseq
    %v5385 = vshrl.u32 %v5384, 7
    %v5386 = vsub.s32 0, %v5385
    %v5387 = vrot.slane %v5382, %v5386
    %v5389 = vadd.f32 %v5379, %v5387
    %v5390 = vadd.f32 %v5380, %v5387
    %v5391 = vadd.f32 %v3782, %v5389
    %v5392 = vadd.f32 %v3783, %v5390
    %s5393 = scalar_lea.vmem %s5, 1
    %v5394 = vld [vmem:[%s5393] sm:$0x1]
    %s5395 = scalar_lea.vmem %s6, 1
    %v5396 = vld [vmem:[%s5395] sm:$0x1]
    %v5397 = vsel %vm78, %v5391, 0.0
    %5398 = vadd.xlane.f32.xlu0 %v5397
    %v5399 = vpop.xlane.xlu0 %5398
    %v5400 = vsel %vm78, %v5392, 0.0
    %5401 = vadd.xlane.f32.xlu0 %v5400
    %v5402 = vpop.xlane.xlu0 %5401
    %v5403 = vmul.f32 %v5399, %v1670
    %v5404 = vmul.f32 %v5402, %v1670
    %v5405 = vsub.f32 %v5391, %v5403
    %v5406 = vsub.f32 %v5392, %v5404
    %v5407 = vmul.f32 %v5405, %v5405
    %v5408 = vmul.f32 %v5406, %v5406
    %v5409 = vsel %vm78, %v5407, 0.0
    %5410 = vadd.xlane.f32.xlu0 %v5409
    %v5411 = vpop.xlane.xlu0 %5410
    %v5412 = vsel %vm78, %v5408, 0.0
    %5413 = vadd.xlane.f32.xlu0 %v5412
    %v5414 = vpop.xlane.xlu0 %5413
    %v5415 = vmul.f32 %v5411, %v1670
    %v5416 = vmul.f32 %v5414, %v1670
    %v5417 = vadd.f32 %v5415, 1e-05
    %v5418 = vadd.f32 %v5416, 1e-05
    %v5419 = vrsqrt.pop %v5417
    %v5420 = vrsqrt.pop %v5418
    %v5421 = vmul.f32 %v5405, %v5419
    %v5422 = vmul.f32 %v5406, %v5420
    %v5424 = vlaneseq
    %v5425 = vshrl.u32 %v5424, 7
    %v5426 = vsub.s32 0, %v5425
    %v5427 = vrot.slane %v5394, %v5426
    %v5429 = vmul.f32 %v5421, %v5427
    %v5430 = vmul.f32 %v5422, %v5427
    %v5432 = vlaneseq
    %v5433 = vshrl.u32 %v5432, 7
    %v5434 = vsub.s32 0, %v5433
    %v5435 = vrot.slane %v5396, %v5434
    %v5437 = vadd.f32 %v5429, %v5435
    %v5438 = vadd.f32 %v5430, %v5435
    %v5439 = vpack.c.bf16 %v5438, %v5437
    %s5440 = scalar_lea.vmem %s7, 256
    %v5441 = vld [vmem:[%s5440] sm:$0xff]
    %v5442 = vld [vmem:[%s5440 + $0x8] sm:$0xff]
    %v5443 = vld [vmem:[%s5440 + $0x10] sm:$0xff]
    %v5444 = vld [vmem:[%s5440 + $0x18] sm:$0xff]
    %v5445 = vld [vmem:[%s5440 + $0x20] sm:$0xff]
    %v5446 = vld [vmem:[%s5440 + $0x28] sm:$0xff]
    %v5447 = vld [vmem:[%s5440 + $0x30] sm:$0xff]
    %v5448 = vld [vmem:[%s5440 + $0x38] sm:$0xff]
    %v5449 = vld [vmem:[%s5440 + $0x40] sm:$0xff]
    %v5450 = vld [vmem:[%s5440 + $0x48] sm:$0xff]
    %v5451 = vld [vmem:[%s5440 + $0x50] sm:$0xff]
    %v5452 = vld [vmem:[%s5440 + $0x58] sm:$0xff]
    %v5453 = vld [vmem:[%s5440 + $0x60] sm:$0xff]
    %v5454 = vld [vmem:[%s5440 + $0x68] sm:$0xff]
    %v5455 = vld [vmem:[%s5440 + $0x70] sm:$0xff]
    %v5456 = vld [vmem:[%s5440 + $0x78] sm:$0xff]
    %v5457 = vld [vmem:[%s5440 + $0x80] sm:$0xff]
    %v5458 = vld [vmem:[%s5440 + $0x88] sm:$0xff]
    %v5459 = vld [vmem:[%s5440 + $0x90] sm:$0xff]
    %v5460 = vld [vmem:[%s5440 + $0x98] sm:$0xff]
    %v5461 = vld [vmem:[%s5440 + $0xa0] sm:$0xff]
    %v5462 = vld [vmem:[%s5440 + $0xa8] sm:$0xff]
    %v5463 = vld [vmem:[%s5440 + $0xb0] sm:$0xff]
    %v5464 = vld [vmem:[%s5440 + $0xb8] sm:$0xff]
    %v5465 = vld [vmem:[%s5440 + $0xc0] sm:$0xff]
    %v5466 = vld [vmem:[%s5440 + $0xc8] sm:$0xff]
    %v5467 = vld [vmem:[%s5440 + $0xd0] sm:$0xff]
    %v5468 = vld [vmem:[%s5440 + $0xd8] sm:$0xff]
    %v5469 = vld [vmem:[%s5440 + $0xe0] sm:$0xff]
    %v5470 = vld [vmem:[%s5440 + $0xe8] sm:$0xff]
    %v5471 = vld [vmem:[%s5440 + $0xf0] sm:$0xff]
    %v5472 = vld [vmem:[%s5440 + $0xf8] sm:$0xff]
    %s5473 = scalar_lea.vmem %s8, 16
    %v5474 = vld [vmem:[%s5473] sm:$0xff]
    %v5475 = vld [vmem:[%s5473 + $0x8] sm:$0xff]
    %v5478 = vlaneseq
    %v5479 = vshrl.u32 %v5478, 7
    %v5480 = vsub.s32 0, %v5479
    %v5481 = vrot.slane %v5474, %v5480
    %v5482 = vlaneseq
    %v5483 = vshrl.u32 %v5482, 7
    %v5484 = vsub.s32 1, %v5483
    %v5485 = vrot.slane %v5474, %v5484
    %v5486 = vlaneseq
    %v5487 = vshrl.u32 %v5486, 7
    %v5488 = vsub.s32 2, %v5487
    %v5489 = vrot.slane %v5474, %v5488
    %v5490 = vlaneseq
    %v5491 = vshrl.u32 %v5490, 7
    %v5492 = vsub.s32 3, %v5491
    %v5493 = vrot.slane %v5474, %v5492
    %v5494 = vlaneseq
    %v5495 = vshrl.u32 %v5494, 7
    %v5496 = vsub.s32 4, %v5495
    %v5497 = vrot.slane %v5474, %v5496
    %v5498 = vlaneseq
    %v5499 = vshrl.u32 %v5498, 7
    %v5500 = vsub.s32 5, %v5499
    %v5501 = vrot.slane %v5474, %v5500
    %v5502 = vlaneseq
    %v5503 = vshrl.u32 %v5502, 7
    %v5504 = vsub.s32 6, %v5503
    %v5505 = vrot.slane %v5474, %v5504
    %v5506 = vlaneseq
    %v5507 = vshrl.u32 %v5506, 7
    %v5508 = vsub.s32 7, %v5507
    %v5509 = vrot.slane %v5474, %v5508
    %v5510 = vlaneseq
    %v5511 = vshrl.u32 %v5510, 7
    %v5512 = vsub.s32 0, %v5511
    %v5513 = vrot.slane %v5475, %v5512
    %v5514 = vlaneseq
    %v5515 = vshrl.u32 %v5514, 7
    %v5516 = vsub.s32 1, %v5515
    %v5517 = vrot.slane %v5475, %v5516
    %v5518 = vlaneseq
    %v5519 = vshrl.u32 %v5518, 7
    %v5520 = vsub.s32 2, %v5519
    %v5521 = vrot.slane %v5475, %v5520
    %v5522 = vlaneseq
    %v5523 = vshrl.u32 %v5522, 7
    %v5524 = vsub.s32 3, %v5523
    %v5525 = vrot.slane %v5475, %v5524
    %v5526 = vlaneseq
    %v5527 = vshrl.u32 %v5526, 7
    %v5528 = vsub.s32 4, %v5527
    %v5529 = vrot.slane %v5475, %v5528
    %v5530 = vlaneseq
    %v5531 = vshrl.u32 %v5530, 7
    %v5532 = vsub.s32 5, %v5531
    %v5533 = vrot.slane %v5475, %v5532
    %v5534 = vlaneseq
    %v5535 = vshrl.u32 %v5534, 7
    %v5536 = vsub.s32 6, %v5535
    %v5537 = vrot.slane %v5475, %v5536
    %v5538 = vlaneseq
    %v5539 = vshrl.u32 %v5538, 7
    %v5540 = vsub.s32 7, %v5539
    %v5541 = vrot.slane %v5475, %v5540
    %v5590 = vunpack.c.l.b16 %v5441
    %v5591 = vunpack.c.h.b16 %v5441
    %v5592 = vunpack.c.l.b16 %v5442
    %v5593 = vunpack.c.h.b16 %v5442
    %v5594 = vunpack.c.l.b16 %v5443
    %v5595 = vunpack.c.h.b16 %v5443
    %v5596 = vunpack.c.l.b16 %v5444
    %v5597 = vunpack.c.h.b16 %v5444
    %v5598 = vunpack.c.l.b16 %v5445
    %v5599 = vunpack.c.h.b16 %v5445
    %v5600 = vunpack.c.l.b16 %v5446
    %v5601 = vunpack.c.h.b16 %v5446
    %v5602 = vunpack.c.l.b16 %v5447
    %v5603 = vunpack.c.h.b16 %v5447
    %v5604 = vunpack.c.l.b16 %v5448
    %v5605 = vunpack.c.h.b16 %v5448
    %v5606 = vunpack.c.l.b16 %v5449
    %v5607 = vunpack.c.h.b16 %v5449
    %v5608 = vunpack.c.l.b16 %v5450
    %v5609 = vunpack.c.h.b16 %v5450
    %v5610 = vunpack.c.l.b16 %v5451
    %v5611 = vunpack.c.h.b16 %v5451
    %v5612 = vunpack.c.l.b16 %v5452
    %v5613 = vunpack.c.h.b16 %v5452
    %v5614 = vunpack.c.l.b16 %v5453
    %v5615 = vunpack.c.h.b16 %v5453
    %v5616 = vunpack.c.l.b16 %v5454
    %v5617 = vunpack.c.h.b16 %v5454
    %v5618 = vunpack.c.l.b16 %v5455
    %v5619 = vunpack.c.h.b16 %v5455
    %v5620 = vunpack.c.l.b16 %v5456
    %v5621 = vunpack.c.h.b16 %v5456
    %v5622 = vunpack.c.l.b16 %v5457
    %v5623 = vunpack.c.h.b16 %v5457
    %v5624 = vunpack.c.l.b16 %v5458
    %v5625 = vunpack.c.h.b16 %v5458
    %v5626 = vunpack.c.l.b16 %v5459
    %v5627 = vunpack.c.h.b16 %v5459
    %v5628 = vunpack.c.l.b16 %v5460
    %v5629 = vunpack.c.h.b16 %v5460
    %v5630 = vunpack.c.l.b16 %v5461
    %v5631 = vunpack.c.h.b16 %v5461
    %v5632 = vunpack.c.l.b16 %v5462
    %v5633 = vunpack.c.h.b16 %v5462
    %v5634 = vunpack.c.l.b16 %v5463
    %v5635 = vunpack.c.h.b16 %v5463
    %v5636 = vunpack.c.l.b16 %v5464
    %v5637 = vunpack.c.h.b16 %v5464
    %v5638 = vunpack.c.l.b16 %v5465
    %v5639 = vunpack.c.h.b16 %v5465
    %v5640 = vunpack.c.l.b16 %v5466
    %v5641 = vunpack.c.h.b16 %v5466
    %v5642 = vunpack.c.l.b16 %v5467
    %v5643 = vunpack.c.h.b16 %v5467
    %v5644 = vunpack.c.l.b16 %v5468
    %v5645 = vunpack.c.h.b16 %v5468
    %v5646 = vunpack.c.l.b16 %v5469
    %v5647 = vunpack.c.h.b16 %v5469
    %v5648 = vunpack.c.l.b16 %v5470
    %v5649 = vunpack.c.h.b16 %v5470
    %v5650 = vunpack.c.l.b16 %v5471
    %v5651 = vunpack.c.h.b16 %v5471
    %v5652 = vunpack.c.l.b16 %v5472
    %v5653 = vunpack.c.h.b16 %v5472
    %v5654 = vpack.c.b16 %v5606, %v5590
    %v5655 = vpack.c.b16 %v5607, %v5591
    %v5656 = vpack.c.b16 %v5608, %v5592
    %v5657 = vpack.c.b16 %v5609, %v5593
    %v5658 = vpack.c.b16 %v5610, %v5594
    %v5659 = vpack.c.b16 %v5611, %v5595
    %v5660 = vpack.c.b16 %v5612, %v5596
    %v5661 = vpack.c.b16 %v5613, %v5597
    %v5662 = vpack.c.b16 %v5614, %v5598
    %v5663 = vpack.c.b16 %v5615, %v5599
    %v5664 = vpack.c.b16 %v5616, %v5600
    %v5665 = vpack.c.b16 %v5617, %v5601
    %v5666 = vpack.c.b16 %v5618, %v5602
    %v5667 = vpack.c.b16 %v5619, %v5603
    %v5668 = vpack.c.b16 %v5620, %v5604
    %v5669 = vpack.c.b16 %v5621, %v5605
    %v5670 = vpack.c.b16 %v5638, %v5622
    %v5671 = vpack.c.b16 %v5639, %v5623
    %v5672 = vpack.c.b16 %v5640, %v5624
    %v5673 = vpack.c.b16 %v5641, %v5625
    %v5674 = vpack.c.b16 %v5642, %v5626
    %v5675 = vpack.c.b16 %v5643, %v5627
    %v5676 = vpack.c.b16 %v5644, %v5628
    %v5677 = vpack.c.b16 %v5645, %v5629
    %v5678 = vpack.c.b16 %v5646, %v5630
    %v5679 = vpack.c.b16 %v5647, %v5631
    %v5680 = vpack.c.b16 %v5648, %v5632
    %v5681 = vpack.c.b16 %v5649, %v5633
    %v5682 = vpack.c.b16 %v5650, %v5634
    %v5683 = vpack.c.b16 %v5651, %v5635
    %v5684 = vpack.c.b16 %v5652, %v5636
    %v5685 = vpack.c.b16 %v5653, %v5637
    %v5719 = vsel %vm78, %v5439, 0
    %5721 = vmatprep.subr.bf16.mxu0 %v5655
    %5722 = vmatpush1.bf16.msra.mxu0 %v5654
    %5723 = vmatprep.subr.bf16.mxu0 %v5671
    %5724 = vmatpush1.bf16.msra.mxu0 %v5670
    %5725 = vmatprep.subr.bf16.mxu0 0
    %5726 = vmatpush1.bf16.msra.mxu0 0
    %5727 = vmatprep.subr.bf16.mxu0 0
    %5728 = vmatpush1.bf16.msra.mxu0 0
    %5729 = vmatprep.subr.bf16.mxu0 0
    %5730 = vmatpush1.bf16.msra.mxu0 0
    %5731 = vmatprep.subr.bf16.mxu0 0
    %5732 = vmatpush1.bf16.msra.mxu0 0
    %5733 = vmatprep.subr.bf16.mxu0 0
    %5734 = vmatpush1.bf16.msra.mxu0 0
    %5735 = vmatprep.subr.bf16.mxu0 0
    %5736 = vmatpush1.bf16.msra.mxu0 0
    %5737 = vmatprep.subr.bf16.mxu0 0
    %5738 = vmatpush1.bf16.msra.mxu0 0
    %5739 = vmatprep.subr.bf16.mxu0 0
    %5740 = vmatpush1.bf16.msra.mxu0 0
    %5741 = vmatprep.subr.bf16.mxu0 0
    %5742 = vmatpush1.bf16.msra.mxu0 0
    %5743 = vmatprep.subr.bf16.mxu0 0
    %5744 = vmatpush1.bf16.msra.mxu0 0
    %5745 = vmatprep.subr.bf16.mxu0 0
    %5746 = vmatpush1.bf16.msra.mxu0 0
    %5747 = vmatprep.subr.bf16.mxu0 0
    %5748 = vmatpush1.bf16.msra.mxu0 0
    %5749 = vmatprep.subr.bf16.mxu0 0
    %5750 = vmatpush1.bf16.msra.mxu0 0
    %5751 = vmatprep.subr.bf16.mxu0 0
    %5752 = vmatpush1.bf16.msra.mxu0 0
    %5753 = vmatprep.mubr.bf16.mxu0 0
    %5754 = vmatmul.mubr.bf16.gmra.mrb[0].mxu0 %v5719
    %v5755 = vpop.f32.mrb[0].mxu0
    %v5756 = vadd.f32 %v5481, %v5755
    %v5757 = vpop.f32.mrb[0].mxu0
    %v5758 = vadd.f32 %v5485, %v5757
    %v5759 = vpop.f32.mrb[0].mxu0
    %v5760 = vadd.f32 %v5481, %v5759
    %v5761 = vpop.f32.mrb[0].mxu0
    %v5762 = vadd.f32 %v5485, %v5761
    %5763 = vdwg.mxu0
    %5764 = vmatprep.subr.bf16.mxu0 %v5657
    %5765 = vmatpush1.bf16.msra.mxu0 %v5656
    %5766 = vmatprep.subr.bf16.mxu0 %v5673
    %5767 = vmatpush1.bf16.msra.mxu0 %v5672
    %5768 = vmatprep.subr.bf16.mxu0 0
    %5769 = vmatpush1.bf16.msra.mxu0 0
    %5770 = vmatprep.subr.bf16.mxu0 0
    %5771 = vmatpush1.bf16.msra.mxu0 0
    %5772 = vmatprep.subr.bf16.mxu0 0
    %5773 = vmatpush1.bf16.msra.mxu0 0
    %5774 = vmatprep.subr.bf16.mxu0 0
    %5775 = vmatpush1.bf16.msra.mxu0 0
    %5776 = vmatprep.subr.bf16.mxu0 0
    %5777 = vmatpush1.bf16.msra.mxu0 0
    %5778 = vmatprep.subr.bf16.mxu0 0
    %5779 = vmatpush1.bf16.msra.mxu0 0
    %5780 = vmatprep.subr.bf16.mxu0 0
    %5781 = vmatpush1.bf16.msra.mxu0 0
    %5782 = vmatprep.subr.bf16.mxu0 0
    %5783 = vmatpush1.bf16.msra.mxu0 0
    %5784 = vmatprep.subr.bf16.mxu0 0
    %5785 = vmatpush1.bf16.msra.mxu0 0
    %5786 = vmatprep.subr.bf16.mxu0 0
    %5787 = vmatpush1.bf16.msra.mxu0 0
    %5788 = vmatprep.subr.bf16.mxu0 0
    %5789 = vmatpush1.bf16.msra.mxu0 0
    %5790 = vmatprep.subr.bf16.mxu0 0
    %5791 = vmatpush1.bf16.msra.mxu0 0
    %5792 = vmatprep.subr.bf16.mxu0 0
    %5793 = vmatpush1.bf16.msra.mxu0 0
    %5794 = vmatprep.subr.bf16.mxu0 0
    %5795 = vmatpush1.bf16.msra.mxu0 0
    %5796 = vmatprep.mubr.bf16.mxu0 0
    %5797 = vmatmul.mubr.bf16.gmra.mrb[0].mxu0 %v5719
    %v5798 = vpop.f32.mrb[0].mxu0
    %v5799 = vadd.f32 %v5489, %v5798
    %v5800 = vpop.f32.mrb[0].mxu0
    %v5801 = vadd.f32 %v5493, %v5800
    %v5802 = vpop.f32.mrb[0].mxu0
    %v5803 = vadd.f32 %v5489, %v5802
    %v5804 = vpop.f32.mrb[0].mxu0
    %v5805 = vadd.f32 %v5493, %v5804
    %5806 = vdwg.mxu0
    %5807 = vmatprep.subr.bf16.mxu0 %v5659
    %5808 = vmatpush1.bf16.msra.mxu0 %v5658
    %5809 = vmatprep.subr.bf16.mxu0 %v5675
    %5810 = vmatpush1.bf16.msra.mxu0 %v5674
    %5811 = vmatprep.subr.bf16.mxu0 0
    %5812 = vmatpush1.bf16.msra.mxu0 0
    %5813 = vmatprep.subr.bf16.mxu0 0
    %5814 = vmatpush1.bf16.msra.mxu0 0
    %5815 = vmatprep.subr.bf16.mxu0 0
    %5816 = vmatpush1.bf16.msra.mxu0 0
    %5817 = vmatprep.subr.bf16.mxu0 0
    %5818 = vmatpush1.bf16.msra.mxu0 0
    %5819 = vmatprep.subr.bf16.mxu0 0
    %5820 = vmatpush1.bf16.msra.mxu0 0
    %5821 = vmatprep.subr.bf16.mxu0 0
    %5822 = vmatpush1.bf16.msra.mxu0 0
    %5823 = vmatprep.subr.bf16.mxu0 0
    %5824 = vmatpush1.bf16.msra.mxu0 0
    %5825 = vmatprep.subr.bf16.mxu0 0
    %5826 = vmatpush1.bf16.msra.mxu0 0
    %5827 = vmatprep.subr.bf16.mxu0 0
    %5828 = vmatpush1.bf16.msra.mxu0 0
    %5829 = vmatprep.subr.bf16.mxu0 0
    %5830 = vmatpush1.bf16.msra.mxu0 0
    %5831 = vmatprep.subr.bf16.mxu0 0
    %5832 = vmatpush1.bf16.msra.mxu0 0
    %5833 = vmatprep.subr.bf16.mxu0 0
    %5834 = vmatpush1.bf16.msra.mxu0 0
    %5835 = vmatprep.subr.bf16.mxu0 0
    %5836 = vmatpush1.bf16.msra.mxu0 0
    %5837 = vmatprep.subr.bf16.mxu0 0
    %5838 = vmatpush1.bf16.msra.mxu0 0
    %5839 = vmatprep.mubr.bf16.mxu0 0
    %5840 = vmatmul.mubr.bf16.gmra.mrb[0].mxu0 %v5719
    %v5841 = vpop.f32.mrb[0].mxu0
    %v5842 = vadd.f32 %v5497, %v5841
    %v5843 = vpop.f32.mrb[0].mxu0
    %v5844 = vadd.f32 %v5501, %v5843
    %v5845 = vpop.f32.mrb[0].mxu0
    %v5846 = vadd.f32 %v5497, %v5845
    %v5847 = vpop.f32.mrb[0].mxu0
    %v5848 = vadd.f32 %v5501, %v5847
    %5849 = vdwg.mxu0
    %5850 = vmatprep.subr.bf16.mxu0 %v5661
    %5851 = vmatpush1.bf16.msra.mxu0 %v5660
    %5852 = vmatprep.subr.bf16.mxu0 %v5677
    %5853 = vmatpush1.bf16.msra.mxu0 %v5676
    %5854 = vmatprep.subr.bf16.mxu0 0
    %5855 = vmatpush1.bf16.msra.mxu0 0
    %5856 = vmatprep.subr.bf16.mxu0 0
    %5857 = vmatpush1.bf16.msra.mxu0 0
    %5858 = vmatprep.subr.bf16.mxu0 0
    %5859 = vmatpush1.bf16.msra.mxu0 0
    %5860 = vmatprep.subr.bf16.mxu0 0
    %5861 = vmatpush1.bf16.msra.mxu0 0
    %5862 = vmatprep.subr.bf16.mxu0 0
    %5863 = vmatpush1.bf16.msra.mxu0 0
    %5864 = vmatprep.subr.bf16.mxu0 0
    %5865 = vmatpush1.bf16.msra.mxu0 0
    %5866 = vmatprep.subr.bf16.mxu0 0
    %5867 = vmatpush1.bf16.msra.mxu0 0
    %5868 = vmatprep.subr.bf16.mxu0 0
    %5869 = vmatpush1.bf16.msra.mxu0 0
    %5870 = vmatprep.subr.bf16.mxu0 0
    %5871 = vmatpush1.bf16.msra.mxu0 0
    %5872 = vmatprep.subr.bf16.mxu0 0
    %5873 = vmatpush1.bf16.msra.mxu0 0
    %5874 = vmatprep.subr.bf16.mxu0 0
    %5875 = vmatpush1.bf16.msra.mxu0 0
    %5876 = vmatprep.subr.bf16.mxu0 0
    %5877 = vmatpush1.bf16.msra.mxu0 0
    %5878 = vmatprep.subr.bf16.mxu0 0
    %5879 = vmatpush1.bf16.msra.mxu0 0
    %5880 = vmatprep.subr.bf16.mxu0 0
    %5881 = vmatpush1.bf16.msra.mxu0 0
    %5882 = vmatprep.mubr.bf16.mxu0 0
    %5883 = vmatmul.mubr.bf16.gmra.mrb[0].mxu0 %v5719
    %v5884 = vpop.f32.mrb[0].mxu0
    %v5885 = vadd.f32 %v5505, %v5884
    %v5886 = vpop.f32.mrb[0].mxu0
    %v5887 = vadd.f32 %v5509, %v5886
    %v5888 = vpop.f32.mrb[0].mxu0
    %v5889 = vadd.f32 %v5505, %v5888
    %v5890 = vpop.f32.mrb[0].mxu0
    %v5891 = vadd.f32 %v5509, %v5890
    %5892 = vdwg.mxu0
    %5893 = vmatprep.subr.bf16.mxu0 %v5663
    %5894 = vmatpush1.bf16.msra.mxu0 %v5662
    %5895 = vmatprep.subr.bf16.mxu0 %v5679
    %5896 = vmatpush1.bf16.msra.mxu0 %v5678
    %5897 = vmatprep.subr.bf16.mxu0 0
    %5898 = vmatpush1.bf16.msra.mxu0 0
    %5899 = vmatprep.subr.bf16.mxu0 0
    %5900 = vmatpush1.bf16.msra.mxu0 0
    %5901 = vmatprep.subr.bf16.mxu0 0
    %5902 = vmatpush1.bf16.msra.mxu0 0
    %5903 = vmatprep.subr.bf16.mxu0 0
    %5904 = vmatpush1.bf16.msra.mxu0 0
    %5905 = vmatprep.subr.bf16.mxu0 0
    %5906 = vmatpush1.bf16.msra.mxu0 0
    %5907 = vmatprep.subr.bf16.mxu0 0
    %5908 = vmatpush1.bf16.msra.mxu0 0
    %5909 = vmatprep.subr.bf16.mxu0 0
    %5910 = vmatpush1.bf16.msra.mxu0 0
    %5911 = vmatprep.subr.bf16.mxu0 0
    %5912 = vmatpush1.bf16.msra.mxu0 0
    %5913 = vmatprep.subr.bf16.mxu0 0
    %5914 = vmatpush1.bf16.msra.mxu0 0
    %5915 = vmatprep.subr.bf16.mxu0 0
    %5916 = vmatpush1.bf16.msra.mxu0 0
    %5917 = vmatprep.subr.bf16.mxu0 0
    %5918 = vmatpush1.bf16.msra.mxu0 0
    %5919 = vmatprep.subr.bf16.mxu0 0
    %5920 = vmatpush1.bf16.msra.mxu0 0
    %5921 = vmatprep.subr.bf16.mxu0 0
    %5922 = vmatpush1.bf16.msra.mxu0 0
    %5923 = vmatprep.subr.bf16.mxu0 0
    %5924 = vmatpush1.bf16.msra.mxu0 0
    %5925 = vmatprep.mubr.bf16.mxu0 0
    %5926 = vmatmul.mubr.bf16.gmra.mrb[0].mxu0 %v5719
    %v5927 = vpop.f32.mrb[0].mxu0
    %v5928 = vadd.f32 %v5513, %v5927
    %v5929 = vpop.f32.mrb[0].mxu0
    %v5930 = vadd.f32 %v5517, %v5929
    %v5931 = vpop.f32.mrb[0].mxu0
    %v5932 = vadd.f32 %v5513, %v5931
    %v5933 = vpop.f32.mrb[0].mxu0
    %v5934 = vadd.f32 %v5517, %v5933
    %5935 = vdwg.mxu0
    %5936 = vmatprep.subr.bf16.mxu0 %v5665
    %5937 = vmatpush1.bf16.msra.mxu0 %v5664
    %5938 = vmatprep.subr.bf16.mxu0 %v5681
    %5939 = vmatpush1.bf16.msra.mxu0 %v5680
    %5940 = vmatprep.subr.bf16.mxu0 0
    %5941 = vmatpush1.bf16.msra.mxu0 0
    %5942 = vmatprep.subr.bf16.mxu0 0
    %5943 = vmatpush1.bf16.msra.mxu0 0
    %5944 = vmatprep.subr.bf16.mxu0 0
    %5945 = vmatpush1.bf16.msra.mxu0 0
    %5946 = vmatprep.subr.bf16.mxu0 0
    %5947 = vmatpush1.bf16.msra.mxu0 0
    %5948 = vmatprep.subr.bf16.mxu0 0
    %5949 = vmatpush1.bf16.msra.mxu0 0
    %5950 = vmatprep.subr.bf16.mxu0 0
    %5951 = vmatpush1.bf16.msra.mxu0 0
    %5952 = vmatprep.subr.bf16.mxu0 0
    %5953 = vmatpush1.bf16.msra.mxu0 0
    %5954 = vmatprep.subr.bf16.mxu0 0
    %5955 = vmatpush1.bf16.msra.mxu0 0
    %5956 = vmatprep.subr.bf16.mxu0 0
    %5957 = vmatpush1.bf16.msra.mxu0 0
    %5958 = vmatprep.subr.bf16.mxu0 0
    %5959 = vmatpush1.bf16.msra.mxu0 0
    %5960 = vmatprep.subr.bf16.mxu0 0
    %5961 = vmatpush1.bf16.msra.mxu0 0
    %5962 = vmatprep.subr.bf16.mxu0 0
    %5963 = vmatpush1.bf16.msra.mxu0 0
    %5964 = vmatprep.subr.bf16.mxu0 0
    %5965 = vmatpush1.bf16.msra.mxu0 0
    %5966 = vmatprep.subr.bf16.mxu0 0
    %5967 = vmatpush1.bf16.msra.mxu0 0
    %5968 = vmatprep.mubr.bf16.mxu0 0
    %5969 = vmatmul.mubr.bf16.gmra.mrb[0].mxu0 %v5719
    %v5970 = vpop.f32.mrb[0].mxu0
    %v5971 = vadd.f32 %v5521, %v5970
    %v5972 = vpop.f32.mrb[0].mxu0
    %v5973 = vadd.f32 %v5525, %v5972
    %v5974 = vpop.f32.mrb[0].mxu0
    %v5975 = vadd.f32 %v5521, %v5974
    %v5976 = vpop.f32.mrb[0].mxu0
    %v5977 = vadd.f32 %v5525, %v5976
    %5978 = vdwg.mxu0
    %5979 = vmatprep.subr.bf16.mxu0 %v5667
    %5980 = vmatpush1.bf16.msra.mxu0 %v5666
    %5981 = vmatprep.subr.bf16.mxu0 %v5683
    %5982 = vmatpush1.bf16.msra.mxu0 %v5682
    %5983 = vmatprep.subr.bf16.mxu0 0
    %5984 = vmatpush1.bf16.msra.mxu0 0
    %5985 = vmatprep.subr.bf16.mxu0 0
    %5986 = vmatpush1.bf16.msra.mxu0 0
    %5987 = vmatprep.subr.bf16.mxu0 0
    %5988 = vmatpush1.bf16.msra.mxu0 0
    %5989 = vmatprep.subr.bf16.mxu0 0
    %5990 = vmatpush1.bf16.msra.mxu0 0
    %5991 = vmatprep.subr.bf16.mxu0 0
    %5992 = vmatpush1.bf16.msra.mxu0 0
    %5993 = vmatprep.subr.bf16.mxu0 0
    %5994 = vmatpush1.bf16.msra.mxu0 0
    %5995 = vmatprep.subr.bf16.mxu0 0
    %5996 = vmatpush1.bf16.msra.mxu0 0
    %5997 = vmatprep.subr.bf16.mxu0 0
    %5998 = vmatpush1.bf16.msra.mxu0 0
    %5999 = vmatprep.subr.bf16.mxu0 0
    %6000 = vmatpush1.bf16.msra.mxu0 0
    %6001 = vmatprep.subr.bf16.mxu0 0
    %6002 = vmatpush1.bf16.msra.mxu0 0
    %6003 = vmatprep.subr.bf16.mxu0 0
    %6004 = vmatpush1.bf16.msra.mxu0 0
    %6005 = vmatprep.subr.bf16.mxu0 0
    %6006 = vmatpush1.bf16.msra.mxu0 0
    %6007 = vmatprep.subr.bf16.mxu0 0
    %6008 = vmatpush1.bf16.msra.mxu0 0
    %6009 = vmatprep.subr.bf16.mxu0 0
    %6010 = vmatpush1.bf16.msra.mxu0 0
    %6011 = vmatprep.mubr.bf16.mxu0 0
    %6012 = vmatmul.mubr.bf16.gmra.mrb[0].mxu0 %v5719
    %v6013 = vpop.f32.mrb[0].mxu0
    %v6014 = vadd.f32 %v5529, %v6013
    %v6015 = vpop.f32.mrb[0].mxu0
    %v6016 = vadd.f32 %v5533, %v6015
    %v6017 = vpop.f32.mrb[0].mxu0
    %v6018 = vadd.f32 %v5529, %v6017
    %v6019 = vpop.f32.mrb[0].mxu0
    %v6020 = vadd.f32 %v5533, %v6019
    %6021 = vdwg.mxu0
    %6022 = vmatprep.subr.bf16.mxu0 %v5669
    %6023 = vmatpush1.bf16.msra.mxu0 %v5668
    %6024 = vmatprep.subr.bf16.mxu0 %v5685
    %6025 = vmatpush1.bf16.msra.mxu0 %v5684
    %6026 = vmatprep.subr.bf16.mxu0 0
    %6027 = vmatpush1.bf16.msra.mxu0 0
    %6028 = vmatprep.subr.bf16.mxu0 0
    %6029 = vmatpush1.bf16.msra.mxu0 0
    %6030 = vmatprep.subr.bf16.mxu0 0
    %6031 = vmatpush1.bf16.msra.mxu0 0
    %6032 = vmatprep.subr.bf16.mxu0 0
    %6033 = vmatpush1.bf16.msra.mxu0 0
    %6034 = vmatprep.subr.bf16.mxu0 0
    %6035 = vmatpush1.bf16.msra.mxu0 0
    %6036 = vmatprep.subr.bf16.mxu0 0
    %6037 = vmatpush1.bf16.msra.mxu0 0
    %6038 = vmatprep.subr.bf16.mxu0 0
    %6039 = vmatpush1.bf16.msra.mxu0 0
    %6040 = vmatprep.subr.bf16.mxu0 0
    %6041 = vmatpush1.bf16.msra.mxu0 0
    %6042 = vmatprep.subr.bf16.mxu0 0
    %6043 = vmatpush1.bf16.msra.mxu0 0
    %6044 = vmatprep.subr.bf16.mxu0 0
    %6045 = vmatpush1.bf16.msra.mxu0 0
    %6046 = vmatprep.subr.bf16.mxu0 0
    %6047 = vmatpush1.bf16.msra.mxu0 0
    %6048 = vmatprep.subr.bf16.mxu0 0
    %6049 = vmatpush1.bf16.msra.mxu0 0
    %6050 = vmatprep.subr.bf16.mxu0 0
    %6051 = vmatpush1.bf16.msra.mxu0 0
    %6052 = vmatprep.subr.bf16.mxu0 0
    %6053 = vmatpush1.bf16.msra.mxu0 0
    %6054 = vmatprep.mubr.bf16.mxu0 0
    %6055 = vmatmul.mubr.bf16.gmra.mrb[0].mxu0 %v5719
    %v6056 = vpop.f32.mrb[0].mxu0
    %v6057 = vadd.f32 %v5537, %v6056
    %v6058 = vpop.f32.mrb[0].mxu0
    %v6059 = vadd.f32 %v5541, %v6058
    %v6060 = vpop.f32.mrb[0].mxu0
    %v6061 = vadd.f32 %v5537, %v6060
    %v6062 = vpop.f32.mrb[0].mxu0
    %v6063 = vadd.f32 %v5541, %v6062
    %6064 = vdwg.mxu0
    %v6065 = vmax.f32 %v5756, 0.0
    %v6066 = vmax.f32 %v5758, 0.0
    %v6067 = vmax.f32 %v5799, 0.0
    %v6068 = vmax.f32 %v5801, 0.0
    %v6069 = vmax.f32 %v5842, 0.0
    %v6070 = vmax.f32 %v5844, 0.0
    %v6071 = vmax.f32 %v5885, 0.0
    %v6072 = vmax.f32 %v5887, 0.0
    %v6073 = vmax.f32 %v5928, 0.0
    %v6074 = vmax.f32 %v5930, 0.0
    %v6075 = vmax.f32 %v5971, 0.0
    %v6076 = vmax.f32 %v5973, 0.0
    %v6077 = vmax.f32 %v6014, 0.0
    %v6078 = vmax.f32 %v6016, 0.0
    %v6079 = vmax.f32 %v6057, 0.0
    %v6080 = vmax.f32 %v6059, 0.0
    %v6081 = vmax.f32 %v5760, 0.0
    %v6082 = vmax.f32 %v5762, 0.0
    %v6083 = vmax.f32 %v5803, 0.0
    %v6084 = vmax.f32 %v5805, 0.0
    %v6085 = vmax.f32 %v5846, 0.0
    %v6086 = vmax.f32 %v5848, 0.0
    %v6087 = vmax.f32 %v5889, 0.0
    %v6088 = vmax.f32 %v5891, 0.0
    %v6089 = vmax.f32 %v5932, 0.0
    %v6090 = vmax.f32 %v5934, 0.0
    %v6091 = vmax.f32 %v5975, 0.0
    %v6092 = vmax.f32 %v5977, 0.0
    %v6093 = vmax.f32 %v6018, 0.0
    %v6094 = vmax.f32 %v6020, 0.0
    %v6095 = vmax.f32 %v6061, 0.0
    %v6096 = vmax.f32 %v6063, 0.0
    %v6097 = vpack.c.bf16 %v6081, %v6065
    %v6098 = vpack.c.bf16 %v6082, %v6066
    %v6099 = vpack.c.bf16 %v6083, %v6067
    %v6100 = vpack.c.bf16 %v6084, %v6068
    %v6101 = vpack.c.bf16 %v6085, %v6069
    %v6102 = vpack.c.bf16 %v6086, %v6070
    %v6103 = vpack.c.bf16 %v6087, %v6071
    %v6104 = vpack.c.bf16 %v6088, %v6072
    %v6105 = vpack.c.bf16 %v6089, %v6073
    %v6106 = vpack.c.bf16 %v6090, %v6074
    %v6107 = vpack.c.bf16 %v6091, %v6075
    %v6108 = vpack.c.bf16 %v6092, %v6076
    %v6109 = vpack.c.bf16 %v6093, %v6077
    %v6110 = vpack.c.bf16 %v6094, %v6078
    %v6111 = vpack.c.bf16 %v6095, %v6079
    %v6112 = vpack.c.bf16 %v6096, %v6080
    %s6113 = scalar_lea.vmem %s9, 1024
    %v6114 = vld [vmem:[%s6113] sm:$0xf]
    %v6115 = vld [vmem:[%s6113 + $0x4] sm:$0xf]
    %v6116 = vld [vmem:[%s6113 + $0x8] sm:$0xf]
    %v6117 = vld [vmem:[%s6113 + $0xc] sm:$0xf]
    %v6118 = vld [vmem:[%s6113 + $0x10] sm:$0xf]
    %v6119 = vld [vmem:[%s6113 + $0x14] sm:$0xf]
    %v6120 = vld [vmem:[%s6113 + $0x18] sm:$0xf]
    %v6121 = vld [vmem:[%s6113 + $0x1c] sm:$0xf]
    %v6122 = vld [vmem:[%s6113 + $0x20] sm:$0xf]
    %v6123 = vld [vmem:[%s6113 + $0x24] sm:$0xf]
    %v6124 = vld [vmem:[%s6113 + $0x28] sm:$0xf]
    %v6125 = vld [vmem:[%s6113 + $0x2c] sm:$0xf]
    %v6126 = vld [vmem:[%s6113 + $0x30] sm:$0xf]
    %v6127 = vld [vmem:[%s6113 + $0x34] sm:$0xf]
    %v6128 = vld [vmem:[%s6113 + $0x38] sm:$0xf]
    %v6129 = vld [vmem:[%s6113 + $0x3c] sm:$0xf]
    %v6130 = vld [vmem:[%s6113 + $0x40] sm:$0xf]
    %v6131 = vld [vmem:[%s6113 + $0x44] sm:$0xf]
    %v6132 = vld [vmem:[%s6113 + $0x48] sm:$0xf]
    %v6133 = vld [vmem:[%s6113 + $0x4c] sm:$0xf]
    %v6134 = vld [vmem:[%s6113 + $0x50] sm:$0xf]
    %v6135 = vld [vmem:[%s6113 + $0x54] sm:$0xf]
    %v6136 = vld [vmem:[%s6113 + $0x58] sm:$0xf]
    %v6137 = vld [vmem:[%s6113 + $0x5c] sm:$0xf]
    %v6138 = vld [vmem:[%s6113 + $0x60] sm:$0xf]
    %v6139 = vld [vmem:[%s6113 + $0x64] sm:$0xf]
    %v6140 = vld [vmem:[%s6113 + $0x68] sm:$0xf]
    %v6141 = vld [vmem:[%s6113 + $0x6c] sm:$0xf]
    %v6142 = vld [vmem:[%s6113 + $0x70] sm:$0xf]
    %v6143 = vld [vmem:[%s6113 + $0x74] sm:$0xf]
    %v6144 = vld [vmem:[%s6113 + $0x78] sm:$0xf]
    %v6145 = vld [vmem:[%s6113 + $0x7c] sm:$0xf]
    %v6146 = vld [vmem:[%s6113 + $0x80] sm:$0xf]
    %v6147 = vld [vmem:[%s6113 + $0x84] sm:$0xf]
    %v6148 = vld [vmem:[%s6113 + $0x88] sm:$0xf]
    %v6149 = vld [vmem:[%s6113 + $0x8c] sm:$0xf]
    %v6150 = vld [vmem:[%s6113 + $0x90] sm:$0xf]
    %v6151 = vld [vmem:[%s6113 + $0x94] sm:$0xf]
    %v6152 = vld [vmem:[%s6113 + $0x98] sm:$0xf]
    %v6153 = vld [vmem:[%s6113 + $0x9c] sm:$0xf]
    %v6154 = vld [vmem:[%s6113 + $0xa0] sm:$0xf]
    %v6155 = vld [vmem:[%s6113 + $0xa4] sm:$0xf]
    %v6156 = vld [vmem:[%s6113 + $0xa8] sm:$0xf]
    %v6157 = vld [vmem:[%s6113 + $0xac] sm:$0xf]
    %v6158 = vld [vmem:[%s6113 + $0xb0] sm:$0xf]
    %v6159 = vld [vmem:[%s6113 + $0xb4] sm:$0xf]
    %v6160 = vld [vmem:[%s6113 + $0xb8] sm:$0xf]
    %v6161 = vld [vmem:[%s6113 + $0xbc] sm:$0xf]
    %v6162 = vld [vmem:[%s6113 + $0xc0] sm:$0xf]
    %v6163 = vld [vmem:[%s6113 + $0xc4] sm:$0xf]
    %v6164 = vld [vmem:[%s6113 + $0xc8] sm:$0xf]
    %v6165 = vld [vmem:[%s6113 + $0xcc] sm:$0xf]
    %v6166 = vld [vmem:[%s6113 + $0xd0] sm:$0xf]
    %v6167 = vld [vmem:[%s6113 + $0xd4] sm:$0xf]
    %v6168 = vld [vmem:[%s6113 + $0xd8] sm:$0xf]
    %v6169 = vld [vmem:[%s6113 + $0xdc] sm:$0xf]
    %v6170 = vld [vmem:[%s6113 + $0xe0] sm:$0xf]
    %v6171 = vld [vmem:[%s6113 + $0xe4] sm:$0xf]
    %v6172 = vld [vmem:[%s6113 + $0xe8] sm:$0xf]
    %v6173 = vld [vmem:[%s6113 + $0xec] sm:$0xf]
    %v6174 = vld [vmem:[%s6113 + $0xf0] sm:$0xf]
    %v6175 = vld [vmem:[%s6113 + $0xf4] sm:$0xf]
    %v6176 = vld [vmem:[%s6113 + $0xf8] sm:$0xf]
    %v6177 = vld [vmem:[%s6113 + $0xfc] sm:$0xf]
    %v6178 = vld [vmem:[%s6113 + $0x100] sm:$0xf]
    %v6179 = vld [vmem:[%s6113 + $0x104] sm:$0xf]
    %v6180 = vld [vmem:[%s6113 + $0x108] sm:$0xf]
    %v6181 = vld [vmem:[%s6113 + $0x10c] sm:$0xf]
    %v6182 = vld [vmem:[%s6113 + $0x110] sm:$0xf]
    %v6183 = vld [vmem:[%s6113 + $0x114] sm:$0xf]
    %v6184 = vld [vmem:[%s6113 + $0x118] sm:$0xf]
    %v6185 = vld [vmem:[%s6113 + $0x11c] sm:$0xf]
    %v6186 = vld [vmem:[%s6113 + $0x120] sm:$0xf]
    %v6187 = vld [vmem:[%s6113 + $0x124] sm:$0xf]
    %v6188 = vld [vmem:[%s6113 + $0x128] sm:$0xf]
    %v6189 = vld [vmem:[%s6113 + $0x12c] sm:$0xf]
    %v6190 = vld [vmem:[%s6113 + $0x130] sm:$0xf]
    %v6191 = vld [vmem:[%s6113 + $0x134] sm:$0xf]
    %v6192 = vld [vmem:[%s6113 + $0x138] sm:$0xf]
    %v6193 = vld [vmem:[%s6113 + $0x13c] sm:$0xf]
    %v6194 = vld [vmem:[%s6113 + $0x140] sm:$0xf]
    %v6195 = vld [vmem:[%s6113 + $0x144] sm:$0xf]
    %v6196 = vld [vmem:[%s6113 + $0x148] sm:$0xf]
    %v6197 = vld [vmem:[%s6113 + $0x14c] sm:$0xf]
    %v6198 = vld [vmem:[%s6113 + $0x150] sm:$0xf]
    %v6199 = vld [vmem:[%s6113 + $0x154] sm:$0xf]
    %v6200 = vld [vmem:[%s6113 + $0x158] sm:$0xf]
    %v6201 = vld [vmem:[%s6113 + $0x15c] sm:$0xf]
    %v6202 = vld [vmem:[%s6113 + $0x160] sm:$0xf]
    %v6203 = vld [vmem:[%s6113 + $0x164] sm:$0xf]
    %v6204 = vld [vmem:[%s6113 + $0x168] sm:$0xf]
    %v6205 = vld [vmem:[%s6113 + $0x16c] sm:$0xf]
    %v6206 = vld [vmem:[%s6113 + $0x170] sm:$0xf]
    %v6207 = vld [vmem:[%s6113 + $0x174] sm:$0xf]
    %v6208 = vld [vmem:[%s6113 + $0x178] sm:$0xf]
    %v6209 = vld [vmem:[%s6113 + $0x17c] sm:$0xf]
    %v6210 = vld [vmem:[%s6113 + $0x180] sm:$0xf]
    %v6211 = vld [vmem:[%s6113 + $0x184] sm:$0xf]
    %v6212 = vld [vmem:[%s6113 + $0x188] sm:$0xf]
    %v6213 = vld [vmem:[%s6113 + $0x18c] sm:$0xf]
    %v6214 = vld [vmem:[%s6113 + $0x190] sm:$0xf]
    %v6215 = vld [vmem:[%s6113 + $0x194] sm:$0xf]
    %v6216 = vld [vmem:[%s6113 + $0x198] sm:$0xf]
    %v6217 = vld [vmem:[%s6113 + $0x19c] sm:$0xf]
    %v6218 = vld [vmem:[%s6113 + $0x1a0] sm:$0xf]
    %v6219 = vld [vmem:[%s6113 + $0x1a4] sm:$0xf]
    %v6220 = vld [vmem:[%s6113 + $0x1a8] sm:$0xf]
    %v6221 = vld [vmem:[%s6113 + $0x1ac] sm:$0xf]
    %v6222 = vld [vmem:[%s6113 + $0x1b0] sm:$0xf]
    %v6223 = vld [vmem:[%s6113 + $0x1b4] sm:$0xf]
    %v6224 = vld [vmem:[%s6113 + $0x1b8] sm:$0xf]
    %v6225 = vld [vmem:[%s6113 + $0x1bc] sm:$0xf]
    %v6226 = vld [vmem:[%s6113 + $0x1c0] sm:$0xf]
    %v6227 = vld [vmem:[%s6113 + $0x1c4] sm:$0xf]
    %v6228 = vld [vmem:[%s6113 + $0x1c8] sm:$0xf]
    %v6229 = vld [vmem:[%s6113 + $0x1cc] sm:$0xf]
    %v6230 = vld [vmem:[%s6113 + $0x1d0] sm:$0xf]
    %v6231 = vld [vmem:[%s6113 + $0x1d4] sm:$0xf]
    %v6232 = vld [vmem:[%s6113 + $0x1d8] sm:$0xf]
    %v6233 = vld [vmem:[%s6113 + $0x1dc] sm:$0xf]
    %v6234 = vld [vmem:[%s6113 + $0x1e0] sm:$0xf]
    %v6235 = vld [vmem:[%s6113 + $0x1e4] sm:$0xf]
    %v6236 = vld [vmem:[%s6113 + $0x1e8] sm:$0xf]
    %v6237 = vld [vmem:[%s6113 + $0x1ec] sm:$0xf]
    %v6238 = vld [vmem:[%s6113 + $0x1f0] sm:$0xf]
    %v6239 = vld [vmem:[%s6113 + $0x1f4] sm:$0xf]
    %v6240 = vld [vmem:[%s6113 + $0x1f8] sm:$0xf]
    %v6241 = vld [vmem:[%s6113 + $0x1fc] sm:$0xf]
    %v6242 = vld [vmem:[%s6113 + $0x200] sm:$0xf]
    %v6243 = vld [vmem:[%s6113 + $0x204] sm:$0xf]
    %v6244 = vld [vmem:[%s6113 + $0x208] sm:$0xf]
    %v6245 = vld [vmem:[%s6113 + $0x20c] sm:$0xf]
    %v6246 = vld [vmem:[%s6113 + $0x210] sm:$0xf]
    %v6247 = vld [vmem:[%s6113 + $0x214] sm:$0xf]
    %v6248 = vld [vmem:[%s6113 + $0x218] sm:$0xf]
    %v6249 = vld [vmem:[%s6113 + $0x21c] sm:$0xf]
    %v6250 = vld [vmem:[%s6113 + $0x220] sm:$0xf]
    %v6251 = vld [vmem:[%s6113 + $0x224] sm:$0xf]
    %v6252 = vld [vmem:[%s6113 + $0x228] sm:$0xf]
    %v6253 = vld [vmem:[%s6113 + $0x22c] sm:$0xf]
    %v6254 = vld [vmem:[%s6113 + $0x230] sm:$0xf]
    %v6255 = vld [vmem:[%s6113 + $0x234] sm:$0xf]
    %v6256 = vld [vmem:[%s6113 + $0x238] sm:$0xf]
    %v6257 = vld [vmem:[%s6113 + $0x23c] sm:$0xf]
    %v6258 = vld [vmem:[%s6113 + $0x240] sm:$0xf]
    %v6259 = vld [vmem:[%s6113 + $0x244] sm:$0xf]
    %v6260 = vld [vmem:[%s6113 + $0x248] sm:$0xf]
    %v6261 = vld [vmem:[%s6113 + $0x24c] sm:$0xf]
    %v6262 = vld [vmem:[%s6113 + $0x250] sm:$0xf]
    %v6263 = vld [vmem:[%s6113 + $0x254] sm:$0xf]
    %v6264 = vld [vmem:[%s6113 + $0x258] sm:$0xf]
    %v6265 = vld [vmem:[%s6113 + $0x25c] sm:$0xf]
    %v6266 = vld [vmem:[%s6113 + $0x260] sm:$0xf]
    %v6267 = vld [vmem:[%s6113 + $0x264] sm:$0xf]
    %v6268 = vld [vmem:[%s6113 + $0x268] sm:$0xf]
    %v6269 = vld [vmem:[%s6113 + $0x26c] sm:$0xf]
    %v6270 = vld [vmem:[%s6113 + $0x270] sm:$0xf]
    %v6271 = vld [vmem:[%s6113 + $0x274] sm:$0xf]
    %v6272 = vld [vmem:[%s6113 + $0x278] sm:$0xf]
    %v6273 = vld [vmem:[%s6113 + $0x27c] sm:$0xf]
    %v6274 = vld [vmem:[%s6113 + $0x280] sm:$0xf]
    %v6275 = vld [vmem:[%s6113 + $0x284] sm:$0xf]
    %v6276 = vld [vmem:[%s6113 + $0x288] sm:$0xf]
    %v6277 = vld [vmem:[%s6113 + $0x28c] sm:$0xf]
    %v6278 = vld [vmem:[%s6113 + $0x290] sm:$0xf]
    %v6279 = vld [vmem:[%s6113 + $0x294] sm:$0xf]
    %v6280 = vld [vmem:[%s6113 + $0x298] sm:$0xf]
    %v6281 = vld [vmem:[%s6113 + $0x29c] sm:$0xf]
    %v6282 = vld [vmem:[%s6113 + $0x2a0] sm:$0xf]
    %v6283 = vld [vmem:[%s6113 + $0x2a4] sm:$0xf]
    %v6284 = vld [vmem:[%s6113 + $0x2a8] sm:$0xf]
    %v6285 = vld [vmem:[%s6113 + $0x2ac] sm:$0xf]
    %v6286 = vld [vmem:[%s6113 + $0x2b0] sm:$0xf]
    %v6287 = vld [vmem:[%s6113 + $0x2b4] sm:$0xf]
    %v6288 = vld [vmem:[%s6113 + $0x2b8] sm:$0xf]
    %v6289 = vld [vmem:[%s6113 + $0x2bc] sm:$0xf]
    %v6290 = vld [vmem:[%s6113 + $0x2c0] sm:$0xf]
    %v6291 = vld [vmem:[%s6113 + $0x2c4] sm:$0xf]
    %v6292 = vld [vmem:[%s6113 + $0x2c8] sm:$0xf]
    %v6293 = vld [vmem:[%s6113 + $0x2cc] sm:$0xf]
    %v6294 = vld [vmem:[%s6113 + $0x2d0] sm:$0xf]
    %v6295 = vld [vmem:[%s6113 + $0x2d4] sm:$0xf]
    %v6296 = vld [vmem:[%s6113 + $0x2d8] sm:$0xf]
    %v6297 = vld [vmem:[%s6113 + $0x2dc] sm:$0xf]
    %v6298 = vld [vmem:[%s6113 + $0x2e0] sm:$0xf]
    %v6299 = vld [vmem:[%s6113 + $0x2e4] sm:$0xf]
    %v6300 = vld [vmem:[%s6113 + $0x2e8] sm:$0xf]
    %v6301 = vld [vmem:[%s6113 + $0x2ec] sm:$0xf]
    %v6302 = vld [vmem:[%s6113 + $0x2f0] sm:$0xf]
    %v6303 = vld [vmem:[%s6113 + $0x2f4] sm:$0xf]
    %v6304 = vld [vmem:[%s6113 + $0x2f8] sm:$0xf]
    %v6305 = vld [vmem:[%s6113 + $0x2fc] sm:$0xf]
    %v6306 = vld [vmem:[%s6113 + $0x300] sm:$0xf]
    %v6307 = vld [vmem:[%s6113 + $0x304] sm:$0xf]
    %v6308 = vld [vmem:[%s6113 + $0x308] sm:$0xf]
    %v6309 = vld [vmem:[%s6113 + $0x30c] sm:$0xf]
    %v6310 = vld [vmem:[%s6113 + $0x310] sm:$0xf]
    %v6311 = vld [vmem:[%s6113 + $0x314] sm:$0xf]
    %v6312 = vld [vmem:[%s6113 + $0x318] sm:$0xf]
    %v6313 = vld [vmem:[%s6113 + $0x31c] sm:$0xf]
    %v6314 = vld [vmem:[%s6113 + $0x320] sm:$0xf]
    %v6315 = vld [vmem:[%s6113 + $0x324] sm:$0xf]
    %v6316 = vld [vmem:[%s6113 + $0x328] sm:$0xf]
    %v6317 = vld [vmem:[%s6113 + $0x32c] sm:$0xf]
    %v6318 = vld [vmem:[%s6113 + $0x330] sm:$0xf]
    %v6319 = vld [vmem:[%s6113 + $0x334] sm:$0xf]
    %v6320 = vld [vmem:[%s6113 + $0x338] sm:$0xf]
    %v6321 = vld [vmem:[%s6113 + $0x33c] sm:$0xf]
    %v6322 = vld [vmem:[%s6113 + $0x340] sm:$0xf]
    %v6323 = vld [vmem:[%s6113 + $0x344] sm:$0xf]
    %v6324 = vld [vmem:[%s6113 + $0x348] sm:$0xf]
    %v6325 = vld [vmem:[%s6113 + $0x34c] sm:$0xf]
    %v6326 = vld [vmem:[%s6113 + $0x350] sm:$0xf]
    %v6327 = vld [vmem:[%s6113 + $0x354] sm:$0xf]
    %v6328 = vld [vmem:[%s6113 + $0x358] sm:$0xf]
    %v6329 = vld [vmem:[%s6113 + $0x35c] sm:$0xf]
    %v6330 = vld [vmem:[%s6113 + $0x360] sm:$0xf]
    %v6331 = vld [vmem:[%s6113 + $0x364] sm:$0xf]
    %v6332 = vld [vmem:[%s6113 + $0x368] sm:$0xf]
    %v6333 = vld [vmem:[%s6113 + $0x36c] sm:$0xf]
    %v6334 = vld [vmem:[%s6113 + $0x370] sm:$0xf]
    %v6335 = vld [vmem:[%s6113 + $0x374] sm:$0xf]
    %v6336 = vld [vmem:[%s6113 + $0x378] sm:$0xf]
    %v6337 = vld [vmem:[%s6113 + $0x37c] sm:$0xf]
    %v6338 = vld [vmem:[%s6113 + $0x380] sm:$0xf]
    %v6339 = vld [vmem:[%s6113 + $0x384] sm:$0xf]
    %v6340 = vld [vmem:[%s6113 + $0x388] sm:$0xf]
    %v6341 = vld [vmem:[%s6113 + $0x38c] sm:$0xf]
    %v6342 = vld [vmem:[%s6113 + $0x390] sm:$0xf]
    %v6343 = vld [vmem:[%s6113 + $0x394] sm:$0xf]
    %v6344 = vld [vmem:[%s6113 + $0x398] sm:$0xf]
    %v6345 = vld [vmem:[%s6113 + $0x39c] sm:$0xf]
    %v6346 = vld [vmem:[%s6113 + $0x3a0] sm:$0xf]
    %v6347 = vld [vmem:[%s6113 + $0x3a4] sm:$0xf]
    %v6348 = vld [vmem:[%s6113 + $0x3a8] sm:$0xf]
    %v6349 = vld [vmem:[%s6113 + $0x3ac] sm:$0xf]
    %v6350 = vld [vmem:[%s6113 + $0x3b0] sm:$0xf]
    %v6351 = vld [vmem:[%s6113 + $0x3b4] sm:$0xf]
    %v6352 = vld [vmem:[%s6113 + $0x3b8] sm:$0xf]
    %v6353 = vld [vmem:[%s6113 + $0x3bc] sm:$0xf]
    %v6354 = vld [vmem:[%s6113 + $0x3c0] sm:$0xf]
    %v6355 = vld [vmem:[%s6113 + $0x3c4] sm:$0xf]
    %v6356 = vld [vmem:[%s6113 + $0x3c8] sm:$0xf]
    %v6357 = vld [vmem:[%s6113 + $0x3cc] sm:$0xf]
    %v6358 = vld [vmem:[%s6113 + $0x3d0] sm:$0xf]
    %v6359 = vld [vmem:[%s6113 + $0x3d4] sm:$0xf]
    %v6360 = vld [vmem:[%s6113 + $0x3d8] sm:$0xf]
    %v6361 = vld [vmem:[%s6113 + $0x3dc] sm:$0xf]
    %v6362 = vld [vmem:[%s6113 + $0x3e0] sm:$0xf]
    %v6363 = vld [vmem:[%s6113 + $0x3e4] sm:$0xf]
    %v6364 = vld [vmem:[%s6113 + $0x3e8] sm:$0xf]
    %v6365 = vld [vmem:[%s6113 + $0x3ec] sm:$0xf]
    %v6366 = vld [vmem:[%s6113 + $0x3f0] sm:$0xf]
    %v6367 = vld [vmem:[%s6113 + $0x3f4] sm:$0xf]
    %v6368 = vld [vmem:[%s6113 + $0x3f8] sm:$0xf]
    %v6369 = vld [vmem:[%s6113 + $0x3fc] sm:$0xf]
    %s6370 = scalar_lea.vmem %s10, 1
    %v6371 = vld [vmem:[%s6370] sm:$0x1]
    %v6373 = vlaneseq
    %v6374 = vshrl.u32 %v6373, 7
    %v6375 = vsub.s32 0, %v6374
    %v6376 = vrot.slane %v6371, %v6375
    %v6634 = vunpack.c.l.b16 %v6114
    %v6635 = vunpack.c.l.b16 %v6115
    %v6636 = vunpack.c.l.b16 %v6116
    %v6637 = vunpack.c.l.b16 %v6117
    %v6638 = vunpack.c.l.b16 %v6118
    %v6639 = vunpack.c.l.b16 %v6119
    %v6640 = vunpack.c.l.b16 %v6120
    %v6641 = vunpack.c.l.b16 %v6121
    %v6642 = vunpack.c.l.b16 %v6122
    %v6643 = vunpack.c.l.b16 %v6123
    %v6644 = vunpack.c.l.b16 %v6124
    %v6645 = vunpack.c.l.b16 %v6125
    %v6646 = vunpack.c.l.b16 %v6126
    %v6647 = vunpack.c.l.b16 %v6127
    %v6648 = vunpack.c.l.b16 %v6128
    %v6649 = vunpack.c.l.b16 %v6129
    %v6650 = vunpack.c.l.b16 %v6130
    %v6651 = vunpack.c.l.b16 %v6131
    %v6652 = vunpack.c.l.b16 %v6132
    %v6653 = vunpack.c.l.b16 %v6133
    %v6654 = vunpack.c.l.b16 %v6134
    %v6655 = vunpack.c.l.b16 %v6135
    %v6656 = vunpack.c.l.b16 %v6136
    %v6657 = vunpack.c.l.b16 %v6137
    %v6658 = vunpack.c.l.b16 %v6138
    %v6659 = vunpack.c.l.b16 %v6139
    %v6660 = vunpack.c.l.b16 %v6140
    %v6661 = vunpack.c.l.b16 %v6141
    %v6662 = vunpack.c.l.b16 %v6142
    %v6663 = vunpack.c.l.b16 %v6143
    %v6664 = vunpack.c.l.b16 %v6144
    %v6665 = vunpack.c.l.b16 %v6145
    %v6666 = vunpack.c.l.b16 %v6146
    %v6667 = vunpack.c.l.b16 %v6147
    %v6668 = vunpack.c.l.b16 %v6148
    %v6669 = vunpack.c.l.b16 %v6149
    %v6670 = vunpack.c.l.b16 %v6150
    %v6671 = vunpack.c.l.b16 %v6151
    %v6672 = vunpack.c.l.b16 %v6152
    %v6673 = vunpack.c.l.b16 %v6153
    %v6674 = vunpack.c.l.b16 %v6154
    %v6675 = vunpack.c.l.b16 %v6155
    %v6676 = vunpack.c.l.b16 %v6156
    %v6677 = vunpack.c.l.b16 %v6157
    %v6678 = vunpack.c.l.b16 %v6158
    %v6679 = vunpack.c.l.b16 %v6159
    %v6680 = vunpack.c.l.b16 %v6160
    %v6681 = vunpack.c.l.b16 %v6161
    %v6682 = vunpack.c.l.b16 %v6162
    %v6683 = vunpack.c.l.b16 %v6163
    %v6684 = vunpack.c.l.b16 %v6164
    %v6685 = vunpack.c.l.b16 %v6165
    %v6686 = vunpack.c.l.b16 %v6166
    %v6687 = vunpack.c.l.b16 %v6167
    %v6688 = vunpack.c.l.b16 %v6168
    %v6689 = vunpack.c.l.b16 %v6169
    %v6690 = vunpack.c.l.b16 %v6170
    %v6691 = vunpack.c.l.b16 %v6171
    %v6692 = vunpack.c.l.b16 %v6172
    %v6693 = vunpack.c.l.b16 %v6173
    %v6694 = vunpack.c.l.b16 %v6174
    %v6695 = vunpack.c.l.b16 %v6175
    %v6696 = vunpack.c.l.b16 %v6176
    %v6697 = vunpack.c.l.b16 %v6177
    %v6698 = vunpack.c.l.b16 %v6178
    %v6699 = vunpack.c.l.b16 %v6179
    %v6700 = vunpack.c.l.b16 %v6180
    %v6701 = vunpack.c.l.b16 %v6181
    %v6702 = vunpack.c.l.b16 %v6182
    %v6703 = vunpack.c.l.b16 %v6183
    %v6704 = vunpack.c.l.b16 %v6184
    %v6705 = vunpack.c.l.b16 %v6185
    %v6706 = vunpack.c.l.b16 %v6186
    %v6707 = vunpack.c.l.b16 %v6187
    %v6708 = vunpack.c.l.b16 %v6188
    %v6709 = vunpack.c.l.b16 %v6189
    %v6710 = vunpack.c.l.b16 %v6190
    %v6711 = vunpack.c.l.b16 %v6191
    %v6712 = vunpack.c.l.b16 %v6192
    %v6713 = vunpack.c.l.b16 %v6193
    %v6714 = vunpack.c.l.b16 %v6194
    %v6715 = vunpack.c.l.b16 %v6195
    %v6716 = vunpack.c.l.b16 %v6196
    %v6717 = vunpack.c.l.b16 %v6197
    %v6718 = vunpack.c.l.b16 %v6198
    %v6719 = vunpack.c.l.b16 %v6199
    %v6720 = vunpack.c.l.b16 %v6200
    %v6721 = vunpack.c.l.b16 %v6201
    %v6722 = vunpack.c.l.b16 %v6202
    %v6723 = vunpack.c.l.b16 %v6203
    %v6724 = vunpack.c.l.b16 %v6204
    %v6725 = vunpack.c.l.b16 %v6205
    %v6726 = vunpack.c.l.b16 %v6206
    %v6727 = vunpack.c.l.b16 %v6207
    %v6728 = vunpack.c.l.b16 %v6208
    %v6729 = vunpack.c.l.b16 %v6209
    %v6730 = vunpack.c.l.b16 %v6210
    %v6731 = vunpack.c.l.b16 %v6211
    %v6732 = vunpack.c.l.b16 %v6212
    %v6733 = vunpack.c.l.b16 %v6213
    %v6734 = vunpack.c.l.b16 %v6214
    %v6735 = vunpack.c.l.b16 %v6215
    %v6736 = vunpack.c.l.b16 %v6216
    %v6737 = vunpack.c.l.b16 %v6217
    %v6738 = vunpack.c.l.b16 %v6218
    %v6739 = vunpack.c.l.b16 %v6219
    %v6740 = vunpack.c.l.b16 %v6220
    %v6741 = vunpack.c.l.b16 %v6221
    %v6742 = vunpack.c.l.b16 %v6222
    %v6743 = vunpack.c.l.b16 %v6223
    %v6744 = vunpack.c.l.b16 %v6224
    %v6745 = vunpack.c.l.b16 %v6225
    %v6746 = vunpack.c.l.b16 %v6226
    %v6747 = vunpack.c.l.b16 %v6227
    %v6748 = vunpack.c.l.b16 %v6228
    %v6749 = vunpack.c.l.b16 %v6229
    %v6750 = vunpack.c.l.b16 %v6230
    %v6751 = vunpack.c.l.b16 %v6231
    %v6752 = vunpack.c.l.b16 %v6232
    %v6753 = vunpack.c.l.b16 %v6233
    %v6754 = vunpack.c.l.b16 %v6234
    %v6755 = vunpack.c.l.b16 %v6235
    %v6756 = vunpack.c.l.b16 %v6236
    %v6757 = vunpack.c.l.b16 %v6237
    %v6758 = vunpack.c.l.b16 %v6238
    %v6759 = vunpack.c.l.b16 %v6239
    %v6760 = vunpack.c.l.b16 %v6240
    %v6761 = vunpack.c.l.b16 %v6241
    %v6762 = vunpack.c.l.b16 %v6242
    %v6763 = vunpack.c.l.b16 %v6243
    %v6764 = vunpack.c.l.b16 %v6244
    %v6765 = vunpack.c.l.b16 %v6245
    %v6766 = vunpack.c.l.b16 %v6246
    %v6767 = vunpack.c.l.b16 %v6247
    %v6768 = vunpack.c.l.b16 %v6248
    %v6769 = vunpack.c.l.b16 %v6249
    %v6770 = vunpack.c.l.b16 %v6250
    %v6771 = vunpack.c.l.b16 %v6251
    %v6772 = vunpack.c.l.b16 %v6252
    %v6773 = vunpack.c.l.b16 %v6253
    %v6774 = vunpack.c.l.b16 %v6254
    %v6775 = vunpack.c.l.b16 %v6255
    %v6776 = vunpack.c.l.b16 %v6256
    %v6777 = vunpack.c.l.b16 %v6257
    %v6778 = vunpack.c.l.b16 %v6258
    %v6779 = vunpack.c.l.b16 %v6259
    %v6780 = vunpack.c.l.b16 %v6260
    %v6781 = vunpack.c.l.b16 %v6261
    %v6782 = vunpack.c.l.b16 %v6262
    %v6783 = vunpack.c.l.b16 %v6263
    %v6784 = vunpack.c.l.b16 %v6264
    %v6785 = vunpack.c.l.b16 %v6265
    %v6786 = vunpack.c.l.b16 %v6266
    %v6787 = vunpack.c.l.b16 %v6267
    %v6788 = vunpack.c.l.b16 %v6268
    %v6789 = vunpack.c.l.b16 %v6269
    %v6790 = vunpack.c.l.b16 %v6270
    %v6791 = vunpack.c.l.b16 %v6271
    %v6792 = vunpack.c.l.b16 %v6272
    %v6793 = vunpack.c.l.b16 %v6273
    %v6794 = vunpack.c.l.b16 %v6274
    %v6795 = vunpack.c.l.b16 %v6275
    %v6796 = vunpack.c.l.b16 %v6276
    %v6797 = vunpack.c.l.b16 %v6277
    %v6798 = vunpack.c.l.b16 %v6278
    %v6799 = vunpack.c.l.b16 %v6279
    %v6800 = vunpack.c.l.b16 %v6280
    %v6801 = vunpack.c.l.b16 %v6281
    %v6802 = vunpack.c.l.b16 %v6282
    %v6803 = vunpack.c.l.b16 %v6283
    %v6804 = vunpack.c.l.b16 %v6284
    %v6805 = vunpack.c.l.b16 %v6285
    %v6806 = vunpack.c.l.b16 %v6286
    %v6807 = vunpack.c.l.b16 %v6287
    %v6808 = vunpack.c.l.b16 %v6288
    %v6809 = vunpack.c.l.b16 %v6289
    %v6810 = vunpack.c.l.b16 %v6290
    %v6811 = vunpack.c.l.b16 %v6291
    %v6812 = vunpack.c.l.b16 %v6292
    %v6813 = vunpack.c.l.b16 %v6293
    %v6814 = vunpack.c.l.b16 %v6294
    %v6815 = vunpack.c.l.b16 %v6295
    %v6816 = vunpack.c.l.b16 %v6296
    %v6817 = vunpack.c.l.b16 %v6297
    %v6818 = vunpack.c.l.b16 %v6298
    %v6819 = vunpack.c.l.b16 %v6299
    %v6820 = vunpack.c.l.b16 %v6300
    %v6821 = vunpack.c.l.b16 %v6301
    %v6822 = vunpack.c.l.b16 %v6302
    %v6823 = vunpack.c.l.b16 %v6303
    %v6824 = vunpack.c.l.b16 %v6304
    %v6825 = vunpack.c.l.b16 %v6305
    %v6826 = vunpack.c.l.b16 %v6306
    %v6827 = vunpack.c.l.b16 %v6307
    %v6828 = vunpack.c.l.b16 %v6308
    %v6829 = vunpack.c.l.b16 %v6309
    %v6830 = vunpack.c.l.b16 %v6310
    %v6831 = vunpack.c.l.b16 %v6311
    %v6832 = vunpack.c.l.b16 %v6312
    %v6833 = vunpack.c.l.b16 %v6313
    %v6834 = vunpack.c.l.b16 %v6314
    %v6835 = vunpack.c.l.b16 %v6315
    %v6836 = vunpack.c.l.b16 %v6316
    %v6837 = vunpack.c.l.b16 %v6317
    %v6838 = vunpack.c.l.b16 %v6318
    %v6839 = vunpack.c.l.b16 %v6319
    %v6840 = vunpack.c.l.b16 %v6320
    %v6841 = vunpack.c.l.b16 %v6321
    %v6842 = vunpack.c.l.b16 %v6322
    %v6843 = vunpack.c.l.b16 %v6323
    %v6844 = vunpack.c.l.b16 %v6324
    %v6845 = vunpack.c.l.b16 %v6325
    %v6846 = vunpack.c.l.b16 %v6326
    %v6847 = vunpack.c.l.b16 %v6327
    %v6848 = vunpack.c.l.b16 %v6328
    %v6849 = vunpack.c.l.b16 %v6329
    %v6850 = vunpack.c.l.b16 %v6330
    %v6851 = vunpack.c.l.b16 %v6331
    %v6852 = vunpack.c.l.b16 %v6332
    %v6853 = vunpack.c.l.b16 %v6333
    %v6854 = vunpack.c.l.b16 %v6334
    %v6855 = vunpack.c.l.b16 %v6335
    %v6856 = vunpack.c.l.b16 %v6336
    %v6857 = vunpack.c.l.b16 %v6337
    %v6858 = vunpack.c.l.b16 %v6338
    %v6859 = vunpack.c.l.b16 %v6339
    %v6860 = vunpack.c.l.b16 %v6340
    %v6861 = vunpack.c.l.b16 %v6341
    %v6862 = vunpack.c.l.b16 %v6342
    %v6863 = vunpack.c.l.b16 %v6343
    %v6864 = vunpack.c.l.b16 %v6344
    %v6865 = vunpack.c.l.b16 %v6345
    %v6866 = vunpack.c.l.b16 %v6346
    %v6867 = vunpack.c.l.b16 %v6347
    %v6868 = vunpack.c.l.b16 %v6348
    %v6869 = vunpack.c.l.b16 %v6349
    %v6870 = vunpack.c.l.b16 %v6350
    %v6871 = vunpack.c.l.b16 %v6351
    %v6872 = vunpack.c.l.b16 %v6352
    %v6873 = vunpack.c.l.b16 %v6353
    %v6874 = vunpack.c.l.b16 %v6354
    %v6875 = vunpack.c.l.b16 %v6355
    %v6876 = vunpack.c.l.b16 %v6356
    %v6877 = vunpack.c.l.b16 %v6357
    %v6878 = vunpack.c.l.b16 %v6358
    %v6879 = vunpack.c.l.b16 %v6359
    %v6880 = vunpack.c.l.b16 %v6360
    %v6881 = vunpack.c.l.b16 %v6361
    %v6882 = vunpack.c.l.b16 %v6362
    %v6883 = vunpack.c.l.b16 %v6363
    %v6884 = vunpack.c.l.b16 %v6364
    %v6885 = vunpack.c.l.b16 %v6365
    %v6886 = vunpack.c.l.b16 %v6366
    %v6887 = vunpack.c.l.b16 %v6367
    %v6888 = vunpack.c.l.b16 %v6368
    %v6889 = vunpack.c.l.b16 %v6369
    %v6890 = vpack.c.b16 %v6635, %v6634
    %v6891 = vpack.c.b16 %v6637, %v6636
    %v6892 = vpack.c.b16 %v6639, %v6638
    %v6893 = vpack.c.b16 %v6641, %v6640
    %v6894 = vpack.c.b16 %v6643, %v6642
    %v6895 = vpack.c.b16 %v6645, %v6644
    %v6896 = vpack.c.b16 %v6647, %v6646
    %v6897 = vpack.c.b16 %v6649, %v6648
    %v6898 = vpack.c.b16 %v6651, %v6650
    %v6899 = vpack.c.b16 %v6653, %v6652
    %v6900 = vpack.c.b16 %v6655, %v6654
    %v6901 = vpack.c.b16 %v6657, %v6656
    %v6902 = vpack.c.b16 %v6659, %v6658
    %v6903 = vpack.c.b16 %v6661, %v6660
    %v6904 = vpack.c.b16 %v6663, %v6662
    %v6905 = vpack.c.b16 %v6665, %v6664
    %v6906 = vpack.c.b16 %v6667, %v6666
    %v6907 = vpack.c.b16 %v6669, %v6668
    %v6908 = vpack.c.b16 %v6671, %v6670
    %v6909 = vpack.c.b16 %v6673, %v6672
    %v6910 = vpack.c.b16 %v6675, %v6674
    %v6911 = vpack.c.b16 %v6677, %v6676
    %v6912 = vpack.c.b16 %v6679, %v6678
    %v6913 = vpack.c.b16 %v6681, %v6680
    %v6914 = vpack.c.b16 %v6683, %v6682
    %v6915 = vpack.c.b16 %v6685, %v6684
    %v6916 = vpack.c.b16 %v6687, %v6686
    %v6917 = vpack.c.b16 %v6689, %v6688
    %v6918 = vpack.c.b16 %v6691, %v6690
    %v6919 = vpack.c.b16 %v6693, %v6692
    %v6920 = vpack.c.b16 %v6695, %v6694
    %v6921 = vpack.c.b16 %v6697, %v6696
    %v6922 = vpack.c.b16 %v6699, %v6698
    %v6923 = vpack.c.b16 %v6701, %v6700
    %v6924 = vpack.c.b16 %v6703, %v6702
    %v6925 = vpack.c.b16 %v6705, %v6704
    %v6926 = vpack.c.b16 %v6707, %v6706
    %v6927 = vpack.c.b16 %v6709, %v6708
    %v6928 = vpack.c.b16 %v6711, %v6710
    %v6929 = vpack.c.b16 %v6713, %v6712
    %v6930 = vpack.c.b16 %v6715, %v6714
    %v6931 = vpack.c.b16 %v6717, %v6716
    %v6932 = vpack.c.b16 %v6719, %v6718
    %v6933 = vpack.c.b16 %v6721, %v6720
    %v6934 = vpack.c.b16 %v6723, %v6722
    %v6935 = vpack.c.b16 %v6725, %v6724
    %v6936 = vpack.c.b16 %v6727, %v6726
    %v6937 = vpack.c.b16 %v6729, %v6728
    %v6938 = vpack.c.b16 %v6731, %v6730
    %v6939 = vpack.c.b16 %v6733, %v6732
    %v6940 = vpack.c.b16 %v6735, %v6734
    %v6941 = vpack.c.b16 %v6737, %v6736
    %v6942 = vpack.c.b16 %v6739, %v6738
    %v6943 = vpack.c.b16 %v6741, %v6740
    %v6944 = vpack.c.b16 %v6743, %v6742
    %v6945 = vpack.c.b16 %v6745, %v6744
    %v6946 = vpack.c.b16 %v6747, %v6746
    %v6947 = vpack.c.b16 %v6749, %v6748
    %v6948 = vpack.c.b16 %v6751, %v6750
    %v6949 = vpack.c.b16 %v6753, %v6752
    %v6950 = vpack.c.b16 %v6755, %v6754
    %v6951 = vpack.c.b16 %v6757, %v6756
    %v6952 = vpack.c.b16 %v6759, %v6758
    %v6953 = vpack.c.b16 %v6761, %v6760
    %v6954 = vpack.c.b16 %v6763, %v6762
    %v6955 = vpack.c.b16 %v6765, %v6764
    %v6956 = vpack.c.b16 %v6767, %v6766
    %v6957 = vpack.c.b16 %v6769, %v6768
    %v6958 = vpack.c.b16 %v6771, %v6770
    %v6959 = vpack.c.b16 %v6773, %v6772
    %v6960 = vpack.c.b16 %v6775, %v6774
    %v6961 = vpack.c.b16 %v6777, %v6776
    %v6962 = vpack.c.b16 %v6779, %v6778
    %v6963 = vpack.c.b16 %v6781, %v6780
    %v6964 = vpack.c.b16 %v6783, %v6782
    %v6965 = vpack.c.b16 %v6785, %v6784
    %v6966 = vpack.c.b16 %v6787, %v6786
    %v6967 = vpack.c.b16 %v6789, %v6788
    %v6968 = vpack.c.b16 %v6791, %v6790
    %v6969 = vpack.c.b16 %v6793, %v6792
    %v6970 = vpack.c.b16 %v6795, %v6794
    %v6971 = vpack.c.b16 %v6797, %v6796
    %v6972 = vpack.c.b16 %v6799, %v6798
    %v6973 = vpack.c.b16 %v6801, %v6800
    %v6974 = vpack.c.b16 %v6803, %v6802
    %v6975 = vpack.c.b16 %v6805, %v6804
    %v6976 = vpack.c.b16 %v6807, %v6806
    %v6977 = vpack.c.b16 %v6809, %v6808
    %v6978 = vpack.c.b16 %v6811, %v6810
    %v6979 = vpack.c.b16 %v6813, %v6812
    %v6980 = vpack.c.b16 %v6815, %v6814
    %v6981 = vpack.c.b16 %v6817, %v6816
    %v6982 = vpack.c.b16 %v6819, %v6818
    %v6983 = vpack.c.b16 %v6821, %v6820
    %v6984 = vpack.c.b16 %v6823, %v6822
    %v6985 = vpack.c.b16 %v6825, %v6824
    %v6986 = vpack.c.b16 %v6827, %v6826
    %v6987 = vpack.c.b16 %v6829, %v6828
    %v6988 = vpack.c.b16 %v6831, %v6830
    %v6989 = vpack.c.b16 %v6833, %v6832
    %v6990 = vpack.c.b16 %v6835, %v6834
    %v6991 = vpack.c.b16 %v6837, %v6836
    %v6992 = vpack.c.b16 %v6839, %v6838
    %v6993 = vpack.c.b16 %v6841, %v6840
    %v6994 = vpack.c.b16 %v6843, %v6842
    %v6995 = vpack.c.b16 %v6845, %v6844
    %v6996 = vpack.c.b16 %v6847, %v6846
    %v6997 = vpack.c.b16 %v6849, %v6848
    %v6998 = vpack.c.b16 %v6851, %v6850
    %v6999 = vpack.c.b16 %v6853, %v6852
    %v7000 = vpack.c.b16 %v6855, %v6854
    %v7001 = vpack.c.b16 %v6857, %v6856
    %v7002 = vpack.c.b16 %v6859, %v6858
    %v7003 = vpack.c.b16 %v6861, %v6860
    %v7004 = vpack.c.b16 %v6863, %v6862
    %v7005 = vpack.c.b16 %v6865, %v6864
    %v7006 = vpack.c.b16 %v6867, %v6866
    %v7007 = vpack.c.b16 %v6869, %v6868
    %v7008 = vpack.c.b16 %v6871, %v6870
    %v7009 = vpack.c.b16 %v6873, %v6872
    %v7010 = vpack.c.b16 %v6875, %v6874
    %v7011 = vpack.c.b16 %v6877, %v6876
    %v7012 = vpack.c.b16 %v6879, %v6878
    %v7013 = vpack.c.b16 %v6881, %v6880
    %v7014 = vpack.c.b16 %v6883, %v6882
    %v7015 = vpack.c.b16 %v6885, %v6884
    %v7016 = vpack.c.b16 %v6887, %v6886
    %v7017 = vpack.c.b16 %v6889, %v6888
    %7146 = vmatprep.subr.bf16.mxu0 0
    %7147 = vmatpush1.bf16.msra.mxu0 %v6890
    %7148 = vmatprep.subr.bf16.mxu0 0
    %7149 = vmatpush1.bf16.msra.mxu0 %v6891
    %7150 = vmatprep.subr.bf16.mxu0 0
    %7151 = vmatpush1.bf16.msra.mxu0 %v6892
    %7152 = vmatprep.subr.bf16.mxu0 0
    %7153 = vmatpush1.bf16.msra.mxu0 %v6893
    %7154 = vmatprep.subr.bf16.mxu0 0
    %7155 = vmatpush1.bf16.msra.mxu0 %v6894
    %7156 = vmatprep.subr.bf16.mxu0 0
    %7157 = vmatpush1.bf16.msra.mxu0 %v6895
    %7158 = vmatprep.subr.bf16.mxu0 0
    %7159 = vmatpush1.bf16.msra.mxu0 %v6896
    %7160 = vmatprep.subr.bf16.mxu0 0
    %7161 = vmatpush1.bf16.msra.mxu0 %v6897
    %7162 = vmatprep.subr.bf16.mxu0 0
    %7163 = vmatpush1.bf16.msra.mxu0 %v6898
    %7164 = vmatprep.subr.bf16.mxu0 0
    %7165 = vmatpush1.bf16.msra.mxu0 %v6899
    %7166 = vmatprep.subr.bf16.mxu0 0
    %7167 = vmatpush1.bf16.msra.mxu0 %v6900
    %7168 = vmatprep.subr.bf16.mxu0 0
    %7169 = vmatpush1.bf16.msra.mxu0 %v6901
    %7170 = vmatprep.subr.bf16.mxu0 0
    %7171 = vmatpush1.bf16.msra.mxu0 %v6902
    %7172 = vmatprep.subr.bf16.mxu0 0
    %7173 = vmatpush1.bf16.msra.mxu0 %v6903
    %7174 = vmatprep.subr.bf16.mxu0 0
    %7175 = vmatpush1.bf16.msra.mxu0 %v6904
    %7176 = vmatprep.subr.bf16.mxu0 0
    %7177 = vmatpush1.bf16.msra.mxu0 %v6905
    %7178 = vmatprep.mubr.bf16.mxu0 %v6098
    %7179 = vmatmul.mubr.bf16.gmra.mrb[0].mxu0 %v6097
    %v7180 = vpop.f32.mrb[0].mxu0
    %v7181 = vadd.f32 %v6376, %v7180
    %v7182 = vpop.f32.mrb[0].mxu0
    %v7183 = vpop.f32.mrb[0].mxu0
    %v7184 = vadd.f32 %v6376, %v7183
    %v7185 = vpop.f32.mrb[0].mxu0
    %7186 = vdwg.mxu0
    %7187 = vmatprep.subr.bf16.mxu0 0
    %7188 = vmatpush1.bf16.msra.mxu0 %v6906
    %7189 = vmatprep.subr.bf16.mxu0 0
    %7190 = vmatpush1.bf16.msra.mxu0 %v6907
    %7191 = vmatprep.subr.bf16.mxu0 0
    %7192 = vmatpush1.bf16.msra.mxu0 %v6908
    %7193 = vmatprep.subr.bf16.mxu0 0
    %7194 = vmatpush1.bf16.msra.mxu0 %v6909
    %7195 = vmatprep.subr.bf16.mxu0 0
    %7196 = vmatpush1.bf16.msra.mxu0 %v6910
    %7197 = vmatprep.subr.bf16.mxu0 0
    %7198 = vmatpush1.bf16.msra.mxu0 %v6911
    %7199 = vmatprep.subr.bf16.mxu0 0
    %7200 = vmatpush1.bf16.msra.mxu0 %v6912
    %7201 = vmatprep.subr.bf16.mxu0 0
    %7202 = vmatpush1.bf16.msra.mxu0 %v6913
    %7203 = vmatprep.subr.bf16.mxu0 0
    %7204 = vmatpush1.bf16.msra.mxu0 %v6914
    %7205 = vmatprep.subr.bf16.mxu0 0
    %7206 = vmatpush1.bf16.msra.mxu0 %v6915
    %7207 = vmatprep.subr.bf16.mxu0 0
    %7208 = vmatpush1.bf16.msra.mxu0 %v6916
    %7209 = vmatprep.subr.bf16.mxu0 0
    %7210 = vmatpush1.bf16.msra.mxu0 %v6917
    %7211 = vmatprep.subr.bf16.mxu0 0
    %7212 = vmatpush1.bf16.msra.mxu0 %v6918
    %7213 = vmatprep.subr.bf16.mxu0 0
    %7214 = vmatpush1.bf16.msra.mxu0 %v6919
    %7215 = vmatprep.subr.bf16.mxu0 0
    %7216 = vmatpush1.bf16.msra.mxu0 %v6920
    %7217 = vmatprep.subr.bf16.mxu0 0
    %7218 = vmatpush1.bf16.msra.mxu0 %v6921
    %7219 = vmatprep.mubr.bf16.mxu0 %v6100
    %7220 = vmatmul.mubr.bf16.gmra.mrb[0].mxu0 %v6099
    %v7221 = vpop.f32.mrb[0].mxu0
    %v7222 = vadd.f32 %v7181, %v7221
    %v7223 = vpop.f32.mrb[0].mxu0
    %v7224 = vpop.f32.mrb[0].mxu0
    %v7225 = vadd.f32 %v7184, %v7224
    %v7226 = vpop.f32.mrb[0].mxu0
    %7227 = vdwg.mxu0
    %7228 = vmatprep.subr.bf16.mxu0 0
    %7229 = vmatpush1.bf16.msra.mxu0 %v6922
    %7230 = vmatprep.subr.bf16.mxu0 0
    %7231 = vmatpush1.bf16.msra.mxu0 %v6923
    %7232 = vmatprep.subr.bf16.mxu0 0
    %7233 = vmatpush1.bf16.msra.mxu0 %v6924
    %7234 = vmatprep.subr.bf16.mxu0 0
    %7235 = vmatpush1.bf16.msra.mxu0 %v6925
    %7236 = vmatprep.subr.bf16.mxu0 0
    %7237 = vmatpush1.bf16.msra.mxu0 %v6926
    %7238 = vmatprep.subr.bf16.mxu0 0
    %7239 = vmatpush1.bf16.msra.mxu0 %v6927
    %7240 = vmatprep.subr.bf16.mxu0 0
    %7241 = vmatpush1.bf16.msra.mxu0 %v6928
    %7242 = vmatprep.subr.bf16.mxu0 0
    %7243 = vmatpush1.bf16.msra.mxu0 %v6929
    %7244 = vmatprep.subr.bf16.mxu0 0
    %7245 = vmatpush1.bf16.msra.mxu0 %v6930
    %7246 = vmatprep.subr.bf16.mxu0 0
    %7247 = vmatpush1.bf16.msra.mxu0 %v6931
    %7248 = vmatprep.subr.bf16.mxu0 0
    %7249 = vmatpush1.bf16.msra.mxu0 %v6932
    %7250 = vmatprep.subr.bf16.mxu0 0
    %7251 = vmatpush1.bf16.msra.mxu0 %v6933
    %7252 = vmatprep.subr.bf16.mxu0 0
    %7253 = vmatpush1.bf16.msra.mxu0 %v6934
    %7254 = vmatprep.subr.bf16.mxu0 0
    %7255 = vmatpush1.bf16.msra.mxu0 %v6935
    %7256 = vmatprep.subr.bf16.mxu0 0
    %7257 = vmatpush1.bf16.msra.mxu0 %v6936
    %7258 = vmatprep.subr.bf16.mxu0 0
    %7259 = vmatpush1.bf16.msra.mxu0 %v6937
    %7260 = vmatprep.mubr.bf16.mxu0 %v6102
    %7261 = vmatmul.mubr.bf16.gmra.mrb[0].mxu0 %v6101
    %v7262 = vpop.f32.mrb[0].mxu0
    %v7263 = vadd.f32 %v7222, %v7262
    %v7264 = vpop.f32.mrb[0].mxu0
    %v7265 = vpop.f32.mrb[0].mxu0
    %v7266 = vadd.f32 %v7225, %v7265
    %v7267 = vpop.f32.mrb[0].mxu0
    %7268 = vdwg.mxu0
    %7269 = vmatprep.subr.bf16.mxu0 0
    %7270 = vmatpush1.bf16.msra.mxu0 %v6938
    %7271 = vmatprep.subr.bf16.mxu0 0
    %7272 = vmatpush1.bf16.msra.mxu0 %v6939
    %7273 = vmatprep.subr.bf16.mxu0 0
    %7274 = vmatpush1.bf16.msra.mxu0 %v6940
    %7275 = vmatprep.subr.bf16.mxu0 0
    %7276 = vmatpush1.bf16.msra.mxu0 %v6941
    %7277 = vmatprep.subr.bf16.mxu0 0
    %7278 = vmatpush1.bf16.msra.mxu0 %v6942
    %7279 = vmatprep.subr.bf16.mxu0 0
    %7280 = vmatpush1.bf16.msra.mxu0 %v6943
    %7281 = vmatprep.subr.bf16.mxu0 0
    %7282 = vmatpush1.bf16.msra.mxu0 %v6944
    %7283 = vmatprep.subr.bf16.mxu0 0
    %7284 = vmatpush1.bf16.msra.mxu0 %v6945
    %7285 = vmatprep.subr.bf16.mxu0 0
    %7286 = vmatpush1.bf16.msra.mxu0 %v6946
    %7287 = vmatprep.subr.bf16.mxu0 0
    %7288 = vmatpush1.bf16.msra.mxu0 %v6947
    %7289 = vmatprep.subr.bf16.mxu0 0
    %7290 = vmatpush1.bf16.msra.mxu0 %v6948
    %7291 = vmatprep.subr.bf16.mxu0 0
    %7292 = vmatpush1.bf16.msra.mxu0 %v6949
    %7293 = vmatprep.subr.bf16.mxu0 0
    %7294 = vmatpush1.bf16.msra.mxu0 %v6950
    %7295 = vmatprep.subr.bf16.mxu0 0
    %7296 = vmatpush1.bf16.msra.mxu0 %v6951
    %7297 = vmatprep.subr.bf16.mxu0 0
    %7298 = vmatpush1.bf16.msra.mxu0 %v6952
    %7299 = vmatprep.subr.bf16.mxu0 0
    %7300 = vmatpush1.bf16.msra.mxu0 %v6953
    %7301 = vmatprep.mubr.bf16.mxu0 %v6104
    %7302 = vmatmul.mubr.bf16.gmra.mrb[0].mxu0 %v6103
    %v7303 = vpop.f32.mrb[0].mxu0
    %v7304 = vadd.f32 %v7263, %v7303
    %v7305 = vpop.f32.mrb[0].mxu0
    %v7306 = vpop.f32.mrb[0].mxu0
    %v7307 = vadd.f32 %v7266, %v7306
    %v7308 = vpop.f32.mrb[0].mxu0
    %7309 = vdwg.mxu0
    %7310 = vmatprep.subr.bf16.mxu0 0
    %7311 = vmatpush1.bf16.msra.mxu0 %v6954
    %7312 = vmatprep.subr.bf16.mxu0 0
    %7313 = vmatpush1.bf16.msra.mxu0 %v6955
    %7314 = vmatprep.subr.bf16.mxu0 0
    %7315 = vmatpush1.bf16.msra.mxu0 %v6956
    %7316 = vmatprep.subr.bf16.mxu0 0
    %7317 = vmatpush1.bf16.msra.mxu0 %v6957
    %7318 = vmatprep.subr.bf16.mxu0 0
    %7319 = vmatpush1.bf16.msra.mxu0 %v6958
    %7320 = vmatprep.subr.bf16.mxu0 0
    %7321 = vmatpush1.bf16.msra.mxu0 %v6959
    %7322 = vmatprep.subr.bf16.mxu0 0
    %7323 = vmatpush1.bf16.msra.mxu0 %v6960
    %7324 = vmatprep.subr.bf16.mxu0 0
    %7325 = vmatpush1.bf16.msra.mxu0 %v6961
    %7326 = vmatprep.subr.bf16.mxu0 0
    %7327 = vmatpush1.bf16.msra.mxu0 %v6962
    %7328 = vmatprep.subr.bf16.mxu0 0
    %7329 = vmatpush1.bf16.msra.mxu0 %v6963
    %7330 = vmatprep.subr.bf16.mxu0 0
    %7331 = vmatpush1.bf16.msra.mxu0 %v6964
    %7332 = vmatprep.subr.bf16.mxu0 0
    %7333 = vmatpush1.bf16.msra.mxu0 %v6965
    %7334 = vmatprep.subr.bf16.mxu0 0
    %7335 = vmatpush1.bf16.msra.mxu0 %v6966
    %7336 = vmatprep.subr.bf16.mxu0 0
    %7337 = vmatpush1.bf16.msra.mxu0 %v6967
    %7338 = vmatprep.subr.bf16.mxu0 0
    %7339 = vmatpush1.bf16.msra.mxu0 %v6968
    %7340 = vmatprep.subr.bf16.mxu0 0
    %7341 = vmatpush1.bf16.msra.mxu0 %v6969
    %7342 = vmatprep.mubr.bf16.mxu0 %v6106
    %7343 = vmatmul.mubr.bf16.gmra.mrb[0].mxu0 %v6105
    %v7344 = vpop.f32.mrb[0].mxu0
    %v7345 = vadd.f32 %v7304, %v7344
    %v7346 = vpop.f32.mrb[0].mxu0
    %v7347 = vpop.f32.mrb[0].mxu0
    %v7348 = vadd.f32 %v7307, %v7347
    %v7349 = vpop.f32.mrb[0].mxu0
    %7350 = vdwg.mxu0
    %7351 = vmatprep.subr.bf16.mxu0 0
    %7352 = vmatpush1.bf16.msra.mxu0 %v6970
    %7353 = vmatprep.subr.bf16.mxu0 0
    %7354 = vmatpush1.bf16.msra.mxu0 %v6971
    %7355 = vmatprep.subr.bf16.mxu0 0
    %7356 = vmatpush1.bf16.msra.mxu0 %v6972
    %7357 = vmatprep.subr.bf16.mxu0 0
    %7358 = vmatpush1.bf16.msra.mxu0 %v6973
    %7359 = vmatprep.subr.bf16.mxu0 0
    %7360 = vmatpush1.bf16.msra.mxu0 %v6974
    %7361 = vmatprep.subr.bf16.mxu0 0
    %7362 = vmatpush1.bf16.msra.mxu0 %v6975
    %7363 = vmatprep.subr.bf16.mxu0 0
    %7364 = vmatpush1.bf16.msra.mxu0 %v6976
    %7365 = vmatprep.subr.bf16.mxu0 0
    %7366 = vmatpush1.bf16.msra.mxu0 %v6977
    %7367 = vmatprep.subr.bf16.mxu0 0
    %7368 = vmatpush1.bf16.msra.mxu0 %v6978
    %7369 = vmatprep.subr.bf16.mxu0 0
    %7370 = vmatpush1.bf16.msra.mxu0 %v6979
    %7371 = vmatprep.subr.bf16.mxu0 0
    %7372 = vmatpush1.bf16.msra.mxu0 %v6980
    %7373 = vmatprep.subr.bf16.mxu0 0
    %7374 = vmatpush1.bf16.msra.mxu0 %v6981
    %7375 = vmatprep.subr.bf16.mxu0 0
    %7376 = vmatpush1.bf16.msra.mxu0 %v6982
    %7377 = vmatprep.subr.bf16.mxu0 0
    %7378 = vmatpush1.bf16.msra.mxu0 %v6983
    %7379 = vmatprep.subr.bf16.mxu0 0
    %7380 = vmatpush1.bf16.msra.mxu0 %v6984
    %7381 = vmatprep.subr.bf16.mxu0 0
    %7382 = vmatpush1.bf16.msra.mxu0 %v6985
    %7383 = vmatprep.mubr.bf16.mxu0 %v6108
    %7384 = vmatmul.mubr.bf16.gmra.mrb[0].mxu0 %v6107
    %v7385 = vpop.f32.mrb[0].mxu0
    %v7386 = vadd.f32 %v7345, %v7385
    %v7387 = vpop.f32.mrb[0].mxu0
    %v7388 = vpop.f32.mrb[0].mxu0
    %v7389 = vadd.f32 %v7348, %v7388
    %v7390 = vpop.f32.mrb[0].mxu0
    %7391 = vdwg.mxu0
    %7392 = vmatprep.subr.bf16.mxu0 0
    %7393 = vmatpush1.bf16.msra.mxu0 %v6986
    %7394 = vmatprep.subr.bf16.mxu0 0
    %7395 = vmatpush1.bf16.msra.mxu0 %v6987
    %7396 = vmatprep.subr.bf16.mxu0 0
    %7397 = vmatpush1.bf16.msra.mxu0 %v6988
    %7398 = vmatprep.subr.bf16.mxu0 0
    %7399 = vmatpush1.bf16.msra.mxu0 %v6989
    %7400 = vmatprep.subr.bf16.mxu0 0
    %7401 = vmatpush1.bf16.msra.mxu0 %v6990
    %7402 = vmatprep.subr.bf16.mxu0 0
    %7403 = vmatpush1.bf16.msra.mxu0 %v6991
    %7404 = vmatprep.subr.bf16.mxu0 0
    %7405 = vmatpush1.bf16.msra.mxu0 %v6992
    %7406 = vmatprep.subr.bf16.mxu0 0
    %7407 = vmatpush1.bf16.msra.mxu0 %v6993
    %7408 = vmatprep.subr.bf16.mxu0 0
    %7409 = vmatpush1.bf16.msra.mxu0 %v6994
    %7410 = vmatprep.subr.bf16.mxu0 0
    %7411 = vmatpush1.bf16.msra.mxu0 %v6995
    %7412 = vmatprep.subr.bf16.mxu0 0
    %7413 = vmatpush1.bf16.msra.mxu0 %v6996
    %7414 = vmatprep.subr.bf16.mxu0 0
    %7415 = vmatpush1.bf16.msra.mxu0 %v6997
    %7416 = vmatprep.subr.bf16.mxu0 0
    %7417 = vmatpush1.bf16.msra.mxu0 %v6998
    %7418 = vmatprep.subr.bf16.mxu0 0
    %7419 = vmatpush1.bf16.msra.mxu0 %v6999
    %7420 = vmatprep.subr.bf16.mxu0 0
    %7421 = vmatpush1.bf16.msra.mxu0 %v7000
    %7422 = vmatprep.subr.bf16.mxu0 0
    %7423 = vmatpush1.bf16.msra.mxu0 %v7001
    %7424 = vmatprep.mubr.bf16.mxu0 %v6110
    %7425 = vmatmul.mubr.bf16.gmra.mrb[0].mxu0 %v6109
    %v7426 = vpop.f32.mrb[0].mxu0
    %v7427 = vadd.f32 %v7386, %v7426
    %v7428 = vpop.f32.mrb[0].mxu0
    %v7429 = vpop.f32.mrb[0].mxu0
    %v7430 = vadd.f32 %v7389, %v7429
    %v7431 = vpop.f32.mrb[0].mxu0
    %7432 = vdwg.mxu0
    %7433 = vmatprep.subr.bf16.mxu0 0
    %7434 = vmatpush1.bf16.msra.mxu0 %v7002
    %7435 = vmatprep.subr.bf16.mxu0 0
    %7436 = vmatpush1.bf16.msra.mxu0 %v7003
    %7437 = vmatprep.subr.bf16.mxu0 0
    %7438 = vmatpush1.bf16.msra.mxu0 %v7004
    %7439 = vmatprep.subr.bf16.mxu0 0
    %7440 = vmatpush1.bf16.msra.mxu0 %v7005
    %7441 = vmatprep.subr.bf16.mxu0 0
    %7442 = vmatpush1.bf16.msra.mxu0 %v7006
    %7443 = vmatprep.subr.bf16.mxu0 0
    %7444 = vmatpush1.bf16.msra.mxu0 %v7007
    %7445 = vmatprep.subr.bf16.mxu0 0
    %7446 = vmatpush1.bf16.msra.mxu0 %v7008
    %7447 = vmatprep.subr.bf16.mxu0 0
    %7448 = vmatpush1.bf16.msra.mxu0 %v7009
    %7449 = vmatprep.subr.bf16.mxu0 0
    %7450 = vmatpush1.bf16.msra.mxu0 %v7010
    %7451 = vmatprep.subr.bf16.mxu0 0
    %7452 = vmatpush1.bf16.msra.mxu0 %v7011
    %7453 = vmatprep.subr.bf16.mxu0 0
    %7454 = vmatpush1.bf16.msra.mxu0 %v7012
    %7455 = vmatprep.subr.bf16.mxu0 0
    %7456 = vmatpush1.bf16.msra.mxu0 %v7013
    %7457 = vmatprep.subr.bf16.mxu0 0
    %7458 = vmatpush1.bf16.msra.mxu0 %v7014
    %7459 = vmatprep.subr.bf16.mxu0 0
    %7460 = vmatpush1.bf16.msra.mxu0 %v7015
    %7461 = vmatprep.subr.bf16.mxu0 0
    %7462 = vmatpush1.bf16.msra.mxu0 %v7016
    %7463 = vmatprep.subr.bf16.mxu0 0
    %7464 = vmatpush1.bf16.msra.mxu0 %v7017
    %7465 = vmatprep.mubr.bf16.mxu0 %v6112
    %7466 = vmatmul.mubr.bf16.gmra.mrb[0].mxu0 %v6111
    %v7467 = vpop.f32.mrb[0].mxu0
    %v7468 = vadd.f32 %v7427, %v7467
    %v7469 = vpop.f32.mrb[0].mxu0
    %v7470 = vpop.f32.mrb[0].mxu0
    %v7471 = vadd.f32 %v7430, %v7470
    %v7472 = vpop.f32.mrb[0].mxu0
    %7473 = vdwg.mxu0
    %v7474 = vadd.f32 %v5437, %v7468
    %v7475 = vadd.f32 %v5438, %v7471
    %s7476 = scalar_lea.vmem %s11, 1
    %v7477 = vld [vmem:[%s7476] sm:$0x1]
    %s7478 = scalar_lea.vmem %s12, 1
    %v7479 = vld [vmem:[%s7478] sm:$0x1]
    %v7480 = vsel %vm78, %v7474, 0.0
    %7481 = vadd.xlane.f32.xlu0 %v7480
    %v7482 = vpop.xlane.xlu0 %7481
    %v7483 = vsel %vm78, %v7475, 0.0
    %7484 = vadd.xlane.f32.xlu0 %v7483
    %v7485 = vpop.xlane.xlu0 %7484
    %v7486 = vmul.f32 %v7482, %v1670
    %v7487 = vmul.f32 %v7485, %v1670
    %v7488 = vsub.f32 %v7474, %v7486
    %v7489 = vsub.f32 %v7475, %v7487
    %v7490 = vmul.f32 %v7488, %v7488
    %v7491 = vmul.f32 %v7489, %v7489
    %v7492 = vsel %vm78, %v7490, 0.0
    %7493 = vadd.xlane.f32.xlu0 %v7492
    %v7494 = vpop.xlane.xlu0 %7493
    %v7495 = vsel %vm78, %v7491, 0.0
    %7496 = vadd.xlane.f32.xlu0 %v7495
    %v7497 = vpop.xlane.xlu0 %7496
    %v7498 = vmul.f32 %v7494, %v1670
    %v7499 = vmul.f32 %v7497, %v1670
    %v7500 = vadd.f32 %v7498, 1e-05
    %v7501 = vadd.f32 %v7499, 1e-05
    %v7502 = vrsqrt.pop %v7500
    %v7503 = vrsqrt.pop %v7501
    %v7504 = vmul.f32 %v7488, %v7502
    %v7505 = vmul.f32 %v7489, %v7503
    %v7507 = vlaneseq
    %v7508 = vshrl.u32 %v7507, 7
    %v7509 = vsub.s32 0, %v7508
    %v7510 = vrot.slane %v7477, %v7509
    %v7512 = vmul.f32 %v7504, %v7510
    %v7513 = vmul.f32 %v7505, %v7510
    %v7515 = vlaneseq
    %v7516 = vshrl.u32 %v7515, 7
    %v7517 = vsub.s32 0, %v7516
    %v7518 = vrot.slane %v7479, %v7517
    %v7520 = vadd.f32 %v7512, %v7518
    %v7521 = vadd.f32 %v7513, %v7518
    %v7522 = vsel %vm78, %v7520, 0.0
    %v7523 = vrot.slane %v7522, 4
    %v7524 = vadd.f32 %v7522, %v7523
    %v7525 = vrot.slane %v7524, 2
    %v7526 = vadd.f32 %v7524, %v7525
    %v7527 = vrot.slane %v7526, 1
    %v7528 = vadd.f32 %v7526, %v7527
    %v7529 = vsel %vm78, %v7521, 0.0
    %v7530 = vrot.slane %v7529, 4
    %v7531 = vadd.f32 %v7529, %v7530
    %v7532 = vrot.slane %v7531, 2
    %v7533 = vadd.f32 %v7531, %v7532
    %v7534 = vrot.slane %v7533, 1
    %v7535 = vadd.f32 %v7533, %v7534
    %v7536 = vrcp.pop 8.0
    %v7537 = vmul.f32 %v7528, %v7536
    %v7538 = vmul.f32 %v7535, %v7536
    %v7539 = vpack.c.bf16 %v7537, %v7537
    %v7540 = vpack.c.bf16 %v7538, %v7538
    %v7541 = vld [vmem:[%s13] sm:$0xf]
    %v7542 = vld [vmem:[%s13 + $0x4] sm:$0xf]
    %v7543 = vld [vmem:[%s13 + $0x8] sm:$0xf]
    %v7544 = vld [vmem:[%s13 + $0xc] sm:$0xf]
    %v7545 = vld [vmem:[%s14] sm:$0x1]
    %v7547 = vlaneseq
    %v7548 = vshrl.u32 %v7547, 7
    %v7549 = vsub.s32 0, %v7548
    %v7550 = vrot.slane %v7545, %v7549
    %v7554 = vunpack.c.l.b16 %v7539
    %v7555 = vunpack.c.l.b16 %v7540
    %vm7556 = vcmask 1041409
    %v7557 = vsel %vm7556, %v7555, %v7554
    %v7558 = vpack.c.b16 %v7557, %v7557
    %v7563 = vunpack.c.l.b16 %v7541
    %v7564 = vunpack.c.l.b16 %v7542
    %v7565 = vunpack.c.l.b16 %v7543
    %v7566 = vunpack.c.l.b16 %v7544
    %v7567 = vpack.c.b16 %v7564, %v7563
    %v7568 = vpack.c.b16 %v7566, %v7565
    %v7572 = vsel %vm78, %v7558, 0
    %7574 = vmatprep.subr.bf16.mxu0 0
    %7575 = vmatpush1.bf16.msra.mxu0 %v7567
    %7576 = vmatprep.subr.bf16.mxu0 0
    %7577 = vmatpush1.bf16.msra.mxu0 %v7568
    %7578 = vmatprep.subr.bf16.mxu0 0
    %7579 = vmatpush1.bf16.msra.mxu0 0
    %7580 = vmatprep.subr.bf16.mxu0 0
    %7581 = vmatpush1.bf16.msra.mxu0 0
    %7582 = vmatprep.subr.bf16.mxu0 0
    %7583 = vmatpush1.bf16.msra.mxu0 0
    %7584 = vmatprep.subr.bf16.mxu0 0
    %7585 = vmatpush1.bf16.msra.mxu0 0
    %7586 = vmatprep.subr.bf16.mxu0 0
    %7587 = vmatpush1.bf16.msra.mxu0 0
    %7588 = vmatprep.subr.bf16.mxu0 0
    %7589 = vmatpush1.bf16.msra.mxu0 0
    %7590 = vmatprep.subr.bf16.mxu0 0
    %7591 = vmatpush1.bf16.msra.mxu0 0
    %7592 = vmatprep.subr.bf16.mxu0 0
    %7593 = vmatpush1.bf16.msra.mxu0 0
    %7594 = vmatprep.subr.bf16.mxu0 0
    %7595 = vmatpush1.bf16.msra.mxu0 0
    %7596 = vmatprep.subr.bf16.mxu0 0
    %7597 = vmatpush1.bf16.msra.mxu0 0
    %7598 = vmatprep.subr.bf16.mxu0 0
    %7599 = vmatpush1.bf16.msra.mxu0 0
    %7600 = vmatprep.subr.bf16.mxu0 0
    %7601 = vmatpush1.bf16.msra.mxu0 0
    %7602 = vmatprep.subr.bf16.mxu0 0
    %7603 = vmatpush1.bf16.msra.mxu0 0
    %7604 = vmatprep.subr.bf16.mxu0 0
    %7605 = vmatpush1.bf16.msra.mxu0 0
    %7606 = vmatprep.mubr.bf16.mxu0 0
    %7607 = vmatmul.mubr.bf16.gmra.mrb[0].mxu0 %v7572
    %v7608 = vpop.f32.mrb[0].mxu0
    %v7609 = vadd.f32 %v7550, %v7608
    %v7610 = vpop.f32.mrb[0].mxu0
    %v7611 = vpop.f32.mrb[0].mxu0
    %v7612 = vpop.f32.mrb[0].mxu0
    %7613 = vdwg.mxu0
    %vm7614 = vcmask 33792
    %7615 = vst.msk [vmem:[#allocation2] sm:$0x3] %vm7614, %v7609
    // Predicated region
    $region62: #{tpu_custom_call.1} parent=1 // pred_check
      _
    $region63: #{tpu_custom_call.1} parent=1 // pred_check_branch
      %7617 = sbr.rel (0) target = $region65
    $region64: #{tpu_custom_call.1} parent=1 // pred_region
      %s7619 = ssub.s32 32, 32
      %7620 = vsyncadd [#allocation3], %s7619
      %s7622 = sshll.u32 [#allocation2], 4
      %s7623 = int_to_ptr.vmem [resolvable:$true] %s7622
      %7625 = dma.vmem_to_hbm [thread:$0]  %s7623, 32, %s15, [#allocation3]
    $region65: #{tpu_custom_call.1} parent=1 // pred_fallthru
      _
    // Predicated region
    $region66: #{tpu_custom_call.1} parent=1 // pred_check
      _
    $region67: #{tpu_custom_call.1} parent=1 // pred_check_branch
      %7627 = sbr.rel (0) target = $region69
    $region68: #{tpu_custom_call.1} parent=1 // pred_region
      %7628 = dma.done [#allocation3], 32
    $region69: #{tpu_custom_call.1} parent=1 // pred_fallthru
      _
    %7629 = vsyncpa [#allocation3], 1

</llo_original>
